<compile_context>
chip_gen: v5e
topology: v5e:2x2
jax: 0.10.0
libtpu: 0.0.40
codegen_flags: <defaults>
</compile_context>

<pallas_src>
import math

import jax
import jax.numpy as jnp
import numpy as np
from jax.experimental import pallas as pl
from jax.experimental.pallas import tpu as pltpu

EPS = 1e-5


# ----------------------------------------------------------------------------
# small helpers
# ----------------------------------------------------------------------------
def _round_up(v, m):
    return (v + m - 1) // m * m


def _pick_tile(n, target, quantum):
    """Largest multiple of `quantum` that divides n and is <= max(target, quantum)."""
    t = min(max(target, quantum), n)
    t -= t % quantum
    t = max(t, quantum)
    while n % t:
        t -= quantum
    return t


def _row_quantum(dtype):
    """Sublane quantum for the packed dtype tiling: f32->8, bf16->16, int8/fp8->32."""
    return max(8, 32 // jnp.dtype(dtype).itemsize)


_VMEM_LIMIT = None


def _vmem_limit():
    """Generation-aware scoped-VMEM limit (~3/4 of physical, capped at 100 MiB)."""
    global _VMEM_LIMIT
    if _VMEM_LIMIT is None:
        try:
            cap = int(pltpu.get_tpu_info().vmem_capacity_bytes)
        except Exception:
            cap = 64 * 1024 * 1024  # conservative fallback (v7x-sized)
        _VMEM_LIMIT = max(32 * 1024 * 1024, min(cap * 3 // 4, 100 * 1024 * 1024))
    return _VMEM_LIMIT


# ----------------------------------------------------------------------------
# Pallas kernels
# ----------------------------------------------------------------------------
def _edge_mlp_kernel(ea_ref, w1t_ref, b1_ref, w2t_ref, b2_ref, out_ref):
    # Fused edge MLPs of all 4 conv layers, lane-dense layout (E on lanes):
    #   h = relu(W1cat^T @ edge_attr^T + b1)   -> [4*H, TE]
    #   z = sigmoid(blockdiag(W2)^T @ h + b2)  -> [4,   TE]
    h = jnp.dot(w1t_ref[...], ea_ref[...], preferred_element_type=jnp.float32)
    h = jnp.maximum(h + b1_ref[...], 0.0)
    z = jnp.dot(w2t_ref[...], h, preferred_element_type=jnp.float32) + b2_ref[...]
    out_ref[...] = jax.nn.sigmoid(z)


def _prep_affine_kernel(x_ref, scale_ref, shift_ref, w_ref, dinv_ref, out_ref):
    # Row-tiled prep with the previous normalization folded in as an affine:
    #   out = dinv * ((x * scale + shift) @ W)           (stored in the A dtype)
    # Padded rows: x is 0 so (x*scale+shift)=shift, but dinv==0 kills the row.
    xn = x_ref[...] * scale_ref[...] + shift_ref[...]
    lin = jnp.dot(xn, w_ref[...], preferred_element_type=jnp.float32)
    out_ref[...] = (dinv_ref[...] * lin).astype(out_ref.dtype)


def _pdn_conv_kernel(a_ref, slin_src_ref, slin_dst_ref, dinv_ref, bias_ref,
                     h_ref, s1_ref, s2_ref, acc_ref):
    # grid = (dst tiles [parallel], src tiles [arbitrary, reduction]).
    # acc accumulates A_tile @ slin over src tiles (MXU, f32 accumulation); at the
    # last src tile we fold in the self-loop + degree normalization + bias + relu
    # and emit the h tile plus per-tile GraphNorm partial sums.
    k = pl.program_id(1)

    @pl.when(k == 0)
    def _():
        acc_ref[...] = jnp.zeros_like(acc_ref)

    acc_ref[...] += jnp.dot(a_ref[...], slin_src_ref[...],
                            preferred_element_type=jnp.float32)

    @pl.when(k == pl.num_programs(1) - 1)
    def _():
        dinv = dinv_ref[...]                                   # (TM, 1)
        h = dinv * (acc_ref[...] + slin_dst_ref[...].astype(jnp.float32))
        h = jnp.maximum(h + bias_ref[...], 0.0)
        h = jnp.where(dinv > 0.0, h, 0.0)                      # zero padded rows
        h_ref[...] = h
        s1_ref[...] = jnp.sum(h, axis=0, keepdims=True).reshape(1, 1, -1)
        s2_ref[...] = jnp.sum(h * h, axis=0, keepdims=True).reshape(1, 1, -1)


def _affine_kernel(h_ref, scale_ref, shift_ref, out_ref):
    # Final GraphNorm (normalization folded into a precomputed affine).
    out_ref[...] = h_ref[...] * scale_ref[...] + shift_ref[...]


# ----------------------------------------------------------------------------
# Pallas wrappers
# ----------------------------------------------------------------------------
def edge_weights_all(edge_attr, layers, *, te=512):
    """Fused edge MLP for all layers -> [num_layers, E] (lane-dense)."""
    E, ec = edge_attr.shape
    H = layers[0]["W1"].shape[1]
    L = len(layers)

    w1t = jnp.concatenate([l["W1"] for l in layers], axis=1).T          # (L*H, ec)
    b1 = jnp.concatenate([l["b1"] for l in layers], axis=1).T           # (L*H, 1)
    b2 = jnp.concatenate([l["b2"] for l in layers], axis=1).T           # (L, 1)
    w2t = jnp.zeros((L, L * H), jnp.float32)                            # block-diag^T
    for l, layer in enumerate(layers):
        w2t = w2t.at[l, l * H:(l + 1) * H].set(layer["W2"][:, 0])

    e_pad = _round_up(E, 128)
    ea_t = jnp.zeros((ec, e_pad), jnp.float32).at[:, :E].set(edge_attr.T)
    TE = _pick_tile(e_pad, te, 128)

    out = pl.pallas_call(
        _edge_mlp_kernel,
        out_shape=jax.ShapeDtypeStruct((L, e_pad), jnp.float32),
        grid_spec=pltpu.PrefetchScalarGridSpec(
            num_scalar_prefetch=0,
            grid=(e_pad // TE,),
            in_specs=[
                pl.BlockSpec((ec, TE), lambda e: (0, e)),
                pl.BlockSpec((L * H, ec), lambda e: (0, 0)),
                pl.BlockSpec((L * H, 1), lambda e: (0, 0)),
                pl.BlockSpec((L, L * H), lambda e: (0, 0)),
                pl.BlockSpec((L, 1), lambda e: (0, 0)),
            ],
            out_specs=pl.BlockSpec((L, TE), lambda e: (0, e)),
        ),
        compiler_params=pltpu.CompilerParams(
            dimension_semantics=("parallel",),
            vmem_limit_bytes=_vmem_limit(),
        ),
    )(ea_t, w1t, b1, w2t, b2)
    return out[:, :E]


def build_adjacency(edge_index, edge_w, n, n_pad, a_dtype):
    """Raw (unnormalized) dense adjacency A[dst,src] built *directly in the
    compute dtype* (no f32 build + astype pass) and dinv = (deg+1)^-1/2.

    Degrees are accumulated in f32 (exact); duplicate (dst,src) edges are summed
    in the narrow A dtype (documented, within tolerance).  Normalization and
    self-loops are applied inside the conv kernel; only the irregular scatter
    (no clean Pallas equivalent) stays in plain XLA.
    """
    src, dst = edge_index[0], edge_index[1]
    a = jnp.zeros((n_pad, n_pad), a_dtype).at[dst, src].add(edge_w.astype(a_dtype))
    valid = (jnp.arange(n_pad) < n).astype(jnp.float32)
    deg = jnp.zeros((n_pad,), jnp.float32).at[dst].add(edge_w) + valid   # +1: self loop
    dinv = jnp.where(deg > 0.0, jax.lax.rsqrt(deg), 0.0)[:, None]
    return a, dinv


def prep_affine(x, scale, shift, w, dinv, *, out_dtype=jnp.bfloat16, tn=1024):
    """Row-tiled  slin = dinv * ((x*scale + shift) @ W)  emitted in the A dtype."""
    n_pad, cin = x.shape
    cout = w.shape[1]
    q = _row_quantum(out_dtype)
    tn_ = _pick_tile(n_pad, min(tn, max(n_pad // 2, q)), q)   # keep >=2 row tiles
    return pl.pallas_call(
        _prep_affine_kernel,
        out_shape=jax.ShapeDtypeStruct((n_pad, cout), out_dtype),
        grid_spec=pltpu.PrefetchScalarGridSpec(
            num_scalar_prefetch=0,
            grid=(n_pad // tn_,),
            in_specs=[
                pl.BlockSpec((tn_, cin), lambda i: (i, 0)),
                pl.BlockSpec((1, cin), lambda i: (0, 0)),
                pl.BlockSpec((1, cin), lambda i: (0, 0)),
                pl.BlockSpec((cin, cout), lambda i: (0, 0)),
                pl.BlockSpec((tn_, 1), lambda i: (i, 0)),
            ],
            out_specs=pl.BlockSpec((tn_, cout), lambda i: (i, 0)),
        ),
        compiler_params=pltpu.CompilerParams(
            dimension_semantics=("parallel",),
            vmem_limit_bytes=_vmem_limit(),
        ),
    )(x, scale, shift, w, dinv)


def pdn_conv(a, slin, dinv, bias, *, tm=1024, tk=2048):
    """Tiled  relu(dinv*(A @ slin + slin) + bias)  + GraphNorm partial sums.

    A and slin arrive already in the narrow MXU dtype (single streams, no casts
    here).  dst axis is 'parallel' (>=2 tiles so both v7x TCs are fed), src axis
    is the reduction ('arbitrary', last).
    """
    n_pad, c = slin.shape
    a_dtype = a.dtype
    q = _row_quantum(a_dtype)
    tm_ = _pick_tile(n_pad, min(tm, max(n_pad // 2, q)), q)   # gm >= 2 for megacore
    tk_ = _pick_tile(n_pad, tk, 128)
    gm, gk = n_pad // tm_, n_pad // tk_
    itemsize = jnp.dtype(a_dtype).itemsize

    h, s1, s2 = pl.pallas_call(
        _pdn_conv_kernel,
        out_shape=(
            jax.ShapeDtypeStruct((n_pad, c), jnp.float32),
            jax.ShapeDtypeStruct((gm, 1, c), jnp.float32),
            jax.ShapeDtypeStruct((gm, 1, c), jnp.float32),
        ),
        grid_spec=pltpu.PrefetchScalarGridSpec(
            num_scalar_prefetch=0,
            grid=(gm, gk),
            in_specs=[
                pl.BlockSpec((tm_, tk_), lambda i, k: (i, k)),    # A tile (narrow dtype)
                pl.BlockSpec((tk_, c), lambda i, k: (k, 0)),      # slin, src side
                pl.BlockSpec((tm_, c), lambda i, k: (i, 0)),      # slin, dst side (self-loop)
                pl.BlockSpec((tm_, 1), lambda i, k: (i, 0)),      # dinv, dst side
                pl.BlockSpec((1, c), lambda i, k: (0, 0)),        # bias
            ],
            out_specs=[
                pl.BlockSpec((tm_, c), lambda i, k: (i, 0)),      # h (resident over k)
                pl.BlockSpec((1, 1, c), lambda i, k: (i, 0, 0)),  # per-tile sum(h)
                pl.BlockSpec((1, 1, c), lambda i, k: (i, 0, 0)),  # per-tile sum(h^2)
            ],
            scratch_shapes=[pltpu.VMEM((tm_, c), jnp.float32)],
        ),
        compiler_params=pltpu.CompilerParams(
            dimension_semantics=("parallel", "arbitrary"),
            vmem_limit_bytes=_vmem_limit(),
        ),
        cost_estimate=pl.CostEstimate(
            flops=2 * n_pad * n_pad * c,
            transcendentals=0,
            bytes_accessed=n_pad * n_pad * itemsize
                           + (gm + 1) * n_pad * c * itemsize
                           + n_pad * c * 4 + n_pad * 4 + 2 * gm * c * 4,
        ),
    )(a, slin, slin, dinv, bias)
    return h, s1, s2


def norm_affine_from_stats(s1, s2, n, gw, gb, ms):
    """Finalize GraphNorm (BatchNorm when ms==1) from per-tile partial sums and
    fold it into a (1,c) affine:  norm(h) = h*scale + shift.   (Cheap; in XLA.)"""
    c = s1.shape[-1]
    inv_n = 1.0 / n
    mean = jnp.sum(s1.reshape(-1, c), axis=0, keepdims=True) * inv_n
    ex2 = jnp.sum(s2.reshape(-1, c), axis=0, keepdims=True) * inv_n
    # var = E[(h - mean*ms)^2]; clamp guards fp cancellation of E[h^2] - (...)*mean^2.
    var = jnp.maximum(ex2 - (2.0 * ms - ms * ms) * mean * mean, 0.0)
    inv_std = jax.lax.rsqrt(var + EPS)
    scale = gw * inv_std
    shift = gb - gw * ms * mean * inv_std
    return scale, shift


def affine_out(h, scale, shift, *, tn=1024):
    """Standalone (last-layer) normalization: row-tiled h*scale + shift."""
    n_pad, c = h.shape
    tn_ = _pick_tile(n_pad, min(tn, max(n_pad // 2, 8)), 8)
    return pl.pallas_call(
        _affine_kernel,
        out_shape=jax.ShapeDtypeStruct((n_pad, c), jnp.float32),
        grid_spec=pltpu.PrefetchScalarGridSpec(
            num_scalar_prefetch=0,
            grid=(n_pad // tn_,),
            in_specs=[
                pl.BlockSpec((tn_, c), lambda i: (i, 0)),
                pl.BlockSpec((1, c), lambda i: (0, 0)),
                pl.BlockSpec((1, c), lambda i: (0, 0)),
            ],
            out_specs=pl.BlockSpec((tn_, c), lambda i: (i, 0)),
        ),
        compiler_params=pltpu.CompilerParams(
            dimension_semantics=("parallel",),
            vmem_limit_bytes=_vmem_limit(),
        ),
    )(h, scale, shift)


# ----------------------------------------------------------------------------
# Model: parameters + forward
# ----------------------------------------------------------------------------
def make_params(key, in_c, out_c, edge_c, hidden_c):
    diff = in_c - out_c
    c1 = in_c - math.floor(1 * diff / 4)
    c2 = in_c - math.floor(2 * diff / 4)
    c3 = in_c - math.floor(3 * diff / 4)
    dims = [(in_c, c1), (c1, c2), (c2, c3), (c3, out_c)]

    keys = jax.random.split(key, 4 * 3 + 1)
    params = {"pre_norm": (jnp.ones((1, in_c), jnp.float32),
                           jnp.zeros((1, in_c), jnp.float32))}
    layers = []
    kidx = 0
    for ci, co in dims:
        W = jax.random.normal(keys[kidx], (ci, co), jnp.float32) / np.sqrt(ci); kidx += 1
        bias = jnp.zeros((1, co), jnp.float32)
        W1 = jax.random.normal(keys[kidx], (edge_c, hidden_c), jnp.float32) / np.sqrt(edge_c); kidx += 1
        b1 = jnp.zeros((1, hidden_c), jnp.float32)
        W2 = jax.random.normal(keys[kidx], (hidden_c, 1), jnp.float32) / np.sqrt(hidden_c); kidx += 1
        b2 = jnp.zeros((1, 1), jnp.float32)
        # norm params: layer 0 is BatchNorm (mean_scale pinned to 1); 1..3 GraphNorm.
        gw = jnp.ones((1, co), jnp.float32)
        gb = jnp.zeros((1, co), jnp.float32)
        ms = jnp.ones((1, co), jnp.float32)
        layers.append(dict(W=W, bias=bias, W1=W1, b1=b1, W2=W2, b2=b2,
                           gw=gw, gb=gb, ms=ms))
    params["layers"] = layers
    return params


def pf_anomaly_forward(params, x, edge_index, edge_attr, *,
                       a_dtype=jnp.bfloat16, tm=1024, tk=2048, tn=1024, te=512):
    n, f = x.shape
    n_pad = _round_up(n, 128)
    x_pad = jnp.zeros((n_pad, f), jnp.float32).at[:n].set(x)

    ew_all = edge_weights_all(edge_attr, params["layers"], te=te)   # [4, E]

    # pre_norm (training BatchNorm) stats: exact two-pass in XLA over real nodes,
    # folded as an affine into the first prep kernel.
    bw, bb = params["pre_norm"]
    mean0 = jnp.mean(x, axis=0, keepdims=True)
    var0 = jnp.mean((x - mean0) ** 2, axis=0, keepdims=True)
    inv_std0 = jax.lax.rsqrt(var0 + EPS)
    scale = bw * inv_std0
    shift = bb - bw * mean0 * inv_std0

    h = x_pad
    for li, layer in enumerate(params["layers"]):
        a, dinv = build_adjacency(edge_index, ew_all[li], n, n_pad, a_dtype)
        # previous norm (pre_norm or GraphNorm) fused into the prep pass:
        slin = prep_affine(h, scale, shift, layer["W"], dinv,
                           out_dtype=a_dtype, tn=tn)
        h, s1, s2 = pdn_conv(a, slin, dinv, layer["bias"], tm=tm, tk=tk)
        scale, shift = norm_affine_from_stats(s1, s2, n, layer["gw"],
                                              layer["gb"], layer["ms"])
    out = affine_out(h, scale, shift, tn=tn)        # last layer's norm, standalone
    return out[:n]


# ----------------------------------------------------------------------------
# Pure-JAX reference (original PyG math).  a_dtype lets us mirror the kernel's
# narrow-precision MXU operands / adjacency build when checking the bf16 path.
# ----------------------------------------------------------------------------
def reference_forward(params, x, edge_index, edge_attr, *, a_dtype=jnp.float32):
    n = x.shape[0]

    def gnorm(h, w, b, ms):
        mean = h.mean(0, keepdims=True)
        cen = h - mean * ms
        var = (cen * cen).mean(0, keepdims=True)
        return w * cen / jnp.sqrt(var + EPS) + b

    bw, bb = params["pre_norm"]
    h = gnorm(x, bw, bb, jnp.ones_like(bw))                       # BatchNorm (training)

    src, dst = edge_index[0], edge_index[1]
    for layer in params["layers"]:
        eh = jnp.maximum(edge_attr @ layer["W1"] + layer["b1"], 0.0)
        ew = jax.nn.sigmoid(eh @ layer["W2"] + layer["b2"])[:, 0]
        a = (jnp.zeros((n, n), a_dtype).at[dst, src].add(ew.astype(a_dtype))
             .astype(jnp.float32))
        deg = jnp.zeros((n,), jnp.float32).at[dst].add(ew) + 1.0  # + self-loop weight 1
        dinv = jax.lax.rsqrt(deg)[:, None]
        lin = h @ layer["W"]
        slin = (dinv * lin).astype(a_dtype).astype(jnp.float32)
        # D^-1/2 (A + I) D^-1/2 @ lin  ==  dinv * (A @ (dinv*lin) + dinv*lin)
        h = jnp.maximum(dinv * (a @ slin + slin) + layer["bias"], 0.0)
        h = gnorm(h, layer["gw"], layer["gb"], layer["ms"])
    return h


if __name__ == "__main__":
    # Small deterministic problem: 200-node graph, 384 directed edges.
    # (N pads to 256 -> with tm capped for megacore and tk=128 we get
    #  2 dst tiles x 2 src tiles, exercising tiled accumulation + partial stats.)
    N, E = 200, 384
    in_channels, out_channels, edge_channels, hidden_channels = 32, 8, 8, 16

    key = jax.random.PRNGKey(0)
    k_x, k_ea, k_src, k_off, k_par = jax.random.split(key, 5)

    x = jax.random.normal(k_x, (N, in_channels), jnp.float32)
    edge_attr = jax.random.normal(k_ea, (E, edge_channels), jnp.float32)
    src = jax.random.randint(k_src, (E,), 0, N)
    # guarantee no self-loops so add_remaining_self_loops semantics == "+ I"
    dst = (src + 1 + jax.random.randint(k_off, (E,), 0, N - 1)) % N
    edge_index = jnp.stack([src, dst], axis=0).astype(jnp.int32)

    params = make_params(k_par, in_channels, out_channels, edge_channels,
                         hidden_channels)

    fwd_bf16 = jax.jit(lambda p, xx, ei, ea: pf_anomaly_forward(
        p, xx, ei, ea, a_dtype=jnp.bfloat16, tm=128, tk=128, tn=128, te=128))
    fwd_f32 = jax.jit(lambda p, xx, ei, ea: pf_anomaly_forward(
        p, xx, ei, ea, a_dtype=jnp.float32, tm=128, tk=128, tn=128, te=128))

    # Full-precision path vs plain f32 reference: checks the module semantics.
    out_f32 = jax.block_until_ready(fwd_f32(params, x, edge_index, edge_attr))
    assert out_f32.shape == (N, out_channels)
    ref_f32 = jax.block_until_ready(
        reference_forward(params, x, edge_index, edge_attr, a_dtype=jnp.float32))
    np.testing.assert_allclose(np.asarray(out_f32), np.asarray(ref_f32),
                               rtol=5e-2, atol=5e-2)

    # Performance (bf16-A) path vs a dtype-matched reference: checks the kernels.
    out_bf16 = jax.block_until_ready(fwd_bf16(params, x, edge_index, edge_attr))
    assert out_bf16.shape == (N, out_channels)
    ref_bf16 = jax.block_until_ready(
        reference_forward(params, x, edge_index, edge_attr, a_dtype=jnp.bfloat16))
    np.testing.assert_allclose(np.asarray(out_bf16), np.asarray(ref_bf16),
                               rtol=5e-2, atol=5e-2)

    print("KERNEL_OK")
</pallas_src>

<mosaic_0001>
module attributes {stable_mosaic.version = 11 : i64} {
  func.func @_edge_mlp_kernel(%arg0: i32, %arg1: memref<8x128xf32, #tpu.memory_space<vmem>>, %arg2: memref<64x8xf32, #tpu.memory_space<vmem>>, %arg3: memref<64x1xf32, #tpu.memory_space<vmem>>, %arg4: memref<4x64xf32, #tpu.memory_space<vmem>>, %arg5: memref<4x1xf32, #tpu.memory_space<vmem>>, %arg6: memref<4x128xf32, #tpu.memory_space<vmem>>) attributes {dimension_semantics = [#tpu.dimension_semantics<parallel>], iteration_bounds = array<i64: 3>, scalar_prefetch = 0 : i64, scratch_operands = 0 : i64, tpu.core_type = #tpu.core_type<tc>, window_params = [{transform_indices = @transform_0, window_bounds = array<i64: 8, 128>}, {pipeline_mode = #tpu.pipeline_mode<synchronous>, transform_indices = @transform_1, window_bounds = array<i64: 64, 8>}, {pipeline_mode = #tpu.pipeline_mode<synchronous>, transform_indices = @transform_2, window_bounds = array<i64: 64, 1>}, {pipeline_mode = #tpu.pipeline_mode<synchronous>, transform_indices = @transform_3, window_bounds = array<i64: 4, 64>}, {pipeline_mode = #tpu.pipeline_mode<synchronous>, transform_indices = @transform_4, window_bounds = array<i64: 4, 1>}, {transform_indices = @transform_5, window_bounds = array<i64: 4, 128>}]} {
    %c0 = arith.constant 0 : index
    %c0_0 = arith.constant 0 : index
    %0 = vector.load %arg2[%c0, %c0_0] : memref<64x8xf32, #tpu.memory_space<vmem>>, vector<64x8xf32>
    %c0_1 = arith.constant 0 : index
    %c0_2 = arith.constant 0 : index
    %1 = vector.load %arg1[%c0_1, %c0_2] : memref<8x128xf32, #tpu.memory_space<vmem>>, vector<8x128xf32>
    %cst = arith.constant dense<0.000000e+00> : vector<64x128xf32>
    %2 = tpu.matmul %0, %1, %cst {dimension_numbers = #tpu.dot_dimension_numbers<[1], [0], [0], [1], [0, 0, 1, 1], [], []>} : vector<64x8xf32>, vector<8x128xf32>, vector<64x128xf32> -> vector<64x128xf32>
    %c0_3 = arith.constant 0 : index
    %c0_4 = arith.constant 0 : index
    %3 = vector.load %arg3[%c0_3, %c0_4] : memref<64x1xf32, #tpu.memory_space<vmem>>, vector<64x1xf32>
    %4 = vector.broadcast %3 : vector<64x1xf32> to vector<64x128xf32>
    %5 = arith.addf %2, %4 : vector<64x128xf32>
    %cst_5 = arith.constant 0.000000e+00 : f32
    %6 = vector.broadcast %cst_5 : f32 to vector<64x128xf32>
    %7 = arith.maximumf %5, %6 : vector<64x128xf32>
    %c0_6 = arith.constant 0 : index
    %c0_7 = arith.constant 0 : index
    %8 = vector.load %arg4[%c0_6, %c0_7] : memref<4x64xf32, #tpu.memory_space<vmem>>, vector<4x64xf32>
    %cst_8 = arith.constant dense<0.000000e+00> : vector<4x128xf32>
    %9 = tpu.matmul %8, %7, %cst_8 {dimension_numbers = #tpu.dot_dimension_numbers<[1], [0], [0], [1], [0, 0, 1, 1], [], []>} : vector<4x64xf32>, vector<64x128xf32>, vector<4x128xf32> -> vector<4x128xf32>
    %c0_9 = arith.constant 0 : index
    %c0_10 = arith.constant 0 : index
    %10 = vector.load %arg5[%c0_9, %c0_10] : memref<4x1xf32, #tpu.memory_space<vmem>>, vector<4x1xf32>
    %11 = vector.broadcast %10 : vector<4x1xf32> to vector<4x128xf32>
    %12 = arith.addf %9, %11 : vector<4x128xf32>
    %13 = arith.negf %12 : vector<4x128xf32>
    %14 = math.exp %13 : vector<4x128xf32>
    %cst_11 = arith.constant 1.000000e+00 : f32
    %15 = vector.broadcast %cst_11 : f32 to vector<4x128xf32>
    %16 = arith.addf %15, %14 : vector<4x128xf32>
    %17 = arith.divf %15, %16 : vector<4x128xf32>
    %c0_12 = arith.constant 0 : index
    %c0_13 = arith.constant 0 : index
    %18 = vector.load %arg6[%c0_12, %c0_13] : memref<4x128xf32, #tpu.memory_space<vmem>>, vector<4x128xf32>
    tpu.vector_store %arg6[%c0_12, %c0_13], %17 {strides = array<i32>} : memref<4x128xf32, #tpu.memory_space<vmem>>, vector<4x128xf32>,
    return
  }
  func.func @transform_0(%arg0: i32) -> (i32, i32) {
    %c0_i32 = arith.constant 0 : i32
    %c0_i32_0 = arith.constant 0 : i32
    return %c0_i32, %arg0 : i32, i32
  }
  func.func @transform_1(%arg0: i32) -> (i32, i32) {
    %c0_i32 = arith.constant 0 : i32
    %c0_i32_0 = arith.constant 0 : i32
    %c0_i32_1 = arith.constant 0 : i32
    return %c0_i32, %c0_i32_0 : i32, i32
  }
  func.func @transform_2(%arg0: i32) -> (i32, i32) {
    %c0_i32 = arith.constant 0 : i32
    %c0_i32_0 = arith.constant 0 : i32
    %c0_i32_1 = arith.constant 0 : i32
    return %c0_i32, %c0_i32_0 : i32, i32
  }
  func.func @transform_3(%arg0: i32) -> (i32, i32) {
    %c0_i32 = arith.constant 0 : i32
    %c0_i32_0 = arith.constant 0 : i32
    %c0_i32_1 = arith.constant 0 : i32
    return %c0_i32, %c0_i32_0 : i32, i32
  }
  func.func @transform_4(%arg0: i32) -> (i32, i32) {
    %c0_i32 = arith.constant 0 : i32
    %c0_i32_0 = arith.constant 0 : i32
    %c0_i32_1 = arith.constant 0 : i32
    return %c0_i32, %c0_i32_0 : i32, i32
  }
  func.func @transform_5(%arg0: i32) -> (i32, i32) {
    %c0_i32 = arith.constant 0 : i32
    %c0_i32_0 = arith.constant 0 : i32
    return %c0_i32, %arg0 : i32, i32
  }
}

module attributes {stable_mosaic.version = 11 : i64} {
  func.func @_prep_affine_kernel(%arg0: i32, %arg1: memref<128x32xf32, #tpu.memory_space<vmem>>, %arg2: memref<1x32xf32, #tpu.memory_space<vmem>>, %arg3: memref<1x32xf32, #tpu.memory_space<vmem>>, %arg4: memref<32x26xf32, #tpu.memory_space<vmem>>, %arg5: memref<128x1xf32, #tpu.memory_space<vmem>>, %arg6: memref<128x26xf32, #tpu.memory_space<vmem>>) attributes {dimension_semantics = [#tpu.dimension_semantics<parallel>], iteration_bounds = array<i64: 2>, scalar_prefetch = 0 : i64, scratch_operands = 0 : i64, tpu.core_type = #tpu.core_type<tc>, window_params = [{transform_indices = @transform_0, window_bounds = array<i64: 128, 32>}, {pipeline_mode = #tpu.pipeline_mode<synchronous>, transform_indices = @transform_1, window_bounds = array<i64: 1, 32>}, {pipeline_mode = #tpu.pipeline_mode<synchronous>, transform_indices = @transform_2, window_bounds = array<i64: 1, 32>}, {pipeline_mode = #tpu.pipeline_mode<synchronous>, transform_indices = @transform_3, window_bounds = array<i64: 32, 26>}, {transform_indices = @transform_4, window_bounds = array<i64: 128, 1>}, {transform_indices = @transform_5, window_bounds = array<i64: 128, 26>}]} {
    %c0 = arith.constant 0 : index
    %c0_0 = arith.constant 0 : index
    %0 = vector.load %arg1[%c0, %c0_0] : memref<128x32xf32, #tpu.memory_space<vmem>>, vector<128x32xf32>
    %c0_1 = arith.constant 0 : index
    %c0_2 = arith.constant 0 : index
    %1 = vector.load %arg2[%c0_1, %c0_2] : memref<1x32xf32, #tpu.memory_space<vmem>>, vector<1x32xf32>
    %2 = vector.broadcast %1 : vector<1x32xf32> to vector<128x32xf32>
    %3 = arith.mulf %0, %2 : vector<128x32xf32>
    %c0_3 = arith.constant 0 : index
    %c0_4 = arith.constant 0 : index
    %4 = vector.load %arg3[%c0_3, %c0_4] : memref<1x32xf32, #tpu.memory_space<vmem>>, vector<1x32xf32>
    %5 = vector.broadcast %4 : vector<1x32xf32> to vector<128x32xf32>
    %6 = arith.addf %3, %5 : vector<128x32xf32>
    %c0_5 = arith.constant 0 : index
    %c0_6 = arith.constant 0 : index
    %7 = vector.load %arg4[%c0_5, %c0_6] : memref<32x26xf32, #tpu.memory_space<vmem>>, vector<32x26xf32>
    %cst = arith.constant dense<0.000000e+00> : vector<128x26xf32>
    %8 = tpu.matmul %6, %7, %cst {dimension_numbers = #tpu.dot_dimension_numbers<[1], [0], [0], [1], [0, 0, 1, 1], [], []>} : vector<128x32xf32>, vector<32x26xf32>, vector<128x26xf32> -> vector<128x26xf32>
    %c0_7 = arith.constant 0 : index
    %c0_8 = arith.constant 0 : index
    %9 = vector.load %arg5[%c0_7, %c0_8] : memref<128x1xf32, #tpu.memory_space<vmem>>, vector<128x1xf32>
    %10 = vector.broadcast %9 : vector<128x1xf32> to vector<128x26xf32>
    %11 = arith.mulf %10, %8 : vector<128x26xf32>
    %c0_9 = arith.constant 0 : index
    %c0_10 = arith.constant 0 : index
    %12 = vector.load %arg6[%c0_9, %c0_10] : memref<128x26xf32, #tpu.memory_space<vmem>>, vector<128x26xf32>
    tpu.vector_store %arg6[%c0_9, %c0_10], %11 {strides = array<i32>} : memref<128x26xf32, #tpu.memory_space<vmem>>, vector<128x26xf32>,
    return
  }
  func.func @transform_0(%arg0: i32) -> (i32, i32) {
    %c0_i32 = arith.constant 0 : i32
    %c0_i32_0 = arith.constant 0 : i32
    return %arg0, %c0_i32 : i32, i32
  }
  func.func @transform_1(%arg0: i32) -> (i32, i32) {
    %c0_i32 = arith.constant 0 : i32
    %c0_i32_0 = arith.constant 0 : i32
    %c0_i32_1 = arith.constant 0 : i32
    return %c0_i32, %c0_i32_0 : i32, i32
  }
  func.func @transform_2(%arg0: i32) -> (i32, i32) {
    %c0_i32 = arith.constant 0 : i32
    %c0_i32_0 = arith.constant 0 : i32
    %c0_i32_1 = arith.constant 0 : i32
    return %c0_i32, %c0_i32_0 : i32, i32
  }
  func.func @transform_3(%arg0: i32) -> (i32, i32) {
    %c0_i32 = arith.constant 0 : i32
    %c0_i32_0 = arith.constant 0 : i32
    %c0_i32_1 = arith.constant 0 : i32
    return %c0_i32, %c0_i32_0 : i32, i32
  }
  func.func @transform_4(%arg0: i32) -> (i32, i32) {
    %c0_i32 = arith.constant 0 : i32
    %c0_i32_0 = arith.constant 0 : i32
    return %arg0, %c0_i32 : i32, i32
  }
  func.func @transform_5(%arg0: i32) -> (i32, i32) {
    %c0_i32 = arith.constant 0 : i32
    %c0_i32_0 = arith.constant 0 : i32
    return %arg0, %c0_i32 : i32, i32
  }
}

module attributes {stable_mosaic.version = 11 : i64} {
  func.func @_pdn_conv_kernel(%arg0: i32, %arg1: i32, %arg2: memref<128x128xf32, #tpu.memory_space<vmem>>, %arg3: memref<128x26xf32, #tpu.memory_space<vmem>>, %arg4: memref<128x26xf32, #tpu.memory_space<vmem>>, %arg5: memref<128x1xf32, #tpu.memory_space<vmem>>, %arg6: memref<1x26xf32, #tpu.memory_space<vmem>>, %arg7: memref<128x26xf32, #tpu.memory_space<vmem>>, %arg8: memref<1x1x26xf32, #tpu.memory_space<vmem>>, %arg9: memref<1x1x26xf32, #tpu.memory_space<vmem>>, %arg10: memref<128x26xf32, #tpu.memory_space<vmem>>) attributes {dimension_semantics = [#tpu.dimension_semantics<parallel>, #tpu.dimension_semantics<arbitrary>], iteration_bounds = array<i64: 2, 2>, scalar_prefetch = 0 : i64, scratch_operands = 1 : i64, tpu.core_type = #tpu.core_type<tc>, window_params = [{transform_indices = @transform_0, window_bounds = array<i64: 128, 128>}, {transform_indices = @transform_1, window_bounds = array<i64: 128, 26>}, {transform_indices = @transform_2, window_bounds = array<i64: 128, 26>}, {transform_indices = @transform_3, window_bounds = array<i64: 128, 1>}, {pipeline_mode = #tpu.pipeline_mode<synchronous>, transform_indices = @transform_4, window_bounds = array<i64: 1, 26>}, {transform_indices = @transform_5, window_bounds = array<i64: 128, 26>}, {transform_indices = @transform_6, window_bounds = array<i64: 1, 1, 26>}, {transform_indices = @transform_7, window_bounds = array<i64: 1, 1, 26>}]} {
    %c0_i32 = arith.constant 0 : i32
    %0 = arith.cmpi eq, %arg1, %c0_i32 : i32
    %1 = arith.extui %0 : i1 to i32
    %c0_i32_0 = arith.constant 0 : i32
    %2 = arith.cmpi ne, %1, %c0_i32_0 : i32
    scf.if %2 {
      %cst_9 = arith.constant 0.000000e+00 : f32
      %12 = vector.broadcast %cst_9 : f32 to vector<128x26xf32>
      %c0_10 = arith.constant 0 : index
      %c0_11 = arith.constant 0 : index
      %13 = vector.load %arg10[%c0_10, %c0_11] : memref<128x26xf32, #tpu.memory_space<vmem>>, vector<128x26xf32>
      tpu.vector_store %arg10[%c0_10, %c0_11], %12 {strides = array<i32>} : memref<128x26xf32, #tpu.memory_space<vmem>>, vector<128x26xf32>,
    } else {
    }
    %c0 = arith.constant 0 : index
    %c0_1 = arith.constant 0 : index
    %3 = vector.load %arg10[%c0, %c0_1] : memref<128x26xf32, #tpu.memory_space<vmem>>, vector<128x26xf32>
    %c0_2 = arith.constant 0 : index
    %c0_3 = arith.constant 0 : index
    %4 = vector.load %arg2[%c0_2, %c0_3] : memref<128x128xf32, #tpu.memory_space<vmem>>, vector<128x128xf32>
    %c0_4 = arith.constant 0 : index
    %c0_5 = arith.constant 0 : index
    %5 = vector.load %arg3[%c0_4, %c0_5] : memref<128x26xf32, #tpu.memory_space<vmem>>, vector<128x26xf32>
    %cst = arith.constant dense<0.000000e+00> : vector<128x26xf32>
    %6 = tpu.matmul %4, %5, %cst {dimension_numbers = #tpu.dot_dimension_numbers<[1], [0], [0], [1], [0, 0, 1, 1], [], []>} : vector<128x128xf32>, vector<128x26xf32>, vector<128x26xf32> -> vector<128x26xf32>
    %7 = arith.addf %3, %6 : vector<128x26xf32>
    %c0_6 = arith.constant 0 : index
    %c0_7 = arith.constant 0 : index
    %8 = vector.load %arg10[%c0_6, %c0_7] : memref<128x26xf32, #tpu.memory_space<vmem>>, vector<128x26xf32>
    tpu.vector_store %arg10[%c0_6, %c0_7], %7 {strides = array<i32>} : memref<128x26xf32, #tpu.memory_space<vmem>>, vector<128x26xf32>,
    %c1_i32 = arith.constant 1 : i32
    %9 = arith.cmpi eq, %arg1, %c1_i32 : i32
    %10 = arith.extui %9 : i1 to i32
    %c0_i32_8 = arith.constant 0 : i32
    %11 = arith.cmpi ne, %10, %c0_i32_8 : i32
    scf.if %11 {
      %c0_9 = arith.constant 0 : index
      %c0_10 = arith.constant 0 : index
      %12 = vector.load %arg5[%c0_9, %c0_10] : memref<128x1xf32, #tpu.memory_space<vmem>>, vector<128x1xf32>
      %c0_11 = arith.constant 0 : index
      %c0_12 = arith.constant 0 : index
      %13 = vector.load %arg10[%c0_11, %c0_12] : memref<128x26xf32, #tpu.memory_space<vmem>>, vector<128x26xf32>
      %c0_13 = arith.constant 0 : index
      %c0_14 = arith.constant 0 : index
      %14 = vector.load %arg4[%c0_13, %c0_14] : memref<128x26xf32, #tpu.memory_space<vmem>>, vector<128x26xf32>
      %15 = arith.addf %13, %14 : vector<128x26xf32>
      %16 = vector.broadcast %12 : vector<128x1xf32> to vector<128x26xf32>
      %17 = arith.mulf %16, %15 : vector<128x26xf32>
      %c0_15 = arith.constant 0 : index
      %c0_16 = arith.constant 0 : index
      %18 = vector.load %arg6[%c0_15, %c0_16] : memref<1x26xf32, #tpu.memory_space<vmem>>, vector<1x26xf32>
      %19 = vector.broadcast %18 : vector<1x26xf32> to vector<128x26xf32>
      %20 = arith.addf %17, %19 : vector<128x26xf32>
      %cst_17 = arith.constant 0.000000e+00 : f32
      %21 = vector.broadcast %cst_17 : f32 to vector<128x26xf32>
      %22 = arith.maximumf %20, %21 : vector<128x26xf32>
      %cst_18 = arith.constant 0.000000e+00 : f32
      %23 = vector.broadcast %cst_18 : f32 to vector<128x1xf32>
      %24 = arith.cmpf ogt, %12, %23 : vector<128x1xf32>
      %cst_19 = arith.constant 0.000000e+00 : f32
      %25 = vector.shape_cast %24 : vector<128x1xi1> to vector<128x1xi1>
      %26 = vector.broadcast %25 : vector<128x1xi1> to vector<128x26xi1>
      %27 = vector.broadcast %cst_19 : f32 to vector<128x26xf32>
      %28 = arith.select %26, %22, %27 : vector<128x26xi1>, vector<128x26xf32>
      %c0_20 = arith.constant 0 : index
      %c0_21 = arith.constant 0 : index
      %29 = vector.load %arg7[%c0_20, %c0_21] : memref<128x26xf32, #tpu.memory_space<vmem>>, vector<128x26xf32>
      tpu.vector_store %arg7[%c0_20, %c0_21], %28 {strides = array<i32>} : memref<128x26xf32, #tpu.memory_space<vmem>>, vector<128x26xf32>,
      %cst_22 = arith.constant dense<0.000000e+00> : vector<26xf32>
      %30 = vector.multi_reduction <add>, %28, %cst_22 [0] : vector<128x26xf32> to vector<26xf32>
      %31 = vector.shape_cast %30 : vector<26xf32> to vector<1x26xf32>
      %32 = vector.shape_cast %31 : vector<1x26xf32> to vector<1x1x26xf32>
      %c0_23 = arith.constant 0 : index
      %c0_24 = arith.constant 0 : index
      %c0_25 = arith.constant 0 : index
      %33 = vector.load %arg8[%c0_23, %c0_24, %c0_25] : memref<1x1x26xf32, #tpu.memory_space<vmem>>, vector<1x1x26xf32>
      tpu.vector_store %arg8[%c0_23, %c0_24, %c0_25], %32 {strides = array<i32>} : memref<1x1x26xf32, #tpu.memory_space<vmem>>, vector<1x1x26xf32>,
      %34 = arith.mulf %28, %28 : vector<128x26xf32>
      %cst_26 = arith.constant dense<0.000000e+00> : vector<26xf32>
      %35 = vector.multi_reduction <add>, %34, %cst_26 [0] : vector<128x26xf32> to vector<26xf32>
      %36 = vector.shape_cast %35 : vector<26xf32> to vector<1x26xf32>
      %37 = vector.shape_cast %36 : vector<1x26xf32> to vector<1x1x26xf32>
      %c0_27 = arith.constant 0 : index
      %c0_28 = arith.constant 0 : index
      %c0_29 = arith.constant 0 : index
      %38 = vector.load %arg9[%c0_27, %c0_28, %c0_29] : memref<1x1x26xf32, #tpu.memory_space<vmem>>, vector<1x1x26xf32>
      tpu.vector_store %arg9[%c0_27, %c0_28, %c0_29], %37 {strides = array<i32>} : memref<1x1x26xf32, #tpu.memory_space<vmem>>, vector<1x1x26xf32>,
    } else {
    }
    return
  }
  func.func @transform_0(%arg0: i32, %arg1: i32) -> (i32, i32) {
    %c0_i32 = arith.constant 0 : i32
    return %arg0, %arg1 : i32, i32
  }
  func.func @transform_1(%arg0: i32, %arg1: i32) -> (i32, i32) {
    %c0_i32 = arith.constant 0 : i32
    %c0_i32_0 = arith.constant 0 : i32
    return %arg1, %c0_i32 : i32, i32
  }
  func.func @transform_2(%arg0: i32, %arg1: i32) -> (i32, i32) {
    %c0_i32 = arith.constant 0 : i32
    %c0_i32_0 = arith.constant 0 : i32
    return %arg0, %c0_i32 : i32, i32
  }
  func.func @transform_3(%arg0: i32, %arg1: i32) -> (i32, i32) {
    %c0_i32 = arith.constant 0 : i32
    %c0_i32_0 = arith.constant 0 : i32
    return %arg0, %c0_i32 : i32, i32
  }
  func.func @transform_4(%arg0: i32, %arg1: i32) -> (i32, i32) {
    %c0_i32 = arith.constant 0 : i32
    %c0_i32_0 = arith.constant 0 : i32
    %c0_i32_1 = arith.constant 0 : i32
    return %c0_i32, %c0_i32_0 : i32, i32
  }
  func.func @transform_5(%arg0: i32, %arg1: i32) -> (i32, i32) {
    %c0_i32 = arith.constant 0 : i32
    %c0_i32_0 = arith.constant 0 : i32
    return %arg0, %c0_i32 : i32, i32
  }
  func.func @transform_6(%arg0: i32, %arg1: i32) -> (i32, i32, i32) {
    %c0_i32 = arith.constant 0 : i32
    %c0_i32_0 = arith.constant 0 : i32
    %c0_i32_1 = arith.constant 0 : i32
    return %arg0, %c0_i32, %c0_i32_0 : i32, i32, i32
  }
  func.func @transform_7(%arg0: i32, %arg1: i32) -> (i32, i32, i32) {
    %c0_i32 = arith.constant 0 : i32
    %c0_i32_0 = arith.constant 0 : i32
    %c0_i32_1 = arith.constant 0 : i32
    return %arg0, %c0_i32, %c0_i32_0 : i32, i32, i32
  }
}

module attributes {stable_mosaic.version = 11 : i64} {
  func.func @_prep_affine_kernel(%arg0: i32, %arg1: memref<128x26xf32, #tpu.memory_space<vmem>>, %arg2: memref<1x26xf32, #tpu.memory_space<vmem>>, %arg3: memref<1x26xf32, #tpu.memory_space<vmem>>, %arg4: memref<26x20xf32, #tpu.memory_space<vmem>>, %arg5: memref<128x1xf32, #tpu.memory_space<vmem>>, %arg6: memref<128x20xf32, #tpu.memory_space<vmem>>) attributes {dimension_semantics = [#tpu.dimension_semantics<parallel>], iteration_bounds = array<i64: 2>, scalar_prefetch = 0 : i64, scratch_operands = 0 : i64, tpu.core_type = #tpu.core_type<tc>, window_params = [{transform_indices = @transform_0, window_bounds = array<i64: 128, 26>}, {pipeline_mode = #tpu.pipeline_mode<synchronous>, transform_indices = @transform_1, window_bounds = array<i64: 1, 26>}, {pipeline_mode = #tpu.pipeline_mode<synchronous>, transform_indices = @transform_2, window_bounds = array<i64: 1, 26>}, {pipeline_mode = #tpu.pipeline_mode<synchronous>, transform_indices = @transform_3, window_bounds = array<i64: 26, 20>}, {transform_indices = @transform_4, window_bounds = array<i64: 128, 1>}, {transform_indices = @transform_5, window_bounds = array<i64: 128, 20>}]} {
    %c0 = arith.constant 0 : index
    %c0_0 = arith.constant 0 : index
    %0 = vector.load %arg1[%c0, %c0_0] : memref<128x26xf32, #tpu.memory_space<vmem>>, vector<128x26xf32>
    %c0_1 = arith.constant 0 : index
    %c0_2 = arith.constant 0 : index
    %1 = vector.load %arg2[%c0_1, %c0_2] : memref<1x26xf32, #tpu.memory_space<vmem>>, vector<1x26xf32>
    %2 = vector.broadcast %1 : vector<1x26xf32> to vector<128x26xf32>
    %3 = arith.mulf %0, %2 : vector<128x26xf32>
    %c0_3 = arith.constant 0 : index
    %c0_4 = arith.constant 0 : index
    %4 = vector.load %arg3[%c0_3, %c0_4] : memref<1x26xf32, #tpu.memory_space<vmem>>, vector<1x26xf32>
    %5 = vector.broadcast %4 : vector<1x26xf32> to vector<128x26xf32>
    %6 = arith.addf %3, %5 : vector<128x26xf32>
    %c0_5 = arith.constant 0 : index
    %c0_6 = arith.constant 0 : index
    %7 = vector.load %arg4[%c0_5, %c0_6] : memref<26x20xf32, #tpu.memory_space<vmem>>, vector<26x20xf32>
    %cst = arith.constant dense<0.000000e+00> : vector<128x20xf32>
    %8 = tpu.matmul %6, %7, %cst {dimension_numbers = #tpu.dot_dimension_numbers<[1], [0], [0], [1], [0, 0, 1, 1], [], []>} : vector<128x26xf32>, vector<26x20xf32>, vector<128x20xf32> -> vector<128x20xf32>
    %c0_7 = arith.constant 0 : index
    %c0_8 = arith.constant 0 : index
    %9 = vector.load %arg5[%c0_7, %c0_8] : memref<128x1xf32, #tpu.memory_space<vmem>>, vector<128x1xf32>
    %10 = vector.broadcast %9 : vector<128x1xf32> to vector<128x20xf32>
    %11 = arith.mulf %10, %8 : vector<128x20xf32>
    %c0_9 = arith.constant 0 : index
    %c0_10 = arith.constant 0 : index
    %12 = vector.load %arg6[%c0_9, %c0_10] : memref<128x20xf32, #tpu.memory_space<vmem>>, vector<128x20xf32>
    tpu.vector_store %arg6[%c0_9, %c0_10], %11 {strides = array<i32>} : memref<128x20xf32, #tpu.memory_space<vmem>>, vector<128x20xf32>,
    return
  }
  func.func @transform_0(%arg0: i32) -> (i32, i32) {
    %c0_i32 = arith.constant 0 : i32
    %c0_i32_0 = arith.constant 0 : i32
    return %arg0, %c0_i32 : i32, i32
  }
  func.func @transform_1(%arg0: i32) -> (i32, i32) {
    %c0_i32 = arith.constant 0 : i32
    %c0_i32_0 = arith.constant 0 : i32
    %c0_i32_1 = arith.constant 0 : i32
    return %c0_i32, %c0_i32_0 : i32, i32
  }
  func.func @transform_2(%arg0: i32) -> (i32, i32) {
    %c0_i32 = arith.constant 0 : i32
    %c0_i32_0 = arith.constant 0 : i32
    %c0_i32_1 = arith.constant 0 : i32
    return %c0_i32, %c0_i32_0 : i32, i32
  }
  func.func @transform_3(%arg0: i32) -> (i32, i32) {
    %c0_i32 = arith.constant 0 : i32
    %c0_i32_0 = arith.constant 0 : i32
    %c0_i32_1 = arith.constant 0 : i32
    return %c0_i32, %c0_i32_0 : i32, i32
  }
  func.func @transform_4(%arg0: i32) -> (i32, i32) {
    %c0_i32 = arith.constant 0 : i32
    %c0_i32_0 = arith.constant 0 : i32
    return %arg0, %c0_i32 : i32, i32
  }
  func.func @transform_5(%arg0: i32) -> (i32, i32) {
    %c0_i32 = arith.constant 0 : i32
    %c0_i32_0 = arith.constant 0 : i32
    return %arg0, %c0_i32 : i32, i32
  }
}

module attributes {stable_mosaic.version = 11 : i64} {
  func.func @_pdn_conv_kernel(%arg0: i32, %arg1: i32, %arg2: memref<128x128xf32, #tpu.memory_space<vmem>>, %arg3: memref<128x20xf32, #tpu.memory_space<vmem>>, %arg4: memref<128x20xf32, #tpu.memory_space<vmem>>, %arg5: memref<128x1xf32, #tpu.memory_space<vmem>>, %arg6: memref<1x20xf32, #tpu.memory_space<vmem>>, %arg7: memref<128x20xf32, #tpu.memory_space<vmem>>, %arg8: memref<1x1x20xf32, #tpu.memory_space<vmem>>, %arg9: memref<1x1x20xf32, #tpu.memory_space<vmem>>, %arg10: memref<128x20xf32, #tpu.memory_space<vmem>>) attributes {dimension_semantics = [#tpu.dimension_semantics<parallel>, #tpu.dimension_semantics<arbitrary>], iteration_bounds = array<i64: 2, 2>, scalar_prefetch = 0 : i64, scratch_operands = 1 : i64, tpu.core_type = #tpu.core_type<tc>, window_params = [{transform_indices = @transform_0, window_bounds = array<i64: 128, 128>}, {transform_indices = @transform_1, window_bounds = array<i64: 128, 20>}, {transform_indices = @transform_2, window_bounds = array<i64: 128, 20>}, {transform_indices = @transform_3, window_bounds = array<i64: 128, 1>}, {pipeline_mode = #tpu.pipeline_mode<synchronous>, transform_indices = @transform_4, window_bounds = array<i64: 1, 20>}, {transform_indices = @transform_5, window_bounds = array<i64: 128, 20>}, {transform_indices = @transform_6, window_bounds = array<i64: 1, 1, 20>}, {transform_indices = @transform_7, window_bounds = array<i64: 1, 1, 20>}]} {
    %c0_i32 = arith.constant 0 : i32
    %0 = arith.cmpi eq, %arg1, %c0_i32 : i32
    %1 = arith.extui %0 : i1 to i32
    %c0_i32_0 = arith.constant 0 : i32
    %2 = arith.cmpi ne, %1, %c0_i32_0 : i32
    scf.if %2 {
      %cst_9 = arith.constant 0.000000e+00 : f32
      %12 = vector.broadcast %cst_9 : f32 to vector<128x20xf32>
      %c0_10 = arith.constant 0 : index
      %c0_11 = arith.constant 0 : index
      %13 = vector.load %arg10[%c0_10, %c0_11] : memref<128x20xf32, #tpu.memory_space<vmem>>, vector<128x20xf32>
      tpu.vector_store %arg10[%c0_10, %c0_11], %12 {strides = array<i32>} : memref<128x20xf32, #tpu.memory_space<vmem>>, vector<128x20xf32>,
    } else {
    }
    %c0 = arith.constant 0 : index
    %c0_1 = arith.constant 0 : index
    %3 = vector.load %arg10[%c0, %c0_1] : memref<128x20xf32, #tpu.memory_space<vmem>>, vector<128x20xf32>
    %c0_2 = arith.constant 0 : index
    %c0_3 = arith.constant 0 : index
    %4 = vector.load %arg2[%c0_2, %c0_3] : memref<128x128xf32, #tpu.memory_space<vmem>>, vector<128x128xf32>
    %c0_4 = arith.constant 0 : index
    %c0_5 = arith.constant 0 : index
    %5 = vector.load %arg3[%c0_4, %c0_5] : memref<128x20xf32, #tpu.memory_space<vmem>>, vector<128x20xf32>
    %cst = arith.constant dense<0.000000e+00> : vector<128x20xf32>
    %6 = tpu.matmul %4, %5, %cst {dimension_numbers = #tpu.dot_dimension_numbers<[1], [0], [0], [1], [0, 0, 1, 1], [], []>} : vector<128x128xf32>, vector<128x20xf32>, vector<128x20xf32> -> vector<128x20xf32>
    %7 = arith.addf %3, %6 : vector<128x20xf32>
    %c0_6 = arith.constant 0 : index
    %c0_7 = arith.constant 0 : index
    %8 = vector.load %arg10[%c0_6, %c0_7] : memref<128x20xf32, #tpu.memory_space<vmem>>, vector<128x20xf32>
    tpu.vector_store %arg10[%c0_6, %c0_7], %7 {strides = array<i32>} : memref<128x20xf32, #tpu.memory_space<vmem>>, vector<128x20xf32>,
    %c1_i32 = arith.constant 1 : i32
    %9 = arith.cmpi eq, %arg1, %c1_i32 : i32
    %10 = arith.extui %9 : i1 to i32
    %c0_i32_8 = arith.constant 0 : i32
    %11 = arith.cmpi ne, %10, %c0_i32_8 : i32
    scf.if %11 {
      %c0_9 = arith.constant 0 : index
      %c0_10 = arith.constant 0 : index
      %12 = vector.load %arg5[%c0_9, %c0_10] : memref<128x1xf32, #tpu.memory_space<vmem>>, vector<128x1xf32>
      %c0_11 = arith.constant 0 : index
      %c0_12 = arith.constant 0 : index
      %13 = vector.load %arg10[%c0_11, %c0_12] : memref<128x20xf32, #tpu.memory_space<vmem>>, vector<128x20xf32>
      %c0_13 = arith.constant 0 : index
      %c0_14 = arith.constant 0 : index
      %14 = vector.load %arg4[%c0_13, %c0_14] : memref<128x20xf32, #tpu.memory_space<vmem>>, vector<128x20xf32>
      %15 = arith.addf %13, %14 : vector<128x20xf32>
      %16 = vector.broadcast %12 : vector<128x1xf32> to vector<128x20xf32>
      %17 = arith.mulf %16, %15 : vector<128x20xf32>
      %c0_15 = arith.constant 0 : index
      %c0_16 = arith.constant 0 : index
      %18 = vector.load %arg6[%c0_15, %c0_16] : memref<1x20xf32, #tpu.memory_space<vmem>>, vector<1x20xf32>
      %19 = vector.broadcast %18 : vector<1x20xf32> to vector<128x20xf32>
      %20 = arith.addf %17, %19 : vector<128x20xf32>
      %cst_17 = arith.constant 0.000000e+00 : f32
      %21 = vector.broadcast %cst_17 : f32 to vector<128x20xf32>
      %22 = arith.maximumf %20, %21 : vector<128x20xf32>
      %cst_18 = arith.constant 0.000000e+00 : f32
      %23 = vector.broadcast %cst_18 : f32 to vector<128x1xf32>
      %24 = arith.cmpf ogt, %12, %23 : vector<128x1xf32>
      %cst_19 = arith.constant 0.000000e+00 : f32
      %25 = vector.shape_cast %24 : vector<128x1xi1> to vector<128x1xi1>
      %26 = vector.broadcast %25 : vector<128x1xi1> to vector<128x20xi1>
      %27 = vector.broadcast %cst_19 : f32 to vector<128x20xf32>
      %28 = arith.select %26, %22, %27 : vector<128x20xi1>, vector<128x20xf32>
      %c0_20 = arith.constant 0 : index
      %c0_21 = arith.constant 0 : index
      %29 = vector.load %arg7[%c0_20, %c0_21] : memref<128x20xf32, #tpu.memory_space<vmem>>, vector<128x20xf32>
      tpu.vector_store %arg7[%c0_20, %c0_21], %28 {strides = array<i32>} : memref<128x20xf32, #tpu.memory_space<vmem>>, vector<128x20xf32>,
      %cst_22 = arith.constant dense<0.000000e+00> : vector<20xf32>
      %30 = vector.multi_reduction <add>, %28, %cst_22 [0] : vector<128x20xf32> to vector<20xf32>
      %31 = vector.shape_cast %30 : vector<20xf32> to vector<1x20xf32>
      %32 = vector.shape_cast %31 : vector<1x20xf32> to vector<1x1x20xf32>
      %c0_23 = arith.constant 0 : index
      %c0_24 = arith.constant 0 : index
      %c0_25 = arith.constant 0 : index
      %33 = vector.load %arg8[%c0_23, %c0_24, %c0_25] : memref<1x1x20xf32, #tpu.memory_space<vmem>>, vector<1x1x20xf32>
      tpu.vector_store %arg8[%c0_23, %c0_24, %c0_25], %32 {strides = array<i32>} : memref<1x1x20xf32, #tpu.memory_space<vmem>>, vector<1x1x20xf32>,
      %34 = arith.mulf %28, %28 : vector<128x20xf32>
      %cst_26 = arith.constant dense<0.000000e+00> : vector<20xf32>
      %35 = vector.multi_reduction <add>, %34, %cst_26 [0] : vector<128x20xf32> to vector<20xf32>
      %36 = vector.shape_cast %35 : vector<20xf32> to vector<1x20xf32>
      %37 = vector.shape_cast %36 : vector<1x20xf32> to vector<1x1x20xf32>
      %c0_27 = arith.constant 0 : index
      %c0_28 = arith.constant 0 : index
      %c0_29 = arith.constant 0 : index
      %38 = vector.load %arg9[%c0_27, %c0_28, %c0_29] : memref<1x1x20xf32, #tpu.memory_space<vmem>>, vector<1x1x20xf32>
      tpu.vector_store %arg9[%c0_27, %c0_28, %c0_29], %37 {strides = array<i32>} : memref<1x1x20xf32, #tpu.memory_space<vmem>>, vector<1x1x20xf32>,
    } else {
    }
    return
  }
  func.func @transform_0(%arg0: i32, %arg1: i32) -> (i32, i32) {
    %c0_i32 = arith.constant 0 : i32
    return %arg0, %arg1 : i32, i32
  }
  func.func @transform_1(%arg0: i32, %arg1: i32) -> (i32, i32) {
    %c0_i32 = arith.constant 0 : i32
    %c0_i32_0 = arith.constant 0 : i32
    return %arg1, %c0_i32 : i32, i32
  }
  func.func @transform_2(%arg0: i32, %arg1: i32) -> (i32, i32) {
    %c0_i32 = arith.constant 0 : i32
    %c0_i32_0 = arith.constant 0 : i32
    return %arg0, %c0_i32 : i32, i32
  }
  func.func @transform_3(%arg0: i32, %arg1: i32) -> (i32, i32) {
    %c0_i32 = arith.constant 0 : i32
    %c0_i32_0 = arith.constant 0 : i32
    return %arg0, %c0_i32 : i32, i32
  }
  func.func @transform_4(%arg0: i32, %arg1: i32) -> (i32, i32) {
    %c0_i32 = arith.constant 0 : i32
    %c0_i32_0 = arith.constant 0 : i32
    %c0_i32_1 = arith.constant 0 : i32
    return %c0_i32, %c0_i32_0 : i32, i32
  }
  func.func @transform_5(%arg0: i32, %arg1: i32) -> (i32, i32) {
    %c0_i32 = arith.constant 0 : i32
    %c0_i32_0 = arith.constant 0 : i32
    return %arg0, %c0_i32 : i32, i32
  }
  func.func @transform_6(%arg0: i32, %arg1: i32) -> (i32, i32, i32) {
    %c0_i32 = arith.constant 0 : i32
    %c0_i32_0 = arith.constant 0 : i32
    %c0_i32_1 = arith.constant 0 : i32
    return %arg0, %c0_i32, %c0_i32_0 : i32, i32, i32
  }
  func.func @transform_7(%arg0: i32, %arg1: i32) -> (i32, i32, i32) {
    %c0_i32 = arith.constant 0 : i32
    %c0_i32_0 = arith.constant 0 : i32
    %c0_i32_1 = arith.constant 0 : i32
    return %arg0, %c0_i32, %c0_i32_0 : i32, i32, i32
  }
}

module attributes {stable_mosaic.version = 11 : i64} {
  func.func @_prep_affine_kernel(%arg0: i32, %arg1: memref<128x20xf32, #tpu.memory_space<vmem>>, %arg2: memref<1x20xf32, #tpu.memory_space<vmem>>, %arg3: memref<1x20xf32, #tpu.memory_space<vmem>>, %arg4: memref<20x14xf32, #tpu.memory_space<vmem>>, %arg5: memref<128x1xf32, #tpu.memory_space<vmem>>, %arg6: memref<128x14xf32, #tpu.memory_space<vmem>>) attributes {dimension_semantics = [#tpu.dimension_semantics<parallel>], iteration_bounds = array<i64: 2>, scalar_prefetch = 0 : i64, scratch_operands = 0 : i64, tpu.core_type = #tpu.core_type<tc>, window_params = [{transform_indices = @transform_0, window_bounds = array<i64: 128, 20>}, {pipeline_mode = #tpu.pipeline_mode<synchronous>, transform_indices = @transform_1, window_bounds = array<i64: 1, 20>}, {pipeline_mode = #tpu.pipeline_mode<synchronous>, transform_indices = @transform_2, window_bounds = array<i64: 1, 20>}, {pipeline_mode = #tpu.pipeline_mode<synchronous>, transform_indices = @transform_3, window_bounds = array<i64: 20, 14>}, {transform_indices = @transform_4, window_bounds = array<i64: 128, 1>}, {transform_indices = @transform_5, window_bounds = array<i64: 128, 14>}]} {
    %c0 = arith.constant 0 : index
    %c0_0 = arith.constant 0 : index
    %0 = vector.load %arg1[%c0, %c0_0] : memref<128x20xf32, #tpu.memory_space<vmem>>, vector<128x20xf32>
    %c0_1 = arith.constant 0 : index
    %c0_2 = arith.constant 0 : index
    %1 = vector.load %arg2[%c0_1, %c0_2] : memref<1x20xf32, #tpu.memory_space<vmem>>, vector<1x20xf32>
    %2 = vector.broadcast %1 : vector<1x20xf32> to vector<128x20xf32>
    %3 = arith.mulf %0, %2 : vector<128x20xf32>
    %c0_3 = arith.constant 0 : index
    %c0_4 = arith.constant 0 : index
    %4 = vector.load %arg3[%c0_3, %c0_4] : memref<1x20xf32, #tpu.memory_space<vmem>>, vector<1x20xf32>
    %5 = vector.broadcast %4 : vector<1x20xf32> to vector<128x20xf32>
    %6 = arith.addf %3, %5 : vector<128x20xf32>
    %c0_5 = arith.constant 0 : index
    %c0_6 = arith.constant 0 : index
    %7 = vector.load %arg4[%c0_5, %c0_6] : memref<20x14xf32, #tpu.memory_space<vmem>>, vector<20x14xf32>
    %cst = arith.constant dense<0.000000e+00> : vector<128x14xf32>
    %8 = tpu.matmul %6, %7, %cst {dimension_numbers = #tpu.dot_dimension_numbers<[1], [0], [0], [1], [0, 0, 1, 1], [], []>} : vector<128x20xf32>, vector<20x14xf32>, vector<128x14xf32> -> vector<128x14xf32>
    %c0_7 = arith.constant 0 : index
    %c0_8 = arith.constant 0 : index
    %9 = vector.load %arg5[%c0_7, %c0_8] : memref<128x1xf32, #tpu.memory_space<vmem>>, vector<128x1xf32>
    %10 = vector.broadcast %9 : vector<128x1xf32> to vector<128x14xf32>
    %11 = arith.mulf %10, %8 : vector<128x14xf32>
    %c0_9 = arith.constant 0 : index
    %c0_10 = arith.constant 0 : index
    %12 = vector.load %arg6[%c0_9, %c0_10] : memref<128x14xf32, #tpu.memory_space<vmem>>, vector<128x14xf32>
    tpu.vector_store %arg6[%c0_9, %c0_10], %11 {strides = array<i32>} : memref<128x14xf32, #tpu.memory_space<vmem>>, vector<128x14xf32>,
    return
  }
  func.func @transform_0(%arg0: i32) -> (i32, i32) {
    %c0_i32 = arith.constant 0 : i32
    %c0_i32_0 = arith.constant 0 : i32
    return %arg0, %c0_i32 : i32, i32
  }
  func.func @transform_1(%arg0: i32) -> (i32, i32) {
    %c0_i32 = arith.constant 0 : i32
    %c0_i32_0 = arith.constant 0 : i32
    %c0_i32_1 = arith.constant 0 : i32
    return %c0_i32, %c0_i32_0 : i32, i32
  }
  func.func @transform_2(%arg0: i32) -> (i32, i32) {
    %c0_i32 = arith.constant 0 : i32
    %c0_i32_0 = arith.constant 0 : i32
    %c0_i32_1 = arith.constant 0 : i32
    return %c0_i32, %c0_i32_0 : i32, i32
  }
  func.func @transform_3(%arg0: i32) -> (i32, i32) {
    %c0_i32 = arith.constant 0 : i32
    %c0_i32_0 = arith.constant 0 : i32
    %c0_i32_1 = arith.constant 0 : i32
    return %c0_i32, %c0_i32_0 : i32, i32
  }
  func.func @transform_4(%arg0: i32) -> (i32, i32) {
    %c0_i32 = arith.constant 0 : i32
    %c0_i32_0 = arith.constant 0 : i32
    return %arg0, %c0_i32 : i32, i32
  }
  func.func @transform_5(%arg0: i32) -> (i32, i32) {
    %c0_i32 = arith.constant 0 : i32
    %c0_i32_0 = arith.constant 0 : i32
    return %arg0, %c0_i32 : i32, i32
  }
}

module attributes {stable_mosaic.version = 11 : i64} {
  func.func @_pdn_conv_kernel(%arg0: i32, %arg1: i32, %arg2: memref<128x128xf32, #tpu.memory_space<vmem>>, %arg3: memref<128x14xf32, #tpu.memory_space<vmem>>, %arg4: memref<128x14xf32, #tpu.memory_space<vmem>>, %arg5: memref<128x1xf32, #tpu.memory_space<vmem>>, %arg6: memref<1x14xf32, #tpu.memory_space<vmem>>, %arg7: memref<128x14xf32, #tpu.memory_space<vmem>>, %arg8: memref<1x1x14xf32, #tpu.memory_space<vmem>>, %arg9: memref<1x1x14xf32, #tpu.memory_space<vmem>>, %arg10: memref<128x14xf32, #tpu.memory_space<vmem>>) attributes {dimension_semantics = [#tpu.dimension_semantics<parallel>, #tpu.dimension_semantics<arbitrary>], iteration_bounds = array<i64: 2, 2>, scalar_prefetch = 0 : i64, scratch_operands = 1 : i64, tpu.core_type = #tpu.core_type<tc>, window_params = [{transform_indices = @transform_0, window_bounds = array<i64: 128, 128>}, {transform_indices = @transform_1, window_bounds = array<i64: 128, 14>}, {transform_indices = @transform_2, window_bounds = array<i64: 128, 14>}, {transform_indices = @transform_3, window_bounds = array<i64: 128, 1>}, {pipeline_mode = #tpu.pipeline_mode<synchronous>, transform_indices = @transform_4, window_bounds = array<i64: 1, 14>}, {transform_indices = @transform_5, window_bounds = array<i64: 128, 14>}, {transform_indices = @transform_6, window_bounds = array<i64: 1, 1, 14>}, {transform_indices = @transform_7, window_bounds = array<i64: 1, 1, 14>}]} {
    %c0_i32 = arith.constant 0 : i32
    %0 = arith.cmpi eq, %arg1, %c0_i32 : i32
    %1 = arith.extui %0 : i1 to i32
    %c0_i32_0 = arith.constant 0 : i32
    %2 = arith.cmpi ne, %1, %c0_i32_0 : i32
    scf.if %2 {
      %cst_9 = arith.constant 0.000000e+00 : f32
      %12 = vector.broadcast %cst_9 : f32 to vector<128x14xf32>
      %c0_10 = arith.constant 0 : index
      %c0_11 = arith.constant 0 : index
      %13 = vector.load %arg10[%c0_10, %c0_11] : memref<128x14xf32, #tpu.memory_space<vmem>>, vector<128x14xf32>
      tpu.vector_store %arg10[%c0_10, %c0_11], %12 {strides = array<i32>} : memref<128x14xf32, #tpu.memory_space<vmem>>, vector<128x14xf32>,
    } else {
    }
    %c0 = arith.constant 0 : index
    %c0_1 = arith.constant 0 : index
    %3 = vector.load %arg10[%c0, %c0_1] : memref<128x14xf32, #tpu.memory_space<vmem>>, vector<128x14xf32>
    %c0_2 = arith.constant 0 : index
    %c0_3 = arith.constant 0 : index
    %4 = vector.load %arg2[%c0_2, %c0_3] : memref<128x128xf32, #tpu.memory_space<vmem>>, vector<128x128xf32>
    %c0_4 = arith.constant 0 : index
    %c0_5 = arith.constant 0 : index
    %5 = vector.load %arg3[%c0_4, %c0_5] : memref<128x14xf32, #tpu.memory_space<vmem>>, vector<128x14xf32>
    %cst = arith.constant dense<0.000000e+00> : vector<128x14xf32>
    %6 = tpu.matmul %4, %5, %cst {dimension_numbers = #tpu.dot_dimension_numbers<[1], [0], [0], [1], [0, 0, 1, 1], [], []>} : vector<128x128xf32>, vector<128x14xf32>, vector<128x14xf32> -> vector<128x14xf32>
    %7 = arith.addf %3, %6 : vector<128x14xf32>
    %c0_6 = arith.constant 0 : index
    %c0_7 = arith.constant 0 : index
    %8 = vector.load %arg10[%c0_6, %c0_7] : memref<128x14xf32, #tpu.memory_space<vmem>>, vector<128x14xf32>
    tpu.vector_store %arg10[%c0_6, %c0_7], %7 {strides = array<i32>} : memref<128x14xf32, #tpu.memory_space<vmem>>, vector<128x14xf32>,
    %c1_i32 = arith.constant 1 : i32
    %9 = arith.cmpi eq, %arg1, %c1_i32 : i32
    %10 = arith.extui %9 : i1 to i32
    %c0_i32_8 = arith.constant 0 : i32
    %11 = arith.cmpi ne, %10, %c0_i32_8 : i32
    scf.if %11 {
      %c0_9 = arith.constant 0 : index
      %c0_10 = arith.constant 0 : index
      %12 = vector.load %arg5[%c0_9, %c0_10] : memref<128x1xf32, #tpu.memory_space<vmem>>, vector<128x1xf32>
      %c0_11 = arith.constant 0 : index
      %c0_12 = arith.constant 0 : index
      %13 = vector.load %arg10[%c0_11, %c0_12] : memref<128x14xf32, #tpu.memory_space<vmem>>, vector<128x14xf32>
      %c0_13 = arith.constant 0 : index
      %c0_14 = arith.constant 0 : index
      %14 = vector.load %arg4[%c0_13, %c0_14] : memref<128x14xf32, #tpu.memory_space<vmem>>, vector<128x14xf32>
      %15 = arith.addf %13, %14 : vector<128x14xf32>
      %16 = vector.broadcast %12 : vector<128x1xf32> to vector<128x14xf32>
      %17 = arith.mulf %16, %15 : vector<128x14xf32>
      %c0_15 = arith.constant 0 : index
      %c0_16 = arith.constant 0 : index
      %18 = vector.load %arg6[%c0_15, %c0_16] : memref<1x14xf32, #tpu.memory_space<vmem>>, vector<1x14xf32>
      %19 = vector.broadcast %18 : vector<1x14xf32> to vector<128x14xf32>
      %20 = arith.addf %17, %19 : vector<128x14xf32>
      %cst_17 = arith.constant 0.000000e+00 : f32
      %21 = vector.broadcast %cst_17 : f32 to vector<128x14xf32>
      %22 = arith.maximumf %20, %21 : vector<128x14xf32>
      %cst_18 = arith.constant 0.000000e+00 : f32
      %23 = vector.broadcast %cst_18 : f32 to vector<128x1xf32>
      %24 = arith.cmpf ogt, %12, %23 : vector<128x1xf32>
      %cst_19 = arith.constant 0.000000e+00 : f32
      %25 = vector.shape_cast %24 : vector<128x1xi1> to vector<128x1xi1>
      %26 = vector.broadcast %25 : vector<128x1xi1> to vector<128x14xi1>
      %27 = vector.broadcast %cst_19 : f32 to vector<128x14xf32>
      %28 = arith.select %26, %22, %27 : vector<128x14xi1>, vector<128x14xf32>
      %c0_20 = arith.constant 0 : index
      %c0_21 = arith.constant 0 : index
      %29 = vector.load %arg7[%c0_20, %c0_21] : memref<128x14xf32, #tpu.memory_space<vmem>>, vector<128x14xf32>
      tpu.vector_store %arg7[%c0_20, %c0_21], %28 {strides = array<i32>} : memref<128x14xf32, #tpu.memory_space<vmem>>, vector<128x14xf32>,
      %cst_22 = arith.constant dense<0.000000e+00> : vector<14xf32>
      %30 = vector.multi_reduction <add>, %28, %cst_22 [0] : vector<128x14xf32> to vector<14xf32>
      %31 = vector.shape_cast %30 : vector<14xf32> to vector<1x14xf32>
      %32 = vector.shape_cast %31 : vector<1x14xf32> to vector<1x1x14xf32>
      %c0_23 = arith.constant 0 : index
      %c0_24 = arith.constant 0 : index
      %c0_25 = arith.constant 0 : index
      %33 = vector.load %arg8[%c0_23, %c0_24, %c0_25] : memref<1x1x14xf32, #tpu.memory_space<vmem>>, vector<1x1x14xf32>
      tpu.vector_store %arg8[%c0_23, %c0_24, %c0_25], %32 {strides = array<i32>} : memref<1x1x14xf32, #tpu.memory_space<vmem>>, vector<1x1x14xf32>,
      %34 = arith.mulf %28, %28 : vector<128x14xf32>
      %cst_26 = arith.constant dense<0.000000e+00> : vector<14xf32>
      %35 = vector.multi_reduction <add>, %34, %cst_26 [0] : vector<128x14xf32> to vector<14xf32>
      %36 = vector.shape_cast %35 : vector<14xf32> to vector<1x14xf32>
      %37 = vector.shape_cast %36 : vector<1x14xf32> to vector<1x1x14xf32>
      %c0_27 = arith.constant 0 : index
      %c0_28 = arith.constant 0 : index
      %c0_29 = arith.constant 0 : index
      %38 = vector.load %arg9[%c0_27, %c0_28, %c0_29] : memref<1x1x14xf32, #tpu.memory_space<vmem>>, vector<1x1x14xf32>
      tpu.vector_store %arg9[%c0_27, %c0_28, %c0_29], %37 {strides = array<i32>} : memref<1x1x14xf32, #tpu.memory_space<vmem>>, vector<1x1x14xf32>,
    } else {
    }
    return
  }
  func.func @transform_0(%arg0: i32, %arg1: i32) -> (i32, i32) {
    %c0_i32 = arith.constant 0 : i32
    return %arg0, %arg1 : i32, i32
  }
  func.func @transform_1(%arg0: i32, %arg1: i32) -> (i32, i32) {
    %c0_i32 = arith.constant 0 : i32
    %c0_i32_0 = arith.constant 0 : i32
    return %arg1, %c0_i32 : i32, i32
  }
  func.func @transform_2(%arg0: i32, %arg1: i32) -> (i32, i32) {
    %c0_i32 = arith.constant 0 : i32
    %c0_i32_0 = arith.constant 0 : i32
    return %arg0, %c0_i32 : i32, i32
  }
  func.func @transform_3(%arg0: i32, %arg1: i32) -> (i32, i32) {
    %c0_i32 = arith.constant 0 : i32
    %c0_i32_0 = arith.constant 0 : i32
    return %arg0, %c0_i32 : i32, i32
  }
  func.func @transform_4(%arg0: i32, %arg1: i32) -> (i32, i32) {
    %c0_i32 = arith.constant 0 : i32
    %c0_i32_0 = arith.constant 0 : i32
    %c0_i32_1 = arith.constant 0 : i32
    return %c0_i32, %c0_i32_0 : i32, i32
  }
  func.func @transform_5(%arg0: i32, %arg1: i32) -> (i32, i32) {
    %c0_i32 = arith.constant 0 : i32
    %c0_i32_0 = arith.constant 0 : i32
    return %arg0, %c0_i32 : i32, i32
  }
  func.func @transform_6(%arg0: i32, %arg1: i32) -> (i32, i32, i32) {
    %c0_i32 = arith.constant 0 : i32
    %c0_i32_0 = arith.constant 0 : i32
    %c0_i32_1 = arith.constant 0 : i32
    return %arg0, %c0_i32, %c0_i32_0 : i32, i32, i32
  }
  func.func @transform_7(%arg0: i32, %arg1: i32) -> (i32, i32, i32) {
    %c0_i32 = arith.constant 0 : i32
    %c0_i32_0 = arith.constant 0 : i32
    %c0_i32_1 = arith.constant 0 : i32
    return %arg0, %c0_i32, %c0_i32_0 : i32, i32, i32
  }
}

module attributes {stable_mosaic.version = 11 : i64} {
  func.func @_prep_affine_kernel(%arg0: i32, %arg1: memref<128x14xf32, #tpu.memory_space<vmem>>, %arg2: memref<1x14xf32, #tpu.memory_space<vmem>>, %arg3: memref<1x14xf32, #tpu.memory_space<vmem>>, %arg4: memref<14x8xf32, #tpu.memory_space<vmem>>, %arg5: memref<128x1xf32, #tpu.memory_space<vmem>>, %arg6: memref<128x8xf32, #tpu.memory_space<vmem>>) attributes {dimension_semantics = [#tpu.dimension_semantics<parallel>], iteration_bounds = array<i64: 2>, scalar_prefetch = 0 : i64, scratch_operands = 0 : i64, tpu.core_type = #tpu.core_type<tc>, window_params = [{transform_indices = @transform_0, window_bounds = array<i64: 128, 14>}, {pipeline_mode = #tpu.pipeline_mode<synchronous>, transform_indices = @transform_1, window_bounds = array<i64: 1, 14>}, {pipeline_mode = #tpu.pipeline_mode<synchronous>, transform_indices = @transform_2, window_bounds = array<i64: 1, 14>}, {pipeline_mode = #tpu.pipeline_mode<synchronous>, transform_indices = @transform_3, window_bounds = array<i64: 14, 8>}, {transform_indices = @transform_4, window_bounds = array<i64: 128, 1>}, {transform_indices = @transform_5, window_bounds = array<i64: 128, 8>}]} {
    %c0 = arith.constant 0 : index
    %c0_0 = arith.constant 0 : index
    %0 = vector.load %arg1[%c0, %c0_0] : memref<128x14xf32, #tpu.memory_space<vmem>>, vector<128x14xf32>
    %c0_1 = arith.constant 0 : index
    %c0_2 = arith.constant 0 : index
    %1 = vector.load %arg2[%c0_1, %c0_2] : memref<1x14xf32, #tpu.memory_space<vmem>>, vector<1x14xf32>
    %2 = vector.broadcast %1 : vector<1x14xf32> to vector<128x14xf32>
    %3 = arith.mulf %0, %2 : vector<128x14xf32>
    %c0_3 = arith.constant 0 : index
    %c0_4 = arith.constant 0 : index
    %4 = vector.load %arg3[%c0_3, %c0_4] : memref<1x14xf32, #tpu.memory_space<vmem>>, vector<1x14xf32>
    %5 = vector.broadcast %4 : vector<1x14xf32> to vector<128x14xf32>
    %6 = arith.addf %3, %5 : vector<128x14xf32>
    %c0_5 = arith.constant 0 : index
    %c0_6 = arith.constant 0 : index
    %7 = vector.load %arg4[%c0_5, %c0_6] : memref<14x8xf32, #tpu.memory_space<vmem>>, vector<14x8xf32>
    %cst = arith.constant dense<0.000000e+00> : vector<128x8xf32>
    %8 = tpu.matmul %6, %7, %cst {dimension_numbers = #tpu.dot_dimension_numbers<[1], [0], [0], [1], [0, 0, 1, 1], [], []>} : vector<128x14xf32>, vector<14x8xf32>, vector<128x8xf32> -> vector<128x8xf32>
    %c0_7 = arith.constant 0 : index
    %c0_8 = arith.constant 0 : index
    %9 = vector.load %arg5[%c0_7, %c0_8] : memref<128x1xf32, #tpu.memory_space<vmem>>, vector<128x1xf32>
    %10 = vector.broadcast %9 : vector<128x1xf32> to vector<128x8xf32>
    %11 = arith.mulf %10, %8 : vector<128x8xf32>
    %c0_9 = arith.constant 0 : index
    %c0_10 = arith.constant 0 : index
    %12 = vector.load %arg6[%c0_9, %c0_10] : memref<128x8xf32, #tpu.memory_space<vmem>>, vector<128x8xf32>
    tpu.vector_store %arg6[%c0_9, %c0_10], %11 {strides = array<i32>} : memref<128x8xf32, #tpu.memory_space<vmem>>, vector<128x8xf32>,
    return
  }
  func.func @transform_0(%arg0: i32) -> (i32, i32) {
    %c0_i32 = arith.constant 0 : i32
    %c0_i32_0 = arith.constant 0 : i32
    return %arg0, %c0_i32 : i32, i32
  }
  func.func @transform_1(%arg0: i32) -> (i32, i32) {
    %c0_i32 = arith.constant 0 : i32
    %c0_i32_0 = arith.constant 0 : i32
    %c0_i32_1 = arith.constant 0 : i32
    return %c0_i32, %c0_i32_0 : i32, i32
  }
  func.func @transform_2(%arg0: i32) -> (i32, i32) {
    %c0_i32 = arith.constant 0 : i32
    %c0_i32_0 = arith.constant 0 : i32
    %c0_i32_1 = arith.constant 0 : i32
    return %c0_i32, %c0_i32_0 : i32, i32
  }
  func.func @transform_3(%arg0: i32) -> (i32, i32) {
    %c0_i32 = arith.constant 0 : i32
    %c0_i32_0 = arith.constant 0 : i32
    %c0_i32_1 = arith.constant 0 : i32
    return %c0_i32, %c0_i32_0 : i32, i32
  }
  func.func @transform_4(%arg0: i32) -> (i32, i32) {
    %c0_i32 = arith.constant 0 : i32
    %c0_i32_0 = arith.constant 0 : i32
    return %arg0, %c0_i32 : i32, i32
  }
  func.func @transform_5(%arg0: i32) -> (i32, i32) {
    %c0_i32 = arith.constant 0 : i32
    %c0_i32_0 = arith.constant 0 : i32
    return %arg0, %c0_i32 : i32, i32
  }
}

module attributes {stable_mosaic.version = 11 : i64} {
  func.func @_pdn_conv_kernel(%arg0: i32, %arg1: i32, %arg2: memref<128x128xf32, #tpu.memory_space<vmem>>, %arg3: memref<128x8xf32, #tpu.memory_space<vmem>>, %arg4: memref<128x8xf32, #tpu.memory_space<vmem>>, %arg5: memref<128x1xf32, #tpu.memory_space<vmem>>, %arg6: memref<1x8xf32, #tpu.memory_space<vmem>>, %arg7: memref<128x8xf32, #tpu.memory_space<vmem>>, %arg8: memref<1x1x8xf32, #tpu.memory_space<vmem>>, %arg9: memref<1x1x8xf32, #tpu.memory_space<vmem>>, %arg10: memref<128x8xf32, #tpu.memory_space<vmem>>) attributes {dimension_semantics = [#tpu.dimension_semantics<parallel>, #tpu.dimension_semantics<arbitrary>], iteration_bounds = array<i64: 2, 2>, scalar_prefetch = 0 : i64, scratch_operands = 1 : i64, tpu.core_type = #tpu.core_type<tc>, window_params = [{transform_indices = @transform_0, window_bounds = array<i64: 128, 128>}, {transform_indices = @transform_1, window_bounds = array<i64: 128, 8>}, {transform_indices = @transform_2, window_bounds = array<i64: 128, 8>}, {transform_indices = @transform_3, window_bounds = array<i64: 128, 1>}, {pipeline_mode = #tpu.pipeline_mode<synchronous>, transform_indices = @transform_4, window_bounds = array<i64: 1, 8>}, {transform_indices = @transform_5, window_bounds = array<i64: 128, 8>}, {transform_indices = @transform_6, window_bounds = array<i64: 1, 1, 8>}, {transform_indices = @transform_7, window_bounds = array<i64: 1, 1, 8>}]} {
    %c0_i32 = arith.constant 0 : i32
    %0 = arith.cmpi eq, %arg1, %c0_i32 : i32
    %1 = arith.extui %0 : i1 to i32
    %c0_i32_0 = arith.constant 0 : i32
    %2 = arith.cmpi ne, %1, %c0_i32_0 : i32
    scf.if %2 {
      %cst_9 = arith.constant 0.000000e+00 : f32
      %12 = vector.broadcast %cst_9 : f32 to vector<128x8xf32>
      %c0_10 = arith.constant 0 : index
      %c0_11 = arith.constant 0 : index
      %13 = vector.load %arg10[%c0_10, %c0_11] : memref<128x8xf32, #tpu.memory_space<vmem>>, vector<128x8xf32>
      tpu.vector_store %arg10[%c0_10, %c0_11], %12 {strides = array<i32>} : memref<128x8xf32, #tpu.memory_space<vmem>>, vector<128x8xf32>,
    } else {
    }
    %c0 = arith.constant 0 : index
    %c0_1 = arith.constant 0 : index
    %3 = vector.load %arg10[%c0, %c0_1] : memref<128x8xf32, #tpu.memory_space<vmem>>, vector<128x8xf32>
    %c0_2 = arith.constant 0 : index
    %c0_3 = arith.constant 0 : index
    %4 = vector.load %arg2[%c0_2, %c0_3] : memref<128x128xf32, #tpu.memory_space<vmem>>, vector<128x128xf32>
    %c0_4 = arith.constant 0 : index
    %c0_5 = arith.constant 0 : index
    %5 = vector.load %arg3[%c0_4, %c0_5] : memref<128x8xf32, #tpu.memory_space<vmem>>, vector<128x8xf32>
    %cst = arith.constant dense<0.000000e+00> : vector<128x8xf32>
    %6 = tpu.matmul %4, %5, %cst {dimension_numbers = #tpu.dot_dimension_numbers<[1], [0], [0], [1], [0, 0, 1, 1], [], []>} : vector<128x128xf32>, vector<128x8xf32>, vector<128x8xf32> -> vector<128x8xf32>
    %7 = arith.addf %3, %6 : vector<128x8xf32>
    %c0_6 = arith.constant 0 : index
    %c0_7 = arith.constant 0 : index
    %8 = vector.load %arg10[%c0_6, %c0_7] : memref<128x8xf32, #tpu.memory_space<vmem>>, vector<128x8xf32>
    tpu.vector_store %arg10[%c0_6, %c0_7], %7 {strides = array<i32>} : memref<128x8xf32, #tpu.memory_space<vmem>>, vector<128x8xf32>,
    %c1_i32 = arith.constant 1 : i32
    %9 = arith.cmpi eq, %arg1, %c1_i32 : i32
    %10 = arith.extui %9 : i1 to i32
    %c0_i32_8 = arith.constant 0 : i32
    %11 = arith.cmpi ne, %10, %c0_i32_8 : i32
    scf.if %11 {
      %c0_9 = arith.constant 0 : index
      %c0_10 = arith.constant 0 : index
      %12 = vector.load %arg5[%c0_9, %c0_10] : memref<128x1xf32, #tpu.memory_space<vmem>>, vector<128x1xf32>
      %c0_11 = arith.constant 0 : index
      %c0_12 = arith.constant 0 : index
      %13 = vector.load %arg10[%c0_11, %c0_12] : memref<128x8xf32, #tpu.memory_space<vmem>>, vector<128x8xf32>
      %c0_13 = arith.constant 0 : index
      %c0_14 = arith.constant 0 : index
      %14 = vector.load %arg4[%c0_13, %c0_14] : memref<128x8xf32, #tpu.memory_space<vmem>>, vector<128x8xf32>
      %15 = arith.addf %13, %14 : vector<128x8xf32>
      %16 = vector.broadcast %12 : vector<128x1xf32> to vector<128x8xf32>
      %17 = arith.mulf %16, %15 : vector<128x8xf32>
      %c0_15 = arith.constant 0 : index
      %c0_16 = arith.constant 0 : index
      %18 = vector.load %arg6[%c0_15, %c0_16] : memref<1x8xf32, #tpu.memory_space<vmem>>, vector<1x8xf32>
      %19 = vector.broadcast %18 : vector<1x8xf32> to vector<128x8xf32>
      %20 = arith.addf %17, %19 : vector<128x8xf32>
      %cst_17 = arith.constant 0.000000e+00 : f32
      %21 = vector.broadcast %cst_17 : f32 to vector<128x8xf32>
      %22 = arith.maximumf %20, %21 : vector<128x8xf32>
      %cst_18 = arith.constant 0.000000e+00 : f32
      %23 = vector.broadcast %cst_18 : f32 to vector<128x1xf32>
      %24 = arith.cmpf ogt, %12, %23 : vector<128x1xf32>
      %cst_19 = arith.constant 0.000000e+00 : f32
      %25 = vector.shape_cast %24 : vector<128x1xi1> to vector<128x1xi1>
      %26 = vector.broadcast %25 : vector<128x1xi1> to vector<128x8xi1>
      %27 = vector.broadcast %cst_19 : f32 to vector<128x8xf32>
      %28 = arith.select %26, %22, %27 : vector<128x8xi1>, vector<128x8xf32>
      %c0_20 = arith.constant 0 : index
      %c0_21 = arith.constant 0 : index
      %29 = vector.load %arg7[%c0_20, %c0_21] : memref<128x8xf32, #tpu.memory_space<vmem>>, vector<128x8xf32>
      tpu.vector_store %arg7[%c0_20, %c0_21], %28 {strides = array<i32>} : memref<128x8xf32, #tpu.memory_space<vmem>>, vector<128x8xf32>,
      %cst_22 = arith.constant dense<0.000000e+00> : vector<8xf32>
      %30 = vector.multi_reduction <add>, %28, %cst_22 [0] : vector<128x8xf32> to vector<8xf32>
      %31 = vector.shape_cast %30 : vector<8xf32> to vector<1x8xf32>
      %32 = vector.shape_cast %31 : vector<1x8xf32> to vector<1x1x8xf32>
      %c0_23 = arith.constant 0 : index
      %c0_24 = arith.constant 0 : index
      %c0_25 = arith.constant 0 : index
      %33 = vector.load %arg8[%c0_23, %c0_24, %c0_25] : memref<1x1x8xf32, #tpu.memory_space<vmem>>, vector<1x1x8xf32>
      tpu.vector_store %arg8[%c0_23, %c0_24, %c0_25], %32 {strides = array<i32>} : memref<1x1x8xf32, #tpu.memory_space<vmem>>, vector<1x1x8xf32>,
      %34 = arith.mulf %28, %28 : vector<128x8xf32>
      %cst_26 = arith.constant dense<0.000000e+00> : vector<8xf32>
      %35 = vector.multi_reduction <add>, %34, %cst_26 [0] : vector<128x8xf32> to vector<8xf32>
      %36 = vector.shape_cast %35 : vector<8xf32> to vector<1x8xf32>
      %37 = vector.shape_cast %36 : vector<1x8xf32> to vector<1x1x8xf32>
      %c0_27 = arith.constant 0 : index
      %c0_28 = arith.constant 0 : index
      %c0_29 = arith.constant 0 : index
      %38 = vector.load %arg9[%c0_27, %c0_28, %c0_29] : memref<1x1x8xf32, #tpu.memory_space<vmem>>, vector<1x1x8xf32>
      tpu.vector_store %arg9[%c0_27, %c0_28, %c0_29], %37 {strides = array<i32>} : memref<1x1x8xf32, #tpu.memory_space<vmem>>, vector<1x1x8xf32>,
    } else {
    }
    return
  }
  func.func @transform_0(%arg0: i32, %arg1: i32) -> (i32, i32) {
    %c0_i32 = arith.constant 0 : i32
    return %arg0, %arg1 : i32, i32
  }
  func.func @transform_1(%arg0: i32, %arg1: i32) -> (i32, i32) {
    %c0_i32 = arith.constant 0 : i32
    %c0_i32_0 = arith.constant 0 : i32
    return %arg1, %c0_i32 : i32, i32
  }
  func.func @transform_2(%arg0: i32, %arg1: i32) -> (i32, i32) {
    %c0_i32 = arith.constant 0 : i32
    %c0_i32_0 = arith.constant 0 : i32
    return %arg0, %c0_i32 : i32, i32
  }
  func.func @transform_3(%arg0: i32, %arg1: i32) -> (i32, i32) {
    %c0_i32 = arith.constant 0 : i32
    %c0_i32_0 = arith.constant 0 : i32
    return %arg0, %c0_i32 : i32, i32
  }
  func.func @transform_4(%arg0: i32, %arg1: i32) -> (i32, i32) {
    %c0_i32 = arith.constant 0 : i32
    %c0_i32_0 = arith.constant 0 : i32
    %c0_i32_1 = arith.constant 0 : i32
    return %c0_i32, %c0_i32_0 : i32, i32
  }
  func.func @transform_5(%arg0: i32, %arg1: i32) -> (i32, i32) {
    %c0_i32 = arith.constant 0 : i32
    %c0_i32_0 = arith.constant 0 : i32
    return %arg0, %c0_i32 : i32, i32
  }
  func.func @transform_6(%arg0: i32, %arg1: i32) -> (i32, i32, i32) {
    %c0_i32 = arith.constant 0 : i32
    %c0_i32_0 = arith.constant 0 : i32
    %c0_i32_1 = arith.constant 0 : i32
    return %arg0, %c0_i32, %c0_i32_0 : i32, i32, i32
  }
  func.func @transform_7(%arg0: i32, %arg1: i32) -> (i32, i32, i32) {
    %c0_i32 = arith.constant 0 : i32
    %c0_i32_0 = arith.constant 0 : i32
    %c0_i32_1 = arith.constant 0 : i32
    return %arg0, %c0_i32, %c0_i32_0 : i32, i32, i32
  }
}

module attributes {stable_mosaic.version = 11 : i64} {
  func.func @_affine_kernel(%arg0: i32, %arg1: memref<128x8xf32, #tpu.memory_space<vmem>>, %arg2: memref<1x8xf32, #tpu.memory_space<vmem>>, %arg3: memref<1x8xf32, #tpu.memory_space<vmem>>, %arg4: memref<128x8xf32, #tpu.memory_space<vmem>>) attributes {dimension_semantics = [#tpu.dimension_semantics<parallel>], iteration_bounds = array<i64: 2>, scalar_prefetch = 0 : i64, scratch_operands = 0 : i64, tpu.core_type = #tpu.core_type<tc>, window_params = [{transform_indices = @transform_0, window_bounds = array<i64: 128, 8>}, {pipeline_mode = #tpu.pipeline_mode<synchronous>, transform_indices = @transform_1, window_bounds = array<i64: 1, 8>}, {pipeline_mode = #tpu.pipeline_mode<synchronous>, transform_indices = @transform_2, window_bounds = array<i64: 1, 8>}, {transform_indices = @transform_3, window_bounds = array<i64: 128, 8>}]} {
    %c0 = arith.constant 0 : index
    %c0_0 = arith.constant 0 : index
    %0 = vector.load %arg1[%c0, %c0_0] : memref<128x8xf32, #tpu.memory_space<vmem>>, vector<128x8xf32>
    %c0_1 = arith.constant 0 : index
    %c0_2 = arith.constant 0 : index
    %1 = vector.load %arg2[%c0_1, %c0_2] : memref<1x8xf32, #tpu.memory_space<vmem>>, vector<1x8xf32>
    %2 = vector.broadcast %1 : vector<1x8xf32> to vector<128x8xf32>
    %3 = arith.mulf %0, %2 : vector<128x8xf32>
    %c0_3 = arith.constant 0 : index
    %c0_4 = arith.constant 0 : index
    %4 = vector.load %arg3[%c0_3, %c0_4] : memref<1x8xf32, #tpu.memory_space<vmem>>, vector<1x8xf32>
    %5 = vector.broadcast %4 : vector<1x8xf32> to vector<128x8xf32>
    %6 = arith.addf %3, %5 : vector<128x8xf32>
    %c0_5 = arith.constant 0 : index
    %c0_6 = arith.constant 0 : index
    %7 = vector.load %arg4[%c0_5, %c0_6] : memref<128x8xf32, #tpu.memory_space<vmem>>, vector<128x8xf32>
    tpu.vector_store %arg4[%c0_5, %c0_6], %6 {strides = array<i32>} : memref<128x8xf32, #tpu.memory_space<vmem>>, vector<128x8xf32>,
    return
  }
  func.func @transform_0(%arg0: i32) -> (i32, i32) {
    %c0_i32 = arith.constant 0 : i32
    %c0_i32_0 = arith.constant 0 : i32
    return %arg0, %c0_i32 : i32, i32
  }
  func.func @transform_1(%arg0: i32) -> (i32, i32) {
    %c0_i32 = arith.constant 0 : i32
    %c0_i32_0 = arith.constant 0 : i32
    %c0_i32_1 = arith.constant 0 : i32
    return %c0_i32, %c0_i32_0 : i32, i32
  }
  func.func @transform_2(%arg0: i32) -> (i32, i32) {
    %c0_i32 = arith.constant 0 : i32
    %c0_i32_0 = arith.constant 0 : i32
    %c0_i32_1 = arith.constant 0 : i32
    return %c0_i32, %c0_i32_0 : i32, i32
  }
  func.func @transform_3(%arg0: i32) -> (i32, i32) {
    %c0_i32 = arith.constant 0 : i32
    %c0_i32_0 = arith.constant 0 : i32
    return %arg0, %c0_i32 : i32, i32
  }
}

</mosaic_0001>

<llo_original>
// kernel: _lambda_.10
$region0: #{_lambda_.10}
  #allocation0 [shape = 'u32[]', space=smem, size = 0x4, offset = 0x4, fixed_abs, tag = 'smem constant byte address 0x4 - core index']
  #allocation1 [shape = 'u32[72,128]{1,0:T(1,128)}', space=vmem, size = 0x9000, scoped, tag = 'internal scratch']
  %s0 = inlined_call_operand.vmem [shape: f32[8,384], index: 0, kind: input, shape index: {}]
  %s1 = inlined_call_operand.vmem [shape: f32[64,8], index: 1, kind: input, shape index: {}]
  %s2 = inlined_call_operand.vmem [shape: f32[64,1], index: 2, kind: input, shape index: {}]
  %s3 = inlined_call_operand.vmem [shape: f32[4,64], index: 3, kind: input, shape index: {}]
  %s4 = inlined_call_operand.vmem [shape: f32[4,1], index: 4, kind: input, shape index: {}]
  %s5 = inlined_call_operand.vmem [shape: f32[4,384], index: 5, kind: output, shape index: {}]
  %s6 = sld [smem:[#allocation0]]
  $region53: #{_lambda_.10} parent=0
    _
  %s8 = ssub.s32 1, %s6
  %s9 = scalar_select 0, %s8, %s6
  loop: start=0, step=1, limit=5
  $region2: #{_lambda_.10} parent=0 // loop_pre_header
    _
  $region3: #{_lambda_.10} parent=0 // loop_header
    %s11 = sphi 0, %s15
    %p12 = scmp.ge.s32.totalorder %s11, 5
    %s21 = sphi 0, %s23
    %s24 = sphi 0, %s21
    %s25 = sphi 0, %s24
    %s41 = sphi 0, %s25
    %s45 = sphi 0, %s45
    %s47 = sphi 0, %s45
    %s48 = sphi 0, %s47
    %s62 = sphi 0, %s48
    %s66 = sphi 0, %s66
    %s68 = sphi 0, %s66
    %s69 = sphi 0, %s68
    %s83 = sphi 0, %s69
    %s87 = sphi 0, %s87
    %s89 = sphi 0, %s87
    %s90 = sphi 0, %s89
    %s104 = sphi 0, %s90
    %s108 = sphi 0, %s108
    %s110 = sphi 0, %s108
    %s111 = sphi 0, %s110
    %s125 = sphi 0, %s111
    %s131 = sphi 0, %s133
    %s134 = sphi 0, %s131
    %s135 = sphi 0, %s134
    %s151 = sphi 0, %s135
  $region4: #{_lambda_.10} parent=0 // loop_header_branch
    %14 = sbr.rel (%p12) target = $region8
  $region5: #{_lambda_.10} parent=0 // loop_body
    %s16 = ssub.s32 %s11, 1
    %s17 = ssub.s32 %s11, 2
    %s18 = sadd.s32 %s11, 1
    %s19 = ssub.s32 %s11, %s18
    %p20 = scmp.eq.s32.totalorder %s19, 0
    %s22 = sadd.s32 %s21, 1
    %s23 = scalar_select %p20, %s21, %s22
    %p26 = pneg %p20
    %p27 = scmp.eq.s32.totalorder %s11, 2
    %p28 = por %p26, %p27
    %p29 = scmp.ne.s32.totalorder %s21, %s24
    %p30 = scmp.eq.s32.totalorder %s11, 0
    %p31 = por %p29, %p30
    %p32 = scmp.ne.s32.totalorder %s21, %s24
    %p33 = scmp.eq.s32.totalorder %s16, 2
    %p34 = por %p32, %p33
    %p35 = scmp.ne.s32.totalorder %s24, %s25
    %p36 = scmp.eq.s32.totalorder %s16, 0
    %p37 = por %p35, %p36
    %p38 = scmp.ne.s32.totalorder %s24, %s25
    %p39 = scmp.eq.s32.totalorder %s17, 2
    %p40 = por %p38, %p39
    %p42 = scmp.ne.s32.totalorder %s25, %s41
    %p43 = scmp.eq.s32.totalorder %s17, 0
    %p44 = por %p42, %p43
    %s46 = sadd.s32 %s45, 1
    %p49 = scmp.eq.s32.totalorder %s11, 2
    %p50 = scmp.ne.s32.totalorder %s45, %s47
    %p51 = scmp.eq.s32.totalorder %s11, 0
    %p52 = por %p50, %p51
    %p53 = scmp.ne.s32.totalorder %s45, %s47
    %p54 = scmp.eq.s32.totalorder %s16, 2
    %p55 = por %p53, %p54
    %p56 = scmp.ne.s32.totalorder %s47, %s48
    %p57 = scmp.eq.s32.totalorder %s16, 0
    %p58 = por %p56, %p57
    %p59 = scmp.ne.s32.totalorder %s47, %s48
    %p60 = scmp.eq.s32.totalorder %s17, 2
    %p61 = por %p59, %p60
    %p63 = scmp.ne.s32.totalorder %s48, %s62
    %p64 = scmp.eq.s32.totalorder %s17, 0
    %p65 = por %p63, %p64
    %s67 = sadd.s32 %s66, 1
    %p70 = scmp.eq.s32.totalorder %s11, 2
    %p71 = scmp.ne.s32.totalorder %s66, %s68
    %p72 = scmp.eq.s32.totalorder %s11, 0
    %p73 = por %p71, %p72
    %p74 = scmp.ne.s32.totalorder %s66, %s68
    %p75 = scmp.eq.s32.totalorder %s16, 2
    %p76 = por %p74, %p75
    %p77 = scmp.ne.s32.totalorder %s68, %s69
    %p78 = scmp.eq.s32.totalorder %s16, 0
    %p79 = por %p77, %p78
    %p80 = scmp.ne.s32.totalorder %s68, %s69
    %p81 = scmp.eq.s32.totalorder %s17, 2
    %p82 = por %p80, %p81
    %p84 = scmp.ne.s32.totalorder %s69, %s83
    %p85 = scmp.eq.s32.totalorder %s17, 0
    %p86 = por %p84, %p85
    %s88 = sadd.s32 %s87, 1
    %p91 = scmp.eq.s32.totalorder %s11, 2
    %p92 = scmp.ne.s32.totalorder %s87, %s89
    %p93 = scmp.eq.s32.totalorder %s11, 0
    %p94 = por %p92, %p93
    %p95 = scmp.ne.s32.totalorder %s87, %s89
    %p96 = scmp.eq.s32.totalorder %s16, 2
    %p97 = por %p95, %p96
    %p98 = scmp.ne.s32.totalorder %s89, %s90
    %p99 = scmp.eq.s32.totalorder %s16, 0
    %p100 = por %p98, %p99
    %p101 = scmp.ne.s32.totalorder %s89, %s90
    %p102 = scmp.eq.s32.totalorder %s17, 2
    %p103 = por %p101, %p102
    %p105 = scmp.ne.s32.totalorder %s90, %s104
    %p106 = scmp.eq.s32.totalorder %s17, 0
    %p107 = por %p105, %p106
    %s109 = sadd.s32 %s108, 1
    %p112 = scmp.eq.s32.totalorder %s11, 2
    %p113 = scmp.ne.s32.totalorder %s108, %s110
    %p114 = scmp.eq.s32.totalorder %s11, 0
    %p115 = por %p113, %p114
    %p116 = scmp.ne.s32.totalorder %s108, %s110
    %p117 = scmp.eq.s32.totalorder %s16, 2
    %p118 = por %p116, %p117
    %p119 = scmp.ne.s32.totalorder %s110, %s111
    %p120 = scmp.eq.s32.totalorder %s16, 0
    %p121 = por %p119, %p120
    %p122 = scmp.ne.s32.totalorder %s110, %s111
    %p123 = scmp.eq.s32.totalorder %s17, 2
    %p124 = por %p122, %p123
    %p126 = scmp.ne.s32.totalorder %s111, %s125
    %p127 = scmp.eq.s32.totalorder %s17, 0
    %p128 = por %p126, %p127
    %s129 = ssub.s32 %s11, %s18
    %p130 = scmp.eq.s32.totalorder %s129, 0
    %s132 = sadd.s32 %s131, 1
    %s133 = scalar_select %p130, %s131, %s132
    %p136 = pneg %p130
    %p137 = scmp.eq.s32.totalorder %s11, 2
    %p138 = por %p136, %p137
    %p139 = scmp.ne.s32.totalorder %s131, %s134
    %p140 = scmp.eq.s32.totalorder %s11, 0
    %p141 = por %p139, %p140
    %p142 = scmp.ne.s32.totalorder %s131, %s134
    %p143 = scmp.eq.s32.totalorder %s16, 2
    %p144 = por %p142, %p143
    %p145 = scmp.ne.s32.totalorder %s134, %s135
    %p146 = scmp.eq.s32.totalorder %s16, 0
    %p147 = por %p145, %p146
    %p148 = scmp.ne.s32.totalorder %s134, %s135
    %p149 = scmp.eq.s32.totalorder %s17, 2
    %p150 = por %p148, %p149
    %p152 = scmp.ne.s32.totalorder %s135, %s151
    %p153 = scmp.eq.s32.totalorder %s17, 0
    %p154 = por %p152, %p153
    %p155 = scmp.le.s32.totalorder 1, %s11
    %p156 = scmp.lt.s32.totalorder %s11, 4
    %p157 = pnand %p155, %p156
    %p158 = pneg %p157
    // Predicated region
    $region9: #{_lambda_.10} parent=5 // pred_check
      _
    $region10: #{_lambda_.10} parent=5 // pred_check_branch
      %160 = sbr.rel (%p157) target = $region12
    $region11: #{_lambda_.10} parent=5 // pred_region
      %s161 = ssub.s32 %s11, 1
      // Predicated region
      $region13: #{_lambda_.10} parent=11 // pred_check
        %p162 = pneg %p58
      $region14: #{_lambda_.10} parent=11 // pred_check_branch
        %164 = sbr.rel (%p162) target = $region16
      $region15: #{_lambda_.10} parent=11 // pred_region
        _
      $region16: #{_lambda_.10} parent=11 // pred_fallthru
        _
      // Predicated region
      $region17: #{_lambda_.10} parent=11 // pred_check
        %p165 = pneg %p79
      $region18: #{_lambda_.10} parent=11 // pred_check_branch
        %167 = sbr.rel (%p165) target = $region20
      $region19: #{_lambda_.10} parent=11 // pred_region
        _
      $region20: #{_lambda_.10} parent=11 // pred_fallthru
        _
      // Predicated region
      $region21: #{_lambda_.10} parent=11 // pred_check
        %p168 = pneg %p100
      $region22: #{_lambda_.10} parent=11 // pred_check_branch
        %170 = sbr.rel (%p168) target = $region24
      $region23: #{_lambda_.10} parent=11 // pred_region
        _
      $region24: #{_lambda_.10} parent=11 // pred_fallthru
        _
      // Predicated region
      $region25: #{_lambda_.10} parent=11 // pred_check
        %p171 = pneg %p121
      $region26: #{_lambda_.10} parent=11 // pred_check_branch
        %173 = sbr.rel (%p171) target = $region28
      $region27: #{_lambda_.10} parent=11 // pred_region
        _
      $region28: #{_lambda_.10} parent=11 // pred_fallthru
        _
    $region12: #{_lambda_.10} parent=5 // pred_fallthru
      _
    %p174 = scmp.lt.s32.totalorder %s11, 3
    // Predicated region
    $region29: #{_lambda_.10} parent=5 // pred_check
      %p175 = pneg %p174
    $region30: #{_lambda_.10} parent=5 // pred_check_branch
      %177 = sbr.rel (%p175) target = $region32
    $region31: #{_lambda_.10} parent=5 // pred_region
      // Predicated region
      $region33: #{_lambda_.10} parent=31 // pred_check
        %p178 = pneg %p31
      $region34: #{_lambda_.10} parent=31 // pred_check_branch
        %180 = sbr.rel (%p178) target = $region36
      $region35: #{_lambda_.10} parent=31 // pred_region
        %p181 = scmp.lt.s32.totalorder %s11, 2
        %s182 = scalar_select %p181, %s11, 2
        %s183 = smul.addr %s182, 8
        %s184 = scalar_lea.vmem %s0, %s183
      $region36: #{_lambda_.10} parent=31 // pred_fallthru
        _
    $region32: #{_lambda_.10} parent=5 // pred_fallthru
      _
    %p185 = scmp.le.s32.totalorder 1, %s11
    %p186 = scmp.lt.s32.totalorder %s11, 4
    %p187 = pnand %p185, %p186
    %p188 = pneg %p187
    // Predicated region
    $region37: #{_lambda_.10} parent=5 // pred_check
      _
    $region38: #{_lambda_.10} parent=5 // pred_check_branch
      %190 = sbr.rel (%p187) target = $region40
    $region39: #{_lambda_.10} parent=5 // pred_region
      %s191 = ssub.s32 %s11, 1
      %p192 = scmp.lt.s32.totalorder %s16, 2
      %s193 = scalar_select %p192, %s16, 2
      %s194 = smul.addr %s193, 8
      %s195 = scalar_lea.vmem %s0, %s194
      %p196 = pneg %p37
      %p197 = pneg %p34
      %p198 = pneg %p58
      %p199 = pneg %p55
      %p200 = pneg %p79
      %p201 = pneg %p76
      %p202 = pneg %p100
      %p203 = pneg %p97
      %p204 = pneg %p121
      %p205 = pneg %p118
      %p206 = pneg %p147
      %p207 = pneg %p144
      %p208 = scmp.lt.s32.totalorder %s16, 2
      %s209 = scalar_select %p208, %s16, 2
      %s210 = smul.addr %s209, 4
      %s211 = scalar_lea.vmem %s5, %s210
      %p212 = scmp.lt.s32.totalorder %s16, 2
      %s213 = scalar_select %p212, %s16, 2
      %s214 = smul.addr %s213, 8
      %s215 = scalar_lea.vmem %s0, %s214
      %p216 = scmp.lt.s32.totalorder %s16, 2
      %s217 = scalar_select %p216, %s16, 2
      %s218 = smul.addr %s217, 4
      %s219 = scalar_lea.vmem %s5, %s218
      %v220 = vld [vmem:[%s1] sm:$0xff]
      %v221 = vld [vmem:[%s1 + $0x8] sm:$0xff]
      %v222 = vld [vmem:[%s1 + $0x10] sm:$0xff]
      %v223 = vld [vmem:[%s1 + $0x18] sm:$0xff]
      %v224 = vld [vmem:[%s1 + $0x20] sm:$0xff]
      %v225 = vld [vmem:[%s1 + $0x28] sm:$0xff]
      %v226 = vld [vmem:[%s1 + $0x30] sm:$0xff]
      %v227 = vld [vmem:[%s1 + $0x38] sm:$0xff]
      %v228 = vld [vmem:[%s215] sm:$0xff]
      %v229 = vld [vmem:[%s2] sm:$0xff]
      %v230 = vld [vmem:[%s2 + $0x8] sm:$0xff]
      %v231 = vld [vmem:[%s2 + $0x10] sm:$0xff]
      %v232 = vld [vmem:[%s2 + $0x18] sm:$0xff]
      %v233 = vld [vmem:[%s2 + $0x20] sm:$0xff]
      %v234 = vld [vmem:[%s2 + $0x28] sm:$0xff]
      %v235 = vld [vmem:[%s2 + $0x30] sm:$0xff]
      %v236 = vld [vmem:[%s2 + $0x38] sm:$0xff]
      %238 = vset.pattern.permute.xlu0 0
      %239 = vperm.xlu0 %238, %v229
      %v240 = vpop.permute.xlu0 %239
      %243 = vset.pattern.permute.xlu0 0
      %244 = vperm.xlu0 %243, %v230
      %v245 = vpop.permute.xlu0 %244
      %248 = vset.pattern.permute.xlu0 0
      %249 = vperm.xlu0 %248, %v231
      %v250 = vpop.permute.xlu0 %249
      %253 = vset.pattern.permute.xlu0 0
      %254 = vperm.xlu0 %253, %v232
      %v255 = vpop.permute.xlu0 %254
      %258 = vset.pattern.permute.xlu0 0
      %259 = vperm.xlu0 %258, %v233
      %v260 = vpop.permute.xlu0 %259
      %263 = vset.pattern.permute.xlu0 0
      %264 = vperm.xlu0 %263, %v234
      %v265 = vpop.permute.xlu0 %264
      %268 = vset.pattern.permute.xlu0 0
      %269 = vperm.xlu0 %268, %v235
      %v270 = vpop.permute.xlu0 %269
      %273 = vset.pattern.permute.xlu0 0
      %274 = vperm.xlu0 %273, %v236
      %v275 = vpop.permute.xlu0 %274
      %vm277 = vcmask 64512
      %v279 = vsel %vm277, %v220, 0
      %v282 = vsel %vm277, %v221, 0
      %v285 = vsel %vm277, %v222, 0
      %v288 = vsel %vm277, %v223, 0
      %v291 = vsel %vm277, %v224, 0
      %v294 = vsel %vm277, %v225, 0
      %v297 = vsel %vm277, %v226, 0
      %v300 = vsel %vm277, %v227, 0
      %302 = vmatpush.msra.mxu0 0.0
      %303 = vmatpush.msra.mxu0 0.0
      %304 = vmatpush.msra.mxu0 0.0
      %305 = vmatpush.msra.mxu0 0.0
      %306 = vmatpush.msra.mxu0 0.0
      %307 = vmatpush.msra.mxu0 0.0
      %308 = vmatpush.msra.mxu0 0.0
      %309 = vmatpush.msra.mxu0 0.0
      %310 = vmatpush.msra.mxu0 0.0
      %311 = vmatpush.msra.mxu0 0.0
      %312 = vmatpush.msra.mxu0 0.0
      %313 = vmatpush.msra.mxu0 0.0
      %314 = vmatpush.msra.mxu0 0.0
      %315 = vmatpush.msra.mxu0 0.0
      %316 = vmatpush.msra.mxu0 0.0
      %317 = vmatpush.msra.mxu0 %v228
      %318 = vmatmul.f32.gmra.mxu0 %v279
      %v319 = vpop.f32.mrf.mxu0
      %v320 = vadd.f32 %v240, %v319
      %321 = vmatmul.f32.gmra.mxu0 %v282
      %v322 = vpop.f32.mrf.mxu0
      %v323 = vadd.f32 %v245, %v322
      %324 = vmatmul.f32.gmra.mxu0 %v285
      %v325 = vpop.f32.mrf.mxu0
      %v326 = vadd.f32 %v250, %v325
      %327 = vmatmul.f32.gmra.mxu0 %v288
      %v328 = vpop.f32.mrf.mxu0
      %v329 = vadd.f32 %v255, %v328
      %330 = vmatmul.f32.gmra.mxu0 %v291
      %v331 = vpop.f32.mrf.mxu0
      %v332 = vadd.f32 %v260, %v331
      %333 = vmatmul.f32.gmra.mxu0 %v294
      %v334 = vpop.f32.mrf.mxu0
      %v335 = vadd.f32 %v265, %v334
      %336 = vmatmul.f32.gmra.mxu0 %v297
      %v337 = vpop.f32.mrf.mxu0
      %v338 = vadd.f32 %v270, %v337
      %339 = vmatmul.f32.gmra.mxu0 %v300
      %v340 = vpop.f32.mrf.mxu0
      %v341 = vadd.f32 %v275, %v340
      %342 = vdwg.mxu0
      %v343 = vmax.f32 %v320, 0.0
      %v344 = vmax.f32 %v323, 0.0
      %v345 = vmax.f32 %v326, 0.0
      %v346 = vmax.f32 %v329, 0.0
      %v347 = vmax.f32 %v332, 0.0
      %v348 = vmax.f32 %v335, 0.0
      %v349 = vmax.f32 %v338, 0.0
      %v350 = vmax.f32 %v341, 0.0
      %v351 = vld [vmem:[%s3] sm:$0xf]
      %v352 = vld [vmem:[%s4] sm:$0xf]
      %354 = vset.pattern.permute.xlu0 0
      %355 = vperm.xlu0 %354, %v352
      %v356 = vpop.permute.xlu0 %355
      %vm358 = vcmask 523264
      %v360 = vsel %vm358, %v351, 0
      %362 = vmatpush.msra.mxu0 0.0
      %363 = vmatpush.msra.mxu0 0.0
      %364 = vmatpush.msra.mxu0 0.0
      %365 = vmatpush.msra.mxu0 0.0
      %366 = vmatpush.msra.mxu0 0.0
      %367 = vmatpush.msra.mxu0 0.0
      %368 = vmatpush.msra.mxu0 0.0
      %369 = vmatpush.msra.mxu0 0.0
      %370 = vmatpush.msra.mxu0 %v350
      %371 = vmatpush.msra.mxu0 %v349
      %372 = vmatpush.msra.mxu0 %v348
      %373 = vmatpush.msra.mxu0 %v347
      %374 = vmatpush.msra.mxu0 %v346
      %375 = vmatpush.msra.mxu0 %v345
      %376 = vmatpush.msra.mxu0 %v344
      %377 = vmatpush.msra.mxu0 %v343
      %378 = vmatmul.f32.gmra.mxu0 %v360
      %v379 = vpop.f32.mrf.mxu0
      %v380 = vadd.f32 %v356, %v379
      %381 = vdwg.mxu0
      %v382 = vxor.u32 %v380, 2147483648
      %v383 = vmul.f32 %v382, 1.442695
      %v384 = vpow.pop %v383
      %v385 = vadd.f32 %v384, 1.0
      %v386 = vrcp.pop %v385
      %v387 = vmul.f32 %v385, %v386
      %v388 = vsub.f32 1.0, %v387
      %v389 = vmul.f32 %v386, %v388
      %v390 = vadd.f32 %v386, %v389
      %vm391 = vweird.f32 %v385
      %vm392 = vweird.f32 %v386
      %vm393 = vmor %vm391, %vm392
      %v394 = vsel %vm393, %v386, %v390
      %v395 = vand.u32 2147483647, %v385
      %vm396 = vcmp.eq.f32.partialorder %v395, 8.507059e+37
      %v397 = vand.u32 %v385, 2147483648
      %v398 = vor.u32 1.1754944e-38, %v397
      %v399 = vsel %vm396, %v398, %v394
      %v400 = vmul.f32 1.0, %v399
      %401 = vst [vmem:[%s219] sm:$0xf] %v400
      %p402 = scmp.lt.s32.totalorder %s16, 2
      %s403 = scalar_select %p402, %s16, 2
      %s404 = smul.addr %s403, 4
      %s405 = scalar_lea.vmem %s5, %s404
      // Predicated region
      $region41: #{_lambda_.10} parent=39 // pred_check
        %p406 = pneg %p144
      $region42: #{_lambda_.10} parent=39 // pred_check_branch
        %408 = sbr.rel (%p406) target = $region44
      $region43: #{_lambda_.10} parent=39 // pred_region
        _
      $region44: #{_lambda_.10} parent=39 // pred_fallthru
        _
    $region40: #{_lambda_.10} parent=5 // pred_fallthru
      _
    %p409 = scmp.le.s32.totalorder 2, %s11
    // Predicated region
    $region45: #{_lambda_.10} parent=5 // pred_check
      %p410 = pneg %p409
    $region46: #{_lambda_.10} parent=5 // pred_check_branch
      %412 = sbr.rel (%p410) target = $region48
    $region47: #{_lambda_.10} parent=5 // pred_region
      %s413 = ssub.s32 %s11, 2
      // Predicated region
      $region49: #{_lambda_.10} parent=47 // pred_check
        %p414 = pneg %p150
      $region50: #{_lambda_.10} parent=47 // pred_check_branch
        %416 = sbr.rel (%p414) target = $region52
      $region51: #{_lambda_.10} parent=47 // pred_region
        %p417 = scmp.lt.s32.totalorder %s17, 2
        %s418 = scalar_select %p417, %s17, 2
        %s419 = smul.addr %s418, 4
        %s420 = scalar_lea.vmem %s5, %s419
      $region52: #{_lambda_.10} parent=47 // pred_fallthru
        _
    $region48: #{_lambda_.10} parent=5 // pred_fallthru
      _
  $region6: #{_lambda_.10} parent=0 // loop_footer
    %s15 = sadd.s32 1, %s11
  $region7: #{_lambda_.10} parent=0 // loop_footer_branch
    %10 = sbr.rel target = $region3
  $region8: #{_lambda_.10} parent=0 // loop_exit
    _

// kernel: _lambda_.11
$region0: #{_lambda_.11}
  #allocation0 [shape = 'u32[]', space=smem, size = 0x4, offset = 0x4, fixed_abs, tag = 'smem constant byte address 0x4 - core index']
  #allocation1 [shape = 'u32[72,128]{1,0:T(1,128)}', space=vmem, size = 0x9000, scoped, tag = 'internal scratch']
  %s0 = inlined_call_operand.vmem [shape: f32[256,32], index: 0, kind: input, shape index: {}]
  %s1 = inlined_call_operand.vmem [shape: f32[1,32], index: 1, kind: input, shape index: {}]
  %s2 = inlined_call_operand.vmem [shape: f32[1,32], index: 2, kind: input, shape index: {}]
  %s3 = inlined_call_operand.vmem [shape: f32[32,26], index: 3, kind: input, shape index: {}]
  %s4 = inlined_call_operand.vmem [shape: f32[256,1], index: 4, kind: input, shape index: {}]
  %s5 = inlined_call_operand.vmem [shape: f32[256,26], index: 5, kind: output, shape index: {}]
  %s6 = sld [smem:[#allocation0]]
  $region53: #{_lambda_.11} parent=0
    _
  %s8 = ssub.s32 1, %s6
  %s9 = scalar_select 0, %s8, %s6
  loop: start=0, step=1, limit=4
  $region2: #{_lambda_.11} parent=0 // loop_pre_header
    _
  $region3: #{_lambda_.11} parent=0 // loop_header
    %s11 = sphi 0, %s15
    %p12 = scmp.ge.s32.totalorder %s11, 4
    %s21 = sphi 0, %s23
    %s24 = sphi 0, %s21
    %s25 = sphi 0, %s24
    %s41 = sphi 0, %s25
    %s45 = sphi 0, %s45
    %s47 = sphi 0, %s45
    %s48 = sphi 0, %s47
    %s62 = sphi 0, %s48
    %s66 = sphi 0, %s66
    %s68 = sphi 0, %s66
    %s69 = sphi 0, %s68
    %s83 = sphi 0, %s69
    %s87 = sphi 0, %s87
    %s89 = sphi 0, %s87
    %s90 = sphi 0, %s89
    %s104 = sphi 0, %s90
    %s110 = sphi 0, %s112
    %s113 = sphi 0, %s110
    %s114 = sphi 0, %s113
    %s130 = sphi 0, %s114
    %s136 = sphi 0, %s138
    %s139 = sphi 0, %s136
    %s140 = sphi 0, %s139
    %s156 = sphi 0, %s140
  $region4: #{_lambda_.11} parent=0 // loop_header_branch
    %14 = sbr.rel (%p12) target = $region8
  $region5: #{_lambda_.11} parent=0 // loop_body
    %s16 = ssub.s32 %s11, 1
    %s17 = ssub.s32 %s11, 2
    %s18 = sadd.s32 %s11, 1
    %s19 = ssub.s32 %s11, %s18
    %p20 = scmp.eq.s32.totalorder %s19, 0
    %s22 = sadd.s32 %s21, 1
    %s23 = scalar_select %p20, %s21, %s22
    %p26 = pneg %p20
    %p27 = scmp.eq.s32.totalorder %s11, 1
    %p28 = por %p26, %p27
    %p29 = scmp.ne.s32.totalorder %s21, %s24
    %p30 = scmp.eq.s32.totalorder %s11, 0
    %p31 = por %p29, %p30
    %p32 = scmp.ne.s32.totalorder %s21, %s24
    %p33 = scmp.eq.s32.totalorder %s16, 1
    %p34 = por %p32, %p33
    %p35 = scmp.ne.s32.totalorder %s24, %s25
    %p36 = scmp.eq.s32.totalorder %s16, 0
    %p37 = por %p35, %p36
    %p38 = scmp.ne.s32.totalorder %s24, %s25
    %p39 = scmp.eq.s32.totalorder %s17, 1
    %p40 = por %p38, %p39
    %p42 = scmp.ne.s32.totalorder %s25, %s41
    %p43 = scmp.eq.s32.totalorder %s17, 0
    %p44 = por %p42, %p43
    %s46 = sadd.s32 %s45, 1
    %p49 = scmp.eq.s32.totalorder %s11, 1
    %p50 = scmp.ne.s32.totalorder %s45, %s47
    %p51 = scmp.eq.s32.totalorder %s11, 0
    %p52 = por %p50, %p51
    %p53 = scmp.ne.s32.totalorder %s45, %s47
    %p54 = scmp.eq.s32.totalorder %s16, 1
    %p55 = por %p53, %p54
    %p56 = scmp.ne.s32.totalorder %s47, %s48
    %p57 = scmp.eq.s32.totalorder %s16, 0
    %p58 = por %p56, %p57
    %p59 = scmp.ne.s32.totalorder %s47, %s48
    %p60 = scmp.eq.s32.totalorder %s17, 1
    %p61 = por %p59, %p60
    %p63 = scmp.ne.s32.totalorder %s48, %s62
    %p64 = scmp.eq.s32.totalorder %s17, 0
    %p65 = por %p63, %p64
    %s67 = sadd.s32 %s66, 1
    %p70 = scmp.eq.s32.totalorder %s11, 1
    %p71 = scmp.ne.s32.totalorder %s66, %s68
    %p72 = scmp.eq.s32.totalorder %s11, 0
    %p73 = por %p71, %p72
    %p74 = scmp.ne.s32.totalorder %s66, %s68
    %p75 = scmp.eq.s32.totalorder %s16, 1
    %p76 = por %p74, %p75
    %p77 = scmp.ne.s32.totalorder %s68, %s69
    %p78 = scmp.eq.s32.totalorder %s16, 0
    %p79 = por %p77, %p78
    %p80 = scmp.ne.s32.totalorder %s68, %s69
    %p81 = scmp.eq.s32.totalorder %s17, 1
    %p82 = por %p80, %p81
    %p84 = scmp.ne.s32.totalorder %s69, %s83
    %p85 = scmp.eq.s32.totalorder %s17, 0
    %p86 = por %p84, %p85
    %s88 = sadd.s32 %s87, 1
    %p91 = scmp.eq.s32.totalorder %s11, 1
    %p92 = scmp.ne.s32.totalorder %s87, %s89
    %p93 = scmp.eq.s32.totalorder %s11, 0
    %p94 = por %p92, %p93
    %p95 = scmp.ne.s32.totalorder %s87, %s89
    %p96 = scmp.eq.s32.totalorder %s16, 1
    %p97 = por %p95, %p96
    %p98 = scmp.ne.s32.totalorder %s89, %s90
    %p99 = scmp.eq.s32.totalorder %s16, 0
    %p100 = por %p98, %p99
    %p101 = scmp.ne.s32.totalorder %s89, %s90
    %p102 = scmp.eq.s32.totalorder %s17, 1
    %p103 = por %p101, %p102
    %p105 = scmp.ne.s32.totalorder %s90, %s104
    %p106 = scmp.eq.s32.totalorder %s17, 0
    %p107 = por %p105, %p106
    %s108 = ssub.s32 %s11, %s18
    %p109 = scmp.eq.s32.totalorder %s108, 0
    %s111 = sadd.s32 %s110, 1
    %s112 = scalar_select %p109, %s110, %s111
    %p115 = pneg %p109
    %p116 = scmp.eq.s32.totalorder %s11, 1
    %p117 = por %p115, %p116
    %p118 = scmp.ne.s32.totalorder %s110, %s113
    %p119 = scmp.eq.s32.totalorder %s11, 0
    %p120 = por %p118, %p119
    %p121 = scmp.ne.s32.totalorder %s110, %s113
    %p122 = scmp.eq.s32.totalorder %s16, 1
    %p123 = por %p121, %p122
    %p124 = scmp.ne.s32.totalorder %s113, %s114
    %p125 = scmp.eq.s32.totalorder %s16, 0
    %p126 = por %p124, %p125
    %p127 = scmp.ne.s32.totalorder %s113, %s114
    %p128 = scmp.eq.s32.totalorder %s17, 1
    %p129 = por %p127, %p128
    %p131 = scmp.ne.s32.totalorder %s114, %s130
    %p132 = scmp.eq.s32.totalorder %s17, 0
    %p133 = por %p131, %p132
    %s134 = ssub.s32 %s11, %s18
    %p135 = scmp.eq.s32.totalorder %s134, 0
    %s137 = sadd.s32 %s136, 1
    %s138 = scalar_select %p135, %s136, %s137
    %p141 = pneg %p135
    %p142 = scmp.eq.s32.totalorder %s11, 1
    %p143 = por %p141, %p142
    %p144 = scmp.ne.s32.totalorder %s136, %s139
    %p145 = scmp.eq.s32.totalorder %s11, 0
    %p146 = por %p144, %p145
    %p147 = scmp.ne.s32.totalorder %s136, %s139
    %p148 = scmp.eq.s32.totalorder %s16, 1
    %p149 = por %p147, %p148
    %p150 = scmp.ne.s32.totalorder %s139, %s140
    %p151 = scmp.eq.s32.totalorder %s16, 0
    %p152 = por %p150, %p151
    %p153 = scmp.ne.s32.totalorder %s139, %s140
    %p154 = scmp.eq.s32.totalorder %s17, 1
    %p155 = por %p153, %p154
    %p157 = scmp.ne.s32.totalorder %s140, %s156
    %p158 = scmp.eq.s32.totalorder %s17, 0
    %p159 = por %p157, %p158
    %p160 = scmp.le.s32.totalorder 1, %s11
    %p161 = scmp.lt.s32.totalorder %s11, 3
    %p162 = pnand %p160, %p161
    %p163 = pneg %p162
    // Predicated region
    $region9: #{_lambda_.11} parent=5 // pred_check
      _
    $region10: #{_lambda_.11} parent=5 // pred_check_branch
      %165 = sbr.rel (%p162) target = $region12
    $region11: #{_lambda_.11} parent=5 // pred_region
      %s166 = ssub.s32 %s11, 1
      // Predicated region
      $region13: #{_lambda_.11} parent=11 // pred_check
        %p167 = pneg %p58
      $region14: #{_lambda_.11} parent=11 // pred_check_branch
        %169 = sbr.rel (%p167) target = $region16
      $region15: #{_lambda_.11} parent=11 // pred_region
        _
      $region16: #{_lambda_.11} parent=11 // pred_fallthru
        _
      // Predicated region
      $region17: #{_lambda_.11} parent=11 // pred_check
        %p170 = pneg %p79
      $region18: #{_lambda_.11} parent=11 // pred_check_branch
        %172 = sbr.rel (%p170) target = $region20
      $region19: #{_lambda_.11} parent=11 // pred_region
        _
      $region20: #{_lambda_.11} parent=11 // pred_fallthru
        _
      // Predicated region
      $region21: #{_lambda_.11} parent=11 // pred_check
        %p173 = pneg %p100
      $region22: #{_lambda_.11} parent=11 // pred_check_branch
        %175 = sbr.rel (%p173) target = $region24
      $region23: #{_lambda_.11} parent=11 // pred_region
        _
      $region24: #{_lambda_.11} parent=11 // pred_fallthru
        _
    $region12: #{_lambda_.11} parent=5 // pred_fallthru
      _
    %p176 = scmp.lt.s32.totalorder %s11, 2
    // Predicated region
    $region25: #{_lambda_.11} parent=5 // pred_check
      %p177 = pneg %p176
    $region26: #{_lambda_.11} parent=5 // pred_check_branch
      %179 = sbr.rel (%p177) target = $region28
    $region27: #{_lambda_.11} parent=5 // pred_region
      // Predicated region
      $region29: #{_lambda_.11} parent=27 // pred_check
        %p180 = pneg %p31
      $region30: #{_lambda_.11} parent=27 // pred_check_branch
        %182 = sbr.rel (%p180) target = $region32
      $region31: #{_lambda_.11} parent=27 // pred_region
        %s183 = smul.u32 16, %s11
        %p184 = scmp.lt.s32.totalorder %s183, 31
        %s185 = scalar_select %p184, %s183, 31
        %s186 = smul.addr %s185, 8
        %s187 = scalar_lea.vmem %s0, %s186
        %s188 = smul.u32 16, %s11
      $region32: #{_lambda_.11} parent=27 // pred_fallthru
        _
      // Predicated region
      $region33: #{_lambda_.11} parent=27 // pred_check
        %p189 = pneg %p120
      $region34: #{_lambda_.11} parent=27 // pred_check_branch
        %191 = sbr.rel (%p189) target = $region36
      $region35: #{_lambda_.11} parent=27 // pred_region
        %s192 = smul.u32 16, %s11
        %p193 = scmp.lt.s32.totalorder %s192, 31
        %s194 = scalar_select %p193, %s192, 31
        %s195 = smul.addr %s194, 8
        %s196 = scalar_lea.vmem %s4, %s195
        %s197 = smul.u32 16, %s11
      $region36: #{_lambda_.11} parent=27 // pred_fallthru
        _
    $region28: #{_lambda_.11} parent=5 // pred_fallthru
      _
    %p198 = scmp.le.s32.totalorder 1, %s11
    %p199 = scmp.lt.s32.totalorder %s11, 3
    %p200 = pnand %p198, %p199
    %p201 = pneg %p200
    // Predicated region
    $region37: #{_lambda_.11} parent=5 // pred_check
      _
    $region38: #{_lambda_.11} parent=5 // pred_check_branch
      %203 = sbr.rel (%p200) target = $region40
    $region39: #{_lambda_.11} parent=5 // pred_region
      %s204 = ssub.s32 %s11, 1
      %s205 = smul.u32 16, %s16
      %p206 = scmp.lt.s32.totalorder %s205, 31
      %s207 = scalar_select %p206, %s205, 31
      %s208 = smul.addr %s207, 8
      %s209 = scalar_lea.vmem %s0, %s208
      %p210 = pneg %p37
      %p211 = pneg %p34
      %p212 = pneg %p58
      %p213 = pneg %p55
      %p214 = pneg %p79
      %p215 = pneg %p76
      %p216 = pneg %p100
      %p217 = pneg %p97
      %s218 = smul.u32 16, %s16
      %p219 = scmp.lt.s32.totalorder %s218, 31
      %s220 = scalar_select %p219, %s218, 31
      %s221 = smul.addr %s220, 8
      %s222 = scalar_lea.vmem %s4, %s221
      %p223 = pneg %p126
      %p224 = pneg %p123
      %p225 = pneg %p152
      %p226 = pneg %p149
      %s227 = smul.u32 16, %s16
      %p228 = scmp.lt.s32.totalorder %s227, 31
      %s229 = scalar_select %p228, %s227, 31
      %s230 = smul.addr %s229, 8
      %s231 = scalar_lea.vmem %s5, %s230
      %s232 = smul.u32 16, %s16
      %p233 = scmp.lt.s32.totalorder %s232, 31
      %s234 = scalar_select %p233, %s232, 31
      %s235 = smul.addr %s234, 8
      %s236 = scalar_lea.vmem %s0, %s235
      %s237 = smul.u32 16, %s16
      %s238 = smul.u32 16, %s16
      %p239 = scmp.lt.s32.totalorder %s238, 31
      %s240 = scalar_select %p239, %s238, 31
      %s241 = smul.addr %s240, 8
      %s242 = scalar_lea.vmem %s4, %s241
      %s243 = smul.u32 16, %s16
      %s244 = smul.u32 16, %s16
      %p245 = scmp.lt.s32.totalorder %s244, 31
      %s246 = scalar_select %p245, %s244, 31
      %s247 = smul.addr %s246, 8
      %s248 = scalar_lea.vmem %s5, %s247
      %s249 = smul.u32 16, %s16
      %v250 = vld [vmem:[%s236] sm:$0xff]
      %v251 = vld [vmem:[%s236 + $0x8] sm:$0xff]
      %v252 = vld [vmem:[%s236 + $0x10] sm:$0xff]
      %v253 = vld [vmem:[%s236 + $0x18] sm:$0xff]
      %v254 = vld [vmem:[%s236 + $0x20] sm:$0xff]
      %v255 = vld [vmem:[%s236 + $0x28] sm:$0xff]
      %v256 = vld [vmem:[%s236 + $0x30] sm:$0xff]
      %v257 = vld [vmem:[%s236 + $0x38] sm:$0xff]
      %v258 = vld [vmem:[%s236 + $0x40] sm:$0xff]
      %v259 = vld [vmem:[%s236 + $0x48] sm:$0xff]
      %v260 = vld [vmem:[%s236 + $0x50] sm:$0xff]
      %v261 = vld [vmem:[%s236 + $0x58] sm:$0xff]
      %v262 = vld [vmem:[%s236 + $0x60] sm:$0xff]
      %v263 = vld [vmem:[%s236 + $0x68] sm:$0xff]
      %v264 = vld [vmem:[%s236 + $0x70] sm:$0xff]
      %v265 = vld [vmem:[%s236 + $0x78] sm:$0xff]
      %v266 = vld [vmem:[%s1] sm:$0x1]
      %v268 = vperm.slane %v266, 0
      %v270 = vmul.f32 %v250, %v268
      %v271 = vmul.f32 %v251, %v268
      %v272 = vmul.f32 %v252, %v268
      %v273 = vmul.f32 %v253, %v268
      %v274 = vmul.f32 %v254, %v268
      %v275 = vmul.f32 %v255, %v268
      %v276 = vmul.f32 %v256, %v268
      %v277 = vmul.f32 %v257, %v268
      %v278 = vmul.f32 %v258, %v268
      %v279 = vmul.f32 %v259, %v268
      %v280 = vmul.f32 %v260, %v268
      %v281 = vmul.f32 %v261, %v268
      %v282 = vmul.f32 %v262, %v268
      %v283 = vmul.f32 %v263, %v268
      %v284 = vmul.f32 %v264, %v268
      %v285 = vmul.f32 %v265, %v268
      %v286 = vld [vmem:[%s2] sm:$0x1]
      %v288 = vperm.slane %v286, 0
      %v290 = vadd.f32 %v270, %v288
      %v291 = vadd.f32 %v271, %v288
      %v292 = vadd.f32 %v272, %v288
      %v293 = vadd.f32 %v273, %v288
      %v294 = vadd.f32 %v274, %v288
      %v295 = vadd.f32 %v275, %v288
      %v296 = vadd.f32 %v276, %v288
      %v297 = vadd.f32 %v277, %v288
      %v298 = vadd.f32 %v278, %v288
      %v299 = vadd.f32 %v279, %v288
      %v300 = vadd.f32 %v280, %v288
      %v301 = vadd.f32 %v281, %v288
      %v302 = vadd.f32 %v282, %v288
      %v303 = vadd.f32 %v283, %v288
      %v304 = vadd.f32 %v284, %v288
      %v305 = vadd.f32 %v285, %v288
      %v306 = vld [vmem:[%s3] sm:$0xff]
      %v307 = vld [vmem:[%s3 + $0x8] sm:$0xff]
      %v308 = vld [vmem:[%s3 + $0x10] sm:$0xff]
      %v309 = vld [vmem:[%s3 + $0x18] sm:$0xff]
      %vm310 = vcmask 261120
      %v312 = vsel %vm310, %v290, 0
      %v315 = vsel %vm310, %v291, 0
      %v318 = vsel %vm310, %v292, 0
      %v321 = vsel %vm310, %v293, 0
      %v324 = vsel %vm310, %v294, 0
      %v327 = vsel %vm310, %v295, 0
      %v330 = vsel %vm310, %v296, 0
      %v333 = vsel %vm310, %v297, 0
      %v336 = vsel %vm310, %v298, 0
      %v339 = vsel %vm310, %v299, 0
      %v342 = vsel %vm310, %v300, 0
      %v345 = vsel %vm310, %v301, 0
      %v348 = vsel %vm310, %v302, 0
      %v351 = vsel %vm310, %v303, 0
      %v354 = vsel %vm310, %v304, 0
      %v357 = vsel %vm310, %v305, 0
      %359 = vmatpush.msra.mxu0 0.0
      %360 = vmatpush.msra.mxu0 0.0
      %361 = vmatpush.msra.mxu0 0.0
      %362 = vmatpush.msra.mxu0 0.0
      %363 = vmatpush.msra.mxu0 0.0
      %364 = vmatpush.msra.mxu0 0.0
      %365 = vmatpush.msra.mxu0 0.0
      %366 = vmatpush.msra.mxu0 0.0
      %367 = vmatpush.msra.mxu0 0.0
      %368 = vmatpush.msra.mxu0 0.0
      %369 = vmatpush.msra.mxu0 0.0
      %370 = vmatpush.msra.mxu0 0.0
      %371 = vmatpush.msra.mxu0 %v309
      %372 = vmatpush.msra.mxu0 %v308
      %373 = vmatpush.msra.mxu0 %v307
      %374 = vmatpush.msra.mxu0 %v306
      %375 = vmatmul.f32.gmra.mxu0 %v312
      %v376 = vpop.f32.mrf.mxu0
      %v377 = vadd.f32 0.0, %v376
      %378 = vmatmul.f32.gmra.mxu0 %v315
      %v379 = vpop.f32.mrf.mxu0
      %v380 = vadd.f32 0.0, %v379
      %381 = vmatmul.f32.gmra.mxu0 %v318
      %v382 = vpop.f32.mrf.mxu0
      %v383 = vadd.f32 0.0, %v382
      %384 = vmatmul.f32.gmra.mxu0 %v321
      %v385 = vpop.f32.mrf.mxu0
      %v386 = vadd.f32 0.0, %v385
      %387 = vmatmul.f32.gmra.mxu0 %v324
      %v388 = vpop.f32.mrf.mxu0
      %v389 = vadd.f32 0.0, %v388
      %390 = vmatmul.f32.gmra.mxu0 %v327
      %v391 = vpop.f32.mrf.mxu0
      %v392 = vadd.f32 0.0, %v391
      %393 = vmatmul.f32.gmra.mxu0 %v330
      %v394 = vpop.f32.mrf.mxu0
      %v395 = vadd.f32 0.0, %v394
      %396 = vmatmul.f32.gmra.mxu0 %v333
      %v397 = vpop.f32.mrf.mxu0
      %v398 = vadd.f32 0.0, %v397
      %399 = vmatmul.f32.gmra.mxu0 %v336
      %v400 = vpop.f32.mrf.mxu0
      %v401 = vadd.f32 0.0, %v400
      %402 = vmatmul.f32.gmra.mxu0 %v339
      %v403 = vpop.f32.mrf.mxu0
      %v404 = vadd.f32 0.0, %v403
      %405 = vmatmul.f32.gmra.mxu0 %v342
      %v406 = vpop.f32.mrf.mxu0
      %v407 = vadd.f32 0.0, %v406
      %408 = vmatmul.f32.gmra.mxu0 %v345
      %v409 = vpop.f32.mrf.mxu0
      %v410 = vadd.f32 0.0, %v409
      %411 = vmatmul.f32.gmra.mxu0 %v348
      %v412 = vpop.f32.mrf.mxu0
      %v413 = vadd.f32 0.0, %v412
      %414 = vmatmul.f32.gmra.mxu0 %v351
      %v415 = vpop.f32.mrf.mxu0
      %v416 = vadd.f32 0.0, %v415
      %417 = vmatmul.f32.gmra.mxu0 %v354
      %v418 = vpop.f32.mrf.mxu0
      %v419 = vadd.f32 0.0, %v418
      %420 = vmatmul.f32.gmra.mxu0 %v357
      %v421 = vpop.f32.mrf.mxu0
      %v422 = vadd.f32 0.0, %v421
      %423 = vdwg.mxu0
      %v424 = vld [vmem:[%s242] sm:$0xff]
      %v425 = vld [vmem:[%s242 + $0x8] sm:$0xff]
      %v426 = vld [vmem:[%s242 + $0x10] sm:$0xff]
      %v427 = vld [vmem:[%s242 + $0x18] sm:$0xff]
      %v428 = vld [vmem:[%s242 + $0x20] sm:$0xff]
      %v429 = vld [vmem:[%s242 + $0x28] sm:$0xff]
      %v430 = vld [vmem:[%s242 + $0x30] sm:$0xff]
      %v431 = vld [vmem:[%s242 + $0x38] sm:$0xff]
      %v432 = vld [vmem:[%s242 + $0x40] sm:$0xff]
      %v433 = vld [vmem:[%s242 + $0x48] sm:$0xff]
      %v434 = vld [vmem:[%s242 + $0x50] sm:$0xff]
      %v435 = vld [vmem:[%s242 + $0x58] sm:$0xff]
      %v436 = vld [vmem:[%s242 + $0x60] sm:$0xff]
      %v437 = vld [vmem:[%s242 + $0x68] sm:$0xff]
      %v438 = vld [vmem:[%s242 + $0x70] sm:$0xff]
      %v439 = vld [vmem:[%s242 + $0x78] sm:$0xff]
      %441 = vset.pattern.permute.xlu0 0
      %442 = vperm.xlu0 %441, %v424
      %v443 = vpop.permute.xlu0 %442
      %446 = vset.pattern.permute.xlu0 0
      %447 = vperm.xlu0 %446, %v425
      %v448 = vpop.permute.xlu0 %447
      %451 = vset.pattern.permute.xlu0 0
      %452 = vperm.xlu0 %451, %v426
      %v453 = vpop.permute.xlu0 %452
      %456 = vset.pattern.permute.xlu0 0
      %457 = vperm.xlu0 %456, %v427
      %v458 = vpop.permute.xlu0 %457
      %461 = vset.pattern.permute.xlu0 0
      %462 = vperm.xlu0 %461, %v428
      %v463 = vpop.permute.xlu0 %462
      %466 = vset.pattern.permute.xlu0 0
      %467 = vperm.xlu0 %466, %v429
      %v468 = vpop.permute.xlu0 %467
      %471 = vset.pattern.permute.xlu0 0
      %472 = vperm.xlu0 %471, %v430
      %v473 = vpop.permute.xlu0 %472
      %476 = vset.pattern.permute.xlu0 0
      %477 = vperm.xlu0 %476, %v431
      %v478 = vpop.permute.xlu0 %477
      %481 = vset.pattern.permute.xlu0 0
      %482 = vperm.xlu0 %481, %v432
      %v483 = vpop.permute.xlu0 %482
      %486 = vset.pattern.permute.xlu0 0
      %487 = vperm.xlu0 %486, %v433
      %v488 = vpop.permute.xlu0 %487
      %491 = vset.pattern.permute.xlu0 0
      %492 = vperm.xlu0 %491, %v434
      %v493 = vpop.permute.xlu0 %492
      %496 = vset.pattern.permute.xlu0 0
      %497 = vperm.xlu0 %496, %v435
      %v498 = vpop.permute.xlu0 %497
      %501 = vset.pattern.permute.xlu0 0
      %502 = vperm.xlu0 %501, %v436
      %v503 = vpop.permute.xlu0 %502
      %506 = vset.pattern.permute.xlu0 0
      %507 = vperm.xlu0 %506, %v437
      %v508 = vpop.permute.xlu0 %507
      %511 = vset.pattern.permute.xlu0 0
      %512 = vperm.xlu0 %511, %v438
      %v513 = vpop.permute.xlu0 %512
      %516 = vset.pattern.permute.xlu0 0
      %517 = vperm.xlu0 %516, %v439
      %v518 = vpop.permute.xlu0 %517
      %v520 = vmul.f32 %v443, %v377
      %v521 = vmul.f32 %v448, %v380
      %v522 = vmul.f32 %v453, %v383
      %v523 = vmul.f32 %v458, %v386
      %v524 = vmul.f32 %v463, %v389
      %v525 = vmul.f32 %v468, %v392
      %v526 = vmul.f32 %v473, %v395
      %v527 = vmul.f32 %v478, %v398
      %v528 = vmul.f32 %v483, %v401
      %v529 = vmul.f32 %v488, %v404
      %v530 = vmul.f32 %v493, %v407
      %v531 = vmul.f32 %v498, %v410
      %v532 = vmul.f32 %v503, %v413
      %v533 = vmul.f32 %v508, %v416
      %v534 = vmul.f32 %v513, %v419
      %v535 = vmul.f32 %v518, %v422
      %vm536 = vcmask 211968
      %537 = vst.msk [vmem:[%s248] sm:$0xff] %vm536, %v520
      %538 = vst.msk [vmem:[%s248 + $0x8] sm:$0xff] %vm536, %v521
      %539 = vst.msk [vmem:[%s248 + $0x10] sm:$0xff] %vm536, %v522
      %540 = vst.msk [vmem:[%s248 + $0x18] sm:$0xff] %vm536, %v523
      %541 = vst.msk [vmem:[%s248 + $0x20] sm:$0xff] %vm536, %v524
      %542 = vst.msk [vmem:[%s248 + $0x28] sm:$0xff] %vm536, %v525
      %543 = vst.msk [vmem:[%s248 + $0x30] sm:$0xff] %vm536, %v526
      %544 = vst.msk [vmem:[%s248 + $0x38] sm:$0xff] %vm536, %v527
      %545 = vst.msk [vmem:[%s248 + $0x40] sm:$0xff] %vm536, %v528
      %546 = vst.msk [vmem:[%s248 + $0x48] sm:$0xff] %vm536, %v529
      %547 = vst.msk [vmem:[%s248 + $0x50] sm:$0xff] %vm536, %v530
      %548 = vst.msk [vmem:[%s248 + $0x58] sm:$0xff] %vm536, %v531
      %549 = vst.msk [vmem:[%s248 + $0x60] sm:$0xff] %vm536, %v532
      %550 = vst.msk [vmem:[%s248 + $0x68] sm:$0xff] %vm536, %v533
      %551 = vst.msk [vmem:[%s248 + $0x70] sm:$0xff] %vm536, %v534
      %552 = vst.msk [vmem:[%s248 + $0x78] sm:$0xff] %vm536, %v535
      %s553 = smul.u32 16, %s16
      %p554 = scmp.lt.s32.totalorder %s553, 31
      %s555 = scalar_select %p554, %s553, 31
      %s556 = smul.addr %s555, 8
      %s557 = scalar_lea.vmem %s5, %s556
      // Predicated region
      $region41: #{_lambda_.11} parent=39 // pred_check
        %p558 = pneg %p149
      $region42: #{_lambda_.11} parent=39 // pred_check_branch
        %560 = sbr.rel (%p558) target = $region44
      $region43: #{_lambda_.11} parent=39 // pred_region
        %s561 = smul.u32 16, %s16
      $region44: #{_lambda_.11} parent=39 // pred_fallthru
        _
    $region40: #{_lambda_.11} parent=5 // pred_fallthru
      _
    %p562 = scmp.le.s32.totalorder 2, %s11
    // Predicated region
    $region45: #{_lambda_.11} parent=5 // pred_check
      %p563 = pneg %p562
    $region46: #{_lambda_.11} parent=5 // pred_check_branch
      %565 = sbr.rel (%p563) target = $region48
    $region47: #{_lambda_.11} parent=5 // pred_region
      %s566 = ssub.s32 %s11, 2
      // Predicated region
      $region49: #{_lambda_.11} parent=47 // pred_check
        %p567 = pneg %p155
      $region50: #{_lambda_.11} parent=47 // pred_check_branch
        %569 = sbr.rel (%p567) target = $region52
      $region51: #{_lambda_.11} parent=47 // pred_region
        %s570 = smul.u32 16, %s17
        %p571 = scmp.lt.s32.totalorder %s570, 31
        %s572 = scalar_select %p571, %s570, 31
        %s573 = smul.addr %s572, 8
        %s574 = scalar_lea.vmem %s5, %s573
      $region52: #{_lambda_.11} parent=47 // pred_fallthru
        _
    $region48: #{_lambda_.11} parent=5 // pred_fallthru
      _
  $region6: #{_lambda_.11} parent=0 // loop_footer
    %s15 = sadd.s32 1, %s11
  $region7: #{_lambda_.11} parent=0 // loop_footer_branch
    %10 = sbr.rel target = $region3
  $region8: #{_lambda_.11} parent=0 // loop_exit
    _

// kernel: _lambda_.12
$region0: #{_lambda_.12}
  #allocation0 [shape = 'u32[]', space=smem, size = 0x4, offset = 0x4, fixed_abs, tag = 'smem constant byte address 0x4 - core index']
  #allocation1 [shape = 'u32[72,128]{1,0:T(1,128)}', space=vmem, size = 0x9000, scoped, tag = 'internal scratch']
  #allocation2 [shape = 'f32[128,26]{1,0:T(8,128)}', space=vmem, size = 0x10000, scoped, tag = 'scratch operand']
  %s0 = inlined_call_operand.vmem [shape: f32[256,256], index: 0, kind: input, shape index: {}]
  %s1 = inlined_call_operand.vmem [shape: f32[256,26], index: 1, kind: input, shape index: {}, may-alias: {1,2}]
  %s2 = inlined_call_operand.vmem [shape: f32[256,26], index: 2, kind: input, shape index: {}, may-alias: {1,2}]
  %s3 = inlined_call_operand.vmem [shape: f32[256,1], index: 3, kind: input, shape index: {}]
  %s4 = inlined_call_operand.vmem [shape: f32[1,26], index: 4, kind: input, shape index: {}]
  %s5 = inlined_call_operand.vmem [shape: f32[256,26], index: 5, kind: output, shape index: {0}]
  %s6 = inlined_call_operand.vmem [shape: f32[2,1,26], index: 6, kind: output, shape index: {1}]
  %s7 = inlined_call_operand.vmem [shape: f32[2,1,26], index: 7, kind: output, shape index: {2}]
  %8 = xla_tuple %s5, %s6, %s7
  %s9 = sld [smem:[#allocation0]]
  $region115: #{_lambda_.12} parent=0
    _
  %s11 = ssub.s32 1, %s9
  %s12 = scalar_select 0, %s11, %s9
  $region1: #{_lambda_.12} parent=0
    #allocation3 [shape = 'u8[131072]{0}', space=vmem, size = 0x20000, scoped, tag = 'input window, operand 0']
    loop: start=0, step=1, limit=6
    $region2: #{_lambda_.12} parent=1 // loop_pre_header
      _
    $region3: #{_lambda_.12} parent=1 // loop_header
      %s14 = sphi 0, %s18
      %p15 = scmp.ge.s32.totalorder %s14, 6
      %s21 = sphi 0, %s33
      %s22 = sphi 0, %s29
      %s23 = sphi 0, %s21
      %s24 = sphi 0, %s22
      %s25 = sphi 0, %s23
      %s26 = sphi 0, %s24
      %s38 = sphi 0, %s40
      %s41 = sphi 0, %s38
      %s42 = sphi 0, %s41
      %s58 = sphi 0, %s42
      %s64 = sphi 0, %s66
      %s67 = sphi 0, %s64
      %s68 = sphi 0, %s67
      %s84 = sphi 0, %s68
      %s90 = sphi 0, %s92
      %s93 = sphi 0, %s90
      %s94 = sphi 0, %s93
      %s110 = sphi 0, %s94
      %s116 = sphi 0, %s118
      %s119 = sphi 0, %s116
      %s120 = sphi 0, %s119
      %s136 = sphi 0, %s120
      %s140 = sphi 0, %s140
      %s142 = sphi 0, %s140
      %s143 = sphi 0, %s142
      %s157 = sphi 0, %s143
      %s163 = sphi 0, %s165
      %s166 = sphi 0, %s163
      %s167 = sphi 0, %s166
      %s183 = sphi 0, %s167
      %s189 = sphi 0, %s191
      %s192 = sphi 0, %s189
      %s193 = sphi 0, %s192
      %s209 = sphi 0, %s193
      %s215 = sphi 0, %s217
      %s218 = sphi 0, %s215
      %s219 = sphi 0, %s218
      %s235 = sphi 0, %s219
    $region4: #{_lambda_.12} parent=1 // loop_header_branch
      %17 = sbr.rel (%p15) target = $region8
    $region5: #{_lambda_.12} parent=1 // loop_body
      %s19 = ssub.s32 %s14, 1
      %s20 = ssub.s32 %s14, 2
      %s27 = sadd.s32 1, %s22
      %p28 = scmp.ge.s32.totalorder %s27, 2
      %s29 = scalar_select %p28, 0, %s27
      %s30 = sadd.s32 1, %s21
      %s31 = scalar_select %p28, %s30, %s21
      %p32 = scmp.ge.s32.totalorder %s31, 2
      %s33 = scalar_select %p32, 0, %s31
      %s34 = ssub.s32 %s21, %s33
      %s35 = ssub.s32 %s22, %s29
      %s36 = sor.u32 %s34, %s35
      %p37 = scmp.eq.s32.totalorder %s36, 0
      %s39 = sadd.s32 %s38, 1
      %s40 = scalar_select %p37, %s38, %s39
      %p43 = pneg %p37
      %p44 = scmp.eq.s32.totalorder %s14, 3
      %p45 = por %p43, %p44
      %p46 = scmp.ne.s32.totalorder %s38, %s41
      %p47 = scmp.eq.s32.totalorder %s14, 0
      %p48 = por %p46, %p47
      %p49 = scmp.ne.s32.totalorder %s38, %s41
      %p50 = scmp.eq.s32.totalorder %s19, 3
      %p51 = por %p49, %p50
      %p52 = scmp.ne.s32.totalorder %s41, %s42
      %p53 = scmp.eq.s32.totalorder %s19, 0
      %p54 = por %p52, %p53
      %p55 = scmp.ne.s32.totalorder %s41, %s42
      %p56 = scmp.eq.s32.totalorder %s20, 3
      %p57 = por %p55, %p56
      %p59 = scmp.ne.s32.totalorder %s42, %s58
      %p60 = scmp.eq.s32.totalorder %s20, 0
      %p61 = por %p59, %p60
      %s62 = ssub.s32 %s22, %s29
      %p63 = scmp.eq.s32.totalorder %s62, 0
      %s65 = sadd.s32 %s64, 1
      %s66 = scalar_select %p63, %s64, %s65
      %p69 = pneg %p63
      %p70 = scmp.eq.s32.totalorder %s14, 3
      %p71 = por %p69, %p70
      %p72 = scmp.ne.s32.totalorder %s64, %s67
      %p73 = scmp.eq.s32.totalorder %s14, 0
      %p74 = por %p72, %p73
      %p75 = scmp.ne.s32.totalorder %s64, %s67
      %p76 = scmp.eq.s32.totalorder %s19, 3
      %p77 = por %p75, %p76
      %p78 = scmp.ne.s32.totalorder %s67, %s68
      %p79 = scmp.eq.s32.totalorder %s19, 0
      %p80 = por %p78, %p79
      %p81 = scmp.ne.s32.totalorder %s67, %s68
      %p82 = scmp.eq.s32.totalorder %s20, 3
      %p83 = por %p81, %p82
      %p85 = scmp.ne.s32.totalorder %s68, %s84
      %p86 = scmp.eq.s32.totalorder %s20, 0
      %p87 = por %p85, %p86
      %s88 = ssub.s32 %s21, %s33
      %p89 = scmp.eq.s32.totalorder %s88, 0
      %s91 = sadd.s32 %s90, 1
      %s92 = scalar_select %p89, %s90, %s91
      %p95 = pneg %p89
      %p96 = scmp.eq.s32.totalorder %s14, 3
      %p97 = por %p95, %p96
      %p98 = scmp.ne.s32.totalorder %s90, %s93
      %p99 = scmp.eq.s32.totalorder %s14, 0
      %p100 = por %p98, %p99
      %p101 = scmp.ne.s32.totalorder %s90, %s93
      %p102 = scmp.eq.s32.totalorder %s19, 3
      %p103 = por %p101, %p102
      %p104 = scmp.ne.s32.totalorder %s93, %s94
      %p105 = scmp.eq.s32.totalorder %s19, 0
      %p106 = por %p104, %p105
      %p107 = scmp.ne.s32.totalorder %s93, %s94
      %p108 = scmp.eq.s32.totalorder %s20, 3
      %p109 = por %p107, %p108
      %p111 = scmp.ne.s32.totalorder %s94, %s110
      %p112 = scmp.eq.s32.totalorder %s20, 0
      %p113 = por %p111, %p112
      %s114 = ssub.s32 %s21, %s33
      %p115 = scmp.eq.s32.totalorder %s114, 0
      %s117 = sadd.s32 %s116, 1
      %s118 = scalar_select %p115, %s116, %s117
      %p121 = pneg %p115
      %p122 = scmp.eq.s32.totalorder %s14, 3
      %p123 = por %p121, %p122
      %p124 = scmp.ne.s32.totalorder %s116, %s119
      %p125 = scmp.eq.s32.totalorder %s14, 0
      %p126 = por %p124, %p125
      %p127 = scmp.ne.s32.totalorder %s116, %s119
      %p128 = scmp.eq.s32.totalorder %s19, 3
      %p129 = por %p127, %p128
      %p130 = scmp.ne.s32.totalorder %s119, %s120
      %p131 = scmp.eq.s32.totalorder %s19, 0
      %p132 = por %p130, %p131
      %p133 = scmp.ne.s32.totalorder %s119, %s120
      %p134 = scmp.eq.s32.totalorder %s20, 3
      %p135 = por %p133, %p134
      %p137 = scmp.ne.s32.totalorder %s120, %s136
      %p138 = scmp.eq.s32.totalorder %s20, 0
      %p139 = por %p137, %p138
      %s141 = sadd.s32 %s140, 1
      %p144 = scmp.eq.s32.totalorder %s14, 3
      %p145 = scmp.ne.s32.totalorder %s140, %s142
      %p146 = scmp.eq.s32.totalorder %s14, 0
      %p147 = por %p145, %p146
      %p148 = scmp.ne.s32.totalorder %s140, %s142
      %p149 = scmp.eq.s32.totalorder %s19, 3
      %p150 = por %p148, %p149
      %p151 = scmp.ne.s32.totalorder %s142, %s143
      %p152 = scmp.eq.s32.totalorder %s19, 0
      %p153 = por %p151, %p152
      %p154 = scmp.ne.s32.totalorder %s142, %s143
      %p155 = scmp.eq.s32.totalorder %s20, 3
      %p156 = por %p154, %p155
      %p158 = scmp.ne.s32.totalorder %s143, %s157
      %p159 = scmp.eq.s32.totalorder %s20, 0
      %p160 = por %p158, %p159
      %s161 = ssub.s32 %s21, %s33
      %p162 = scmp.eq.s32.totalorder %s161, 0
      %s164 = sadd.s32 %s163, 1
      %s165 = scalar_select %p162, %s163, %s164
      %p168 = pneg %p162
      %p169 = scmp.eq.s32.totalorder %s14, 3
      %p170 = por %p168, %p169
      %p171 = scmp.ne.s32.totalorder %s163, %s166
      %p172 = scmp.eq.s32.totalorder %s14, 0
      %p173 = por %p171, %p172
      %p174 = scmp.ne.s32.totalorder %s163, %s166
      %p175 = scmp.eq.s32.totalorder %s19, 3
      %p176 = por %p174, %p175
      %p177 = scmp.ne.s32.totalorder %s166, %s167
      %p178 = scmp.eq.s32.totalorder %s19, 0
      %p179 = por %p177, %p178
      %p180 = scmp.ne.s32.totalorder %s166, %s167
      %p181 = scmp.eq.s32.totalorder %s20, 3
      %p182 = por %p180, %p181
      %p184 = scmp.ne.s32.totalorder %s167, %s183
      %p185 = scmp.eq.s32.totalorder %s20, 0
      %p186 = por %p184, %p185
      %s187 = ssub.s32 %s21, %s33
      %p188 = scmp.eq.s32.totalorder %s187, 0
      %s190 = sadd.s32 %s189, 1
      %s191 = scalar_select %p188, %s189, %s190
      %p194 = pneg %p188
      %p195 = scmp.eq.s32.totalorder %s14, 3
      %p196 = por %p194, %p195
      %p197 = scmp.ne.s32.totalorder %s189, %s192
      %p198 = scmp.eq.s32.totalorder %s14, 0
      %p199 = por %p197, %p198
      %p200 = scmp.ne.s32.totalorder %s189, %s192
      %p201 = scmp.eq.s32.totalorder %s19, 3
      %p202 = por %p200, %p201
      %p203 = scmp.ne.s32.totalorder %s192, %s193
      %p204 = scmp.eq.s32.totalorder %s19, 0
      %p205 = por %p203, %p204
      %p206 = scmp.ne.s32.totalorder %s192, %s193
      %p207 = scmp.eq.s32.totalorder %s20, 3
      %p208 = por %p206, %p207
      %p210 = scmp.ne.s32.totalorder %s193, %s209
      %p211 = scmp.eq.s32.totalorder %s20, 0
      %p212 = por %p210, %p211
      %s213 = ssub.s32 %s21, %s33
      %p214 = scmp.eq.s32.totalorder %s213, 0
      %s216 = sadd.s32 %s215, 1
      %s217 = scalar_select %p214, %s215, %s216
      %p220 = pneg %p214
      %p221 = scmp.eq.s32.totalorder %s14, 3
      %p222 = por %p220, %p221
      %p223 = scmp.ne.s32.totalorder %s215, %s218
      %p224 = scmp.eq.s32.totalorder %s14, 0
      %p225 = por %p223, %p224
      %p226 = scmp.ne.s32.totalorder %s215, %s218
      %p227 = scmp.eq.s32.totalorder %s19, 3
      %p228 = por %p226, %p227
      %p229 = scmp.ne.s32.totalorder %s218, %s219
      %p230 = scmp.eq.s32.totalorder %s19, 0
      %p231 = por %p229, %p230
      %p232 = scmp.ne.s32.totalorder %s218, %s219
      %p233 = scmp.eq.s32.totalorder %s20, 3
      %p234 = por %p232, %p233
      %p236 = scmp.ne.s32.totalorder %s219, %s235
      %p237 = scmp.eq.s32.totalorder %s20, 0
      %p238 = por %p236, %p237
      %p239 = scmp.le.s32.totalorder 1, %s14
      %p240 = scmp.lt.s32.totalorder %s14, 5
      %p241 = pnand %p239, %p240
      %p242 = pneg %p241
      // Predicated region
      $region9: #{_lambda_.12} parent=5 // pred_check
        _
      $region10: #{_lambda_.12} parent=5 // pred_check_branch
        %244 = sbr.rel (%p241) target = $region12
      $region11: #{_lambda_.12} parent=5 // pred_region
        %s245 = ssub.s32 %s14, 1
        // Predicated region
        $region13: #{_lambda_.12} parent=11 // pred_check
          %p246 = pneg %p153
        $region14: #{_lambda_.12} parent=11 // pred_check_branch
          %248 = sbr.rel (%p246) target = $region16
        $region15: #{_lambda_.12} parent=11 // pred_region
          _
        $region16: #{_lambda_.12} parent=11 // pred_fallthru
          _
      $region12: #{_lambda_.12} parent=5 // pred_fallthru
        _
      %p249 = scmp.lt.s32.totalorder %s14, 4
      // Predicated region
      $region17: #{_lambda_.12} parent=5 // pred_check
        %p250 = pneg %p249
      $region18: #{_lambda_.12} parent=5 // pred_check_branch
        %252 = sbr.rel (%p250) target = $region20
      $region19: #{_lambda_.12} parent=5 // pred_region
        // Predicated region
        $region21: #{_lambda_.12} parent=19 // pred_check
          %p253 = pneg %p48
        $region22: #{_lambda_.12} parent=19 // pred_check_branch
          %255 = sbr.rel (%p253) target = $region24
        $region23: #{_lambda_.12} parent=19 // pred_region
          %s256 = sand.u32 %s38, 1
          %s257 = sand.u32 %s38, 1
          %s258 = smul.addr %s257, 128
          %s259 = scalar_lea.vmem [#allocation3], %s258
          %s260 = smul.u32 16, %s21
          %s261 = smul.addr %s260, 2
          %s262 = sadd.s32 %s22, %s261
          %s263 = smul.addr %s262, 8
          %s264 = scalar_lea.vmem %s0, %s263
          // Predicated region
          $region25: #{_lambda_.12} parent=23 // pred_check
            _
          $region26: #{_lambda_.12} parent=23 // pred_check_branch
            %266 = sbr.rel (0) target = $region28
          $region27: #{_lambda_.12} parent=23 // pred_region
            // Predicated region
            $region29: #{_lambda_.12} parent=27 // pred_check
              _
            $region30: #{_lambda_.12} parent=27 // pred_check_branch
              %268 = sbr.rel (0) target = $region32
            $region31: #{_lambda_.12} parent=27 // pred_region
              // Predicated region
              $region44: #{_lambda_.12} parent=31 // pred_check
                _
              $region45: #{_lambda_.12} parent=31 // pred_check_branch
                %314 = sbr.rel (0) target = $region47
              $region46: #{_lambda_.12} parent=31 // pred_region
                loop: start=0, step=1, limit=1
                $region48: #{_lambda_.12} parent=46 // loop_pre_header
                  _
                $region49: #{_lambda_.12} parent=46 // loop_header
                  %s316 = sphi 0, %s320
                  %p317 = scmp.ge.s32.totalorder %s316, 1
                  %s321 = sphi %s264, %s264
                  %s322 = sphi %s259, %s259
                $region50: #{_lambda_.12} parent=46 // loop_header_branch
                  %319 = sbr.rel (%p317) target = $region54
                $region51: #{_lambda_.12} parent=46 // loop_body
                  %v323 = vld [vmem:[%s321] sm:$0xff]
                  %324 = vst [vmem:[%s322] sm:$0xff] %v323
                  %v325 = vld [vmem:[%s321 + $0x10] sm:$0xff]
                  %326 = vst [vmem:[%s322 + $0x8] sm:$0xff] %v325
                  %v327 = vld [vmem:[%s321 + $0x20] sm:$0xff]
                  %328 = vst [vmem:[%s322 + $0x10] sm:$0xff] %v327
                  %v329 = vld [vmem:[%s321 + $0x30] sm:$0xff]
                  %330 = vst [vmem:[%s322 + $0x18] sm:$0xff] %v329
                  %v331 = vld [vmem:[%s321 + $0x40] sm:$0xff]
                  %332 = vst [vmem:[%s322 + $0x20] sm:$0xff] %v331
                  %v333 = vld [vmem:[%s321 + $0x50] sm:$0xff]
                  %334 = vst [vmem:[%s322 + $0x28] sm:$0xff] %v333
                  %v335 = vld [vmem:[%s321 + $0x60] sm:$0xff]
                  %336 = vst [vmem:[%s322 + $0x30] sm:$0xff] %v335
                  %v337 = vld [vmem:[%s321 + $0x70] sm:$0xff]
                  %338 = vst [vmem:[%s322 + $0x38] sm:$0xff] %v337
                  %v339 = vld [vmem:[%s321 + $0x80] sm:$0xff]
                  %340 = vst [vmem:[%s322 + $0x40] sm:$0xff] %v339
                  %v341 = vld [vmem:[%s321 + $0x90] sm:$0xff]
                  %342 = vst [vmem:[%s322 + $0x48] sm:$0xff] %v341
                  %v343 = vld [vmem:[%s321 + $0xa0] sm:$0xff]
                  %344 = vst [vmem:[%s322 + $0x50] sm:$0xff] %v343
                  %v345 = vld [vmem:[%s321 + $0xb0] sm:$0xff]
                  %346 = vst [vmem:[%s322 + $0x58] sm:$0xff] %v345
                  %v347 = vld [vmem:[%s321 + $0xc0] sm:$0xff]
                  %348 = vst [vmem:[%s322 + $0x60] sm:$0xff] %v347
                  %v349 = vld [vmem:[%s321 + $0xd0] sm:$0xff]
                  %350 = vst [vmem:[%s322 + $0x68] sm:$0xff] %v349
                  %v351 = vld [vmem:[%s321 + $0xe0] sm:$0xff]
                  %352 = vst [vmem:[%s322 + $0x70] sm:$0xff] %v351
                  %v353 = vld [vmem:[%s321 + $0xf0] sm:$0xff]
                  %354 = vst [vmem:[%s322 + $0x78] sm:$0xff] %v353
                $region52: #{_lambda_.12} parent=46 // loop_footer
                  %s320 = sadd.s32 1, %s316
                $region53: #{_lambda_.12} parent=46 // loop_footer_branch
                  %315 = sbr.rel target = $region49
                $region54: #{_lambda_.12} parent=46 // loop_exit
                  _
              $region47: #{_lambda_.12} parent=31 // pred_fallthru
                _
              // Predicated region
              $region55: #{_lambda_.12} parent=31 // pred_check
                _
              $region56: #{_lambda_.12} parent=31 // pred_check_branch
                %356 = sbr.rel target = $region58
              $region57: #{_lambda_.12} parent=31 // pred_region
                _
              $region58: #{_lambda_.12} parent=31 // pred_fallthru
                _
            $region32: #{_lambda_.12} parent=27 // pred_fallthru
              _
            // Predicated region
            $region33: #{_lambda_.12} parent=27 // pred_check
              _
            $region34: #{_lambda_.12} parent=27 // pred_check_branch
              %270 = sbr.rel target = $region36
            $region35: #{_lambda_.12} parent=27 // pred_region
              %s272 = ssub.s32 256, 1
              loop: start=0, step=1, limit=1
              $region37: #{_lambda_.12} parent=35 // loop_pre_header
                _
              $region38: #{_lambda_.12} parent=35 // loop_header
                %s274 = sphi 0, %s278
                %p275 = scmp.ge.s32.totalorder %s274, 1
                %s279 = sphi %s264, %s264
                %s280 = sphi %s259, %s259
              $region39: #{_lambda_.12} parent=35 // loop_header_branch
                %277 = sbr.rel (%p275) target = $region43
              $region40: #{_lambda_.12} parent=35 // loop_body
                %v281 = vld [vmem:[%s279] sm:%s272]
                %282 = vst [vmem:[%s280] sm:%s272] %v281
                %v283 = vld [vmem:[%s279 + $0x10] sm:%s272]
                %284 = vst [vmem:[%s280 + $0x8] sm:%s272] %v283
                %v285 = vld [vmem:[%s279 + $0x20] sm:%s272]
                %286 = vst [vmem:[%s280 + $0x10] sm:%s272] %v285
                %v287 = vld [vmem:[%s279 + $0x30] sm:%s272]
                %288 = vst [vmem:[%s280 + $0x18] sm:%s272] %v287
                %v289 = vld [vmem:[%s279 + $0x40] sm:%s272]
                %290 = vst [vmem:[%s280 + $0x20] sm:%s272] %v289
                %v291 = vld [vmem:[%s279 + $0x50] sm:%s272]
                %292 = vst [vmem:[%s280 + $0x28] sm:%s272] %v291
                %v293 = vld [vmem:[%s279 + $0x60] sm:%s272]
                %294 = vst [vmem:[%s280 + $0x30] sm:%s272] %v293
                %v295 = vld [vmem:[%s279 + $0x70] sm:%s272]
                %296 = vst [vmem:[%s280 + $0x38] sm:%s272] %v295
                %v297 = vld [vmem:[%s279 + $0x80] sm:%s272]
                %298 = vst [vmem:[%s280 + $0x40] sm:%s272] %v297
                %v299 = vld [vmem:[%s279 + $0x90] sm:%s272]
                %300 = vst [vmem:[%s280 + $0x48] sm:%s272] %v299
                %v301 = vld [vmem:[%s279 + $0xa0] sm:%s272]
                %302 = vst [vmem:[%s280 + $0x50] sm:%s272] %v301
                %v303 = vld [vmem:[%s279 + $0xb0] sm:%s272]
                %304 = vst [vmem:[%s280 + $0x58] sm:%s272] %v303
                %v305 = vld [vmem:[%s279 + $0xc0] sm:%s272]
                %306 = vst [vmem:[%s280 + $0x60] sm:%s272] %v305
                %v307 = vld [vmem:[%s279 + $0xd0] sm:%s272]
                %308 = vst [vmem:[%s280 + $0x68] sm:%s272] %v307
                %v309 = vld [vmem:[%s279 + $0xe0] sm:%s272]
                %310 = vst [vmem:[%s280 + $0x70] sm:%s272] %v309
                %v311 = vld [vmem:[%s279 + $0xf0] sm:%s272]
                %312 = vst [vmem:[%s280 + $0x78] sm:%s272] %v311
              $region41: #{_lambda_.12} parent=35 // loop_footer
                %s278 = sadd.s32 1, %s274
              $region42: #{_lambda_.12} parent=35 // loop_footer_branch
                %273 = sbr.rel target = $region38
              $region43: #{_lambda_.12} parent=35 // loop_exit
                _
            $region36: #{_lambda_.12} parent=27 // pred_fallthru
              _
          $region28: #{_lambda_.12} parent=23 // pred_fallthru
            _
          %357 = vnop
        $region24: #{_lambda_.12} parent=19 // pred_fallthru
          _
        // Predicated region
        $region59: #{_lambda_.12} parent=19 // pred_check
          %p358 = pneg %p74
        $region60: #{_lambda_.12} parent=19 // pred_check_branch
          %360 = sbr.rel (%p358) target = $region62
        $region61: #{_lambda_.12} parent=19 // pred_region
          %s361 = smul.u32 16, %s22
          %p362 = scmp.lt.s32.totalorder %s361, 31
          %s363 = scalar_select %p362, %s361, 31
          %s364 = smul.addr %s363, 8
          %s365 = scalar_lea.vmem %s1, %s364
          %s366 = smul.u32 16, %s22
        $region62: #{_lambda_.12} parent=19 // pred_fallthru
          _
        // Predicated region
        $region63: #{_lambda_.12} parent=19 // pred_check
          %p367 = pneg %p100
        $region64: #{_lambda_.12} parent=19 // pred_check_branch
          %369 = sbr.rel (%p367) target = $region66
        $region65: #{_lambda_.12} parent=19 // pred_region
          %s370 = smul.u32 16, %s21
          %p371 = scmp.lt.s32.totalorder %s370, 31
          %s372 = scalar_select %p371, %s370, 31
          %s373 = smul.addr %s372, 8
          %s374 = scalar_lea.vmem %s2, %s373
          %s375 = smul.u32 16, %s21
        $region66: #{_lambda_.12} parent=19 // pred_fallthru
          _
        // Predicated region
        $region67: #{_lambda_.12} parent=19 // pred_check
          %p376 = pneg %p126
        $region68: #{_lambda_.12} parent=19 // pred_check_branch
          %378 = sbr.rel (%p376) target = $region70
        $region69: #{_lambda_.12} parent=19 // pred_region
          %s379 = smul.u32 16, %s21
          %p380 = scmp.lt.s32.totalorder %s379, 31
          %s381 = scalar_select %p380, %s379, 31
          %s382 = smul.addr %s381, 8
          %s383 = scalar_lea.vmem %s3, %s382
          %s384 = smul.u32 16, %s21
        $region70: #{_lambda_.12} parent=19 // pred_fallthru
          _
      $region20: #{_lambda_.12} parent=5 // pred_fallthru
        _
      %p385 = scmp.le.s32.totalorder 1, %s14
      %p386 = scmp.lt.s32.totalorder %s14, 5
      %p387 = pnand %p385, %p386
      %p388 = pneg %p387
      // Predicated region
      $region71: #{_lambda_.12} parent=5 // pred_check
        _
      $region72: #{_lambda_.12} parent=5 // pred_check_branch
        %390 = sbr.rel (%p387) target = $region74
      $region73: #{_lambda_.12} parent=5 // pred_region
        %s391 = ssub.s32 %s14, 1
        %s392 = sand.u32 %s41, 1
        %s393 = sand.u32 %s41, 1
        %s394 = smul.addr %s393, 128
        %s395 = scalar_lea.vmem [#allocation3], %s394
        // Predicated region
        $region75: #{_lambda_.12} parent=73 // pred_check
          %p396 = pneg %p54
        $region76: #{_lambda_.12} parent=73 // pred_check_branch
          %398 = sbr.rel (%p396) target = $region78
        $region77: #{_lambda_.12} parent=73 // pred_region
          _
        $region78: #{_lambda_.12} parent=73 // pred_fallthru
          _
        %s399 = sand.u32 %s41, 1
        %s400 = sand.u32 %s41, 1
        %s401 = smul.addr %s400, 128
        %s402 = scalar_lea.vmem [#allocation3], %s401
        %p403 = pneg %p54
        %p404 = pneg %p51
        %s405 = smul.u32 16, %s24
        %p406 = scmp.lt.s32.totalorder %s405, 31
        %s407 = scalar_select %p406, %s405, 31
        %s408 = smul.addr %s407, 8
        %s409 = scalar_lea.vmem %s1, %s408
        %p410 = pneg %p80
        %p411 = pneg %p77
        %s412 = smul.u32 16, %s23
        %p413 = scmp.lt.s32.totalorder %s412, 31
        %s414 = scalar_select %p413, %s412, 31
        %s415 = smul.addr %s414, 8
        %s416 = scalar_lea.vmem %s2, %s415
        %p417 = pneg %p106
        %p418 = pneg %p103
        %s419 = smul.u32 16, %s23
        %p420 = scmp.lt.s32.totalorder %s419, 31
        %s421 = scalar_select %p420, %s419, 31
        %s422 = smul.addr %s421, 8
        %s423 = scalar_lea.vmem %s3, %s422
        %p424 = pneg %p132
        %p425 = pneg %p129
        %p426 = pneg %p153
        %p427 = pneg %p150
        %p428 = pneg %p179
        %p429 = pneg %p176
        %s430 = smul.u32 16, %s23
        %p431 = scmp.lt.s32.totalorder %s430, 31
        %s432 = scalar_select %p431, %s430, 31
        %s433 = smul.addr %s432, 8
        %s434 = scalar_lea.vmem %s5, %s433
        %p435 = pneg %p205
        %p436 = pneg %p202
        %p437 = scmp.lt.s32.totalorder %s23, 1
        %s438 = scalar_select %p437, %s23, 1
        %s439 = scalar_lea.vmem %s6, %s438
        %p440 = pneg %p231
        %p441 = pneg %p228
        %p442 = scmp.lt.s32.totalorder %s23, 1
        %s443 = scalar_select %p442, %s23, 1
        %s444 = scalar_lea.vmem %s7, %s443
        %s445 = smul.u32 16, %s23
        %s446 = smul.u32 16, %s24
        %p447 = scmp.lt.s32.totalorder %s446, 31
        %s448 = scalar_select %p447, %s446, 31
        %s449 = smul.addr %s448, 8
        %s450 = scalar_lea.vmem %s1, %s449
        %s451 = smul.u32 16, %s24
        %s452 = smul.u32 16, %s23
        %p453 = scmp.lt.s32.totalorder %s452, 31
        %s454 = scalar_select %p453, %s452, 31
        %s455 = smul.addr %s454, 8
        %s456 = scalar_lea.vmem %s2, %s455
        %s457 = smul.u32 16, %s23
        %s458 = smul.u32 16, %s23
        %p459 = scmp.lt.s32.totalorder %s458, 31
        %s460 = scalar_select %p459, %s458, 31
        %s461 = smul.addr %s460, 8
        %s462 = scalar_lea.vmem %s3, %s461
        %s463 = smul.u32 16, %s23
        %s464 = smul.u32 16, %s23
        %p465 = scmp.lt.s32.totalorder %s464, 31
        %s466 = scalar_select %p465, %s464, 31
        %s467 = smul.addr %s466, 8
        %s468 = scalar_lea.vmem %s5, %s467
        %s469 = smul.u32 16, %s23
        %p470 = scmp.lt.s32.totalorder %s23, 1
        %s471 = scalar_select %p470, %s23, 1
        %s472 = scalar_lea.vmem %s6, %s471
        %p473 = scmp.lt.s32.totalorder %s23, 1
        %s474 = scalar_select %p473, %s23, 1
        %s475 = scalar_lea.vmem %s7, %s474
        %p476 = scmp.eq.s32.totalorder %s24, 0
        // Predicated region
        $region79: #{_lambda_.12} parent=73 // pred_check
          %p477 = pneg %p476
        $region80: #{_lambda_.12} parent=73 // pred_check_branch
          %479 = sbr.rel (%p477) target = $region82
        $region81: #{_lambda_.12} parent=73 // pred_region
          %vm480 = vcmask 211968
          %481 = vst.msk [vmem:[#allocation2] sm:$0xff] %vm480, 0.0
          %482 = vst.msk [vmem:[#allocation2 + $0x8] sm:$0xff] %vm480, 0.0
          %483 = vst.msk [vmem:[#allocation2 + $0x10] sm:$0xff] %vm480, 0.0
          %484 = vst.msk [vmem:[#allocation2 + $0x18] sm:$0xff] %vm480, 0.0
          %485 = vst.msk [vmem:[#allocation2 + $0x20] sm:$0xff] %vm480, 0.0
          %486 = vst.msk [vmem:[#allocation2 + $0x28] sm:$0xff] %vm480, 0.0
          %487 = vst.msk [vmem:[#allocation2 + $0x30] sm:$0xff] %vm480, 0.0
          %488 = vst.msk [vmem:[#allocation2 + $0x38] sm:$0xff] %vm480, 0.0
          %489 = vst.msk [vmem:[#allocation2 + $0x40] sm:$0xff] %vm480, 0.0
          %490 = vst.msk [vmem:[#allocation2 + $0x48] sm:$0xff] %vm480, 0.0
          %491 = vst.msk [vmem:[#allocation2 + $0x50] sm:$0xff] %vm480, 0.0
          %492 = vst.msk [vmem:[#allocation2 + $0x58] sm:$0xff] %vm480, 0.0
          %493 = vst.msk [vmem:[#allocation2 + $0x60] sm:$0xff] %vm480, 0.0
          %494 = vst.msk [vmem:[#allocation2 + $0x68] sm:$0xff] %vm480, 0.0
          %495 = vst.msk [vmem:[#allocation2 + $0x70] sm:$0xff] %vm480, 0.0
          %496 = vst.msk [vmem:[#allocation2 + $0x78] sm:$0xff] %vm480, 0.0
        $region82: #{_lambda_.12} parent=73 // pred_fallthru
          _
        %v497 = vld [vmem:[#allocation2] sm:$0xff]
        %v498 = vld [vmem:[#allocation2 + $0x8] sm:$0xff]
        %v499 = vld [vmem:[#allocation2 + $0x10] sm:$0xff]
        %v500 = vld [vmem:[#allocation2 + $0x18] sm:$0xff]
        %v501 = vld [vmem:[#allocation2 + $0x20] sm:$0xff]
        %v502 = vld [vmem:[#allocation2 + $0x28] sm:$0xff]
        %v503 = vld [vmem:[#allocation2 + $0x30] sm:$0xff]
        %v504 = vld [vmem:[#allocation2 + $0x38] sm:$0xff]
        %v505 = vld [vmem:[#allocation2 + $0x40] sm:$0xff]
        %v506 = vld [vmem:[#allocation2 + $0x48] sm:$0xff]
        %v507 = vld [vmem:[#allocation2 + $0x50] sm:$0xff]
        %v508 = vld [vmem:[#allocation2 + $0x58] sm:$0xff]
        %v509 = vld [vmem:[#allocation2 + $0x60] sm:$0xff]
        %v510 = vld [vmem:[#allocation2 + $0x68] sm:$0xff]
        %v511 = vld [vmem:[#allocation2 + $0x70] sm:$0xff]
        %v512 = vld [vmem:[#allocation2 + $0x78] sm:$0xff]
        %v513 = vld [vmem:[%s395] sm:$0xff]
        %v514 = vld [vmem:[%s395 + $0x8] sm:$0xff]
        %v515 = vld [vmem:[%s395 + $0x10] sm:$0xff]
        %v516 = vld [vmem:[%s395 + $0x18] sm:$0xff]
        %v517 = vld [vmem:[%s395 + $0x20] sm:$0xff]
        %v518 = vld [vmem:[%s395 + $0x28] sm:$0xff]
        %v519 = vld [vmem:[%s395 + $0x30] sm:$0xff]
        %v520 = vld [vmem:[%s395 + $0x38] sm:$0xff]
        %v521 = vld [vmem:[%s395 + $0x40] sm:$0xff]
        %v522 = vld [vmem:[%s395 + $0x48] sm:$0xff]
        %v523 = vld [vmem:[%s395 + $0x50] sm:$0xff]
        %v524 = vld [vmem:[%s395 + $0x58] sm:$0xff]
        %v525 = vld [vmem:[%s395 + $0x60] sm:$0xff]
        %v526 = vld [vmem:[%s395 + $0x68] sm:$0xff]
        %v527 = vld [vmem:[%s395 + $0x70] sm:$0xff]
        %v528 = vld [vmem:[%s395 + $0x78] sm:$0xff]
        %v529 = vld [vmem:[%s450] sm:$0xff]
        %v530 = vld [vmem:[%s450 + $0x8] sm:$0xff]
        %v531 = vld [vmem:[%s450 + $0x10] sm:$0xff]
        %v532 = vld [vmem:[%s450 + $0x18] sm:$0xff]
        %v533 = vld [vmem:[%s450 + $0x20] sm:$0xff]
        %v534 = vld [vmem:[%s450 + $0x28] sm:$0xff]
        %v535 = vld [vmem:[%s450 + $0x30] sm:$0xff]
        %v536 = vld [vmem:[%s450 + $0x38] sm:$0xff]
        %v537 = vld [vmem:[%s450 + $0x40] sm:$0xff]
        %v538 = vld [vmem:[%s450 + $0x48] sm:$0xff]
        %v539 = vld [vmem:[%s450 + $0x50] sm:$0xff]
        %v540 = vld [vmem:[%s450 + $0x58] sm:$0xff]
        %v541 = vld [vmem:[%s450 + $0x60] sm:$0xff]
        %v542 = vld [vmem:[%s450 + $0x68] sm:$0xff]
        %v543 = vld [vmem:[%s450 + $0x70] sm:$0xff]
        %v544 = vld [vmem:[%s450 + $0x78] sm:$0xff]
        %545 = vmatpush.msra.mxu0 %v544
        %546 = vmatpush.msra.mxu0 %v543
        %547 = vmatpush.msra.mxu0 %v542
        %548 = vmatpush.msra.mxu0 %v541
        %549 = vmatpush.msra.mxu0 %v540
        %550 = vmatpush.msra.mxu0 %v539
        %551 = vmatpush.msra.mxu0 %v538
        %552 = vmatpush.msra.mxu0 %v537
        %553 = vmatpush.msra.mxu0 %v536
        %554 = vmatpush.msra.mxu0 %v535
        %555 = vmatpush.msra.mxu0 %v534
        %556 = vmatpush.msra.mxu0 %v533
        %557 = vmatpush.msra.mxu0 %v532
        %558 = vmatpush.msra.mxu0 %v531
        %559 = vmatpush.msra.mxu0 %v530
        %560 = vmatpush.msra.mxu0 %v529
        %561 = vmatmul.f32.gmra.mxu0 %v513
        %v562 = vpop.f32.mrf.mxu0
        %v563 = vadd.f32 0.0, %v562
        %564 = vmatmul.f32.gmra.mxu0 %v514
        %v565 = vpop.f32.mrf.mxu0
        %v566 = vadd.f32 0.0, %v565
        %567 = vmatmul.f32.gmra.mxu0 %v515
        %v568 = vpop.f32.mrf.mxu0
        %v569 = vadd.f32 0.0, %v568
        %570 = vmatmul.f32.gmra.mxu0 %v516
        %v571 = vpop.f32.mrf.mxu0
        %v572 = vadd.f32 0.0, %v571
        %573 = vmatmul.f32.gmra.mxu0 %v517
        %v574 = vpop.f32.mrf.mxu0
        %v575 = vadd.f32 0.0, %v574
        %576 = vmatmul.f32.gmra.mxu0 %v518
        %v577 = vpop.f32.mrf.mxu0
        %v578 = vadd.f32 0.0, %v577
        %579 = vmatmul.f32.gmra.mxu0 %v519
        %v580 = vpop.f32.mrf.mxu0
        %v581 = vadd.f32 0.0, %v580
        %582 = vmatmul.f32.gmra.mxu0 %v520
        %v583 = vpop.f32.mrf.mxu0
        %v584 = vadd.f32 0.0, %v583
        %585 = vmatmul.f32.gmra.mxu0 %v521
        %v586 = vpop.f32.mrf.mxu0
        %v587 = vadd.f32 0.0, %v586
        %588 = vmatmul.f32.gmra.mxu0 %v522
        %v589 = vpop.f32.mrf.mxu0
        %v590 = vadd.f32 0.0, %v589
        %591 = vmatmul.f32.gmra.mxu0 %v523
        %v592 = vpop.f32.mrf.mxu0
        %v593 = vadd.f32 0.0, %v592
        %594 = vmatmul.f32.gmra.mxu0 %v524
        %v595 = vpop.f32.mrf.mxu0
        %v596 = vadd.f32 0.0, %v595
        %597 = vmatmul.f32.gmra.mxu0 %v525
        %v598 = vpop.f32.mrf.mxu0
        %v599 = vadd.f32 0.0, %v598
        %600 = vmatmul.f32.gmra.mxu0 %v526
        %v601 = vpop.f32.mrf.mxu0
        %v602 = vadd.f32 0.0, %v601
        %603 = vmatmul.f32.gmra.mxu0 %v527
        %v604 = vpop.f32.mrf.mxu0
        %v605 = vadd.f32 0.0, %v604
        %606 = vmatmul.f32.gmra.mxu0 %v528
        %v607 = vpop.f32.mrf.mxu0
        %v608 = vadd.f32 0.0, %v607
        %609 = vdwg.mxu0
        %v610 = vadd.f32 %v497, %v563
        %v611 = vadd.f32 %v498, %v566
        %v612 = vadd.f32 %v499, %v569
        %v613 = vadd.f32 %v500, %v572
        %v614 = vadd.f32 %v501, %v575
        %v615 = vadd.f32 %v502, %v578
        %v616 = vadd.f32 %v503, %v581
        %v617 = vadd.f32 %v504, %v584
        %v618 = vadd.f32 %v505, %v587
        %v619 = vadd.f32 %v506, %v590
        %v620 = vadd.f32 %v507, %v593
        %v621 = vadd.f32 %v508, %v596
        %v622 = vadd.f32 %v509, %v599
        %v623 = vadd.f32 %v510, %v602
        %v624 = vadd.f32 %v511, %v605
        %v625 = vadd.f32 %v512, %v608
        %vm626 = vcmask 211968
        %627 = vst.msk [vmem:[#allocation2] sm:$0xff] %vm626, %v610
        %628 = vst.msk [vmem:[#allocation2 + $0x8] sm:$0xff] %vm626, %v611
        %629 = vst.msk [vmem:[#allocation2 + $0x10] sm:$0xff] %vm626, %v612
        %630 = vst.msk [vmem:[#allocation2 + $0x18] sm:$0xff] %vm626, %v613
        %631 = vst.msk [vmem:[#allocation2 + $0x20] sm:$0xff] %vm626, %v614
        %632 = vst.msk [vmem:[#allocation2 + $0x28] sm:$0xff] %vm626, %v615
        %633 = vst.msk [vmem:[#allocation2 + $0x30] sm:$0xff] %vm626, %v616
        %634 = vst.msk [vmem:[#allocation2 + $0x38] sm:$0xff] %vm626, %v617
        %635 = vst.msk [vmem:[#allocation2 + $0x40] sm:$0xff] %vm626, %v618
        %636 = vst.msk [vmem:[#allocation2 + $0x48] sm:$0xff] %vm626, %v619
        %637 = vst.msk [vmem:[#allocation2 + $0x50] sm:$0xff] %vm626, %v620
        %638 = vst.msk [vmem:[#allocation2 + $0x58] sm:$0xff] %vm626, %v621
        %639 = vst.msk [vmem:[#allocation2 + $0x60] sm:$0xff] %vm626, %v622
        %640 = vst.msk [vmem:[#allocation2 + $0x68] sm:$0xff] %vm626, %v623
        %641 = vst.msk [vmem:[#allocation2 + $0x70] sm:$0xff] %vm626, %v624
        %642 = vst.msk [vmem:[#allocation2 + $0x78] sm:$0xff] %vm626, %v625
        %p643 = scmp.eq.s32.totalorder %s24, 1
        // Predicated region
        $region83: #{_lambda_.12} parent=73 // pred_check
          %p644 = pneg %p643
        $region84: #{_lambda_.12} parent=73 // pred_check_branch
          %646 = sbr.rel (%p644) target = $region86
        $region85: #{_lambda_.12} parent=73 // pred_region
          %v647 = vld [vmem:[%s462] sm:$0xff]
          %v648 = vld [vmem:[%s462 + $0x8] sm:$0xff]
          %v649 = vld [vmem:[%s462 + $0x10] sm:$0xff]
          %v650 = vld [vmem:[%s462 + $0x18] sm:$0xff]
          %v651 = vld [vmem:[%s462 + $0x20] sm:$0xff]
          %v652 = vld [vmem:[%s462 + $0x28] sm:$0xff]
          %v653 = vld [vmem:[%s462 + $0x30] sm:$0xff]
          %v654 = vld [vmem:[%s462 + $0x38] sm:$0xff]
          %v655 = vld [vmem:[%s462 + $0x40] sm:$0xff]
          %v656 = vld [vmem:[%s462 + $0x48] sm:$0xff]
          %v657 = vld [vmem:[%s462 + $0x50] sm:$0xff]
          %v658 = vld [vmem:[%s462 + $0x58] sm:$0xff]
          %v659 = vld [vmem:[%s462 + $0x60] sm:$0xff]
          %v660 = vld [vmem:[%s462 + $0x68] sm:$0xff]
          %v661 = vld [vmem:[%s462 + $0x70] sm:$0xff]
          %v662 = vld [vmem:[%s462 + $0x78] sm:$0xff]
          %v663 = vld [vmem:[#allocation2] sm:$0xff]
          %v664 = vld [vmem:[#allocation2 + $0x8] sm:$0xff]
          %v665 = vld [vmem:[#allocation2 + $0x10] sm:$0xff]
          %v666 = vld [vmem:[#allocation2 + $0x18] sm:$0xff]
          %v667 = vld [vmem:[#allocation2 + $0x20] sm:$0xff]
          %v668 = vld [vmem:[#allocation2 + $0x28] sm:$0xff]
          %v669 = vld [vmem:[#allocation2 + $0x30] sm:$0xff]
          %v670 = vld [vmem:[#allocation2 + $0x38] sm:$0xff]
          %v671 = vld [vmem:[#allocation2 + $0x40] sm:$0xff]
          %v672 = vld [vmem:[#allocation2 + $0x48] sm:$0xff]
          %v673 = vld [vmem:[#allocation2 + $0x50] sm:$0xff]
          %v674 = vld [vmem:[#allocation2 + $0x58] sm:$0xff]
          %v675 = vld [vmem:[#allocation2 + $0x60] sm:$0xff]
          %v676 = vld [vmem:[#allocation2 + $0x68] sm:$0xff]
          %v677 = vld [vmem:[#allocation2 + $0x70] sm:$0xff]
          %v678 = vld [vmem:[#allocation2 + $0x78] sm:$0xff]
          %v679 = vld [vmem:[%s456] sm:$0xff]
          %v680 = vld [vmem:[%s456 + $0x8] sm:$0xff]
          %v681 = vld [vmem:[%s456 + $0x10] sm:$0xff]
          %v682 = vld [vmem:[%s456 + $0x18] sm:$0xff]
          %v683 = vld [vmem:[%s456 + $0x20] sm:$0xff]
          %v684 = vld [vmem:[%s456 + $0x28] sm:$0xff]
          %v685 = vld [vmem:[%s456 + $0x30] sm:$0xff]
          %v686 = vld [vmem:[%s456 + $0x38] sm:$0xff]
          %v687 = vld [vmem:[%s456 + $0x40] sm:$0xff]
          %v688 = vld [vmem:[%s456 + $0x48] sm:$0xff]
          %v689 = vld [vmem:[%s456 + $0x50] sm:$0xff]
          %v690 = vld [vmem:[%s456 + $0x58] sm:$0xff]
          %v691 = vld [vmem:[%s456 + $0x60] sm:$0xff]
          %v692 = vld [vmem:[%s456 + $0x68] sm:$0xff]
          %v693 = vld [vmem:[%s456 + $0x70] sm:$0xff]
          %v694 = vld [vmem:[%s456 + $0x78] sm:$0xff]
          %v695 = vadd.f32 %v663, %v679
          %v696 = vadd.f32 %v664, %v680
          %v697 = vadd.f32 %v665, %v681
          %v698 = vadd.f32 %v666, %v682
          %v699 = vadd.f32 %v667, %v683
          %v700 = vadd.f32 %v668, %v684
          %v701 = vadd.f32 %v669, %v685
          %v702 = vadd.f32 %v670, %v686
          %v703 = vadd.f32 %v671, %v687
          %v704 = vadd.f32 %v672, %v688
          %v705 = vadd.f32 %v673, %v689
          %v706 = vadd.f32 %v674, %v690
          %v707 = vadd.f32 %v675, %v691
          %v708 = vadd.f32 %v676, %v692
          %v709 = vadd.f32 %v677, %v693
          %v710 = vadd.f32 %v678, %v694
          %712 = vset.pattern.permute.xlu0 0
          %713 = vperm.xlu0 %712, %v647
          %v714 = vpop.permute.xlu0 %713
          %717 = vset.pattern.permute.xlu0 0
          %718 = vperm.xlu0 %717, %v648
          %v719 = vpop.permute.xlu0 %718
          %722 = vset.pattern.permute.xlu0 0
          %723 = vperm.xlu0 %722, %v649
          %v724 = vpop.permute.xlu0 %723
          %727 = vset.pattern.permute.xlu0 0
          %728 = vperm.xlu0 %727, %v650
          %v729 = vpop.permute.xlu0 %728
          %732 = vset.pattern.permute.xlu0 0
          %733 = vperm.xlu0 %732, %v651
          %v734 = vpop.permute.xlu0 %733
          %737 = vset.pattern.permute.xlu0 0
          %738 = vperm.xlu0 %737, %v652
          %v739 = vpop.permute.xlu0 %738
          %742 = vset.pattern.permute.xlu0 0
          %743 = vperm.xlu0 %742, %v653
          %v744 = vpop.permute.xlu0 %743
          %747 = vset.pattern.permute.xlu0 0
          %748 = vperm.xlu0 %747, %v654
          %v749 = vpop.permute.xlu0 %748
          %752 = vset.pattern.permute.xlu0 0
          %753 = vperm.xlu0 %752, %v655
          %v754 = vpop.permute.xlu0 %753
          %757 = vset.pattern.permute.xlu0 0
          %758 = vperm.xlu0 %757, %v656
          %v759 = vpop.permute.xlu0 %758
          %762 = vset.pattern.permute.xlu0 0
          %763 = vperm.xlu0 %762, %v657
          %v764 = vpop.permute.xlu0 %763
          %767 = vset.pattern.permute.xlu0 0
          %768 = vperm.xlu0 %767, %v658
          %v769 = vpop.permute.xlu0 %768
          %772 = vset.pattern.permute.xlu0 0
          %773 = vperm.xlu0 %772, %v659
          %v774 = vpop.permute.xlu0 %773
          %777 = vset.pattern.permute.xlu0 0
          %778 = vperm.xlu0 %777, %v660
          %v779 = vpop.permute.xlu0 %778
          %782 = vset.pattern.permute.xlu0 0
          %783 = vperm.xlu0 %782, %v661
          %v784 = vpop.permute.xlu0 %783
          %787 = vset.pattern.permute.xlu0 0
          %788 = vperm.xlu0 %787, %v662
          %v789 = vpop.permute.xlu0 %788
          %v791 = vmul.f32 %v714, %v695
          %v792 = vmul.f32 %v719, %v696
          %v793 = vmul.f32 %v724, %v697
          %v794 = vmul.f32 %v729, %v698
          %v795 = vmul.f32 %v734, %v699
          %v796 = vmul.f32 %v739, %v700
          %v797 = vmul.f32 %v744, %v701
          %v798 = vmul.f32 %v749, %v702
          %v799 = vmul.f32 %v754, %v703
          %v800 = vmul.f32 %v759, %v704
          %v801 = vmul.f32 %v764, %v705
          %v802 = vmul.f32 %v769, %v706
          %v803 = vmul.f32 %v774, %v707
          %v804 = vmul.f32 %v779, %v708
          %v805 = vmul.f32 %v784, %v709
          %v806 = vmul.f32 %v789, %v710
          %v807 = vld [vmem:[%s4] sm:$0x1]
          %v809 = vperm.slane %v807, 0
          %v811 = vadd.f32 %v791, %v809
          %v812 = vadd.f32 %v792, %v809
          %v813 = vadd.f32 %v793, %v809
          %v814 = vadd.f32 %v794, %v809
          %v815 = vadd.f32 %v795, %v809
          %v816 = vadd.f32 %v796, %v809
          %v817 = vadd.f32 %v797, %v809
          %v818 = vadd.f32 %v798, %v809
          %v819 = vadd.f32 %v799, %v809
          %v820 = vadd.f32 %v800, %v809
          %v821 = vadd.f32 %v801, %v809
          %v822 = vadd.f32 %v802, %v809
          %v823 = vadd.f32 %v803, %v809
          %v824 = vadd.f32 %v804, %v809
          %v825 = vadd.f32 %v805, %v809
          %v826 = vadd.f32 %v806, %v809
          %v827 = vmax.f32 %v811, 0.0
          %v828 = vmax.f32 %v812, 0.0
          %v829 = vmax.f32 %v813, 0.0
          %v830 = vmax.f32 %v814, 0.0
          %v831 = vmax.f32 %v815, 0.0
          %v832 = vmax.f32 %v816, 0.0
          %v833 = vmax.f32 %v817, 0.0
          %v834 = vmax.f32 %v818, 0.0
          %v835 = vmax.f32 %v819, 0.0
          %v836 = vmax.f32 %v820, 0.0
          %v837 = vmax.f32 %v821, 0.0
          %v838 = vmax.f32 %v822, 0.0
          %v839 = vmax.f32 %v823, 0.0
          %v840 = vmax.f32 %v824, 0.0
          %v841 = vmax.f32 %v825, 0.0
          %v842 = vmax.f32 %v826, 0.0
          %vm843 = vcmp.gt.f32.partialorder %v647, 0.0
          %vm844 = vcmp.gt.f32.partialorder %v648, 0.0
          %vm845 = vcmp.gt.f32.partialorder %v649, 0.0
          %vm846 = vcmp.gt.f32.partialorder %v650, 0.0
          %vm847 = vcmp.gt.f32.partialorder %v651, 0.0
          %vm848 = vcmp.gt.f32.partialorder %v652, 0.0
          %vm849 = vcmp.gt.f32.partialorder %v653, 0.0
          %vm850 = vcmp.gt.f32.partialorder %v654, 0.0
          %vm851 = vcmp.gt.f32.partialorder %v655, 0.0
          %vm852 = vcmp.gt.f32.partialorder %v656, 0.0
          %vm853 = vcmp.gt.f32.partialorder %v657, 0.0
          %vm854 = vcmp.gt.f32.partialorder %v658, 0.0
          %vm855 = vcmp.gt.f32.partialorder %v659, 0.0
          %vm856 = vcmp.gt.f32.partialorder %v660, 0.0
          %vm857 = vcmp.gt.f32.partialorder %v661, 0.0
          %vm858 = vcmp.gt.f32.partialorder %v662, 0.0
          %v859 = vsel %vm843, 1, 0
          %v860 = vsel %vm844, 1, 0
          %v861 = vsel %vm845, 1, 0
          %v862 = vsel %vm846, 1, 0
          %v863 = vsel %vm847, 1, 0
          %v864 = vsel %vm848, 1, 0
          %v865 = vsel %vm849, 1, 0
          %v866 = vsel %vm850, 1, 0
          %v867 = vsel %vm851, 1, 0
          %v868 = vsel %vm852, 1, 0
          %v869 = vsel %vm853, 1, 0
          %v870 = vsel %vm854, 1, 0
          %v871 = vsel %vm855, 1, 0
          %v872 = vsel %vm856, 1, 0
          %v873 = vsel %vm857, 1, 0
          %v874 = vsel %vm858, 1, 0
          %875 = vset.pattern.permute.xlu0 0
          %876 = vperm.xlu0 %875, %v859
          %v877 = vpop.permute.xlu0 %876
          %878 = vset.pattern.permute.xlu0 0
          %879 = vperm.xlu0 %878, %v860
          %v880 = vpop.permute.xlu0 %879
          %881 = vset.pattern.permute.xlu0 0
          %882 = vperm.xlu0 %881, %v861
          %v883 = vpop.permute.xlu0 %882
          %884 = vset.pattern.permute.xlu0 0
          %885 = vperm.xlu0 %884, %v862
          %v886 = vpop.permute.xlu0 %885
          %887 = vset.pattern.permute.xlu0 0
          %888 = vperm.xlu0 %887, %v863
          %v889 = vpop.permute.xlu0 %888
          %890 = vset.pattern.permute.xlu0 0
          %891 = vperm.xlu0 %890, %v864
          %v892 = vpop.permute.xlu0 %891
          %893 = vset.pattern.permute.xlu0 0
          %894 = vperm.xlu0 %893, %v865
          %v895 = vpop.permute.xlu0 %894
          %896 = vset.pattern.permute.xlu0 0
          %897 = vperm.xlu0 %896, %v866
          %v898 = vpop.permute.xlu0 %897
          %899 = vset.pattern.permute.xlu0 0
          %900 = vperm.xlu0 %899, %v867
          %v901 = vpop.permute.xlu0 %900
          %902 = vset.pattern.permute.xlu0 0
          %903 = vperm.xlu0 %902, %v868
          %v904 = vpop.permute.xlu0 %903
          %905 = vset.pattern.permute.xlu0 0
          %906 = vperm.xlu0 %905, %v869
          %v907 = vpop.permute.xlu0 %906
          %908 = vset.pattern.permute.xlu0 0
          %909 = vperm.xlu0 %908, %v870
          %v910 = vpop.permute.xlu0 %909
          %911 = vset.pattern.permute.xlu0 0
          %912 = vperm.xlu0 %911, %v871
          %v913 = vpop.permute.xlu0 %912
          %914 = vset.pattern.permute.xlu0 0
          %915 = vperm.xlu0 %914, %v872
          %v916 = vpop.permute.xlu0 %915
          %917 = vset.pattern.permute.xlu0 0
          %918 = vperm.xlu0 %917, %v873
          %v919 = vpop.permute.xlu0 %918
          %920 = vset.pattern.permute.xlu0 0
          %921 = vperm.xlu0 %920, %v874
          %v922 = vpop.permute.xlu0 %921
          %vm923 = vcmp.eq.s32.totalorder %v877, 1
          %vm924 = vcmp.eq.s32.totalorder %v880, 1
          %vm925 = vcmp.eq.s32.totalorder %v883, 1
          %vm926 = vcmp.eq.s32.totalorder %v886, 1
          %vm927 = vcmp.eq.s32.totalorder %v889, 1
          %vm928 = vcmp.eq.s32.totalorder %v892, 1
          %vm929 = vcmp.eq.s32.totalorder %v895, 1
          %vm930 = vcmp.eq.s32.totalorder %v898, 1
          %vm931 = vcmp.eq.s32.totalorder %v901, 1
          %vm932 = vcmp.eq.s32.totalorder %v904, 1
          %vm933 = vcmp.eq.s32.totalorder %v907, 1
          %vm934 = vcmp.eq.s32.totalorder %v910, 1
          %vm935 = vcmp.eq.s32.totalorder %v913, 1
          %vm936 = vcmp.eq.s32.totalorder %v916, 1
          %vm937 = vcmp.eq.s32.totalorder %v919, 1
          %vm938 = vcmp.eq.s32.totalorder %v922, 1
          %v939 = vsel %vm923, %v827, 0.0
          %v940 = vsel %vm924, %v828, 0.0
          %v941 = vsel %vm925, %v829, 0.0
          %v942 = vsel %vm926, %v830, 0.0
          %v943 = vsel %vm927, %v831, 0.0
          %v944 = vsel %vm928, %v832, 0.0
          %v945 = vsel %vm929, %v833, 0.0
          %v946 = vsel %vm930, %v834, 0.0
          %v947 = vsel %vm931, %v835, 0.0
          %v948 = vsel %vm932, %v836, 0.0
          %v949 = vsel %vm933, %v837, 0.0
          %v950 = vsel %vm934, %v838, 0.0
          %v951 = vsel %vm935, %v839, 0.0
          %v952 = vsel %vm936, %v840, 0.0
          %v953 = vsel %vm937, %v841, 0.0
          %v954 = vsel %vm938, %v842, 0.0
          %955 = vst.msk [vmem:[%s468] sm:$0xff] %vm626, %v939
          %956 = vst.msk [vmem:[%s468 + $0x8] sm:$0xff] %vm626, %v940
          %957 = vst.msk [vmem:[%s468 + $0x10] sm:$0xff] %vm626, %v941
          %958 = vst.msk [vmem:[%s468 + $0x18] sm:$0xff] %vm626, %v942
          %959 = vst.msk [vmem:[%s468 + $0x20] sm:$0xff] %vm626, %v943
          %960 = vst.msk [vmem:[%s468 + $0x28] sm:$0xff] %vm626, %v944
          %961 = vst.msk [vmem:[%s468 + $0x30] sm:$0xff] %vm626, %v945
          %962 = vst.msk [vmem:[%s468 + $0x38] sm:$0xff] %vm626, %v946
          %963 = vst.msk [vmem:[%s468 + $0x40] sm:$0xff] %vm626, %v947
          %964 = vst.msk [vmem:[%s468 + $0x48] sm:$0xff] %vm626, %v948
          %965 = vst.msk [vmem:[%s468 + $0x50] sm:$0xff] %vm626, %v949
          %966 = vst.msk [vmem:[%s468 + $0x58] sm:$0xff] %vm626, %v950
          %967 = vst.msk [vmem:[%s468 + $0x60] sm:$0xff] %vm626, %v951
          %968 = vst.msk [vmem:[%s468 + $0x68] sm:$0xff] %vm626, %v952
          %969 = vst.msk [vmem:[%s468 + $0x70] sm:$0xff] %vm626, %v953
          %970 = vst.msk [vmem:[%s468 + $0x78] sm:$0xff] %vm626, %v954
          %v971 = vsel %vm626, %v939, 0.0
          %v972 = vsel %vm626, %v940, 0.0
          %v973 = vadd.f32 %v971, %v972
          %v974 = vsel %vm626, %v941, 0.0
          %v975 = vadd.f32 %v973, %v974
          %v976 = vsel %vm626, %v942, 0.0
          %v977 = vadd.f32 %v975, %v976
          %v978 = vsel %vm626, %v943, 0.0
          %v979 = vadd.f32 %v977, %v978
          %v980 = vsel %vm626, %v944, 0.0
          %v981 = vadd.f32 %v979, %v980
          %v982 = vsel %vm626, %v945, 0.0
          %v983 = vadd.f32 %v981, %v982
          %v984 = vsel %vm626, %v946, 0.0
          %v985 = vadd.f32 %v983, %v984
          %v986 = vsel %vm626, %v947, 0.0
          %v987 = vadd.f32 %v985, %v986
          %v988 = vsel %vm626, %v948, 0.0
          %v989 = vadd.f32 %v987, %v988
          %v990 = vsel %vm626, %v949, 0.0
          %v991 = vadd.f32 %v989, %v990
          %v992 = vsel %vm626, %v950, 0.0
          %v993 = vadd.f32 %v991, %v992
          %v994 = vsel %vm626, %v951, 0.0
          %v995 = vadd.f32 %v993, %v994
          %v996 = vsel %vm626, %v952, 0.0
          %v997 = vadd.f32 %v995, %v996
          %v998 = vsel %vm626, %v953, 0.0
          %v999 = vadd.f32 %v997, %v998
          %v1000 = vsel %vm626, %v954, 0.0
          %v1001 = vadd.f32 %v999, %v1000
          %v1002 = vrot.slane %v1001, 4
          %v1003 = vadd.f32 %v1001, %v1002
          %v1004 = vrot.slane %v1003, 2
          %v1005 = vadd.f32 %v1003, %v1004
          %v1006 = vrot.slane %v1005, 1
          %v1007 = vadd.f32 %v1005, %v1006
          %vm1008 = vcmask 204800
          %1009 = vst.msk [vmem:[%s472] sm:$0x1] %vm1008, %v1007
          %v1010 = vmul.f32 %v939, %v939
          %v1011 = vmul.f32 %v940, %v940
          %v1012 = vmul.f32 %v941, %v941
          %v1013 = vmul.f32 %v942, %v942
          %v1014 = vmul.f32 %v943, %v943
          %v1015 = vmul.f32 %v944, %v944
          %v1016 = vmul.f32 %v945, %v945
          %v1017 = vmul.f32 %v946, %v946
          %v1018 = vmul.f32 %v947, %v947
          %v1019 = vmul.f32 %v948, %v948
          %v1020 = vmul.f32 %v949, %v949
          %v1021 = vmul.f32 %v950, %v950
          %v1022 = vmul.f32 %v951, %v951
          %v1023 = vmul.f32 %v952, %v952
          %v1024 = vmul.f32 %v953, %v953
          %v1025 = vmul.f32 %v954, %v954
          %v1026 = vsel %vm626, %v1010, 0.0
          %v1027 = vsel %vm626, %v1011, 0.0
          %v1028 = vadd.f32 %v1026, %v1027
          %v1029 = vsel %vm626, %v1012, 0.0
          %v1030 = vadd.f32 %v1028, %v1029
          %v1031 = vsel %vm626, %v1013, 0.0
          %v1032 = vadd.f32 %v1030, %v1031
          %v1033 = vsel %vm626, %v1014, 0.0
          %v1034 = vadd.f32 %v1032, %v1033
          %v1035 = vsel %vm626, %v1015, 0.0
          %v1036 = vadd.f32 %v1034, %v1035
          %v1037 = vsel %vm626, %v1016, 0.0
          %v1038 = vadd.f32 %v1036, %v1037
          %v1039 = vsel %vm626, %v1017, 0.0
          %v1040 = vadd.f32 %v1038, %v1039
          %v1041 = vsel %vm626, %v1018, 0.0
          %v1042 = vadd.f32 %v1040, %v1041
          %v1043 = vsel %vm626, %v1019, 0.0
          %v1044 = vadd.f32 %v1042, %v1043
          %v1045 = vsel %vm626, %v1020, 0.0
          %v1046 = vadd.f32 %v1044, %v1045
          %v1047 = vsel %vm626, %v1021, 0.0
          %v1048 = vadd.f32 %v1046, %v1047
          %v1049 = vsel %vm626, %v1022, 0.0
          %v1050 = vadd.f32 %v1048, %v1049
          %v1051 = vsel %vm626, %v1023, 0.0
          %v1052 = vadd.f32 %v1050, %v1051
          %v1053 = vsel %vm626, %v1024, 0.0
          %v1054 = vadd.f32 %v1052, %v1053
          %v1055 = vsel %vm626, %v1025, 0.0
          %v1056 = vadd.f32 %v1054, %v1055
          %v1057 = vrot.slane %v1056, 4
          %v1058 = vadd.f32 %v1056, %v1057
          %v1059 = vrot.slane %v1058, 2
          %v1060 = vadd.f32 %v1058, %v1059
          %v1061 = vrot.slane %v1060, 1
          %v1062 = vadd.f32 %v1060, %v1061
          %1063 = vst.msk [vmem:[%s475] sm:$0x1] %vm1008, %v1062
        $region86: #{_lambda_.12} parent=73 // pred_fallthru
          _
        %s1064 = smul.u32 16, %s23
        %p1065 = scmp.lt.s32.totalorder %s1064, 31
        %s1066 = scalar_select %p1065, %s1064, 31
        %s1067 = smul.addr %s1066, 8
        %s1068 = scalar_lea.vmem %s5, %s1067
        %p1069 = scmp.lt.s32.totalorder %s23, 1
        %s1070 = scalar_select %p1069, %s23, 1
        %s1071 = scalar_lea.vmem %s6, %s1070
        %p1072 = scmp.lt.s32.totalorder %s23, 1
        %s1073 = scalar_select %p1072, %s23, 1
        %s1074 = scalar_lea.vmem %s7, %s1073
        // Predicated region
        $region87: #{_lambda_.12} parent=73 // pred_check
          %p1075 = pneg %p176
        $region88: #{_lambda_.12} parent=73 // pred_check_branch
          %1077 = sbr.rel (%p1075) target = $region90
        $region89: #{_lambda_.12} parent=73 // pred_region
          %s1078 = smul.u32 16, %s23
        $region90: #{_lambda_.12} parent=73 // pred_fallthru
          _
        // Predicated region
        $region91: #{_lambda_.12} parent=73 // pred_check
          %p1079 = pneg %p202
        $region92: #{_lambda_.12} parent=73 // pred_check_branch
          %1081 = sbr.rel (%p1079) target = $region94
        $region93: #{_lambda_.12} parent=73 // pred_region
          _
        $region94: #{_lambda_.12} parent=73 // pred_fallthru
          _
        // Predicated region
        $region95: #{_lambda_.12} parent=73 // pred_check
          %p1082 = pneg %p228
        $region96: #{_lambda_.12} parent=73 // pred_check_branch
          %1084 = sbr.rel (%p1082) target = $region98
        $region97: #{_lambda_.12} parent=73 // pred_region
          _
        $region98: #{_lambda_.12} parent=73 // pred_fallthru
          _
      $region74: #{_lambda_.12} parent=5 // pred_fallthru
        _
      %p1085 = scmp.le.s32.totalorder 2, %s14
      // Predicated region
      $region99: #{_lambda_.12} parent=5 // pred_check
        %p1086 = pneg %p1085
      $region100: #{_lambda_.12} parent=5 // pred_check_branch
        %1088 = sbr.rel (%p1086) target = $region102
      $region101: #{_lambda_.12} parent=5 // pred_region
        %s1089 = ssub.s32 %s14, 2
        // Predicated region
        $region103: #{_lambda_.12} parent=101 // pred_check
          %p1090 = pneg %p182
        $region104: #{_lambda_.12} parent=101 // pred_check_branch
          %1092 = sbr.rel (%p1090) target = $region106
        $region105: #{_lambda_.12} parent=101 // pred_region
          %s1093 = smul.u32 16, %s25
          %p1094 = scmp.lt.s32.totalorder %s1093, 31
          %s1095 = scalar_select %p1094, %s1093, 31
          %s1096 = smul.addr %s1095, 8
          %s1097 = scalar_lea.vmem %s5, %s1096
        $region106: #{_lambda_.12} parent=101 // pred_fallthru
          _
        // Predicated region
        $region107: #{_lambda_.12} parent=101 // pred_check
          %p1098 = pneg %p208
        $region108: #{_lambda_.12} parent=101 // pred_check_branch
          %1100 = sbr.rel (%p1098) target = $region110
        $region109: #{_lambda_.12} parent=101 // pred_region
          %p1101 = scmp.lt.s32.totalorder %s25, 1
          %s1102 = scalar_select %p1101, %s25, 1
          %s1103 = scalar_lea.vmem %s6, %s1102
        $region110: #{_lambda_.12} parent=101 // pred_fallthru
          _
        // Predicated region
        $region111: #{_lambda_.12} parent=101 // pred_check
          %p1104 = pneg %p234
        $region112: #{_lambda_.12} parent=101 // pred_check_branch
          %1106 = sbr.rel (%p1104) target = $region114
        $region113: #{_lambda_.12} parent=101 // pred_region
          %p1107 = scmp.lt.s32.totalorder %s25, 1
          %s1108 = scalar_select %p1107, %s25, 1
          %s1109 = scalar_lea.vmem %s7, %s1108
        $region114: #{_lambda_.12} parent=101 // pred_fallthru
          _
      $region102: #{_lambda_.12} parent=5 // pred_fallthru
        _
    $region6: #{_lambda_.12} parent=1 // loop_footer
      %s18 = sadd.s32 1, %s14
    $region7: #{_lambda_.12} parent=1 // loop_footer_branch
      %13 = sbr.rel target = $region3
    $region8: #{_lambda_.12} parent=1 // loop_exit
      _

// kernel: _lambda_.13
$region0: #{_lambda_.13}
  #allocation0 [shape = 'u32[]', space=smem, size = 0x4, offset = 0x4, fixed_abs, tag = 'smem constant byte address 0x4 - core index']
  #allocation1 [shape = 'u32[72,128]{1,0:T(1,128)}', space=vmem, size = 0x9000, scoped, tag = 'internal scratch']
  %s0 = inlined_call_operand.vmem [shape: f32[256,26], index: 0, kind: input, shape index: {}]
  %s1 = inlined_call_operand.vmem [shape: f32[1,26], index: 1, kind: input, shape index: {}]
  %s2 = inlined_call_operand.vmem [shape: f32[1,26], index: 2, kind: input, shape index: {}]
  %s3 = inlined_call_operand.vmem [shape: f32[26,20], index: 3, kind: input, shape index: {}]
  %s4 = inlined_call_operand.vmem [shape: f32[256,1], index: 4, kind: input, shape index: {}]
  %s5 = inlined_call_operand.vmem [shape: f32[256,20], index: 5, kind: output, shape index: {}]
  %s6 = sld [smem:[#allocation0]]
  $region53: #{_lambda_.13} parent=0
    _
  %s8 = ssub.s32 1, %s6
  %s9 = scalar_select 0, %s8, %s6
  loop: start=0, step=1, limit=4
  $region2: #{_lambda_.13} parent=0 // loop_pre_header
    _
  $region3: #{_lambda_.13} parent=0 // loop_header
    %s11 = sphi 0, %s15
    %p12 = scmp.ge.s32.totalorder %s11, 4
    %s21 = sphi 0, %s23
    %s24 = sphi 0, %s21
    %s25 = sphi 0, %s24
    %s41 = sphi 0, %s25
    %s45 = sphi 0, %s45
    %s47 = sphi 0, %s45
    %s48 = sphi 0, %s47
    %s62 = sphi 0, %s48
    %s66 = sphi 0, %s66
    %s68 = sphi 0, %s66
    %s69 = sphi 0, %s68
    %s83 = sphi 0, %s69
    %s87 = sphi 0, %s87
    %s89 = sphi 0, %s87
    %s90 = sphi 0, %s89
    %s104 = sphi 0, %s90
    %s110 = sphi 0, %s112
    %s113 = sphi 0, %s110
    %s114 = sphi 0, %s113
    %s130 = sphi 0, %s114
    %s136 = sphi 0, %s138
    %s139 = sphi 0, %s136
    %s140 = sphi 0, %s139
    %s156 = sphi 0, %s140
  $region4: #{_lambda_.13} parent=0 // loop_header_branch
    %14 = sbr.rel (%p12) target = $region8
  $region5: #{_lambda_.13} parent=0 // loop_body
    %s16 = ssub.s32 %s11, 1
    %s17 = ssub.s32 %s11, 2
    %s18 = sadd.s32 %s11, 1
    %s19 = ssub.s32 %s11, %s18
    %p20 = scmp.eq.s32.totalorder %s19, 0
    %s22 = sadd.s32 %s21, 1
    %s23 = scalar_select %p20, %s21, %s22
    %p26 = pneg %p20
    %p27 = scmp.eq.s32.totalorder %s11, 1
    %p28 = por %p26, %p27
    %p29 = scmp.ne.s32.totalorder %s21, %s24
    %p30 = scmp.eq.s32.totalorder %s11, 0
    %p31 = por %p29, %p30
    %p32 = scmp.ne.s32.totalorder %s21, %s24
    %p33 = scmp.eq.s32.totalorder %s16, 1
    %p34 = por %p32, %p33
    %p35 = scmp.ne.s32.totalorder %s24, %s25
    %p36 = scmp.eq.s32.totalorder %s16, 0
    %p37 = por %p35, %p36
    %p38 = scmp.ne.s32.totalorder %s24, %s25
    %p39 = scmp.eq.s32.totalorder %s17, 1
    %p40 = por %p38, %p39
    %p42 = scmp.ne.s32.totalorder %s25, %s41
    %p43 = scmp.eq.s32.totalorder %s17, 0
    %p44 = por %p42, %p43
    %s46 = sadd.s32 %s45, 1
    %p49 = scmp.eq.s32.totalorder %s11, 1
    %p50 = scmp.ne.s32.totalorder %s45, %s47
    %p51 = scmp.eq.s32.totalorder %s11, 0
    %p52 = por %p50, %p51
    %p53 = scmp.ne.s32.totalorder %s45, %s47
    %p54 = scmp.eq.s32.totalorder %s16, 1
    %p55 = por %p53, %p54
    %p56 = scmp.ne.s32.totalorder %s47, %s48
    %p57 = scmp.eq.s32.totalorder %s16, 0
    %p58 = por %p56, %p57
    %p59 = scmp.ne.s32.totalorder %s47, %s48
    %p60 = scmp.eq.s32.totalorder %s17, 1
    %p61 = por %p59, %p60
    %p63 = scmp.ne.s32.totalorder %s48, %s62
    %p64 = scmp.eq.s32.totalorder %s17, 0
    %p65 = por %p63, %p64
    %s67 = sadd.s32 %s66, 1
    %p70 = scmp.eq.s32.totalorder %s11, 1
    %p71 = scmp.ne.s32.totalorder %s66, %s68
    %p72 = scmp.eq.s32.totalorder %s11, 0
    %p73 = por %p71, %p72
    %p74 = scmp.ne.s32.totalorder %s66, %s68
    %p75 = scmp.eq.s32.totalorder %s16, 1
    %p76 = por %p74, %p75
    %p77 = scmp.ne.s32.totalorder %s68, %s69
    %p78 = scmp.eq.s32.totalorder %s16, 0
    %p79 = por %p77, %p78
    %p80 = scmp.ne.s32.totalorder %s68, %s69
    %p81 = scmp.eq.s32.totalorder %s17, 1
    %p82 = por %p80, %p81
    %p84 = scmp.ne.s32.totalorder %s69, %s83
    %p85 = scmp.eq.s32.totalorder %s17, 0
    %p86 = por %p84, %p85
    %s88 = sadd.s32 %s87, 1
    %p91 = scmp.eq.s32.totalorder %s11, 1
    %p92 = scmp.ne.s32.totalorder %s87, %s89
    %p93 = scmp.eq.s32.totalorder %s11, 0
    %p94 = por %p92, %p93
    %p95 = scmp.ne.s32.totalorder %s87, %s89
    %p96 = scmp.eq.s32.totalorder %s16, 1
    %p97 = por %p95, %p96
    %p98 = scmp.ne.s32.totalorder %s89, %s90
    %p99 = scmp.eq.s32.totalorder %s16, 0
    %p100 = por %p98, %p99
    %p101 = scmp.ne.s32.totalorder %s89, %s90
    %p102 = scmp.eq.s32.totalorder %s17, 1
    %p103 = por %p101, %p102
    %p105 = scmp.ne.s32.totalorder %s90, %s104
    %p106 = scmp.eq.s32.totalorder %s17, 0
    %p107 = por %p105, %p106
    %s108 = ssub.s32 %s11, %s18
    %p109 = scmp.eq.s32.totalorder %s108, 0
    %s111 = sadd.s32 %s110, 1
    %s112 = scalar_select %p109, %s110, %s111
    %p115 = pneg %p109
    %p116 = scmp.eq.s32.totalorder %s11, 1
    %p117 = por %p115, %p116
    %p118 = scmp.ne.s32.totalorder %s110, %s113
    %p119 = scmp.eq.s32.totalorder %s11, 0
    %p120 = por %p118, %p119
    %p121 = scmp.ne.s32.totalorder %s110, %s113
    %p122 = scmp.eq.s32.totalorder %s16, 1
    %p123 = por %p121, %p122
    %p124 = scmp.ne.s32.totalorder %s113, %s114
    %p125 = scmp.eq.s32.totalorder %s16, 0
    %p126 = por %p124, %p125
    %p127 = scmp.ne.s32.totalorder %s113, %s114
    %p128 = scmp.eq.s32.totalorder %s17, 1
    %p129 = por %p127, %p128
    %p131 = scmp.ne.s32.totalorder %s114, %s130
    %p132 = scmp.eq.s32.totalorder %s17, 0
    %p133 = por %p131, %p132
    %s134 = ssub.s32 %s11, %s18
    %p135 = scmp.eq.s32.totalorder %s134, 0
    %s137 = sadd.s32 %s136, 1
    %s138 = scalar_select %p135, %s136, %s137
    %p141 = pneg %p135
    %p142 = scmp.eq.s32.totalorder %s11, 1
    %p143 = por %p141, %p142
    %p144 = scmp.ne.s32.totalorder %s136, %s139
    %p145 = scmp.eq.s32.totalorder %s11, 0
    %p146 = por %p144, %p145
    %p147 = scmp.ne.s32.totalorder %s136, %s139
    %p148 = scmp.eq.s32.totalorder %s16, 1
    %p149 = por %p147, %p148
    %p150 = scmp.ne.s32.totalorder %s139, %s140
    %p151 = scmp.eq.s32.totalorder %s16, 0
    %p152 = por %p150, %p151
    %p153 = scmp.ne.s32.totalorder %s139, %s140
    %p154 = scmp.eq.s32.totalorder %s17, 1
    %p155 = por %p153, %p154
    %p157 = scmp.ne.s32.totalorder %s140, %s156
    %p158 = scmp.eq.s32.totalorder %s17, 0
    %p159 = por %p157, %p158
    %p160 = scmp.le.s32.totalorder 1, %s11
    %p161 = scmp.lt.s32.totalorder %s11, 3
    %p162 = pnand %p160, %p161
    %p163 = pneg %p162
    // Predicated region
    $region9: #{_lambda_.13} parent=5 // pred_check
      _
    $region10: #{_lambda_.13} parent=5 // pred_check_branch
      %165 = sbr.rel (%p162) target = $region12
    $region11: #{_lambda_.13} parent=5 // pred_region
      %s166 = ssub.s32 %s11, 1
      // Predicated region
      $region13: #{_lambda_.13} parent=11 // pred_check
        %p167 = pneg %p58
      $region14: #{_lambda_.13} parent=11 // pred_check_branch
        %169 = sbr.rel (%p167) target = $region16
      $region15: #{_lambda_.13} parent=11 // pred_region
        _
      $region16: #{_lambda_.13} parent=11 // pred_fallthru
        _
      // Predicated region
      $region17: #{_lambda_.13} parent=11 // pred_check
        %p170 = pneg %p79
      $region18: #{_lambda_.13} parent=11 // pred_check_branch
        %172 = sbr.rel (%p170) target = $region20
      $region19: #{_lambda_.13} parent=11 // pred_region
        _
      $region20: #{_lambda_.13} parent=11 // pred_fallthru
        _
      // Predicated region
      $region21: #{_lambda_.13} parent=11 // pred_check
        %p173 = pneg %p100
      $region22: #{_lambda_.13} parent=11 // pred_check_branch
        %175 = sbr.rel (%p173) target = $region24
      $region23: #{_lambda_.13} parent=11 // pred_region
        _
      $region24: #{_lambda_.13} parent=11 // pred_fallthru
        _
    $region12: #{_lambda_.13} parent=5 // pred_fallthru
      _
    %p176 = scmp.lt.s32.totalorder %s11, 2
    // Predicated region
    $region25: #{_lambda_.13} parent=5 // pred_check
      %p177 = pneg %p176
    $region26: #{_lambda_.13} parent=5 // pred_check_branch
      %179 = sbr.rel (%p177) target = $region28
    $region27: #{_lambda_.13} parent=5 // pred_region
      // Predicated region
      $region29: #{_lambda_.13} parent=27 // pred_check
        %p180 = pneg %p31
      $region30: #{_lambda_.13} parent=27 // pred_check_branch
        %182 = sbr.rel (%p180) target = $region32
      $region31: #{_lambda_.13} parent=27 // pred_region
        %s183 = smul.u32 16, %s11
        %p184 = scmp.lt.s32.totalorder %s183, 31
        %s185 = scalar_select %p184, %s183, 31
        %s186 = smul.addr %s185, 8
        %s187 = scalar_lea.vmem %s0, %s186
        %s188 = smul.u32 16, %s11
      $region32: #{_lambda_.13} parent=27 // pred_fallthru
        _
      // Predicated region
      $region33: #{_lambda_.13} parent=27 // pred_check
        %p189 = pneg %p120
      $region34: #{_lambda_.13} parent=27 // pred_check_branch
        %191 = sbr.rel (%p189) target = $region36
      $region35: #{_lambda_.13} parent=27 // pred_region
        %s192 = smul.u32 16, %s11
        %p193 = scmp.lt.s32.totalorder %s192, 31
        %s194 = scalar_select %p193, %s192, 31
        %s195 = smul.addr %s194, 8
        %s196 = scalar_lea.vmem %s4, %s195
        %s197 = smul.u32 16, %s11
      $region36: #{_lambda_.13} parent=27 // pred_fallthru
        _
    $region28: #{_lambda_.13} parent=5 // pred_fallthru
      _
    %p198 = scmp.le.s32.totalorder 1, %s11
    %p199 = scmp.lt.s32.totalorder %s11, 3
    %p200 = pnand %p198, %p199
    %p201 = pneg %p200
    // Predicated region
    $region37: #{_lambda_.13} parent=5 // pred_check
      _
    $region38: #{_lambda_.13} parent=5 // pred_check_branch
      %203 = sbr.rel (%p200) target = $region40
    $region39: #{_lambda_.13} parent=5 // pred_region
      %s204 = ssub.s32 %s11, 1
      %s205 = smul.u32 16, %s16
      %p206 = scmp.lt.s32.totalorder %s205, 31
      %s207 = scalar_select %p206, %s205, 31
      %s208 = smul.addr %s207, 8
      %s209 = scalar_lea.vmem %s0, %s208
      %p210 = pneg %p37
      %p211 = pneg %p34
      %p212 = pneg %p58
      %p213 = pneg %p55
      %p214 = pneg %p79
      %p215 = pneg %p76
      %p216 = pneg %p100
      %p217 = pneg %p97
      %s218 = smul.u32 16, %s16
      %p219 = scmp.lt.s32.totalorder %s218, 31
      %s220 = scalar_select %p219, %s218, 31
      %s221 = smul.addr %s220, 8
      %s222 = scalar_lea.vmem %s4, %s221
      %p223 = pneg %p126
      %p224 = pneg %p123
      %p225 = pneg %p152
      %p226 = pneg %p149
      %s227 = smul.u32 16, %s16
      %p228 = scmp.lt.s32.totalorder %s227, 31
      %s229 = scalar_select %p228, %s227, 31
      %s230 = smul.addr %s229, 8
      %s231 = scalar_lea.vmem %s5, %s230
      %s232 = smul.u32 16, %s16
      %p233 = scmp.lt.s32.totalorder %s232, 31
      %s234 = scalar_select %p233, %s232, 31
      %s235 = smul.addr %s234, 8
      %s236 = scalar_lea.vmem %s0, %s235
      %s237 = smul.u32 16, %s16
      %s238 = smul.u32 16, %s16
      %p239 = scmp.lt.s32.totalorder %s238, 31
      %s240 = scalar_select %p239, %s238, 31
      %s241 = smul.addr %s240, 8
      %s242 = scalar_lea.vmem %s4, %s241
      %s243 = smul.u32 16, %s16
      %s244 = smul.u32 16, %s16
      %p245 = scmp.lt.s32.totalorder %s244, 31
      %s246 = scalar_select %p245, %s244, 31
      %s247 = smul.addr %s246, 8
      %s248 = scalar_lea.vmem %s5, %s247
      %s249 = smul.u32 16, %s16
      %v250 = vld [vmem:[%s236] sm:$0xff]
      %v251 = vld [vmem:[%s236 + $0x8] sm:$0xff]
      %v252 = vld [vmem:[%s236 + $0x10] sm:$0xff]
      %v253 = vld [vmem:[%s236 + $0x18] sm:$0xff]
      %v254 = vld [vmem:[%s236 + $0x20] sm:$0xff]
      %v255 = vld [vmem:[%s236 + $0x28] sm:$0xff]
      %v256 = vld [vmem:[%s236 + $0x30] sm:$0xff]
      %v257 = vld [vmem:[%s236 + $0x38] sm:$0xff]
      %v258 = vld [vmem:[%s236 + $0x40] sm:$0xff]
      %v259 = vld [vmem:[%s236 + $0x48] sm:$0xff]
      %v260 = vld [vmem:[%s236 + $0x50] sm:$0xff]
      %v261 = vld [vmem:[%s236 + $0x58] sm:$0xff]
      %v262 = vld [vmem:[%s236 + $0x60] sm:$0xff]
      %v263 = vld [vmem:[%s236 + $0x68] sm:$0xff]
      %v264 = vld [vmem:[%s236 + $0x70] sm:$0xff]
      %v265 = vld [vmem:[%s236 + $0x78] sm:$0xff]
      %v266 = vld [vmem:[%s1] sm:$0x1]
      %v268 = vperm.slane %v266, 0
      %v270 = vmul.f32 %v250, %v268
      %v271 = vmul.f32 %v251, %v268
      %v272 = vmul.f32 %v252, %v268
      %v273 = vmul.f32 %v253, %v268
      %v274 = vmul.f32 %v254, %v268
      %v275 = vmul.f32 %v255, %v268
      %v276 = vmul.f32 %v256, %v268
      %v277 = vmul.f32 %v257, %v268
      %v278 = vmul.f32 %v258, %v268
      %v279 = vmul.f32 %v259, %v268
      %v280 = vmul.f32 %v260, %v268
      %v281 = vmul.f32 %v261, %v268
      %v282 = vmul.f32 %v262, %v268
      %v283 = vmul.f32 %v263, %v268
      %v284 = vmul.f32 %v264, %v268
      %v285 = vmul.f32 %v265, %v268
      %v286 = vld [vmem:[%s2] sm:$0x1]
      %v288 = vperm.slane %v286, 0
      %v290 = vadd.f32 %v270, %v288
      %v291 = vadd.f32 %v271, %v288
      %v292 = vadd.f32 %v272, %v288
      %v293 = vadd.f32 %v273, %v288
      %v294 = vadd.f32 %v274, %v288
      %v295 = vadd.f32 %v275, %v288
      %v296 = vadd.f32 %v276, %v288
      %v297 = vadd.f32 %v277, %v288
      %v298 = vadd.f32 %v278, %v288
      %v299 = vadd.f32 %v279, %v288
      %v300 = vadd.f32 %v280, %v288
      %v301 = vadd.f32 %v281, %v288
      %v302 = vadd.f32 %v282, %v288
      %v303 = vadd.f32 %v283, %v288
      %v304 = vadd.f32 %v284, %v288
      %v305 = vadd.f32 %v285, %v288
      %v306 = vld [vmem:[%s3] sm:$0xff]
      %v307 = vld [vmem:[%s3 + $0x8] sm:$0xff]
      %v308 = vld [vmem:[%s3 + $0x10] sm:$0xff]
      %v309 = vld [vmem:[%s3 + $0x18] sm:$0x3]
      %vm310 = vcmask 211968
      %v312 = vsel %vm310, %v290, 0
      %v315 = vsel %vm310, %v291, 0
      %v318 = vsel %vm310, %v292, 0
      %v321 = vsel %vm310, %v293, 0
      %v324 = vsel %vm310, %v294, 0
      %v327 = vsel %vm310, %v295, 0
      %v330 = vsel %vm310, %v296, 0
      %v333 = vsel %vm310, %v297, 0
      %v336 = vsel %vm310, %v298, 0
      %v339 = vsel %vm310, %v299, 0
      %v342 = vsel %vm310, %v300, 0
      %v345 = vsel %vm310, %v301, 0
      %v348 = vsel %vm310, %v302, 0
      %v351 = vsel %vm310, %v303, 0
      %v354 = vsel %vm310, %v304, 0
      %v357 = vsel %vm310, %v305, 0
      %vm359 = vcmask 1041408
      %v361 = vsel %vm359, %v309, 0
      %363 = vmatpush.msra.mxu0 0.0
      %364 = vmatpush.msra.mxu0 0.0
      %365 = vmatpush.msra.mxu0 0.0
      %366 = vmatpush.msra.mxu0 0.0
      %367 = vmatpush.msra.mxu0 0.0
      %368 = vmatpush.msra.mxu0 0.0
      %369 = vmatpush.msra.mxu0 0.0
      %370 = vmatpush.msra.mxu0 0.0
      %371 = vmatpush.msra.mxu0 0.0
      %372 = vmatpush.msra.mxu0 0.0
      %373 = vmatpush.msra.mxu0 0.0
      %374 = vmatpush.msra.mxu0 0.0
      %375 = vmatpush.msra.mxu0 %v361
      %376 = vmatpush.msra.mxu0 %v308
      %377 = vmatpush.msra.mxu0 %v307
      %378 = vmatpush.msra.mxu0 %v306
      %379 = vmatmul.f32.gmra.mxu0 %v312
      %v380 = vpop.f32.mrf.mxu0
      %v381 = vadd.f32 0.0, %v380
      %382 = vmatmul.f32.gmra.mxu0 %v315
      %v383 = vpop.f32.mrf.mxu0
      %v384 = vadd.f32 0.0, %v383
      %385 = vmatmul.f32.gmra.mxu0 %v318
      %v386 = vpop.f32.mrf.mxu0
      %v387 = vadd.f32 0.0, %v386
      %388 = vmatmul.f32.gmra.mxu0 %v321
      %v389 = vpop.f32.mrf.mxu0
      %v390 = vadd.f32 0.0, %v389
      %391 = vmatmul.f32.gmra.mxu0 %v324
      %v392 = vpop.f32.mrf.mxu0
      %v393 = vadd.f32 0.0, %v392
      %394 = vmatmul.f32.gmra.mxu0 %v327
      %v395 = vpop.f32.mrf.mxu0
      %v396 = vadd.f32 0.0, %v395
      %397 = vmatmul.f32.gmra.mxu0 %v330
      %v398 = vpop.f32.mrf.mxu0
      %v399 = vadd.f32 0.0, %v398
      %400 = vmatmul.f32.gmra.mxu0 %v333
      %v401 = vpop.f32.mrf.mxu0
      %v402 = vadd.f32 0.0, %v401
      %403 = vmatmul.f32.gmra.mxu0 %v336
      %v404 = vpop.f32.mrf.mxu0
      %v405 = vadd.f32 0.0, %v404
      %406 = vmatmul.f32.gmra.mxu0 %v339
      %v407 = vpop.f32.mrf.mxu0
      %v408 = vadd.f32 0.0, %v407
      %409 = vmatmul.f32.gmra.mxu0 %v342
      %v410 = vpop.f32.mrf.mxu0
      %v411 = vadd.f32 0.0, %v410
      %412 = vmatmul.f32.gmra.mxu0 %v345
      %v413 = vpop.f32.mrf.mxu0
      %v414 = vadd.f32 0.0, %v413
      %415 = vmatmul.f32.gmra.mxu0 %v348
      %v416 = vpop.f32.mrf.mxu0
      %v417 = vadd.f32 0.0, %v416
      %418 = vmatmul.f32.gmra.mxu0 %v351
      %v419 = vpop.f32.mrf.mxu0
      %v420 = vadd.f32 0.0, %v419
      %421 = vmatmul.f32.gmra.mxu0 %v354
      %v422 = vpop.f32.mrf.mxu0
      %v423 = vadd.f32 0.0, %v422
      %424 = vmatmul.f32.gmra.mxu0 %v357
      %v425 = vpop.f32.mrf.mxu0
      %v426 = vadd.f32 0.0, %v425
      %427 = vdwg.mxu0
      %v428 = vld [vmem:[%s242] sm:$0xff]
      %v429 = vld [vmem:[%s242 + $0x8] sm:$0xff]
      %v430 = vld [vmem:[%s242 + $0x10] sm:$0xff]
      %v431 = vld [vmem:[%s242 + $0x18] sm:$0xff]
      %v432 = vld [vmem:[%s242 + $0x20] sm:$0xff]
      %v433 = vld [vmem:[%s242 + $0x28] sm:$0xff]
      %v434 = vld [vmem:[%s242 + $0x30] sm:$0xff]
      %v435 = vld [vmem:[%s242 + $0x38] sm:$0xff]
      %v436 = vld [vmem:[%s242 + $0x40] sm:$0xff]
      %v437 = vld [vmem:[%s242 + $0x48] sm:$0xff]
      %v438 = vld [vmem:[%s242 + $0x50] sm:$0xff]
      %v439 = vld [vmem:[%s242 + $0x58] sm:$0xff]
      %v440 = vld [vmem:[%s242 + $0x60] sm:$0xff]
      %v441 = vld [vmem:[%s242 + $0x68] sm:$0xff]
      %v442 = vld [vmem:[%s242 + $0x70] sm:$0xff]
      %v443 = vld [vmem:[%s242 + $0x78] sm:$0xff]
      %445 = vset.pattern.permute.xlu0 0
      %446 = vperm.xlu0 %445, %v428
      %v447 = vpop.permute.xlu0 %446
      %450 = vset.pattern.permute.xlu0 0
      %451 = vperm.xlu0 %450, %v429
      %v452 = vpop.permute.xlu0 %451
      %455 = vset.pattern.permute.xlu0 0
      %456 = vperm.xlu0 %455, %v430
      %v457 = vpop.permute.xlu0 %456
      %460 = vset.pattern.permute.xlu0 0
      %461 = vperm.xlu0 %460, %v431
      %v462 = vpop.permute.xlu0 %461
      %465 = vset.pattern.permute.xlu0 0
      %466 = vperm.xlu0 %465, %v432
      %v467 = vpop.permute.xlu0 %466
      %470 = vset.pattern.permute.xlu0 0
      %471 = vperm.xlu0 %470, %v433
      %v472 = vpop.permute.xlu0 %471
      %475 = vset.pattern.permute.xlu0 0
      %476 = vperm.xlu0 %475, %v434
      %v477 = vpop.permute.xlu0 %476
      %480 = vset.pattern.permute.xlu0 0
      %481 = vperm.xlu0 %480, %v435
      %v482 = vpop.permute.xlu0 %481
      %485 = vset.pattern.permute.xlu0 0
      %486 = vperm.xlu0 %485, %v436
      %v487 = vpop.permute.xlu0 %486
      %490 = vset.pattern.permute.xlu0 0
      %491 = vperm.xlu0 %490, %v437
      %v492 = vpop.permute.xlu0 %491
      %495 = vset.pattern.permute.xlu0 0
      %496 = vperm.xlu0 %495, %v438
      %v497 = vpop.permute.xlu0 %496
      %500 = vset.pattern.permute.xlu0 0
      %501 = vperm.xlu0 %500, %v439
      %v502 = vpop.permute.xlu0 %501
      %505 = vset.pattern.permute.xlu0 0
      %506 = vperm.xlu0 %505, %v440
      %v507 = vpop.permute.xlu0 %506
      %510 = vset.pattern.permute.xlu0 0
      %511 = vperm.xlu0 %510, %v441
      %v512 = vpop.permute.xlu0 %511
      %515 = vset.pattern.permute.xlu0 0
      %516 = vperm.xlu0 %515, %v442
      %v517 = vpop.permute.xlu0 %516
      %520 = vset.pattern.permute.xlu0 0
      %521 = vperm.xlu0 %520, %v443
      %v522 = vpop.permute.xlu0 %521
      %v524 = vmul.f32 %v447, %v381
      %v525 = vmul.f32 %v452, %v384
      %v526 = vmul.f32 %v457, %v387
      %v527 = vmul.f32 %v462, %v390
      %v528 = vmul.f32 %v467, %v393
      %v529 = vmul.f32 %v472, %v396
      %v530 = vmul.f32 %v477, %v399
      %v531 = vmul.f32 %v482, %v402
      %v532 = vmul.f32 %v487, %v405
      %v533 = vmul.f32 %v492, %v408
      %v534 = vmul.f32 %v497, %v411
      %v535 = vmul.f32 %v502, %v414
      %v536 = vmul.f32 %v507, %v417
      %v537 = vmul.f32 %v512, %v420
      %v538 = vmul.f32 %v517, %v423
      %v539 = vmul.f32 %v522, %v426
      %vm540 = vcmask 162816
      %541 = vst.msk [vmem:[%s248] sm:$0xff] %vm540, %v524
      %542 = vst.msk [vmem:[%s248 + $0x8] sm:$0xff] %vm540, %v525
      %543 = vst.msk [vmem:[%s248 + $0x10] sm:$0xff] %vm540, %v526
      %544 = vst.msk [vmem:[%s248 + $0x18] sm:$0xff] %vm540, %v527
      %545 = vst.msk [vmem:[%s248 + $0x20] sm:$0xff] %vm540, %v528
      %546 = vst.msk [vmem:[%s248 + $0x28] sm:$0xff] %vm540, %v529
      %547 = vst.msk [vmem:[%s248 + $0x30] sm:$0xff] %vm540, %v530
      %548 = vst.msk [vmem:[%s248 + $0x38] sm:$0xff] %vm540, %v531
      %549 = vst.msk [vmem:[%s248 + $0x40] sm:$0xff] %vm540, %v532
      %550 = vst.msk [vmem:[%s248 + $0x48] sm:$0xff] %vm540, %v533
      %551 = vst.msk [vmem:[%s248 + $0x50] sm:$0xff] %vm540, %v534
      %552 = vst.msk [vmem:[%s248 + $0x58] sm:$0xff] %vm540, %v535
      %553 = vst.msk [vmem:[%s248 + $0x60] sm:$0xff] %vm540, %v536
      %554 = vst.msk [vmem:[%s248 + $0x68] sm:$0xff] %vm540, %v537
      %555 = vst.msk [vmem:[%s248 + $0x70] sm:$0xff] %vm540, %v538
      %556 = vst.msk [vmem:[%s248 + $0x78] sm:$0xff] %vm540, %v539
      %s557 = smul.u32 16, %s16
      %p558 = scmp.lt.s32.totalorder %s557, 31
      %s559 = scalar_select %p558, %s557, 31
      %s560 = smul.addr %s559, 8
      %s561 = scalar_lea.vmem %s5, %s560
      // Predicated region
      $region41: #{_lambda_.13} parent=39 // pred_check
        %p562 = pneg %p149
      $region42: #{_lambda_.13} parent=39 // pred_check_branch
        %564 = sbr.rel (%p562) target = $region44
      $region43: #{_lambda_.13} parent=39 // pred_region
        %s565 = smul.u32 16, %s16
      $region44: #{_lambda_.13} parent=39 // pred_fallthru
        _
    $region40: #{_lambda_.13} parent=5 // pred_fallthru
      _
    %p566 = scmp.le.s32.totalorder 2, %s11
    // Predicated region
    $region45: #{_lambda_.13} parent=5 // pred_check
      %p567 = pneg %p566
    $region46: #{_lambda_.13} parent=5 // pred_check_branch
      %569 = sbr.rel (%p567) target = $region48
    $region47: #{_lambda_.13} parent=5 // pred_region
      %s570 = ssub.s32 %s11, 2
      // Predicated region
      $region49: #{_lambda_.13} parent=47 // pred_check
        %p571 = pneg %p155
      $region50: #{_lambda_.13} parent=47 // pred_check_branch
        %573 = sbr.rel (%p571) target = $region52
      $region51: #{_lambda_.13} parent=47 // pred_region
        %s574 = smul.u32 16, %s17
        %p575 = scmp.lt.s32.totalorder %s574, 31
        %s576 = scalar_select %p575, %s574, 31
        %s577 = smul.addr %s576, 8
        %s578 = scalar_lea.vmem %s5, %s577
      $region52: #{_lambda_.13} parent=47 // pred_fallthru
        _
    $region48: #{_lambda_.13} parent=5 // pred_fallthru
      _
  $region6: #{_lambda_.13} parent=0 // loop_footer
    %s15 = sadd.s32 1, %s11
  $region7: #{_lambda_.13} parent=0 // loop_footer_branch
    %10 = sbr.rel target = $region3
  $region8: #{_lambda_.13} parent=0 // loop_exit
    _

// kernel: _lambda_.15
$region0: #{_lambda_.15}
  #allocation0 [shape = 'u32[]', space=smem, size = 0x4, offset = 0x4, fixed_abs, tag = 'smem constant byte address 0x4 - core index']
  #allocation1 [shape = 'u32[72,128]{1,0:T(1,128)}', space=vmem, size = 0x9000, scoped, tag = 'internal scratch']
  %s0 = inlined_call_operand.vmem [shape: f32[256,20], index: 0, kind: input, shape index: {}]
  %s1 = inlined_call_operand.vmem [shape: f32[1,20], index: 1, kind: input, shape index: {}]
  %s2 = inlined_call_operand.vmem [shape: f32[1,20], index: 2, kind: input, shape index: {}]
  %s3 = inlined_call_operand.vmem [shape: f32[20,14], index: 3, kind: input, shape index: {}]
  %s4 = inlined_call_operand.vmem [shape: f32[256,1], index: 4, kind: input, shape index: {}]
  %s5 = inlined_call_operand.vmem [shape: f32[256,14], index: 5, kind: output, shape index: {}]
  %s6 = sld [smem:[#allocation0]]
  $region53: #{_lambda_.15} parent=0
    _
  %s8 = ssub.s32 1, %s6
  %s9 = scalar_select 0, %s8, %s6
  loop: start=0, step=1, limit=4
  $region2: #{_lambda_.15} parent=0 // loop_pre_header
    _
  $region3: #{_lambda_.15} parent=0 // loop_header
    %s11 = sphi 0, %s15
    %p12 = scmp.ge.s32.totalorder %s11, 4
    %s21 = sphi 0, %s23
    %s24 = sphi 0, %s21
    %s25 = sphi 0, %s24
    %s41 = sphi 0, %s25
    %s45 = sphi 0, %s45
    %s47 = sphi 0, %s45
    %s48 = sphi 0, %s47
    %s62 = sphi 0, %s48
    %s66 = sphi 0, %s66
    %s68 = sphi 0, %s66
    %s69 = sphi 0, %s68
    %s83 = sphi 0, %s69
    %s87 = sphi 0, %s87
    %s89 = sphi 0, %s87
    %s90 = sphi 0, %s89
    %s104 = sphi 0, %s90
    %s110 = sphi 0, %s112
    %s113 = sphi 0, %s110
    %s114 = sphi 0, %s113
    %s130 = sphi 0, %s114
    %s136 = sphi 0, %s138
    %s139 = sphi 0, %s136
    %s140 = sphi 0, %s139
    %s156 = sphi 0, %s140
  $region4: #{_lambda_.15} parent=0 // loop_header_branch
    %14 = sbr.rel (%p12) target = $region8
  $region5: #{_lambda_.15} parent=0 // loop_body
    %s16 = ssub.s32 %s11, 1
    %s17 = ssub.s32 %s11, 2
    %s18 = sadd.s32 %s11, 1
    %s19 = ssub.s32 %s11, %s18
    %p20 = scmp.eq.s32.totalorder %s19, 0
    %s22 = sadd.s32 %s21, 1
    %s23 = scalar_select %p20, %s21, %s22
    %p26 = pneg %p20
    %p27 = scmp.eq.s32.totalorder %s11, 1
    %p28 = por %p26, %p27
    %p29 = scmp.ne.s32.totalorder %s21, %s24
    %p30 = scmp.eq.s32.totalorder %s11, 0
    %p31 = por %p29, %p30
    %p32 = scmp.ne.s32.totalorder %s21, %s24
    %p33 = scmp.eq.s32.totalorder %s16, 1
    %p34 = por %p32, %p33
    %p35 = scmp.ne.s32.totalorder %s24, %s25
    %p36 = scmp.eq.s32.totalorder %s16, 0
    %p37 = por %p35, %p36
    %p38 = scmp.ne.s32.totalorder %s24, %s25
    %p39 = scmp.eq.s32.totalorder %s17, 1
    %p40 = por %p38, %p39
    %p42 = scmp.ne.s32.totalorder %s25, %s41
    %p43 = scmp.eq.s32.totalorder %s17, 0
    %p44 = por %p42, %p43
    %s46 = sadd.s32 %s45, 1
    %p49 = scmp.eq.s32.totalorder %s11, 1
    %p50 = scmp.ne.s32.totalorder %s45, %s47
    %p51 = scmp.eq.s32.totalorder %s11, 0
    %p52 = por %p50, %p51
    %p53 = scmp.ne.s32.totalorder %s45, %s47
    %p54 = scmp.eq.s32.totalorder %s16, 1
    %p55 = por %p53, %p54
    %p56 = scmp.ne.s32.totalorder %s47, %s48
    %p57 = scmp.eq.s32.totalorder %s16, 0
    %p58 = por %p56, %p57
    %p59 = scmp.ne.s32.totalorder %s47, %s48
    %p60 = scmp.eq.s32.totalorder %s17, 1
    %p61 = por %p59, %p60
    %p63 = scmp.ne.s32.totalorder %s48, %s62
    %p64 = scmp.eq.s32.totalorder %s17, 0
    %p65 = por %p63, %p64
    %s67 = sadd.s32 %s66, 1
    %p70 = scmp.eq.s32.totalorder %s11, 1
    %p71 = scmp.ne.s32.totalorder %s66, %s68
    %p72 = scmp.eq.s32.totalorder %s11, 0
    %p73 = por %p71, %p72
    %p74 = scmp.ne.s32.totalorder %s66, %s68
    %p75 = scmp.eq.s32.totalorder %s16, 1
    %p76 = por %p74, %p75
    %p77 = scmp.ne.s32.totalorder %s68, %s69
    %p78 = scmp.eq.s32.totalorder %s16, 0
    %p79 = por %p77, %p78
    %p80 = scmp.ne.s32.totalorder %s68, %s69
    %p81 = scmp.eq.s32.totalorder %s17, 1
    %p82 = por %p80, %p81
    %p84 = scmp.ne.s32.totalorder %s69, %s83
    %p85 = scmp.eq.s32.totalorder %s17, 0
    %p86 = por %p84, %p85
    %s88 = sadd.s32 %s87, 1
    %p91 = scmp.eq.s32.totalorder %s11, 1
    %p92 = scmp.ne.s32.totalorder %s87, %s89
    %p93 = scmp.eq.s32.totalorder %s11, 0
    %p94 = por %p92, %p93
    %p95 = scmp.ne.s32.totalorder %s87, %s89
    %p96 = scmp.eq.s32.totalorder %s16, 1
    %p97 = por %p95, %p96
    %p98 = scmp.ne.s32.totalorder %s89, %s90
    %p99 = scmp.eq.s32.totalorder %s16, 0
    %p100 = por %p98, %p99
    %p101 = scmp.ne.s32.totalorder %s89, %s90
    %p102 = scmp.eq.s32.totalorder %s17, 1
    %p103 = por %p101, %p102
    %p105 = scmp.ne.s32.totalorder %s90, %s104
    %p106 = scmp.eq.s32.totalorder %s17, 0
    %p107 = por %p105, %p106
    %s108 = ssub.s32 %s11, %s18
    %p109 = scmp.eq.s32.totalorder %s108, 0
    %s111 = sadd.s32 %s110, 1
    %s112 = scalar_select %p109, %s110, %s111
    %p115 = pneg %p109
    %p116 = scmp.eq.s32.totalorder %s11, 1
    %p117 = por %p115, %p116
    %p118 = scmp.ne.s32.totalorder %s110, %s113
    %p119 = scmp.eq.s32.totalorder %s11, 0
    %p120 = por %p118, %p119
    %p121 = scmp.ne.s32.totalorder %s110, %s113
    %p122 = scmp.eq.s32.totalorder %s16, 1
    %p123 = por %p121, %p122
    %p124 = scmp.ne.s32.totalorder %s113, %s114
    %p125 = scmp.eq.s32.totalorder %s16, 0
    %p126 = por %p124, %p125
    %p127 = scmp.ne.s32.totalorder %s113, %s114
    %p128 = scmp.eq.s32.totalorder %s17, 1
    %p129 = por %p127, %p128
    %p131 = scmp.ne.s32.totalorder %s114, %s130
    %p132 = scmp.eq.s32.totalorder %s17, 0
    %p133 = por %p131, %p132
    %s134 = ssub.s32 %s11, %s18
    %p135 = scmp.eq.s32.totalorder %s134, 0
    %s137 = sadd.s32 %s136, 1
    %s138 = scalar_select %p135, %s136, %s137
    %p141 = pneg %p135
    %p142 = scmp.eq.s32.totalorder %s11, 1
    %p143 = por %p141, %p142
    %p144 = scmp.ne.s32.totalorder %s136, %s139
    %p145 = scmp.eq.s32.totalorder %s11, 0
    %p146 = por %p144, %p145
    %p147 = scmp.ne.s32.totalorder %s136, %s139
    %p148 = scmp.eq.s32.totalorder %s16, 1
    %p149 = por %p147, %p148
    %p150 = scmp.ne.s32.totalorder %s139, %s140
    %p151 = scmp.eq.s32.totalorder %s16, 0
    %p152 = por %p150, %p151
    %p153 = scmp.ne.s32.totalorder %s139, %s140
    %p154 = scmp.eq.s32.totalorder %s17, 1
    %p155 = por %p153, %p154
    %p157 = scmp.ne.s32.totalorder %s140, %s156
    %p158 = scmp.eq.s32.totalorder %s17, 0
    %p159 = por %p157, %p158
    %p160 = scmp.le.s32.totalorder 1, %s11
    %p161 = scmp.lt.s32.totalorder %s11, 3
    %p162 = pnand %p160, %p161
    %p163 = pneg %p162
    // Predicated region
    $region9: #{_lambda_.15} parent=5 // pred_check
      _
    $region10: #{_lambda_.15} parent=5 // pred_check_branch
      %165 = sbr.rel (%p162) target = $region12
    $region11: #{_lambda_.15} parent=5 // pred_region
      %s166 = ssub.s32 %s11, 1
      // Predicated region
      $region13: #{_lambda_.15} parent=11 // pred_check
        %p167 = pneg %p58
      $region14: #{_lambda_.15} parent=11 // pred_check_branch
        %169 = sbr.rel (%p167) target = $region16
      $region15: #{_lambda_.15} parent=11 // pred_region
        _
      $region16: #{_lambda_.15} parent=11 // pred_fallthru
        _
      // Predicated region
      $region17: #{_lambda_.15} parent=11 // pred_check
        %p170 = pneg %p79
      $region18: #{_lambda_.15} parent=11 // pred_check_branch
        %172 = sbr.rel (%p170) target = $region20
      $region19: #{_lambda_.15} parent=11 // pred_region
        _
      $region20: #{_lambda_.15} parent=11 // pred_fallthru
        _
      // Predicated region
      $region21: #{_lambda_.15} parent=11 // pred_check
        %p173 = pneg %p100
      $region22: #{_lambda_.15} parent=11 // pred_check_branch
        %175 = sbr.rel (%p173) target = $region24
      $region23: #{_lambda_.15} parent=11 // pred_region
        _
      $region24: #{_lambda_.15} parent=11 // pred_fallthru
        _
    $region12: #{_lambda_.15} parent=5 // pred_fallthru
      _
    %p176 = scmp.lt.s32.totalorder %s11, 2
    // Predicated region
    $region25: #{_lambda_.15} parent=5 // pred_check
      %p177 = pneg %p176
    $region26: #{_lambda_.15} parent=5 // pred_check_branch
      %179 = sbr.rel (%p177) target = $region28
    $region27: #{_lambda_.15} parent=5 // pred_region
      // Predicated region
      $region29: #{_lambda_.15} parent=27 // pred_check
        %p180 = pneg %p31
      $region30: #{_lambda_.15} parent=27 // pred_check_branch
        %182 = sbr.rel (%p180) target = $region32
      $region31: #{_lambda_.15} parent=27 // pred_region
        %s183 = smul.u32 16, %s11
        %p184 = scmp.lt.s32.totalorder %s183, 31
        %s185 = scalar_select %p184, %s183, 31
        %s186 = smul.addr %s185, 8
        %s187 = scalar_lea.vmem %s0, %s186
        %s188 = smul.u32 16, %s11
      $region32: #{_lambda_.15} parent=27 // pred_fallthru
        _
      // Predicated region
      $region33: #{_lambda_.15} parent=27 // pred_check
        %p189 = pneg %p120
      $region34: #{_lambda_.15} parent=27 // pred_check_branch
        %191 = sbr.rel (%p189) target = $region36
      $region35: #{_lambda_.15} parent=27 // pred_region
        %s192 = smul.u32 16, %s11
        %p193 = scmp.lt.s32.totalorder %s192, 31
        %s194 = scalar_select %p193, %s192, 31
        %s195 = smul.addr %s194, 8
        %s196 = scalar_lea.vmem %s4, %s195
        %s197 = smul.u32 16, %s11
      $region36: #{_lambda_.15} parent=27 // pred_fallthru
        _
    $region28: #{_lambda_.15} parent=5 // pred_fallthru
      _
    %p198 = scmp.le.s32.totalorder 1, %s11
    %p199 = scmp.lt.s32.totalorder %s11, 3
    %p200 = pnand %p198, %p199
    %p201 = pneg %p200
    // Predicated region
    $region37: #{_lambda_.15} parent=5 // pred_check
      _
    $region38: #{_lambda_.15} parent=5 // pred_check_branch
      %203 = sbr.rel (%p200) target = $region40
    $region39: #{_lambda_.15} parent=5 // pred_region
      %s204 = ssub.s32 %s11, 1
      %s205 = smul.u32 16, %s16
      %p206 = scmp.lt.s32.totalorder %s205, 31
      %s207 = scalar_select %p206, %s205, 31
      %s208 = smul.addr %s207, 8
      %s209 = scalar_lea.vmem %s0, %s208
      %p210 = pneg %p37
      %p211 = pneg %p34
      %p212 = pneg %p58
      %p213 = pneg %p55
      %p214 = pneg %p79
      %p215 = pneg %p76
      %p216 = pneg %p100
      %p217 = pneg %p97
      %s218 = smul.u32 16, %s16
      %p219 = scmp.lt.s32.totalorder %s218, 31
      %s220 = scalar_select %p219, %s218, 31
      %s221 = smul.addr %s220, 8
      %s222 = scalar_lea.vmem %s4, %s221
      %p223 = pneg %p126
      %p224 = pneg %p123
      %p225 = pneg %p152
      %p226 = pneg %p149
      %s227 = smul.u32 16, %s16
      %p228 = scmp.lt.s32.totalorder %s227, 31
      %s229 = scalar_select %p228, %s227, 31
      %s230 = smul.addr %s229, 8
      %s231 = scalar_lea.vmem %s5, %s230
      %s232 = smul.u32 16, %s16
      %p233 = scmp.lt.s32.totalorder %s232, 31
      %s234 = scalar_select %p233, %s232, 31
      %s235 = smul.addr %s234, 8
      %s236 = scalar_lea.vmem %s0, %s235
      %s237 = smul.u32 16, %s16
      %s238 = smul.u32 16, %s16
      %p239 = scmp.lt.s32.totalorder %s238, 31
      %s240 = scalar_select %p239, %s238, 31
      %s241 = smul.addr %s240, 8
      %s242 = scalar_lea.vmem %s4, %s241
      %s243 = smul.u32 16, %s16
      %s244 = smul.u32 16, %s16
      %p245 = scmp.lt.s32.totalorder %s244, 31
      %s246 = scalar_select %p245, %s244, 31
      %s247 = smul.addr %s246, 8
      %s248 = scalar_lea.vmem %s5, %s247
      %s249 = smul.u32 16, %s16
      %v250 = vld [vmem:[%s236] sm:$0xff]
      %v251 = vld [vmem:[%s236 + $0x8] sm:$0xff]
      %v252 = vld [vmem:[%s236 + $0x10] sm:$0xff]
      %v253 = vld [vmem:[%s236 + $0x18] sm:$0xff]
      %v254 = vld [vmem:[%s236 + $0x20] sm:$0xff]
      %v255 = vld [vmem:[%s236 + $0x28] sm:$0xff]
      %v256 = vld [vmem:[%s236 + $0x30] sm:$0xff]
      %v257 = vld [vmem:[%s236 + $0x38] sm:$0xff]
      %v258 = vld [vmem:[%s236 + $0x40] sm:$0xff]
      %v259 = vld [vmem:[%s236 + $0x48] sm:$0xff]
      %v260 = vld [vmem:[%s236 + $0x50] sm:$0xff]
      %v261 = vld [vmem:[%s236 + $0x58] sm:$0xff]
      %v262 = vld [vmem:[%s236 + $0x60] sm:$0xff]
      %v263 = vld [vmem:[%s236 + $0x68] sm:$0xff]
      %v264 = vld [vmem:[%s236 + $0x70] sm:$0xff]
      %v265 = vld [vmem:[%s236 + $0x78] sm:$0xff]
      %v266 = vld [vmem:[%s1] sm:$0x1]
      %v268 = vperm.slane %v266, 0
      %v270 = vmul.f32 %v250, %v268
      %v271 = vmul.f32 %v251, %v268
      %v272 = vmul.f32 %v252, %v268
      %v273 = vmul.f32 %v253, %v268
      %v274 = vmul.f32 %v254, %v268
      %v275 = vmul.f32 %v255, %v268
      %v276 = vmul.f32 %v256, %v268
      %v277 = vmul.f32 %v257, %v268
      %v278 = vmul.f32 %v258, %v268
      %v279 = vmul.f32 %v259, %v268
      %v280 = vmul.f32 %v260, %v268
      %v281 = vmul.f32 %v261, %v268
      %v282 = vmul.f32 %v262, %v268
      %v283 = vmul.f32 %v263, %v268
      %v284 = vmul.f32 %v264, %v268
      %v285 = vmul.f32 %v265, %v268
      %v286 = vld [vmem:[%s2] sm:$0x1]
      %v288 = vperm.slane %v286, 0
      %v290 = vadd.f32 %v270, %v288
      %v291 = vadd.f32 %v271, %v288
      %v292 = vadd.f32 %v272, %v288
      %v293 = vadd.f32 %v273, %v288
      %v294 = vadd.f32 %v274, %v288
      %v295 = vadd.f32 %v275, %v288
      %v296 = vadd.f32 %v276, %v288
      %v297 = vadd.f32 %v277, %v288
      %v298 = vadd.f32 %v278, %v288
      %v299 = vadd.f32 %v279, %v288
      %v300 = vadd.f32 %v280, %v288
      %v301 = vadd.f32 %v281, %v288
      %v302 = vadd.f32 %v282, %v288
      %v303 = vadd.f32 %v283, %v288
      %v304 = vadd.f32 %v284, %v288
      %v305 = vadd.f32 %v285, %v288
      %v306 = vld [vmem:[%s3] sm:$0xff]
      %v307 = vld [vmem:[%s3 + $0x8] sm:$0xff]
      %v308 = vld [vmem:[%s3 + $0x10] sm:$0xf]
      %vm309 = vcmask 162816
      %v311 = vsel %vm309, %v290, 0
      %v314 = vsel %vm309, %v291, 0
      %v317 = vsel %vm309, %v292, 0
      %v320 = vsel %vm309, %v293, 0
      %v323 = vsel %vm309, %v294, 0
      %v326 = vsel %vm309, %v295, 0
      %v329 = vsel %vm309, %v296, 0
      %v332 = vsel %vm309, %v297, 0
      %v335 = vsel %vm309, %v298, 0
      %v338 = vsel %vm309, %v299, 0
      %v341 = vsel %vm309, %v300, 0
      %v344 = vsel %vm309, %v301, 0
      %v347 = vsel %vm309, %v302, 0
      %v350 = vsel %vm309, %v303, 0
      %v353 = vsel %vm309, %v304, 0
      %v356 = vsel %vm309, %v305, 0
      %vm358 = vcmask 1043456
      %v360 = vsel %vm358, %v308, 0
      %362 = vmatpush.msra.mxu0 0.0
      %363 = vmatpush.msra.mxu0 0.0
      %364 = vmatpush.msra.mxu0 0.0
      %365 = vmatpush.msra.mxu0 0.0
      %366 = vmatpush.msra.mxu0 0.0
      %367 = vmatpush.msra.mxu0 0.0
      %368 = vmatpush.msra.mxu0 0.0
      %369 = vmatpush.msra.mxu0 0.0
      %370 = vmatpush.msra.mxu0 0.0
      %371 = vmatpush.msra.mxu0 0.0
      %372 = vmatpush.msra.mxu0 0.0
      %373 = vmatpush.msra.mxu0 0.0
      %374 = vmatpush.msra.mxu0 0.0
      %375 = vmatpush.msra.mxu0 %v360
      %376 = vmatpush.msra.mxu0 %v307
      %377 = vmatpush.msra.mxu0 %v306
      %378 = vmatmul.f32.gmra.mxu0 %v311
      %v379 = vpop.f32.mrf.mxu0
      %v380 = vadd.f32 0.0, %v379
      %381 = vmatmul.f32.gmra.mxu0 %v314
      %v382 = vpop.f32.mrf.mxu0
      %v383 = vadd.f32 0.0, %v382
      %384 = vmatmul.f32.gmra.mxu0 %v317
      %v385 = vpop.f32.mrf.mxu0
      %v386 = vadd.f32 0.0, %v385
      %387 = vmatmul.f32.gmra.mxu0 %v320
      %v388 = vpop.f32.mrf.mxu0
      %v389 = vadd.f32 0.0, %v388
      %390 = vmatmul.f32.gmra.mxu0 %v323
      %v391 = vpop.f32.mrf.mxu0
      %v392 = vadd.f32 0.0, %v391
      %393 = vmatmul.f32.gmra.mxu0 %v326
      %v394 = vpop.f32.mrf.mxu0
      %v395 = vadd.f32 0.0, %v394
      %396 = vmatmul.f32.gmra.mxu0 %v329
      %v397 = vpop.f32.mrf.mxu0
      %v398 = vadd.f32 0.0, %v397
      %399 = vmatmul.f32.gmra.mxu0 %v332
      %v400 = vpop.f32.mrf.mxu0
      %v401 = vadd.f32 0.0, %v400
      %402 = vmatmul.f32.gmra.mxu0 %v335
      %v403 = vpop.f32.mrf.mxu0
      %v404 = vadd.f32 0.0, %v403
      %405 = vmatmul.f32.gmra.mxu0 %v338
      %v406 = vpop.f32.mrf.mxu0
      %v407 = vadd.f32 0.0, %v406
      %408 = vmatmul.f32.gmra.mxu0 %v341
      %v409 = vpop.f32.mrf.mxu0
      %v410 = vadd.f32 0.0, %v409
      %411 = vmatmul.f32.gmra.mxu0 %v344
      %v412 = vpop.f32.mrf.mxu0
      %v413 = vadd.f32 0.0, %v412
      %414 = vmatmul.f32.gmra.mxu0 %v347
      %v415 = vpop.f32.mrf.mxu0
      %v416 = vadd.f32 0.0, %v415
      %417 = vmatmul.f32.gmra.mxu0 %v350
      %v418 = vpop.f32.mrf.mxu0
      %v419 = vadd.f32 0.0, %v418
      %420 = vmatmul.f32.gmra.mxu0 %v353
      %v421 = vpop.f32.mrf.mxu0
      %v422 = vadd.f32 0.0, %v421
      %423 = vmatmul.f32.gmra.mxu0 %v356
      %v424 = vpop.f32.mrf.mxu0
      %v425 = vadd.f32 0.0, %v424
      %426 = vdwg.mxu0
      %v427 = vld [vmem:[%s242] sm:$0xff]
      %v428 = vld [vmem:[%s242 + $0x8] sm:$0xff]
      %v429 = vld [vmem:[%s242 + $0x10] sm:$0xff]
      %v430 = vld [vmem:[%s242 + $0x18] sm:$0xff]
      %v431 = vld [vmem:[%s242 + $0x20] sm:$0xff]
      %v432 = vld [vmem:[%s242 + $0x28] sm:$0xff]
      %v433 = vld [vmem:[%s242 + $0x30] sm:$0xff]
      %v434 = vld [vmem:[%s242 + $0x38] sm:$0xff]
      %v435 = vld [vmem:[%s242 + $0x40] sm:$0xff]
      %v436 = vld [vmem:[%s242 + $0x48] sm:$0xff]
      %v437 = vld [vmem:[%s242 + $0x50] sm:$0xff]
      %v438 = vld [vmem:[%s242 + $0x58] sm:$0xff]
      %v439 = vld [vmem:[%s242 + $0x60] sm:$0xff]
      %v440 = vld [vmem:[%s242 + $0x68] sm:$0xff]
      %v441 = vld [vmem:[%s242 + $0x70] sm:$0xff]
      %v442 = vld [vmem:[%s242 + $0x78] sm:$0xff]
      %444 = vset.pattern.permute.xlu0 0
      %445 = vperm.xlu0 %444, %v427
      %v446 = vpop.permute.xlu0 %445
      %449 = vset.pattern.permute.xlu0 0
      %450 = vperm.xlu0 %449, %v428
      %v451 = vpop.permute.xlu0 %450
      %454 = vset.pattern.permute.xlu0 0
      %455 = vperm.xlu0 %454, %v429
      %v456 = vpop.permute.xlu0 %455
      %459 = vset.pattern.permute.xlu0 0
      %460 = vperm.xlu0 %459, %v430
      %v461 = vpop.permute.xlu0 %460
      %464 = vset.pattern.permute.xlu0 0
      %465 = vperm.xlu0 %464, %v431
      %v466 = vpop.permute.xlu0 %465
      %469 = vset.pattern.permute.xlu0 0
      %470 = vperm.xlu0 %469, %v432
      %v471 = vpop.permute.xlu0 %470
      %474 = vset.pattern.permute.xlu0 0
      %475 = vperm.xlu0 %474, %v433
      %v476 = vpop.permute.xlu0 %475
      %479 = vset.pattern.permute.xlu0 0
      %480 = vperm.xlu0 %479, %v434
      %v481 = vpop.permute.xlu0 %480
      %484 = vset.pattern.permute.xlu0 0
      %485 = vperm.xlu0 %484, %v435
      %v486 = vpop.permute.xlu0 %485
      %489 = vset.pattern.permute.xlu0 0
      %490 = vperm.xlu0 %489, %v436
      %v491 = vpop.permute.xlu0 %490
      %494 = vset.pattern.permute.xlu0 0
      %495 = vperm.xlu0 %494, %v437
      %v496 = vpop.permute.xlu0 %495
      %499 = vset.pattern.permute.xlu0 0
      %500 = vperm.xlu0 %499, %v438
      %v501 = vpop.permute.xlu0 %500
      %504 = vset.pattern.permute.xlu0 0
      %505 = vperm.xlu0 %504, %v439
      %v506 = vpop.permute.xlu0 %505
      %509 = vset.pattern.permute.xlu0 0
      %510 = vperm.xlu0 %509, %v440
      %v511 = vpop.permute.xlu0 %510
      %514 = vset.pattern.permute.xlu0 0
      %515 = vperm.xlu0 %514, %v441
      %v516 = vpop.permute.xlu0 %515
      %519 = vset.pattern.permute.xlu0 0
      %520 = vperm.xlu0 %519, %v442
      %v521 = vpop.permute.xlu0 %520
      %v523 = vmul.f32 %v446, %v380
      %v524 = vmul.f32 %v451, %v383
      %v525 = vmul.f32 %v456, %v386
      %v526 = vmul.f32 %v461, %v389
      %v527 = vmul.f32 %v466, %v392
      %v528 = vmul.f32 %v471, %v395
      %v529 = vmul.f32 %v476, %v398
      %v530 = vmul.f32 %v481, %v401
      %v531 = vmul.f32 %v486, %v404
      %v532 = vmul.f32 %v491, %v407
      %v533 = vmul.f32 %v496, %v410
      %v534 = vmul.f32 %v501, %v413
      %v535 = vmul.f32 %v506, %v416
      %v536 = vmul.f32 %v511, %v419
      %v537 = vmul.f32 %v516, %v422
      %v538 = vmul.f32 %v521, %v425
      %vm539 = vcmask 113664
      %540 = vst.msk [vmem:[%s248] sm:$0xff] %vm539, %v523
      %541 = vst.msk [vmem:[%s248 + $0x8] sm:$0xff] %vm539, %v524
      %542 = vst.msk [vmem:[%s248 + $0x10] sm:$0xff] %vm539, %v525
      %543 = vst.msk [vmem:[%s248 + $0x18] sm:$0xff] %vm539, %v526
      %544 = vst.msk [vmem:[%s248 + $0x20] sm:$0xff] %vm539, %v527
      %545 = vst.msk [vmem:[%s248 + $0x28] sm:$0xff] %vm539, %v528
      %546 = vst.msk [vmem:[%s248 + $0x30] sm:$0xff] %vm539, %v529
      %547 = vst.msk [vmem:[%s248 + $0x38] sm:$0xff] %vm539, %v530
      %548 = vst.msk [vmem:[%s248 + $0x40] sm:$0xff] %vm539, %v531
      %549 = vst.msk [vmem:[%s248 + $0x48] sm:$0xff] %vm539, %v532
      %550 = vst.msk [vmem:[%s248 + $0x50] sm:$0xff] %vm539, %v533
      %551 = vst.msk [vmem:[%s248 + $0x58] sm:$0xff] %vm539, %v534
      %552 = vst.msk [vmem:[%s248 + $0x60] sm:$0xff] %vm539, %v535
      %553 = vst.msk [vmem:[%s248 + $0x68] sm:$0xff] %vm539, %v536
      %554 = vst.msk [vmem:[%s248 + $0x70] sm:$0xff] %vm539, %v537
      %555 = vst.msk [vmem:[%s248 + $0x78] sm:$0xff] %vm539, %v538
      %s556 = smul.u32 16, %s16
      %p557 = scmp.lt.s32.totalorder %s556, 31
      %s558 = scalar_select %p557, %s556, 31
      %s559 = smul.addr %s558, 8
      %s560 = scalar_lea.vmem %s5, %s559
      // Predicated region
      $region41: #{_lambda_.15} parent=39 // pred_check
        %p561 = pneg %p149
      $region42: #{_lambda_.15} parent=39 // pred_check_branch
        %563 = sbr.rel (%p561) target = $region44
      $region43: #{_lambda_.15} parent=39 // pred_region
        %s564 = smul.u32 16, %s16
      $region44: #{_lambda_.15} parent=39 // pred_fallthru
        _
    $region40: #{_lambda_.15} parent=5 // pred_fallthru
      _
    %p565 = scmp.le.s32.totalorder 2, %s11
    // Predicated region
    $region45: #{_lambda_.15} parent=5 // pred_check
      %p566 = pneg %p565
    $region46: #{_lambda_.15} parent=5 // pred_check_branch
      %568 = sbr.rel (%p566) target = $region48
    $region47: #{_lambda_.15} parent=5 // pred_region
      %s569 = ssub.s32 %s11, 2
      // Predicated region
      $region49: #{_lambda_.15} parent=47 // pred_check
        %p570 = pneg %p155
      $region50: #{_lambda_.15} parent=47 // pred_check_branch
        %572 = sbr.rel (%p570) target = $region52
      $region51: #{_lambda_.15} parent=47 // pred_region
        %s573 = smul.u32 16, %s17
        %p574 = scmp.lt.s32.totalorder %s573, 31
        %s575 = scalar_select %p574, %s573, 31
        %s576 = smul.addr %s575, 8
        %s577 = scalar_lea.vmem %s5, %s576
      $region52: #{_lambda_.15} parent=47 // pred_fallthru
        _
    $region48: #{_lambda_.15} parent=5 // pred_fallthru
      _
  $region6: #{_lambda_.15} parent=0 // loop_footer
    %s15 = sadd.s32 1, %s11
  $region7: #{_lambda_.15} parent=0 // loop_footer_branch
    %10 = sbr.rel target = $region3
  $region8: #{_lambda_.15} parent=0 // loop_exit
    _

// kernel: _lambda_.14
$region0: #{_lambda_.14}
  #allocation0 [shape = 'u32[]', space=smem, size = 0x4, offset = 0x4, fixed_abs, tag = 'smem constant byte address 0x4 - core index']
  #allocation1 [shape = 'u32[72,128]{1,0:T(1,128)}', space=vmem, size = 0x9000, scoped, tag = 'internal scratch']
  #allocation2 [shape = 'f32[128,20]{1,0:T(8,128)}', space=vmem, size = 0x10000, scoped, tag = 'scratch operand']
  %s0 = inlined_call_operand.vmem [shape: f32[256,256], index: 0, kind: input, shape index: {}]
  %s1 = inlined_call_operand.vmem [shape: f32[256,20], index: 1, kind: input, shape index: {}, may-alias: {1,2}]
  %s2 = inlined_call_operand.vmem [shape: f32[256,20], index: 2, kind: input, shape index: {}, may-alias: {1,2}]
  %s3 = inlined_call_operand.vmem [shape: f32[256,1], index: 3, kind: input, shape index: {}]
  %s4 = inlined_call_operand.vmem [shape: f32[1,20], index: 4, kind: input, shape index: {}]
  %s5 = inlined_call_operand.vmem [shape: f32[256,20], index: 5, kind: output, shape index: {0}]
  %s6 = inlined_call_operand.vmem [shape: f32[2,1,20], index: 6, kind: output, shape index: {1}]
  %s7 = inlined_call_operand.vmem [shape: f32[2,1,20], index: 7, kind: output, shape index: {2}]
  %8 = xla_tuple %s5, %s6, %s7
  %s9 = sld [smem:[#allocation0]]
  $region115: #{_lambda_.14} parent=0
    _
  %s11 = ssub.s32 1, %s9
  %s12 = scalar_select 0, %s11, %s9
  $region1: #{_lambda_.14} parent=0
    #allocation3 [shape = 'u8[131072]{0}', space=vmem, size = 0x20000, scoped, tag = 'input window, operand 0']
    loop: start=0, step=1, limit=6
    $region2: #{_lambda_.14} parent=1 // loop_pre_header
      _
    $region3: #{_lambda_.14} parent=1 // loop_header
      %s14 = sphi 0, %s18
      %p15 = scmp.ge.s32.totalorder %s14, 6
      %s21 = sphi 0, %s33
      %s22 = sphi 0, %s29
      %s23 = sphi 0, %s21
      %s24 = sphi 0, %s22
      %s25 = sphi 0, %s23
      %s26 = sphi 0, %s24
      %s38 = sphi 0, %s40
      %s41 = sphi 0, %s38
      %s42 = sphi 0, %s41
      %s58 = sphi 0, %s42
      %s64 = sphi 0, %s66
      %s67 = sphi 0, %s64
      %s68 = sphi 0, %s67
      %s84 = sphi 0, %s68
      %s90 = sphi 0, %s92
      %s93 = sphi 0, %s90
      %s94 = sphi 0, %s93
      %s110 = sphi 0, %s94
      %s116 = sphi 0, %s118
      %s119 = sphi 0, %s116
      %s120 = sphi 0, %s119
      %s136 = sphi 0, %s120
      %s140 = sphi 0, %s140
      %s142 = sphi 0, %s140
      %s143 = sphi 0, %s142
      %s157 = sphi 0, %s143
      %s163 = sphi 0, %s165
      %s166 = sphi 0, %s163
      %s167 = sphi 0, %s166
      %s183 = sphi 0, %s167
      %s189 = sphi 0, %s191
      %s192 = sphi 0, %s189
      %s193 = sphi 0, %s192
      %s209 = sphi 0, %s193
      %s215 = sphi 0, %s217
      %s218 = sphi 0, %s215
      %s219 = sphi 0, %s218
      %s235 = sphi 0, %s219
    $region4: #{_lambda_.14} parent=1 // loop_header_branch
      %17 = sbr.rel (%p15) target = $region8
    $region5: #{_lambda_.14} parent=1 // loop_body
      %s19 = ssub.s32 %s14, 1
      %s20 = ssub.s32 %s14, 2
      %s27 = sadd.s32 1, %s22
      %p28 = scmp.ge.s32.totalorder %s27, 2
      %s29 = scalar_select %p28, 0, %s27
      %s30 = sadd.s32 1, %s21
      %s31 = scalar_select %p28, %s30, %s21
      %p32 = scmp.ge.s32.totalorder %s31, 2
      %s33 = scalar_select %p32, 0, %s31
      %s34 = ssub.s32 %s21, %s33
      %s35 = ssub.s32 %s22, %s29
      %s36 = sor.u32 %s34, %s35
      %p37 = scmp.eq.s32.totalorder %s36, 0
      %s39 = sadd.s32 %s38, 1
      %s40 = scalar_select %p37, %s38, %s39
      %p43 = pneg %p37
      %p44 = scmp.eq.s32.totalorder %s14, 3
      %p45 = por %p43, %p44
      %p46 = scmp.ne.s32.totalorder %s38, %s41
      %p47 = scmp.eq.s32.totalorder %s14, 0
      %p48 = por %p46, %p47
      %p49 = scmp.ne.s32.totalorder %s38, %s41
      %p50 = scmp.eq.s32.totalorder %s19, 3
      %p51 = por %p49, %p50
      %p52 = scmp.ne.s32.totalorder %s41, %s42
      %p53 = scmp.eq.s32.totalorder %s19, 0
      %p54 = por %p52, %p53
      %p55 = scmp.ne.s32.totalorder %s41, %s42
      %p56 = scmp.eq.s32.totalorder %s20, 3
      %p57 = por %p55, %p56
      %p59 = scmp.ne.s32.totalorder %s42, %s58
      %p60 = scmp.eq.s32.totalorder %s20, 0
      %p61 = por %p59, %p60
      %s62 = ssub.s32 %s22, %s29
      %p63 = scmp.eq.s32.totalorder %s62, 0
      %s65 = sadd.s32 %s64, 1
      %s66 = scalar_select %p63, %s64, %s65
      %p69 = pneg %p63
      %p70 = scmp.eq.s32.totalorder %s14, 3
      %p71 = por %p69, %p70
      %p72 = scmp.ne.s32.totalorder %s64, %s67
      %p73 = scmp.eq.s32.totalorder %s14, 0
      %p74 = por %p72, %p73
      %p75 = scmp.ne.s32.totalorder %s64, %s67
      %p76 = scmp.eq.s32.totalorder %s19, 3
      %p77 = por %p75, %p76
      %p78 = scmp.ne.s32.totalorder %s67, %s68
      %p79 = scmp.eq.s32.totalorder %s19, 0
      %p80 = por %p78, %p79
      %p81 = scmp.ne.s32.totalorder %s67, %s68
      %p82 = scmp.eq.s32.totalorder %s20, 3
      %p83 = por %p81, %p82
      %p85 = scmp.ne.s32.totalorder %s68, %s84
      %p86 = scmp.eq.s32.totalorder %s20, 0
      %p87 = por %p85, %p86
      %s88 = ssub.s32 %s21, %s33
      %p89 = scmp.eq.s32.totalorder %s88, 0
      %s91 = sadd.s32 %s90, 1
      %s92 = scalar_select %p89, %s90, %s91
      %p95 = pneg %p89
      %p96 = scmp.eq.s32.totalorder %s14, 3
      %p97 = por %p95, %p96
      %p98 = scmp.ne.s32.totalorder %s90, %s93
      %p99 = scmp.eq.s32.totalorder %s14, 0
      %p100 = por %p98, %p99
      %p101 = scmp.ne.s32.totalorder %s90, %s93
      %p102 = scmp.eq.s32.totalorder %s19, 3
      %p103 = por %p101, %p102
      %p104 = scmp.ne.s32.totalorder %s93, %s94
      %p105 = scmp.eq.s32.totalorder %s19, 0
      %p106 = por %p104, %p105
      %p107 = scmp.ne.s32.totalorder %s93, %s94
      %p108 = scmp.eq.s32.totalorder %s20, 3
      %p109 = por %p107, %p108
      %p111 = scmp.ne.s32.totalorder %s94, %s110
      %p112 = scmp.eq.s32.totalorder %s20, 0
      %p113 = por %p111, %p112
      %s114 = ssub.s32 %s21, %s33
      %p115 = scmp.eq.s32.totalorder %s114, 0
      %s117 = sadd.s32 %s116, 1
      %s118 = scalar_select %p115, %s116, %s117
      %p121 = pneg %p115
      %p122 = scmp.eq.s32.totalorder %s14, 3
      %p123 = por %p121, %p122
      %p124 = scmp.ne.s32.totalorder %s116, %s119
      %p125 = scmp.eq.s32.totalorder %s14, 0
      %p126 = por %p124, %p125
      %p127 = scmp.ne.s32.totalorder %s116, %s119
      %p128 = scmp.eq.s32.totalorder %s19, 3
      %p129 = por %p127, %p128
      %p130 = scmp.ne.s32.totalorder %s119, %s120
      %p131 = scmp.eq.s32.totalorder %s19, 0
      %p132 = por %p130, %p131
      %p133 = scmp.ne.s32.totalorder %s119, %s120
      %p134 = scmp.eq.s32.totalorder %s20, 3
      %p135 = por %p133, %p134
      %p137 = scmp.ne.s32.totalorder %s120, %s136
      %p138 = scmp.eq.s32.totalorder %s20, 0
      %p139 = por %p137, %p138
      %s141 = sadd.s32 %s140, 1
      %p144 = scmp.eq.s32.totalorder %s14, 3
      %p145 = scmp.ne.s32.totalorder %s140, %s142
      %p146 = scmp.eq.s32.totalorder %s14, 0
      %p147 = por %p145, %p146
      %p148 = scmp.ne.s32.totalorder %s140, %s142
      %p149 = scmp.eq.s32.totalorder %s19, 3
      %p150 = por %p148, %p149
      %p151 = scmp.ne.s32.totalorder %s142, %s143
      %p152 = scmp.eq.s32.totalorder %s19, 0
      %p153 = por %p151, %p152
      %p154 = scmp.ne.s32.totalorder %s142, %s143
      %p155 = scmp.eq.s32.totalorder %s20, 3
      %p156 = por %p154, %p155
      %p158 = scmp.ne.s32.totalorder %s143, %s157
      %p159 = scmp.eq.s32.totalorder %s20, 0
      %p160 = por %p158, %p159
      %s161 = ssub.s32 %s21, %s33
      %p162 = scmp.eq.s32.totalorder %s161, 0
      %s164 = sadd.s32 %s163, 1
      %s165 = scalar_select %p162, %s163, %s164
      %p168 = pneg %p162
      %p169 = scmp.eq.s32.totalorder %s14, 3
      %p170 = por %p168, %p169
      %p171 = scmp.ne.s32.totalorder %s163, %s166
      %p172 = scmp.eq.s32.totalorder %s14, 0
      %p173 = por %p171, %p172
      %p174 = scmp.ne.s32.totalorder %s163, %s166
      %p175 = scmp.eq.s32.totalorder %s19, 3
      %p176 = por %p174, %p175
      %p177 = scmp.ne.s32.totalorder %s166, %s167
      %p178 = scmp.eq.s32.totalorder %s19, 0
      %p179 = por %p177, %p178
      %p180 = scmp.ne.s32.totalorder %s166, %s167
      %p181 = scmp.eq.s32.totalorder %s20, 3
      %p182 = por %p180, %p181
      %p184 = scmp.ne.s32.totalorder %s167, %s183
      %p185 = scmp.eq.s32.totalorder %s20, 0
      %p186 = por %p184, %p185
      %s187 = ssub.s32 %s21, %s33
      %p188 = scmp.eq.s32.totalorder %s187, 0
      %s190 = sadd.s32 %s189, 1
      %s191 = scalar_select %p188, %s189, %s190
      %p194 = pneg %p188
      %p195 = scmp.eq.s32.totalorder %s14, 3
      %p196 = por %p194, %p195
      %p197 = scmp.ne.s32.totalorder %s189, %s192
      %p198 = scmp.eq.s32.totalorder %s14, 0
      %p199 = por %p197, %p198
      %p200 = scmp.ne.s32.totalorder %s189, %s192
      %p201 = scmp.eq.s32.totalorder %s19, 3
      %p202 = por %p200, %p201
      %p203 = scmp.ne.s32.totalorder %s192, %s193
      %p204 = scmp.eq.s32.totalorder %s19, 0
      %p205 = por %p203, %p204
      %p206 = scmp.ne.s32.totalorder %s192, %s193
      %p207 = scmp.eq.s32.totalorder %s20, 3
      %p208 = por %p206, %p207
      %p210 = scmp.ne.s32.totalorder %s193, %s209
      %p211 = scmp.eq.s32.totalorder %s20, 0
      %p212 = por %p210, %p211
      %s213 = ssub.s32 %s21, %s33
      %p214 = scmp.eq.s32.totalorder %s213, 0
      %s216 = sadd.s32 %s215, 1
      %s217 = scalar_select %p214, %s215, %s216
      %p220 = pneg %p214
      %p221 = scmp.eq.s32.totalorder %s14, 3
      %p222 = por %p220, %p221
      %p223 = scmp.ne.s32.totalorder %s215, %s218
      %p224 = scmp.eq.s32.totalorder %s14, 0
      %p225 = por %p223, %p224
      %p226 = scmp.ne.s32.totalorder %s215, %s218
      %p227 = scmp.eq.s32.totalorder %s19, 3
      %p228 = por %p226, %p227
      %p229 = scmp.ne.s32.totalorder %s218, %s219
      %p230 = scmp.eq.s32.totalorder %s19, 0
      %p231 = por %p229, %p230
      %p232 = scmp.ne.s32.totalorder %s218, %s219
      %p233 = scmp.eq.s32.totalorder %s20, 3
      %p234 = por %p232, %p233
      %p236 = scmp.ne.s32.totalorder %s219, %s235
      %p237 = scmp.eq.s32.totalorder %s20, 0
      %p238 = por %p236, %p237
      %p239 = scmp.le.s32.totalorder 1, %s14
      %p240 = scmp.lt.s32.totalorder %s14, 5
      %p241 = pnand %p239, %p240
      %p242 = pneg %p241
      // Predicated region
      $region9: #{_lambda_.14} parent=5 // pred_check
        _
      $region10: #{_lambda_.14} parent=5 // pred_check_branch
        %244 = sbr.rel (%p241) target = $region12
      $region11: #{_lambda_.14} parent=5 // pred_region
        %s245 = ssub.s32 %s14, 1
        // Predicated region
        $region13: #{_lambda_.14} parent=11 // pred_check
          %p246 = pneg %p153
        $region14: #{_lambda_.14} parent=11 // pred_check_branch
          %248 = sbr.rel (%p246) target = $region16
        $region15: #{_lambda_.14} parent=11 // pred_region
          _
        $region16: #{_lambda_.14} parent=11 // pred_fallthru
          _
      $region12: #{_lambda_.14} parent=5 // pred_fallthru
        _
      %p249 = scmp.lt.s32.totalorder %s14, 4
      // Predicated region
      $region17: #{_lambda_.14} parent=5 // pred_check
        %p250 = pneg %p249
      $region18: #{_lambda_.14} parent=5 // pred_check_branch
        %252 = sbr.rel (%p250) target = $region20
      $region19: #{_lambda_.14} parent=5 // pred_region
        // Predicated region
        $region21: #{_lambda_.14} parent=19 // pred_check
          %p253 = pneg %p48
        $region22: #{_lambda_.14} parent=19 // pred_check_branch
          %255 = sbr.rel (%p253) target = $region24
        $region23: #{_lambda_.14} parent=19 // pred_region
          %s256 = sand.u32 %s38, 1
          %s257 = sand.u32 %s38, 1
          %s258 = smul.addr %s257, 128
          %s259 = scalar_lea.vmem [#allocation3], %s258
          %s260 = smul.u32 16, %s21
          %s261 = smul.addr %s260, 2
          %s262 = sadd.s32 %s22, %s261
          %s263 = smul.addr %s262, 8
          %s264 = scalar_lea.vmem %s0, %s263
          // Predicated region
          $region25: #{_lambda_.14} parent=23 // pred_check
            _
          $region26: #{_lambda_.14} parent=23 // pred_check_branch
            %266 = sbr.rel (0) target = $region28
          $region27: #{_lambda_.14} parent=23 // pred_region
            // Predicated region
            $region29: #{_lambda_.14} parent=27 // pred_check
              _
            $region30: #{_lambda_.14} parent=27 // pred_check_branch
              %268 = sbr.rel (0) target = $region32
            $region31: #{_lambda_.14} parent=27 // pred_region
              // Predicated region
              $region44: #{_lambda_.14} parent=31 // pred_check
                _
              $region45: #{_lambda_.14} parent=31 // pred_check_branch
                %314 = sbr.rel (0) target = $region47
              $region46: #{_lambda_.14} parent=31 // pred_region
                loop: start=0, step=1, limit=1
                $region48: #{_lambda_.14} parent=46 // loop_pre_header
                  _
                $region49: #{_lambda_.14} parent=46 // loop_header
                  %s316 = sphi 0, %s320
                  %p317 = scmp.ge.s32.totalorder %s316, 1
                  %s321 = sphi %s264, %s264
                  %s322 = sphi %s259, %s259
                $region50: #{_lambda_.14} parent=46 // loop_header_branch
                  %319 = sbr.rel (%p317) target = $region54
                $region51: #{_lambda_.14} parent=46 // loop_body
                  %v323 = vld [vmem:[%s321] sm:$0xff]
                  %324 = vst [vmem:[%s322] sm:$0xff] %v323
                  %v325 = vld [vmem:[%s321 + $0x10] sm:$0xff]
                  %326 = vst [vmem:[%s322 + $0x8] sm:$0xff] %v325
                  %v327 = vld [vmem:[%s321 + $0x20] sm:$0xff]
                  %328 = vst [vmem:[%s322 + $0x10] sm:$0xff] %v327
                  %v329 = vld [vmem:[%s321 + $0x30] sm:$0xff]
                  %330 = vst [vmem:[%s322 + $0x18] sm:$0xff] %v329
                  %v331 = vld [vmem:[%s321 + $0x40] sm:$0xff]
                  %332 = vst [vmem:[%s322 + $0x20] sm:$0xff] %v331
                  %v333 = vld [vmem:[%s321 + $0x50] sm:$0xff]
                  %334 = vst [vmem:[%s322 + $0x28] sm:$0xff] %v333
                  %v335 = vld [vmem:[%s321 + $0x60] sm:$0xff]
                  %336 = vst [vmem:[%s322 + $0x30] sm:$0xff] %v335
                  %v337 = vld [vmem:[%s321 + $0x70] sm:$0xff]
                  %338 = vst [vmem:[%s322 + $0x38] sm:$0xff] %v337
                  %v339 = vld [vmem:[%s321 + $0x80] sm:$0xff]
                  %340 = vst [vmem:[%s322 + $0x40] sm:$0xff] %v339
                  %v341 = vld [vmem:[%s321 + $0x90] sm:$0xff]
                  %342 = vst [vmem:[%s322 + $0x48] sm:$0xff] %v341
                  %v343 = vld [vmem:[%s321 + $0xa0] sm:$0xff]
                  %344 = vst [vmem:[%s322 + $0x50] sm:$0xff] %v343
                  %v345 = vld [vmem:[%s321 + $0xb0] sm:$0xff]
                  %346 = vst [vmem:[%s322 + $0x58] sm:$0xff] %v345
                  %v347 = vld [vmem:[%s321 + $0xc0] sm:$0xff]
                  %348 = vst [vmem:[%s322 + $0x60] sm:$0xff] %v347
                  %v349 = vld [vmem:[%s321 + $0xd0] sm:$0xff]
                  %350 = vst [vmem:[%s322 + $0x68] sm:$0xff] %v349
                  %v351 = vld [vmem:[%s321 + $0xe0] sm:$0xff]
                  %352 = vst [vmem:[%s322 + $0x70] sm:$0xff] %v351
                  %v353 = vld [vmem:[%s321 + $0xf0] sm:$0xff]
                  %354 = vst [vmem:[%s322 + $0x78] sm:$0xff] %v353
                $region52: #{_lambda_.14} parent=46 // loop_footer
                  %s320 = sadd.s32 1, %s316
                $region53: #{_lambda_.14} parent=46 // loop_footer_branch
                  %315 = sbr.rel target = $region49
                $region54: #{_lambda_.14} parent=46 // loop_exit
                  _
              $region47: #{_lambda_.14} parent=31 // pred_fallthru
                _
              // Predicated region
              $region55: #{_lambda_.14} parent=31 // pred_check
                _
              $region56: #{_lambda_.14} parent=31 // pred_check_branch
                %356 = sbr.rel target = $region58
              $region57: #{_lambda_.14} parent=31 // pred_region
                _
              $region58: #{_lambda_.14} parent=31 // pred_fallthru
                _
            $region32: #{_lambda_.14} parent=27 // pred_fallthru
              _
            // Predicated region
            $region33: #{_lambda_.14} parent=27 // pred_check
              _
            $region34: #{_lambda_.14} parent=27 // pred_check_branch
              %270 = sbr.rel target = $region36
            $region35: #{_lambda_.14} parent=27 // pred_region
              %s272 = ssub.s32 256, 1
              loop: start=0, step=1, limit=1
              $region37: #{_lambda_.14} parent=35 // loop_pre_header
                _
              $region38: #{_lambda_.14} parent=35 // loop_header
                %s274 = sphi 0, %s278
                %p275 = scmp.ge.s32.totalorder %s274, 1
                %s279 = sphi %s264, %s264
                %s280 = sphi %s259, %s259
              $region39: #{_lambda_.14} parent=35 // loop_header_branch
                %277 = sbr.rel (%p275) target = $region43
              $region40: #{_lambda_.14} parent=35 // loop_body
                %v281 = vld [vmem:[%s279] sm:%s272]
                %282 = vst [vmem:[%s280] sm:%s272] %v281
                %v283 = vld [vmem:[%s279 + $0x10] sm:%s272]
                %284 = vst [vmem:[%s280 + $0x8] sm:%s272] %v283
                %v285 = vld [vmem:[%s279 + $0x20] sm:%s272]
                %286 = vst [vmem:[%s280 + $0x10] sm:%s272] %v285
                %v287 = vld [vmem:[%s279 + $0x30] sm:%s272]
                %288 = vst [vmem:[%s280 + $0x18] sm:%s272] %v287
                %v289 = vld [vmem:[%s279 + $0x40] sm:%s272]
                %290 = vst [vmem:[%s280 + $0x20] sm:%s272] %v289
                %v291 = vld [vmem:[%s279 + $0x50] sm:%s272]
                %292 = vst [vmem:[%s280 + $0x28] sm:%s272] %v291
                %v293 = vld [vmem:[%s279 + $0x60] sm:%s272]
                %294 = vst [vmem:[%s280 + $0x30] sm:%s272] %v293
                %v295 = vld [vmem:[%s279 + $0x70] sm:%s272]
                %296 = vst [vmem:[%s280 + $0x38] sm:%s272] %v295
                %v297 = vld [vmem:[%s279 + $0x80] sm:%s272]
                %298 = vst [vmem:[%s280 + $0x40] sm:%s272] %v297
                %v299 = vld [vmem:[%s279 + $0x90] sm:%s272]
                %300 = vst [vmem:[%s280 + $0x48] sm:%s272] %v299
                %v301 = vld [vmem:[%s279 + $0xa0] sm:%s272]
                %302 = vst [vmem:[%s280 + $0x50] sm:%s272] %v301
                %v303 = vld [vmem:[%s279 + $0xb0] sm:%s272]
                %304 = vst [vmem:[%s280 + $0x58] sm:%s272] %v303
                %v305 = vld [vmem:[%s279 + $0xc0] sm:%s272]
                %306 = vst [vmem:[%s280 + $0x60] sm:%s272] %v305
                %v307 = vld [vmem:[%s279 + $0xd0] sm:%s272]
                %308 = vst [vmem:[%s280 + $0x68] sm:%s272] %v307
                %v309 = vld [vmem:[%s279 + $0xe0] sm:%s272]
                %310 = vst [vmem:[%s280 + $0x70] sm:%s272] %v309
                %v311 = vld [vmem:[%s279 + $0xf0] sm:%s272]
                %312 = vst [vmem:[%s280 + $0x78] sm:%s272] %v311
              $region41: #{_lambda_.14} parent=35 // loop_footer
                %s278 = sadd.s32 1, %s274
              $region42: #{_lambda_.14} parent=35 // loop_footer_branch
                %273 = sbr.rel target = $region38
              $region43: #{_lambda_.14} parent=35 // loop_exit
                _
            $region36: #{_lambda_.14} parent=27 // pred_fallthru
              _
          $region28: #{_lambda_.14} parent=23 // pred_fallthru
            _
          %357 = vnop
        $region24: #{_lambda_.14} parent=19 // pred_fallthru
          _
        // Predicated region
        $region59: #{_lambda_.14} parent=19 // pred_check
          %p358 = pneg %p74
        $region60: #{_lambda_.14} parent=19 // pred_check_branch
          %360 = sbr.rel (%p358) target = $region62
        $region61: #{_lambda_.14} parent=19 // pred_region
          %s361 = smul.u32 16, %s22
          %p362 = scmp.lt.s32.totalorder %s361, 31
          %s363 = scalar_select %p362, %s361, 31
          %s364 = smul.addr %s363, 8
          %s365 = scalar_lea.vmem %s1, %s364
          %s366 = smul.u32 16, %s22
        $region62: #{_lambda_.14} parent=19 // pred_fallthru
          _
        // Predicated region
        $region63: #{_lambda_.14} parent=19 // pred_check
          %p367 = pneg %p100
        $region64: #{_lambda_.14} parent=19 // pred_check_branch
          %369 = sbr.rel (%p367) target = $region66
        $region65: #{_lambda_.14} parent=19 // pred_region
          %s370 = smul.u32 16, %s21
          %p371 = scmp.lt.s32.totalorder %s370, 31
          %s372 = scalar_select %p371, %s370, 31
          %s373 = smul.addr %s372, 8
          %s374 = scalar_lea.vmem %s2, %s373
          %s375 = smul.u32 16, %s21
        $region66: #{_lambda_.14} parent=19 // pred_fallthru
          _
        // Predicated region
        $region67: #{_lambda_.14} parent=19 // pred_check
          %p376 = pneg %p126
        $region68: #{_lambda_.14} parent=19 // pred_check_branch
          %378 = sbr.rel (%p376) target = $region70
        $region69: #{_lambda_.14} parent=19 // pred_region
          %s379 = smul.u32 16, %s21
          %p380 = scmp.lt.s32.totalorder %s379, 31
          %s381 = scalar_select %p380, %s379, 31
          %s382 = smul.addr %s381, 8
          %s383 = scalar_lea.vmem %s3, %s382
          %s384 = smul.u32 16, %s21
        $region70: #{_lambda_.14} parent=19 // pred_fallthru
          _
      $region20: #{_lambda_.14} parent=5 // pred_fallthru
        _
      %p385 = scmp.le.s32.totalorder 1, %s14
      %p386 = scmp.lt.s32.totalorder %s14, 5
      %p387 = pnand %p385, %p386
      %p388 = pneg %p387
      // Predicated region
      $region71: #{_lambda_.14} parent=5 // pred_check
        _
      $region72: #{_lambda_.14} parent=5 // pred_check_branch
        %390 = sbr.rel (%p387) target = $region74
      $region73: #{_lambda_.14} parent=5 // pred_region
        %s391 = ssub.s32 %s14, 1
        %s392 = sand.u32 %s41, 1
        %s393 = sand.u32 %s41, 1
        %s394 = smul.addr %s393, 128
        %s395 = scalar_lea.vmem [#allocation3], %s394
        // Predicated region
        $region75: #{_lambda_.14} parent=73 // pred_check
          %p396 = pneg %p54
        $region76: #{_lambda_.14} parent=73 // pred_check_branch
          %398 = sbr.rel (%p396) target = $region78
        $region77: #{_lambda_.14} parent=73 // pred_region
          _
        $region78: #{_lambda_.14} parent=73 // pred_fallthru
          _
        %s399 = sand.u32 %s41, 1
        %s400 = sand.u32 %s41, 1
        %s401 = smul.addr %s400, 128
        %s402 = scalar_lea.vmem [#allocation3], %s401
        %p403 = pneg %p54
        %p404 = pneg %p51
        %s405 = smul.u32 16, %s24
        %p406 = scmp.lt.s32.totalorder %s405, 31
        %s407 = scalar_select %p406, %s405, 31
        %s408 = smul.addr %s407, 8
        %s409 = scalar_lea.vmem %s1, %s408
        %p410 = pneg %p80
        %p411 = pneg %p77
        %s412 = smul.u32 16, %s23
        %p413 = scmp.lt.s32.totalorder %s412, 31
        %s414 = scalar_select %p413, %s412, 31
        %s415 = smul.addr %s414, 8
        %s416 = scalar_lea.vmem %s2, %s415
        %p417 = pneg %p106
        %p418 = pneg %p103
        %s419 = smul.u32 16, %s23
        %p420 = scmp.lt.s32.totalorder %s419, 31
        %s421 = scalar_select %p420, %s419, 31
        %s422 = smul.addr %s421, 8
        %s423 = scalar_lea.vmem %s3, %s422
        %p424 = pneg %p132
        %p425 = pneg %p129
        %p426 = pneg %p153
        %p427 = pneg %p150
        %p428 = pneg %p179
        %p429 = pneg %p176
        %s430 = smul.u32 16, %s23
        %p431 = scmp.lt.s32.totalorder %s430, 31
        %s432 = scalar_select %p431, %s430, 31
        %s433 = smul.addr %s432, 8
        %s434 = scalar_lea.vmem %s5, %s433
        %p435 = pneg %p205
        %p436 = pneg %p202
        %p437 = scmp.lt.s32.totalorder %s23, 1
        %s438 = scalar_select %p437, %s23, 1
        %s439 = scalar_lea.vmem %s6, %s438
        %p440 = pneg %p231
        %p441 = pneg %p228
        %p442 = scmp.lt.s32.totalorder %s23, 1
        %s443 = scalar_select %p442, %s23, 1
        %s444 = scalar_lea.vmem %s7, %s443
        %s445 = smul.u32 16, %s23
        %s446 = smul.u32 16, %s24
        %p447 = scmp.lt.s32.totalorder %s446, 31
        %s448 = scalar_select %p447, %s446, 31
        %s449 = smul.addr %s448, 8
        %s450 = scalar_lea.vmem %s1, %s449
        %s451 = smul.u32 16, %s24
        %s452 = smul.u32 16, %s23
        %p453 = scmp.lt.s32.totalorder %s452, 31
        %s454 = scalar_select %p453, %s452, 31
        %s455 = smul.addr %s454, 8
        %s456 = scalar_lea.vmem %s2, %s455
        %s457 = smul.u32 16, %s23
        %s458 = smul.u32 16, %s23
        %p459 = scmp.lt.s32.totalorder %s458, 31
        %s460 = scalar_select %p459, %s458, 31
        %s461 = smul.addr %s460, 8
        %s462 = scalar_lea.vmem %s3, %s461
        %s463 = smul.u32 16, %s23
        %s464 = smul.u32 16, %s23
        %p465 = scmp.lt.s32.totalorder %s464, 31
        %s466 = scalar_select %p465, %s464, 31
        %s467 = smul.addr %s466, 8
        %s468 = scalar_lea.vmem %s5, %s467
        %s469 = smul.u32 16, %s23
        %p470 = scmp.lt.s32.totalorder %s23, 1
        %s471 = scalar_select %p470, %s23, 1
        %s472 = scalar_lea.vmem %s6, %s471
        %p473 = scmp.lt.s32.totalorder %s23, 1
        %s474 = scalar_select %p473, %s23, 1
        %s475 = scalar_lea.vmem %s7, %s474
        %p476 = scmp.eq.s32.totalorder %s24, 0
        // Predicated region
        $region79: #{_lambda_.14} parent=73 // pred_check
          %p477 = pneg %p476
        $region80: #{_lambda_.14} parent=73 // pred_check_branch
          %479 = sbr.rel (%p477) target = $region82
        $region81: #{_lambda_.14} parent=73 // pred_region
          %vm480 = vcmask 162816
          %481 = vst.msk [vmem:[#allocation2] sm:$0xff] %vm480, 0.0
          %482 = vst.msk [vmem:[#allocation2 + $0x8] sm:$0xff] %vm480, 0.0
          %483 = vst.msk [vmem:[#allocation2 + $0x10] sm:$0xff] %vm480, 0.0
          %484 = vst.msk [vmem:[#allocation2 + $0x18] sm:$0xff] %vm480, 0.0
          %485 = vst.msk [vmem:[#allocation2 + $0x20] sm:$0xff] %vm480, 0.0
          %486 = vst.msk [vmem:[#allocation2 + $0x28] sm:$0xff] %vm480, 0.0
          %487 = vst.msk [vmem:[#allocation2 + $0x30] sm:$0xff] %vm480, 0.0
          %488 = vst.msk [vmem:[#allocation2 + $0x38] sm:$0xff] %vm480, 0.0
          %489 = vst.msk [vmem:[#allocation2 + $0x40] sm:$0xff] %vm480, 0.0
          %490 = vst.msk [vmem:[#allocation2 + $0x48] sm:$0xff] %vm480, 0.0
          %491 = vst.msk [vmem:[#allocation2 + $0x50] sm:$0xff] %vm480, 0.0
          %492 = vst.msk [vmem:[#allocation2 + $0x58] sm:$0xff] %vm480, 0.0
          %493 = vst.msk [vmem:[#allocation2 + $0x60] sm:$0xff] %vm480, 0.0
          %494 = vst.msk [vmem:[#allocation2 + $0x68] sm:$0xff] %vm480, 0.0
          %495 = vst.msk [vmem:[#allocation2 + $0x70] sm:$0xff] %vm480, 0.0
          %496 = vst.msk [vmem:[#allocation2 + $0x78] sm:$0xff] %vm480, 0.0
        $region82: #{_lambda_.14} parent=73 // pred_fallthru
          _
        %v497 = vld [vmem:[#allocation2] sm:$0xff]
        %v498 = vld [vmem:[#allocation2 + $0x8] sm:$0xff]
        %v499 = vld [vmem:[#allocation2 + $0x10] sm:$0xff]
        %v500 = vld [vmem:[#allocation2 + $0x18] sm:$0xff]
        %v501 = vld [vmem:[#allocation2 + $0x20] sm:$0xff]
        %v502 = vld [vmem:[#allocation2 + $0x28] sm:$0xff]
        %v503 = vld [vmem:[#allocation2 + $0x30] sm:$0xff]
        %v504 = vld [vmem:[#allocation2 + $0x38] sm:$0xff]
        %v505 = vld [vmem:[#allocation2 + $0x40] sm:$0xff]
        %v506 = vld [vmem:[#allocation2 + $0x48] sm:$0xff]
        %v507 = vld [vmem:[#allocation2 + $0x50] sm:$0xff]
        %v508 = vld [vmem:[#allocation2 + $0x58] sm:$0xff]
        %v509 = vld [vmem:[#allocation2 + $0x60] sm:$0xff]
        %v510 = vld [vmem:[#allocation2 + $0x68] sm:$0xff]
        %v511 = vld [vmem:[#allocation2 + $0x70] sm:$0xff]
        %v512 = vld [vmem:[#allocation2 + $0x78] sm:$0xff]
        %v513 = vld [vmem:[%s395] sm:$0xff]
        %v514 = vld [vmem:[%s395 + $0x8] sm:$0xff]
        %v515 = vld [vmem:[%s395 + $0x10] sm:$0xff]
        %v516 = vld [vmem:[%s395 + $0x18] sm:$0xff]
        %v517 = vld [vmem:[%s395 + $0x20] sm:$0xff]
        %v518 = vld [vmem:[%s395 + $0x28] sm:$0xff]
        %v519 = vld [vmem:[%s395 + $0x30] sm:$0xff]
        %v520 = vld [vmem:[%s395 + $0x38] sm:$0xff]
        %v521 = vld [vmem:[%s395 + $0x40] sm:$0xff]
        %v522 = vld [vmem:[%s395 + $0x48] sm:$0xff]
        %v523 = vld [vmem:[%s395 + $0x50] sm:$0xff]
        %v524 = vld [vmem:[%s395 + $0x58] sm:$0xff]
        %v525 = vld [vmem:[%s395 + $0x60] sm:$0xff]
        %v526 = vld [vmem:[%s395 + $0x68] sm:$0xff]
        %v527 = vld [vmem:[%s395 + $0x70] sm:$0xff]
        %v528 = vld [vmem:[%s395 + $0x78] sm:$0xff]
        %v529 = vld [vmem:[%s450] sm:$0xff]
        %v530 = vld [vmem:[%s450 + $0x8] sm:$0xff]
        %v531 = vld [vmem:[%s450 + $0x10] sm:$0xff]
        %v532 = vld [vmem:[%s450 + $0x18] sm:$0xff]
        %v533 = vld [vmem:[%s450 + $0x20] sm:$0xff]
        %v534 = vld [vmem:[%s450 + $0x28] sm:$0xff]
        %v535 = vld [vmem:[%s450 + $0x30] sm:$0xff]
        %v536 = vld [vmem:[%s450 + $0x38] sm:$0xff]
        %v537 = vld [vmem:[%s450 + $0x40] sm:$0xff]
        %v538 = vld [vmem:[%s450 + $0x48] sm:$0xff]
        %v539 = vld [vmem:[%s450 + $0x50] sm:$0xff]
        %v540 = vld [vmem:[%s450 + $0x58] sm:$0xff]
        %v541 = vld [vmem:[%s450 + $0x60] sm:$0xff]
        %v542 = vld [vmem:[%s450 + $0x68] sm:$0xff]
        %v543 = vld [vmem:[%s450 + $0x70] sm:$0xff]
        %v544 = vld [vmem:[%s450 + $0x78] sm:$0xff]
        %545 = vmatpush.msra.mxu0 %v544
        %546 = vmatpush.msra.mxu0 %v543
        %547 = vmatpush.msra.mxu0 %v542
        %548 = vmatpush.msra.mxu0 %v541
        %549 = vmatpush.msra.mxu0 %v540
        %550 = vmatpush.msra.mxu0 %v539
        %551 = vmatpush.msra.mxu0 %v538
        %552 = vmatpush.msra.mxu0 %v537
        %553 = vmatpush.msra.mxu0 %v536
        %554 = vmatpush.msra.mxu0 %v535
        %555 = vmatpush.msra.mxu0 %v534
        %556 = vmatpush.msra.mxu0 %v533
        %557 = vmatpush.msra.mxu0 %v532
        %558 = vmatpush.msra.mxu0 %v531
        %559 = vmatpush.msra.mxu0 %v530
        %560 = vmatpush.msra.mxu0 %v529
        %561 = vmatmul.f32.gmra.mxu0 %v513
        %v562 = vpop.f32.mrf.mxu0
        %v563 = vadd.f32 0.0, %v562
        %564 = vmatmul.f32.gmra.mxu0 %v514
        %v565 = vpop.f32.mrf.mxu0
        %v566 = vadd.f32 0.0, %v565
        %567 = vmatmul.f32.gmra.mxu0 %v515
        %v568 = vpop.f32.mrf.mxu0
        %v569 = vadd.f32 0.0, %v568
        %570 = vmatmul.f32.gmra.mxu0 %v516
        %v571 = vpop.f32.mrf.mxu0
        %v572 = vadd.f32 0.0, %v571
        %573 = vmatmul.f32.gmra.mxu0 %v517
        %v574 = vpop.f32.mrf.mxu0
        %v575 = vadd.f32 0.0, %v574
        %576 = vmatmul.f32.gmra.mxu0 %v518
        %v577 = vpop.f32.mrf.mxu0
        %v578 = vadd.f32 0.0, %v577
        %579 = vmatmul.f32.gmra.mxu0 %v519
        %v580 = vpop.f32.mrf.mxu0
        %v581 = vadd.f32 0.0, %v580
        %582 = vmatmul.f32.gmra.mxu0 %v520
        %v583 = vpop.f32.mrf.mxu0
        %v584 = vadd.f32 0.0, %v583
        %585 = vmatmul.f32.gmra.mxu0 %v521
        %v586 = vpop.f32.mrf.mxu0
        %v587 = vadd.f32 0.0, %v586
        %588 = vmatmul.f32.gmra.mxu0 %v522
        %v589 = vpop.f32.mrf.mxu0
        %v590 = vadd.f32 0.0, %v589
        %591 = vmatmul.f32.gmra.mxu0 %v523
        %v592 = vpop.f32.mrf.mxu0
        %v593 = vadd.f32 0.0, %v592
        %594 = vmatmul.f32.gmra.mxu0 %v524
        %v595 = vpop.f32.mrf.mxu0
        %v596 = vadd.f32 0.0, %v595
        %597 = vmatmul.f32.gmra.mxu0 %v525
        %v598 = vpop.f32.mrf.mxu0
        %v599 = vadd.f32 0.0, %v598
        %600 = vmatmul.f32.gmra.mxu0 %v526
        %v601 = vpop.f32.mrf.mxu0
        %v602 = vadd.f32 0.0, %v601
        %603 = vmatmul.f32.gmra.mxu0 %v527
        %v604 = vpop.f32.mrf.mxu0
        %v605 = vadd.f32 0.0, %v604
        %606 = vmatmul.f32.gmra.mxu0 %v528
        %v607 = vpop.f32.mrf.mxu0
        %v608 = vadd.f32 0.0, %v607
        %609 = vdwg.mxu0
        %v610 = vadd.f32 %v497, %v563
        %v611 = vadd.f32 %v498, %v566
        %v612 = vadd.f32 %v499, %v569
        %v613 = vadd.f32 %v500, %v572
        %v614 = vadd.f32 %v501, %v575
        %v615 = vadd.f32 %v502, %v578
        %v616 = vadd.f32 %v503, %v581
        %v617 = vadd.f32 %v504, %v584
        %v618 = vadd.f32 %v505, %v587
        %v619 = vadd.f32 %v506, %v590
        %v620 = vadd.f32 %v507, %v593
        %v621 = vadd.f32 %v508, %v596
        %v622 = vadd.f32 %v509, %v599
        %v623 = vadd.f32 %v510, %v602
        %v624 = vadd.f32 %v511, %v605
        %v625 = vadd.f32 %v512, %v608
        %vm626 = vcmask 162816
        %627 = vst.msk [vmem:[#allocation2] sm:$0xff] %vm626, %v610
        %628 = vst.msk [vmem:[#allocation2 + $0x8] sm:$0xff] %vm626, %v611
        %629 = vst.msk [vmem:[#allocation2 + $0x10] sm:$0xff] %vm626, %v612
        %630 = vst.msk [vmem:[#allocation2 + $0x18] sm:$0xff] %vm626, %v613
        %631 = vst.msk [vmem:[#allocation2 + $0x20] sm:$0xff] %vm626, %v614
        %632 = vst.msk [vmem:[#allocation2 + $0x28] sm:$0xff] %vm626, %v615
        %633 = vst.msk [vmem:[#allocation2 + $0x30] sm:$0xff] %vm626, %v616
        %634 = vst.msk [vmem:[#allocation2 + $0x38] sm:$0xff] %vm626, %v617
        %635 = vst.msk [vmem:[#allocation2 + $0x40] sm:$0xff] %vm626, %v618
        %636 = vst.msk [vmem:[#allocation2 + $0x48] sm:$0xff] %vm626, %v619
        %637 = vst.msk [vmem:[#allocation2 + $0x50] sm:$0xff] %vm626, %v620
        %638 = vst.msk [vmem:[#allocation2 + $0x58] sm:$0xff] %vm626, %v621
        %639 = vst.msk [vmem:[#allocation2 + $0x60] sm:$0xff] %vm626, %v622
        %640 = vst.msk [vmem:[#allocation2 + $0x68] sm:$0xff] %vm626, %v623
        %641 = vst.msk [vmem:[#allocation2 + $0x70] sm:$0xff] %vm626, %v624
        %642 = vst.msk [vmem:[#allocation2 + $0x78] sm:$0xff] %vm626, %v625
        %p643 = scmp.eq.s32.totalorder %s24, 1
        // Predicated region
        $region83: #{_lambda_.14} parent=73 // pred_check
          %p644 = pneg %p643
        $region84: #{_lambda_.14} parent=73 // pred_check_branch
          %646 = sbr.rel (%p644) target = $region86
        $region85: #{_lambda_.14} parent=73 // pred_region
          %v647 = vld [vmem:[%s462] sm:$0xff]
          %v648 = vld [vmem:[%s462 + $0x8] sm:$0xff]
          %v649 = vld [vmem:[%s462 + $0x10] sm:$0xff]
          %v650 = vld [vmem:[%s462 + $0x18] sm:$0xff]
          %v651 = vld [vmem:[%s462 + $0x20] sm:$0xff]
          %v652 = vld [vmem:[%s462 + $0x28] sm:$0xff]
          %v653 = vld [vmem:[%s462 + $0x30] sm:$0xff]
          %v654 = vld [vmem:[%s462 + $0x38] sm:$0xff]
          %v655 = vld [vmem:[%s462 + $0x40] sm:$0xff]
          %v656 = vld [vmem:[%s462 + $0x48] sm:$0xff]
          %v657 = vld [vmem:[%s462 + $0x50] sm:$0xff]
          %v658 = vld [vmem:[%s462 + $0x58] sm:$0xff]
          %v659 = vld [vmem:[%s462 + $0x60] sm:$0xff]
          %v660 = vld [vmem:[%s462 + $0x68] sm:$0xff]
          %v661 = vld [vmem:[%s462 + $0x70] sm:$0xff]
          %v662 = vld [vmem:[%s462 + $0x78] sm:$0xff]
          %v663 = vld [vmem:[#allocation2] sm:$0xff]
          %v664 = vld [vmem:[#allocation2 + $0x8] sm:$0xff]
          %v665 = vld [vmem:[#allocation2 + $0x10] sm:$0xff]
          %v666 = vld [vmem:[#allocation2 + $0x18] sm:$0xff]
          %v667 = vld [vmem:[#allocation2 + $0x20] sm:$0xff]
          %v668 = vld [vmem:[#allocation2 + $0x28] sm:$0xff]
          %v669 = vld [vmem:[#allocation2 + $0x30] sm:$0xff]
          %v670 = vld [vmem:[#allocation2 + $0x38] sm:$0xff]
          %v671 = vld [vmem:[#allocation2 + $0x40] sm:$0xff]
          %v672 = vld [vmem:[#allocation2 + $0x48] sm:$0xff]
          %v673 = vld [vmem:[#allocation2 + $0x50] sm:$0xff]
          %v674 = vld [vmem:[#allocation2 + $0x58] sm:$0xff]
          %v675 = vld [vmem:[#allocation2 + $0x60] sm:$0xff]
          %v676 = vld [vmem:[#allocation2 + $0x68] sm:$0xff]
          %v677 = vld [vmem:[#allocation2 + $0x70] sm:$0xff]
          %v678 = vld [vmem:[#allocation2 + $0x78] sm:$0xff]
          %v679 = vld [vmem:[%s456] sm:$0xff]
          %v680 = vld [vmem:[%s456 + $0x8] sm:$0xff]
          %v681 = vld [vmem:[%s456 + $0x10] sm:$0xff]
          %v682 = vld [vmem:[%s456 + $0x18] sm:$0xff]
          %v683 = vld [vmem:[%s456 + $0x20] sm:$0xff]
          %v684 = vld [vmem:[%s456 + $0x28] sm:$0xff]
          %v685 = vld [vmem:[%s456 + $0x30] sm:$0xff]
          %v686 = vld [vmem:[%s456 + $0x38] sm:$0xff]
          %v687 = vld [vmem:[%s456 + $0x40] sm:$0xff]
          %v688 = vld [vmem:[%s456 + $0x48] sm:$0xff]
          %v689 = vld [vmem:[%s456 + $0x50] sm:$0xff]
          %v690 = vld [vmem:[%s456 + $0x58] sm:$0xff]
          %v691 = vld [vmem:[%s456 + $0x60] sm:$0xff]
          %v692 = vld [vmem:[%s456 + $0x68] sm:$0xff]
          %v693 = vld [vmem:[%s456 + $0x70] sm:$0xff]
          %v694 = vld [vmem:[%s456 + $0x78] sm:$0xff]
          %v695 = vadd.f32 %v663, %v679
          %v696 = vadd.f32 %v664, %v680
          %v697 = vadd.f32 %v665, %v681
          %v698 = vadd.f32 %v666, %v682
          %v699 = vadd.f32 %v667, %v683
          %v700 = vadd.f32 %v668, %v684
          %v701 = vadd.f32 %v669, %v685
          %v702 = vadd.f32 %v670, %v686
          %v703 = vadd.f32 %v671, %v687
          %v704 = vadd.f32 %v672, %v688
          %v705 = vadd.f32 %v673, %v689
          %v706 = vadd.f32 %v674, %v690
          %v707 = vadd.f32 %v675, %v691
          %v708 = vadd.f32 %v676, %v692
          %v709 = vadd.f32 %v677, %v693
          %v710 = vadd.f32 %v678, %v694
          %712 = vset.pattern.permute.xlu0 0
          %713 = vperm.xlu0 %712, %v647
          %v714 = vpop.permute.xlu0 %713
          %717 = vset.pattern.permute.xlu0 0
          %718 = vperm.xlu0 %717, %v648
          %v719 = vpop.permute.xlu0 %718
          %722 = vset.pattern.permute.xlu0 0
          %723 = vperm.xlu0 %722, %v649
          %v724 = vpop.permute.xlu0 %723
          %727 = vset.pattern.permute.xlu0 0
          %728 = vperm.xlu0 %727, %v650
          %v729 = vpop.permute.xlu0 %728
          %732 = vset.pattern.permute.xlu0 0
          %733 = vperm.xlu0 %732, %v651
          %v734 = vpop.permute.xlu0 %733
          %737 = vset.pattern.permute.xlu0 0
          %738 = vperm.xlu0 %737, %v652
          %v739 = vpop.permute.xlu0 %738
          %742 = vset.pattern.permute.xlu0 0
          %743 = vperm.xlu0 %742, %v653
          %v744 = vpop.permute.xlu0 %743
          %747 = vset.pattern.permute.xlu0 0
          %748 = vperm.xlu0 %747, %v654
          %v749 = vpop.permute.xlu0 %748
          %752 = vset.pattern.permute.xlu0 0
          %753 = vperm.xlu0 %752, %v655
          %v754 = vpop.permute.xlu0 %753
          %757 = vset.pattern.permute.xlu0 0
          %758 = vperm.xlu0 %757, %v656
          %v759 = vpop.permute.xlu0 %758
          %762 = vset.pattern.permute.xlu0 0
          %763 = vperm.xlu0 %762, %v657
          %v764 = vpop.permute.xlu0 %763
          %767 = vset.pattern.permute.xlu0 0
          %768 = vperm.xlu0 %767, %v658
          %v769 = vpop.permute.xlu0 %768
          %772 = vset.pattern.permute.xlu0 0
          %773 = vperm.xlu0 %772, %v659
          %v774 = vpop.permute.xlu0 %773
          %777 = vset.pattern.permute.xlu0 0
          %778 = vperm.xlu0 %777, %v660
          %v779 = vpop.permute.xlu0 %778
          %782 = vset.pattern.permute.xlu0 0
          %783 = vperm.xlu0 %782, %v661
          %v784 = vpop.permute.xlu0 %783
          %787 = vset.pattern.permute.xlu0 0
          %788 = vperm.xlu0 %787, %v662
          %v789 = vpop.permute.xlu0 %788
          %v791 = vmul.f32 %v714, %v695
          %v792 = vmul.f32 %v719, %v696
          %v793 = vmul.f32 %v724, %v697
          %v794 = vmul.f32 %v729, %v698
          %v795 = vmul.f32 %v734, %v699
          %v796 = vmul.f32 %v739, %v700
          %v797 = vmul.f32 %v744, %v701
          %v798 = vmul.f32 %v749, %v702
          %v799 = vmul.f32 %v754, %v703
          %v800 = vmul.f32 %v759, %v704
          %v801 = vmul.f32 %v764, %v705
          %v802 = vmul.f32 %v769, %v706
          %v803 = vmul.f32 %v774, %v707
          %v804 = vmul.f32 %v779, %v708
          %v805 = vmul.f32 %v784, %v709
          %v806 = vmul.f32 %v789, %v710
          %v807 = vld [vmem:[%s4] sm:$0x1]
          %v809 = vperm.slane %v807, 0
          %v811 = vadd.f32 %v791, %v809
          %v812 = vadd.f32 %v792, %v809
          %v813 = vadd.f32 %v793, %v809
          %v814 = vadd.f32 %v794, %v809
          %v815 = vadd.f32 %v795, %v809
          %v816 = vadd.f32 %v796, %v809
          %v817 = vadd.f32 %v797, %v809
          %v818 = vadd.f32 %v798, %v809
          %v819 = vadd.f32 %v799, %v809
          %v820 = vadd.f32 %v800, %v809
          %v821 = vadd.f32 %v801, %v809
          %v822 = vadd.f32 %v802, %v809
          %v823 = vadd.f32 %v803, %v809
          %v824 = vadd.f32 %v804, %v809
          %v825 = vadd.f32 %v805, %v809
          %v826 = vadd.f32 %v806, %v809
          %v827 = vmax.f32 %v811, 0.0
          %v828 = vmax.f32 %v812, 0.0
          %v829 = vmax.f32 %v813, 0.0
          %v830 = vmax.f32 %v814, 0.0
          %v831 = vmax.f32 %v815, 0.0
          %v832 = vmax.f32 %v816, 0.0
          %v833 = vmax.f32 %v817, 0.0
          %v834 = vmax.f32 %v818, 0.0
          %v835 = vmax.f32 %v819, 0.0
          %v836 = vmax.f32 %v820, 0.0
          %v837 = vmax.f32 %v821, 0.0
          %v838 = vmax.f32 %v822, 0.0
          %v839 = vmax.f32 %v823, 0.0
          %v840 = vmax.f32 %v824, 0.0
          %v841 = vmax.f32 %v825, 0.0
          %v842 = vmax.f32 %v826, 0.0
          %vm843 = vcmp.gt.f32.partialorder %v647, 0.0
          %vm844 = vcmp.gt.f32.partialorder %v648, 0.0
          %vm845 = vcmp.gt.f32.partialorder %v649, 0.0
          %vm846 = vcmp.gt.f32.partialorder %v650, 0.0
          %vm847 = vcmp.gt.f32.partialorder %v651, 0.0
          %vm848 = vcmp.gt.f32.partialorder %v652, 0.0
          %vm849 = vcmp.gt.f32.partialorder %v653, 0.0
          %vm850 = vcmp.gt.f32.partialorder %v654, 0.0
          %vm851 = vcmp.gt.f32.partialorder %v655, 0.0
          %vm852 = vcmp.gt.f32.partialorder %v656, 0.0
          %vm853 = vcmp.gt.f32.partialorder %v657, 0.0
          %vm854 = vcmp.gt.f32.partialorder %v658, 0.0
          %vm855 = vcmp.gt.f32.partialorder %v659, 0.0
          %vm856 = vcmp.gt.f32.partialorder %v660, 0.0
          %vm857 = vcmp.gt.f32.partialorder %v661, 0.0
          %vm858 = vcmp.gt.f32.partialorder %v662, 0.0
          %v859 = vsel %vm843, 1, 0
          %v860 = vsel %vm844, 1, 0
          %v861 = vsel %vm845, 1, 0
          %v862 = vsel %vm846, 1, 0
          %v863 = vsel %vm847, 1, 0
          %v864 = vsel %vm848, 1, 0
          %v865 = vsel %vm849, 1, 0
          %v866 = vsel %vm850, 1, 0
          %v867 = vsel %vm851, 1, 0
          %v868 = vsel %vm852, 1, 0
          %v869 = vsel %vm853, 1, 0
          %v870 = vsel %vm854, 1, 0
          %v871 = vsel %vm855, 1, 0
          %v872 = vsel %vm856, 1, 0
          %v873 = vsel %vm857, 1, 0
          %v874 = vsel %vm858, 1, 0
          %875 = vset.pattern.permute.xlu0 0
          %876 = vperm.xlu0 %875, %v859
          %v877 = vpop.permute.xlu0 %876
          %878 = vset.pattern.permute.xlu0 0
          %879 = vperm.xlu0 %878, %v860
          %v880 = vpop.permute.xlu0 %879
          %881 = vset.pattern.permute.xlu0 0
          %882 = vperm.xlu0 %881, %v861
          %v883 = vpop.permute.xlu0 %882
          %884 = vset.pattern.permute.xlu0 0
          %885 = vperm.xlu0 %884, %v862
          %v886 = vpop.permute.xlu0 %885
          %887 = vset.pattern.permute.xlu0 0
          %888 = vperm.xlu0 %887, %v863
          %v889 = vpop.permute.xlu0 %888
          %890 = vset.pattern.permute.xlu0 0
          %891 = vperm.xlu0 %890, %v864
          %v892 = vpop.permute.xlu0 %891
          %893 = vset.pattern.permute.xlu0 0
          %894 = vperm.xlu0 %893, %v865
          %v895 = vpop.permute.xlu0 %894
          %896 = vset.pattern.permute.xlu0 0
          %897 = vperm.xlu0 %896, %v866
          %v898 = vpop.permute.xlu0 %897
          %899 = vset.pattern.permute.xlu0 0
          %900 = vperm.xlu0 %899, %v867
          %v901 = vpop.permute.xlu0 %900
          %902 = vset.pattern.permute.xlu0 0
          %903 = vperm.xlu0 %902, %v868
          %v904 = vpop.permute.xlu0 %903
          %905 = vset.pattern.permute.xlu0 0
          %906 = vperm.xlu0 %905, %v869
          %v907 = vpop.permute.xlu0 %906
          %908 = vset.pattern.permute.xlu0 0
          %909 = vperm.xlu0 %908, %v870
          %v910 = vpop.permute.xlu0 %909
          %911 = vset.pattern.permute.xlu0 0
          %912 = vperm.xlu0 %911, %v871
          %v913 = vpop.permute.xlu0 %912
          %914 = vset.pattern.permute.xlu0 0
          %915 = vperm.xlu0 %914, %v872
          %v916 = vpop.permute.xlu0 %915
          %917 = vset.pattern.permute.xlu0 0
          %918 = vperm.xlu0 %917, %v873
          %v919 = vpop.permute.xlu0 %918
          %920 = vset.pattern.permute.xlu0 0
          %921 = vperm.xlu0 %920, %v874
          %v922 = vpop.permute.xlu0 %921
          %vm923 = vcmp.eq.s32.totalorder %v877, 1
          %vm924 = vcmp.eq.s32.totalorder %v880, 1
          %vm925 = vcmp.eq.s32.totalorder %v883, 1
          %vm926 = vcmp.eq.s32.totalorder %v886, 1
          %vm927 = vcmp.eq.s32.totalorder %v889, 1
          %vm928 = vcmp.eq.s32.totalorder %v892, 1
          %vm929 = vcmp.eq.s32.totalorder %v895, 1
          %vm930 = vcmp.eq.s32.totalorder %v898, 1
          %vm931 = vcmp.eq.s32.totalorder %v901, 1
          %vm932 = vcmp.eq.s32.totalorder %v904, 1
          %vm933 = vcmp.eq.s32.totalorder %v907, 1
          %vm934 = vcmp.eq.s32.totalorder %v910, 1
          %vm935 = vcmp.eq.s32.totalorder %v913, 1
          %vm936 = vcmp.eq.s32.totalorder %v916, 1
          %vm937 = vcmp.eq.s32.totalorder %v919, 1
          %vm938 = vcmp.eq.s32.totalorder %v922, 1
          %v939 = vsel %vm923, %v827, 0.0
          %v940 = vsel %vm924, %v828, 0.0
          %v941 = vsel %vm925, %v829, 0.0
          %v942 = vsel %vm926, %v830, 0.0
          %v943 = vsel %vm927, %v831, 0.0
          %v944 = vsel %vm928, %v832, 0.0
          %v945 = vsel %vm929, %v833, 0.0
          %v946 = vsel %vm930, %v834, 0.0
          %v947 = vsel %vm931, %v835, 0.0
          %v948 = vsel %vm932, %v836, 0.0
          %v949 = vsel %vm933, %v837, 0.0
          %v950 = vsel %vm934, %v838, 0.0
          %v951 = vsel %vm935, %v839, 0.0
          %v952 = vsel %vm936, %v840, 0.0
          %v953 = vsel %vm937, %v841, 0.0
          %v954 = vsel %vm938, %v842, 0.0
          %955 = vst.msk [vmem:[%s468] sm:$0xff] %vm626, %v939
          %956 = vst.msk [vmem:[%s468 + $0x8] sm:$0xff] %vm626, %v940
          %957 = vst.msk [vmem:[%s468 + $0x10] sm:$0xff] %vm626, %v941
          %958 = vst.msk [vmem:[%s468 + $0x18] sm:$0xff] %vm626, %v942
          %959 = vst.msk [vmem:[%s468 + $0x20] sm:$0xff] %vm626, %v943
          %960 = vst.msk [vmem:[%s468 + $0x28] sm:$0xff] %vm626, %v944
          %961 = vst.msk [vmem:[%s468 + $0x30] sm:$0xff] %vm626, %v945
          %962 = vst.msk [vmem:[%s468 + $0x38] sm:$0xff] %vm626, %v946
          %963 = vst.msk [vmem:[%s468 + $0x40] sm:$0xff] %vm626, %v947
          %964 = vst.msk [vmem:[%s468 + $0x48] sm:$0xff] %vm626, %v948
          %965 = vst.msk [vmem:[%s468 + $0x50] sm:$0xff] %vm626, %v949
          %966 = vst.msk [vmem:[%s468 + $0x58] sm:$0xff] %vm626, %v950
          %967 = vst.msk [vmem:[%s468 + $0x60] sm:$0xff] %vm626, %v951
          %968 = vst.msk [vmem:[%s468 + $0x68] sm:$0xff] %vm626, %v952
          %969 = vst.msk [vmem:[%s468 + $0x70] sm:$0xff] %vm626, %v953
          %970 = vst.msk [vmem:[%s468 + $0x78] sm:$0xff] %vm626, %v954
          %v971 = vsel %vm626, %v939, 0.0
          %v972 = vsel %vm626, %v940, 0.0
          %v973 = vadd.f32 %v971, %v972
          %v974 = vsel %vm626, %v941, 0.0
          %v975 = vadd.f32 %v973, %v974
          %v976 = vsel %vm626, %v942, 0.0
          %v977 = vadd.f32 %v975, %v976
          %v978 = vsel %vm626, %v943, 0.0
          %v979 = vadd.f32 %v977, %v978
          %v980 = vsel %vm626, %v944, 0.0
          %v981 = vadd.f32 %v979, %v980
          %v982 = vsel %vm626, %v945, 0.0
          %v983 = vadd.f32 %v981, %v982
          %v984 = vsel %vm626, %v946, 0.0
          %v985 = vadd.f32 %v983, %v984
          %v986 = vsel %vm626, %v947, 0.0
          %v987 = vadd.f32 %v985, %v986
          %v988 = vsel %vm626, %v948, 0.0
          %v989 = vadd.f32 %v987, %v988
          %v990 = vsel %vm626, %v949, 0.0
          %v991 = vadd.f32 %v989, %v990
          %v992 = vsel %vm626, %v950, 0.0
          %v993 = vadd.f32 %v991, %v992
          %v994 = vsel %vm626, %v951, 0.0
          %v995 = vadd.f32 %v993, %v994
          %v996 = vsel %vm626, %v952, 0.0
          %v997 = vadd.f32 %v995, %v996
          %v998 = vsel %vm626, %v953, 0.0
          %v999 = vadd.f32 %v997, %v998
          %v1000 = vsel %vm626, %v954, 0.0
          %v1001 = vadd.f32 %v999, %v1000
          %v1002 = vrot.slane %v1001, 4
          %v1003 = vadd.f32 %v1001, %v1002
          %v1004 = vrot.slane %v1003, 2
          %v1005 = vadd.f32 %v1003, %v1004
          %v1006 = vrot.slane %v1005, 1
          %v1007 = vadd.f32 %v1005, %v1006
          %vm1008 = vcmask 155648
          %1009 = vst.msk [vmem:[%s472] sm:$0x1] %vm1008, %v1007
          %v1010 = vmul.f32 %v939, %v939
          %v1011 = vmul.f32 %v940, %v940
          %v1012 = vmul.f32 %v941, %v941
          %v1013 = vmul.f32 %v942, %v942
          %v1014 = vmul.f32 %v943, %v943
          %v1015 = vmul.f32 %v944, %v944
          %v1016 = vmul.f32 %v945, %v945
          %v1017 = vmul.f32 %v946, %v946
          %v1018 = vmul.f32 %v947, %v947
          %v1019 = vmul.f32 %v948, %v948
          %v1020 = vmul.f32 %v949, %v949
          %v1021 = vmul.f32 %v950, %v950
          %v1022 = vmul.f32 %v951, %v951
          %v1023 = vmul.f32 %v952, %v952
          %v1024 = vmul.f32 %v953, %v953
          %v1025 = vmul.f32 %v954, %v954
          %v1026 = vsel %vm626, %v1010, 0.0
          %v1027 = vsel %vm626, %v1011, 0.0
          %v1028 = vadd.f32 %v1026, %v1027
          %v1029 = vsel %vm626, %v1012, 0.0
          %v1030 = vadd.f32 %v1028, %v1029
          %v1031 = vsel %vm626, %v1013, 0.0
          %v1032 = vadd.f32 %v1030, %v1031
          %v1033 = vsel %vm626, %v1014, 0.0
          %v1034 = vadd.f32 %v1032, %v1033
          %v1035 = vsel %vm626, %v1015, 0.0
          %v1036 = vadd.f32 %v1034, %v1035
          %v1037 = vsel %vm626, %v1016, 0.0
          %v1038 = vadd.f32 %v1036, %v1037
          %v1039 = vsel %vm626, %v1017, 0.0
          %v1040 = vadd.f32 %v1038, %v1039
          %v1041 = vsel %vm626, %v1018, 0.0
          %v1042 = vadd.f32 %v1040, %v1041
          %v1043 = vsel %vm626, %v1019, 0.0
          %v1044 = vadd.f32 %v1042, %v1043
          %v1045 = vsel %vm626, %v1020, 0.0
          %v1046 = vadd.f32 %v1044, %v1045
          %v1047 = vsel %vm626, %v1021, 0.0
          %v1048 = vadd.f32 %v1046, %v1047
          %v1049 = vsel %vm626, %v1022, 0.0
          %v1050 = vadd.f32 %v1048, %v1049
          %v1051 = vsel %vm626, %v1023, 0.0
          %v1052 = vadd.f32 %v1050, %v1051
          %v1053 = vsel %vm626, %v1024, 0.0
          %v1054 = vadd.f32 %v1052, %v1053
          %v1055 = vsel %vm626, %v1025, 0.0
          %v1056 = vadd.f32 %v1054, %v1055
          %v1057 = vrot.slane %v1056, 4
          %v1058 = vadd.f32 %v1056, %v1057
          %v1059 = vrot.slane %v1058, 2
          %v1060 = vadd.f32 %v1058, %v1059
          %v1061 = vrot.slane %v1060, 1
          %v1062 = vadd.f32 %v1060, %v1061
          %1063 = vst.msk [vmem:[%s475] sm:$0x1] %vm1008, %v1062
        $region86: #{_lambda_.14} parent=73 // pred_fallthru
          _
        %s1064 = smul.u32 16, %s23
        %p1065 = scmp.lt.s32.totalorder %s1064, 31
        %s1066 = scalar_select %p1065, %s1064, 31
        %s1067 = smul.addr %s1066, 8
        %s1068 = scalar_lea.vmem %s5, %s1067
        %p1069 = scmp.lt.s32.totalorder %s23, 1
        %s1070 = scalar_select %p1069, %s23, 1
        %s1071 = scalar_lea.vmem %s6, %s1070
        %p1072 = scmp.lt.s32.totalorder %s23, 1
        %s1073 = scalar_select %p1072, %s23, 1
        %s1074 = scalar_lea.vmem %s7, %s1073
        // Predicated region
        $region87: #{_lambda_.14} parent=73 // pred_check
          %p1075 = pneg %p176
        $region88: #{_lambda_.14} parent=73 // pred_check_branch
          %1077 = sbr.rel (%p1075) target = $region90
        $region89: #{_lambda_.14} parent=73 // pred_region
          %s1078 = smul.u32 16, %s23
        $region90: #{_lambda_.14} parent=73 // pred_fallthru
          _
        // Predicated region
        $region91: #{_lambda_.14} parent=73 // pred_check
          %p1079 = pneg %p202
        $region92: #{_lambda_.14} parent=73 // pred_check_branch
          %1081 = sbr.rel (%p1079) target = $region94
        $region93: #{_lambda_.14} parent=73 // pred_region
          _
        $region94: #{_lambda_.14} parent=73 // pred_fallthru
          _
        // Predicated region
        $region95: #{_lambda_.14} parent=73 // pred_check
          %p1082 = pneg %p228
        $region96: #{_lambda_.14} parent=73 // pred_check_branch
          %1084 = sbr.rel (%p1082) target = $region98
        $region97: #{_lambda_.14} parent=73 // pred_region
          _
        $region98: #{_lambda_.14} parent=73 // pred_fallthru
          _
      $region74: #{_lambda_.14} parent=5 // pred_fallthru
        _
      %p1085 = scmp.le.s32.totalorder 2, %s14
      // Predicated region
      $region99: #{_lambda_.14} parent=5 // pred_check
        %p1086 = pneg %p1085
      $region100: #{_lambda_.14} parent=5 // pred_check_branch
        %1088 = sbr.rel (%p1086) target = $region102
      $region101: #{_lambda_.14} parent=5 // pred_region
        %s1089 = ssub.s32 %s14, 2
        // Predicated region
        $region103: #{_lambda_.14} parent=101 // pred_check
          %p1090 = pneg %p182
        $region104: #{_lambda_.14} parent=101 // pred_check_branch
          %1092 = sbr.rel (%p1090) target = $region106
        $region105: #{_lambda_.14} parent=101 // pred_region
          %s1093 = smul.u32 16, %s25
          %p1094 = scmp.lt.s32.totalorder %s1093, 31
          %s1095 = scalar_select %p1094, %s1093, 31
          %s1096 = smul.addr %s1095, 8
          %s1097 = scalar_lea.vmem %s5, %s1096
        $region106: #{_lambda_.14} parent=101 // pred_fallthru
          _
        // Predicated region
        $region107: #{_lambda_.14} parent=101 // pred_check
          %p1098 = pneg %p208
        $region108: #{_lambda_.14} parent=101 // pred_check_branch
          %1100 = sbr.rel (%p1098) target = $region110
        $region109: #{_lambda_.14} parent=101 // pred_region
          %p1101 = scmp.lt.s32.totalorder %s25, 1
          %s1102 = scalar_select %p1101, %s25, 1
          %s1103 = scalar_lea.vmem %s6, %s1102
        $region110: #{_lambda_.14} parent=101 // pred_fallthru
          _
        // Predicated region
        $region111: #{_lambda_.14} parent=101 // pred_check
          %p1104 = pneg %p234
        $region112: #{_lambda_.14} parent=101 // pred_check_branch
          %1106 = sbr.rel (%p1104) target = $region114
        $region113: #{_lambda_.14} parent=101 // pred_region
          %p1107 = scmp.lt.s32.totalorder %s25, 1
          %s1108 = scalar_select %p1107, %s25, 1
          %s1109 = scalar_lea.vmem %s7, %s1108
        $region114: #{_lambda_.14} parent=101 // pred_fallthru
          _
      $region102: #{_lambda_.14} parent=5 // pred_fallthru
        _
    $region6: #{_lambda_.14} parent=1 // loop_footer
      %s18 = sadd.s32 1, %s14
    $region7: #{_lambda_.14} parent=1 // loop_footer_branch
      %13 = sbr.rel target = $region3
    $region8: #{_lambda_.14} parent=1 // loop_exit
      _

// kernel: _lambda_.16
$region0: #{_lambda_.16}
  #allocation0 [shape = 'u32[]', space=smem, size = 0x4, offset = 0x4, fixed_abs, tag = 'smem constant byte address 0x4 - core index']
  #allocation1 [shape = 'u32[72,128]{1,0:T(1,128)}', space=vmem, size = 0x9000, scoped, tag = 'internal scratch']
  #allocation2 [shape = 'f32[128,14]{1,0:T(8,128)}', space=vmem, size = 0x10000, scoped, tag = 'scratch operand']
  %s0 = inlined_call_operand.vmem [shape: f32[256,256], index: 0, kind: input, shape index: {}]
  %s1 = inlined_call_operand.vmem [shape: f32[256,14], index: 1, kind: input, shape index: {}, may-alias: {1,2}]
  %s2 = inlined_call_operand.vmem [shape: f32[256,14], index: 2, kind: input, shape index: {}, may-alias: {1,2}]
  %s3 = inlined_call_operand.vmem [shape: f32[256,1], index: 3, kind: input, shape index: {}]
  %s4 = inlined_call_operand.vmem [shape: f32[1,14], index: 4, kind: input, shape index: {}]
  %s5 = inlined_call_operand.vmem [shape: f32[256,14], index: 5, kind: output, shape index: {0}]
  %s6 = inlined_call_operand.vmem [shape: f32[2,1,14], index: 6, kind: output, shape index: {1}]
  %s7 = inlined_call_operand.vmem [shape: f32[2,1,14], index: 7, kind: output, shape index: {2}]
  %8 = xla_tuple %s5, %s6, %s7
  %s9 = sld [smem:[#allocation0]]
  $region115: #{_lambda_.16} parent=0
    _
  %s11 = ssub.s32 1, %s9
  %s12 = scalar_select 0, %s11, %s9
  $region1: #{_lambda_.16} parent=0
    #allocation3 [shape = 'u8[131072]{0}', space=vmem, size = 0x20000, scoped, tag = 'input window, operand 0']
    loop: start=0, step=1, limit=6
    $region2: #{_lambda_.16} parent=1 // loop_pre_header
      _
    $region3: #{_lambda_.16} parent=1 // loop_header
      %s14 = sphi 0, %s18
      %p15 = scmp.ge.s32.totalorder %s14, 6
      %s21 = sphi 0, %s33
      %s22 = sphi 0, %s29
      %s23 = sphi 0, %s21
      %s24 = sphi 0, %s22
      %s25 = sphi 0, %s23
      %s26 = sphi 0, %s24
      %s38 = sphi 0, %s40
      %s41 = sphi 0, %s38
      %s42 = sphi 0, %s41
      %s58 = sphi 0, %s42
      %s64 = sphi 0, %s66
      %s67 = sphi 0, %s64
      %s68 = sphi 0, %s67
      %s84 = sphi 0, %s68
      %s90 = sphi 0, %s92
      %s93 = sphi 0, %s90
      %s94 = sphi 0, %s93
      %s110 = sphi 0, %s94
      %s116 = sphi 0, %s118
      %s119 = sphi 0, %s116
      %s120 = sphi 0, %s119
      %s136 = sphi 0, %s120
      %s140 = sphi 0, %s140
      %s142 = sphi 0, %s140
      %s143 = sphi 0, %s142
      %s157 = sphi 0, %s143
      %s163 = sphi 0, %s165
      %s166 = sphi 0, %s163
      %s167 = sphi 0, %s166
      %s183 = sphi 0, %s167
      %s189 = sphi 0, %s191
      %s192 = sphi 0, %s189
      %s193 = sphi 0, %s192
      %s209 = sphi 0, %s193
      %s215 = sphi 0, %s217
      %s218 = sphi 0, %s215
      %s219 = sphi 0, %s218
      %s235 = sphi 0, %s219
    $region4: #{_lambda_.16} parent=1 // loop_header_branch
      %17 = sbr.rel (%p15) target = $region8
    $region5: #{_lambda_.16} parent=1 // loop_body
      %s19 = ssub.s32 %s14, 1
      %s20 = ssub.s32 %s14, 2
      %s27 = sadd.s32 1, %s22
      %p28 = scmp.ge.s32.totalorder %s27, 2
      %s29 = scalar_select %p28, 0, %s27
      %s30 = sadd.s32 1, %s21
      %s31 = scalar_select %p28, %s30, %s21
      %p32 = scmp.ge.s32.totalorder %s31, 2
      %s33 = scalar_select %p32, 0, %s31
      %s34 = ssub.s32 %s21, %s33
      %s35 = ssub.s32 %s22, %s29
      %s36 = sor.u32 %s34, %s35
      %p37 = scmp.eq.s32.totalorder %s36, 0
      %s39 = sadd.s32 %s38, 1
      %s40 = scalar_select %p37, %s38, %s39
      %p43 = pneg %p37
      %p44 = scmp.eq.s32.totalorder %s14, 3
      %p45 = por %p43, %p44
      %p46 = scmp.ne.s32.totalorder %s38, %s41
      %p47 = scmp.eq.s32.totalorder %s14, 0
      %p48 = por %p46, %p47
      %p49 = scmp.ne.s32.totalorder %s38, %s41
      %p50 = scmp.eq.s32.totalorder %s19, 3
      %p51 = por %p49, %p50
      %p52 = scmp.ne.s32.totalorder %s41, %s42
      %p53 = scmp.eq.s32.totalorder %s19, 0
      %p54 = por %p52, %p53
      %p55 = scmp.ne.s32.totalorder %s41, %s42
      %p56 = scmp.eq.s32.totalorder %s20, 3
      %p57 = por %p55, %p56
      %p59 = scmp.ne.s32.totalorder %s42, %s58
      %p60 = scmp.eq.s32.totalorder %s20, 0
      %p61 = por %p59, %p60
      %s62 = ssub.s32 %s22, %s29
      %p63 = scmp.eq.s32.totalorder %s62, 0
      %s65 = sadd.s32 %s64, 1
      %s66 = scalar_select %p63, %s64, %s65
      %p69 = pneg %p63
      %p70 = scmp.eq.s32.totalorder %s14, 3
      %p71 = por %p69, %p70
      %p72 = scmp.ne.s32.totalorder %s64, %s67
      %p73 = scmp.eq.s32.totalorder %s14, 0
      %p74 = por %p72, %p73
      %p75 = scmp.ne.s32.totalorder %s64, %s67
      %p76 = scmp.eq.s32.totalorder %s19, 3
      %p77 = por %p75, %p76
      %p78 = scmp.ne.s32.totalorder %s67, %s68
      %p79 = scmp.eq.s32.totalorder %s19, 0
      %p80 = por %p78, %p79
      %p81 = scmp.ne.s32.totalorder %s67, %s68
      %p82 = scmp.eq.s32.totalorder %s20, 3
      %p83 = por %p81, %p82
      %p85 = scmp.ne.s32.totalorder %s68, %s84
      %p86 = scmp.eq.s32.totalorder %s20, 0
      %p87 = por %p85, %p86
      %s88 = ssub.s32 %s21, %s33
      %p89 = scmp.eq.s32.totalorder %s88, 0
      %s91 = sadd.s32 %s90, 1
      %s92 = scalar_select %p89, %s90, %s91
      %p95 = pneg %p89
      %p96 = scmp.eq.s32.totalorder %s14, 3
      %p97 = por %p95, %p96
      %p98 = scmp.ne.s32.totalorder %s90, %s93
      %p99 = scmp.eq.s32.totalorder %s14, 0
      %p100 = por %p98, %p99
      %p101 = scmp.ne.s32.totalorder %s90, %s93
      %p102 = scmp.eq.s32.totalorder %s19, 3
      %p103 = por %p101, %p102
      %p104 = scmp.ne.s32.totalorder %s93, %s94
      %p105 = scmp.eq.s32.totalorder %s19, 0
      %p106 = por %p104, %p105
      %p107 = scmp.ne.s32.totalorder %s93, %s94
      %p108 = scmp.eq.s32.totalorder %s20, 3
      %p109 = por %p107, %p108
      %p111 = scmp.ne.s32.totalorder %s94, %s110
      %p112 = scmp.eq.s32.totalorder %s20, 0
      %p113 = por %p111, %p112
      %s114 = ssub.s32 %s21, %s33
      %p115 = scmp.eq.s32.totalorder %s114, 0
      %s117 = sadd.s32 %s116, 1
      %s118 = scalar_select %p115, %s116, %s117
      %p121 = pneg %p115
      %p122 = scmp.eq.s32.totalorder %s14, 3
      %p123 = por %p121, %p122
      %p124 = scmp.ne.s32.totalorder %s116, %s119
      %p125 = scmp.eq.s32.totalorder %s14, 0
      %p126 = por %p124, %p125
      %p127 = scmp.ne.s32.totalorder %s116, %s119
      %p128 = scmp.eq.s32.totalorder %s19, 3
      %p129 = por %p127, %p128
      %p130 = scmp.ne.s32.totalorder %s119, %s120
      %p131 = scmp.eq.s32.totalorder %s19, 0
      %p132 = por %p130, %p131
      %p133 = scmp.ne.s32.totalorder %s119, %s120
      %p134 = scmp.eq.s32.totalorder %s20, 3
      %p135 = por %p133, %p134
      %p137 = scmp.ne.s32.totalorder %s120, %s136
      %p138 = scmp.eq.s32.totalorder %s20, 0
      %p139 = por %p137, %p138
      %s141 = sadd.s32 %s140, 1
      %p144 = scmp.eq.s32.totalorder %s14, 3
      %p145 = scmp.ne.s32.totalorder %s140, %s142
      %p146 = scmp.eq.s32.totalorder %s14, 0
      %p147 = por %p145, %p146
      %p148 = scmp.ne.s32.totalorder %s140, %s142
      %p149 = scmp.eq.s32.totalorder %s19, 3
      %p150 = por %p148, %p149
      %p151 = scmp.ne.s32.totalorder %s142, %s143
      %p152 = scmp.eq.s32.totalorder %s19, 0
      %p153 = por %p151, %p152
      %p154 = scmp.ne.s32.totalorder %s142, %s143
      %p155 = scmp.eq.s32.totalorder %s20, 3
      %p156 = por %p154, %p155
      %p158 = scmp.ne.s32.totalorder %s143, %s157
      %p159 = scmp.eq.s32.totalorder %s20, 0
      %p160 = por %p158, %p159
      %s161 = ssub.s32 %s21, %s33
      %p162 = scmp.eq.s32.totalorder %s161, 0
      %s164 = sadd.s32 %s163, 1
      %s165 = scalar_select %p162, %s163, %s164
      %p168 = pneg %p162
      %p169 = scmp.eq.s32.totalorder %s14, 3
      %p170 = por %p168, %p169
      %p171 = scmp.ne.s32.totalorder %s163, %s166
      %p172 = scmp.eq.s32.totalorder %s14, 0
      %p173 = por %p171, %p172
      %p174 = scmp.ne.s32.totalorder %s163, %s166
      %p175 = scmp.eq.s32.totalorder %s19, 3
      %p176 = por %p174, %p175
      %p177 = scmp.ne.s32.totalorder %s166, %s167
      %p178 = scmp.eq.s32.totalorder %s19, 0
      %p179 = por %p177, %p178
      %p180 = scmp.ne.s32.totalorder %s166, %s167
      %p181 = scmp.eq.s32.totalorder %s20, 3
      %p182 = por %p180, %p181
      %p184 = scmp.ne.s32.totalorder %s167, %s183
      %p185 = scmp.eq.s32.totalorder %s20, 0
      %p186 = por %p184, %p185
      %s187 = ssub.s32 %s21, %s33
      %p188 = scmp.eq.s32.totalorder %s187, 0
      %s190 = sadd.s32 %s189, 1
      %s191 = scalar_select %p188, %s189, %s190
      %p194 = pneg %p188
      %p195 = scmp.eq.s32.totalorder %s14, 3
      %p196 = por %p194, %p195
      %p197 = scmp.ne.s32.totalorder %s189, %s192
      %p198 = scmp.eq.s32.totalorder %s14, 0
      %p199 = por %p197, %p198
      %p200 = scmp.ne.s32.totalorder %s189, %s192
      %p201 = scmp.eq.s32.totalorder %s19, 3
      %p202 = por %p200, %p201
      %p203 = scmp.ne.s32.totalorder %s192, %s193
      %p204 = scmp.eq.s32.totalorder %s19, 0
      %p205 = por %p203, %p204
      %p206 = scmp.ne.s32.totalorder %s192, %s193
      %p207 = scmp.eq.s32.totalorder %s20, 3
      %p208 = por %p206, %p207
      %p210 = scmp.ne.s32.totalorder %s193, %s209
      %p211 = scmp.eq.s32.totalorder %s20, 0
      %p212 = por %p210, %p211
      %s213 = ssub.s32 %s21, %s33
      %p214 = scmp.eq.s32.totalorder %s213, 0
      %s216 = sadd.s32 %s215, 1
      %s217 = scalar_select %p214, %s215, %s216
      %p220 = pneg %p214
      %p221 = scmp.eq.s32.totalorder %s14, 3
      %p222 = por %p220, %p221
      %p223 = scmp.ne.s32.totalorder %s215, %s218
      %p224 = scmp.eq.s32.totalorder %s14, 0
      %p225 = por %p223, %p224
      %p226 = scmp.ne.s32.totalorder %s215, %s218
      %p227 = scmp.eq.s32.totalorder %s19, 3
      %p228 = por %p226, %p227
      %p229 = scmp.ne.s32.totalorder %s218, %s219
      %p230 = scmp.eq.s32.totalorder %s19, 0
      %p231 = por %p229, %p230
      %p232 = scmp.ne.s32.totalorder %s218, %s219
      %p233 = scmp.eq.s32.totalorder %s20, 3
      %p234 = por %p232, %p233
      %p236 = scmp.ne.s32.totalorder %s219, %s235
      %p237 = scmp.eq.s32.totalorder %s20, 0
      %p238 = por %p236, %p237
      %p239 = scmp.le.s32.totalorder 1, %s14
      %p240 = scmp.lt.s32.totalorder %s14, 5
      %p241 = pnand %p239, %p240
      %p242 = pneg %p241
      // Predicated region
      $region9: #{_lambda_.16} parent=5 // pred_check
        _
      $region10: #{_lambda_.16} parent=5 // pred_check_branch
        %244 = sbr.rel (%p241) target = $region12
      $region11: #{_lambda_.16} parent=5 // pred_region
        %s245 = ssub.s32 %s14, 1
        // Predicated region
        $region13: #{_lambda_.16} parent=11 // pred_check
          %p246 = pneg %p153
        $region14: #{_lambda_.16} parent=11 // pred_check_branch
          %248 = sbr.rel (%p246) target = $region16
        $region15: #{_lambda_.16} parent=11 // pred_region
          _
        $region16: #{_lambda_.16} parent=11 // pred_fallthru
          _
      $region12: #{_lambda_.16} parent=5 // pred_fallthru
        _
      %p249 = scmp.lt.s32.totalorder %s14, 4
      // Predicated region
      $region17: #{_lambda_.16} parent=5 // pred_check
        %p250 = pneg %p249
      $region18: #{_lambda_.16} parent=5 // pred_check_branch
        %252 = sbr.rel (%p250) target = $region20
      $region19: #{_lambda_.16} parent=5 // pred_region
        // Predicated region
        $region21: #{_lambda_.16} parent=19 // pred_check
          %p253 = pneg %p48
        $region22: #{_lambda_.16} parent=19 // pred_check_branch
          %255 = sbr.rel (%p253) target = $region24
        $region23: #{_lambda_.16} parent=19 // pred_region
          %s256 = sand.u32 %s38, 1
          %s257 = sand.u32 %s38, 1
          %s258 = smul.addr %s257, 128
          %s259 = scalar_lea.vmem [#allocation3], %s258
          %s260 = smul.u32 16, %s21
          %s261 = smul.addr %s260, 2
          %s262 = sadd.s32 %s22, %s261
          %s263 = smul.addr %s262, 8
          %s264 = scalar_lea.vmem %s0, %s263
          // Predicated region
          $region25: #{_lambda_.16} parent=23 // pred_check
            _
          $region26: #{_lambda_.16} parent=23 // pred_check_branch
            %266 = sbr.rel (0) target = $region28
          $region27: #{_lambda_.16} parent=23 // pred_region
            // Predicated region
            $region29: #{_lambda_.16} parent=27 // pred_check
              _
            $region30: #{_lambda_.16} parent=27 // pred_check_branch
              %268 = sbr.rel (0) target = $region32
            $region31: #{_lambda_.16} parent=27 // pred_region
              // Predicated region
              $region44: #{_lambda_.16} parent=31 // pred_check
                _
              $region45: #{_lambda_.16} parent=31 // pred_check_branch
                %314 = sbr.rel (0) target = $region47
              $region46: #{_lambda_.16} parent=31 // pred_region
                loop: start=0, step=1, limit=1
                $region48: #{_lambda_.16} parent=46 // loop_pre_header
                  _
                $region49: #{_lambda_.16} parent=46 // loop_header
                  %s316 = sphi 0, %s320
                  %p317 = scmp.ge.s32.totalorder %s316, 1
                  %s321 = sphi %s264, %s264
                  %s322 = sphi %s259, %s259
                $region50: #{_lambda_.16} parent=46 // loop_header_branch
                  %319 = sbr.rel (%p317) target = $region54
                $region51: #{_lambda_.16} parent=46 // loop_body
                  %v323 = vld [vmem:[%s321] sm:$0xff]
                  %324 = vst [vmem:[%s322] sm:$0xff] %v323
                  %v325 = vld [vmem:[%s321 + $0x10] sm:$0xff]
                  %326 = vst [vmem:[%s322 + $0x8] sm:$0xff] %v325
                  %v327 = vld [vmem:[%s321 + $0x20] sm:$0xff]
                  %328 = vst [vmem:[%s322 + $0x10] sm:$0xff] %v327
                  %v329 = vld [vmem:[%s321 + $0x30] sm:$0xff]
                  %330 = vst [vmem:[%s322 + $0x18] sm:$0xff] %v329
                  %v331 = vld [vmem:[%s321 + $0x40] sm:$0xff]
                  %332 = vst [vmem:[%s322 + $0x20] sm:$0xff] %v331
                  %v333 = vld [vmem:[%s321 + $0x50] sm:$0xff]
                  %334 = vst [vmem:[%s322 + $0x28] sm:$0xff] %v333
                  %v335 = vld [vmem:[%s321 + $0x60] sm:$0xff]
                  %336 = vst [vmem:[%s322 + $0x30] sm:$0xff] %v335
                  %v337 = vld [vmem:[%s321 + $0x70] sm:$0xff]
                  %338 = vst [vmem:[%s322 + $0x38] sm:$0xff] %v337
                  %v339 = vld [vmem:[%s321 + $0x80] sm:$0xff]
                  %340 = vst [vmem:[%s322 + $0x40] sm:$0xff] %v339
                  %v341 = vld [vmem:[%s321 + $0x90] sm:$0xff]
                  %342 = vst [vmem:[%s322 + $0x48] sm:$0xff] %v341
                  %v343 = vld [vmem:[%s321 + $0xa0] sm:$0xff]
                  %344 = vst [vmem:[%s322 + $0x50] sm:$0xff] %v343
                  %v345 = vld [vmem:[%s321 + $0xb0] sm:$0xff]
                  %346 = vst [vmem:[%s322 + $0x58] sm:$0xff] %v345
                  %v347 = vld [vmem:[%s321 + $0xc0] sm:$0xff]
                  %348 = vst [vmem:[%s322 + $0x60] sm:$0xff] %v347
                  %v349 = vld [vmem:[%s321 + $0xd0] sm:$0xff]
                  %350 = vst [vmem:[%s322 + $0x68] sm:$0xff] %v349
                  %v351 = vld [vmem:[%s321 + $0xe0] sm:$0xff]
                  %352 = vst [vmem:[%s322 + $0x70] sm:$0xff] %v351
                  %v353 = vld [vmem:[%s321 + $0xf0] sm:$0xff]
                  %354 = vst [vmem:[%s322 + $0x78] sm:$0xff] %v353
                $region52: #{_lambda_.16} parent=46 // loop_footer
                  %s320 = sadd.s32 1, %s316
                $region53: #{_lambda_.16} parent=46 // loop_footer_branch
                  %315 = sbr.rel target = $region49
                $region54: #{_lambda_.16} parent=46 // loop_exit
                  _
              $region47: #{_lambda_.16} parent=31 // pred_fallthru
                _
              // Predicated region
              $region55: #{_lambda_.16} parent=31 // pred_check
                _
              $region56: #{_lambda_.16} parent=31 // pred_check_branch
                %356 = sbr.rel target = $region58
              $region57: #{_lambda_.16} parent=31 // pred_region
                _
              $region58: #{_lambda_.16} parent=31 // pred_fallthru
                _
            $region32: #{_lambda_.16} parent=27 // pred_fallthru
              _
            // Predicated region
            $region33: #{_lambda_.16} parent=27 // pred_check
              _
            $region34: #{_lambda_.16} parent=27 // pred_check_branch
              %270 = sbr.rel target = $region36
            $region35: #{_lambda_.16} parent=27 // pred_region
              %s272 = ssub.s32 256, 1
              loop: start=0, step=1, limit=1
              $region37: #{_lambda_.16} parent=35 // loop_pre_header
                _
              $region38: #{_lambda_.16} parent=35 // loop_header
                %s274 = sphi 0, %s278
                %p275 = scmp.ge.s32.totalorder %s274, 1
                %s279 = sphi %s264, %s264
                %s280 = sphi %s259, %s259
              $region39: #{_lambda_.16} parent=35 // loop_header_branch
                %277 = sbr.rel (%p275) target = $region43
              $region40: #{_lambda_.16} parent=35 // loop_body
                %v281 = vld [vmem:[%s279] sm:%s272]
                %282 = vst [vmem:[%s280] sm:%s272] %v281
                %v283 = vld [vmem:[%s279 + $0x10] sm:%s272]
                %284 = vst [vmem:[%s280 + $0x8] sm:%s272] %v283
                %v285 = vld [vmem:[%s279 + $0x20] sm:%s272]
                %286 = vst [vmem:[%s280 + $0x10] sm:%s272] %v285
                %v287 = vld [vmem:[%s279 + $0x30] sm:%s272]
                %288 = vst [vmem:[%s280 + $0x18] sm:%s272] %v287
                %v289 = vld [vmem:[%s279 + $0x40] sm:%s272]
                %290 = vst [vmem:[%s280 + $0x20] sm:%s272] %v289
                %v291 = vld [vmem:[%s279 + $0x50] sm:%s272]
                %292 = vst [vmem:[%s280 + $0x28] sm:%s272] %v291
                %v293 = vld [vmem:[%s279 + $0x60] sm:%s272]
                %294 = vst [vmem:[%s280 + $0x30] sm:%s272] %v293
                %v295 = vld [vmem:[%s279 + $0x70] sm:%s272]
                %296 = vst [vmem:[%s280 + $0x38] sm:%s272] %v295
                %v297 = vld [vmem:[%s279 + $0x80] sm:%s272]
                %298 = vst [vmem:[%s280 + $0x40] sm:%s272] %v297
                %v299 = vld [vmem:[%s279 + $0x90] sm:%s272]
                %300 = vst [vmem:[%s280 + $0x48] sm:%s272] %v299
                %v301 = vld [vmem:[%s279 + $0xa0] sm:%s272]
                %302 = vst [vmem:[%s280 + $0x50] sm:%s272] %v301
                %v303 = vld [vmem:[%s279 + $0xb0] sm:%s272]
                %304 = vst [vmem:[%s280 + $0x58] sm:%s272] %v303
                %v305 = vld [vmem:[%s279 + $0xc0] sm:%s272]
                %306 = vst [vmem:[%s280 + $0x60] sm:%s272] %v305
                %v307 = vld [vmem:[%s279 + $0xd0] sm:%s272]
                %308 = vst [vmem:[%s280 + $0x68] sm:%s272] %v307
                %v309 = vld [vmem:[%s279 + $0xe0] sm:%s272]
                %310 = vst [vmem:[%s280 + $0x70] sm:%s272] %v309
                %v311 = vld [vmem:[%s279 + $0xf0] sm:%s272]
                %312 = vst [vmem:[%s280 + $0x78] sm:%s272] %v311
              $region41: #{_lambda_.16} parent=35 // loop_footer
                %s278 = sadd.s32 1, %s274
              $region42: #{_lambda_.16} parent=35 // loop_footer_branch
                %273 = sbr.rel target = $region38
              $region43: #{_lambda_.16} parent=35 // loop_exit
                _
            $region36: #{_lambda_.16} parent=27 // pred_fallthru
              _
          $region28: #{_lambda_.16} parent=23 // pred_fallthru
            _
          %357 = vnop
        $region24: #{_lambda_.16} parent=19 // pred_fallthru
          _
        // Predicated region
        $region59: #{_lambda_.16} parent=19 // pred_check
          %p358 = pneg %p74
        $region60: #{_lambda_.16} parent=19 // pred_check_branch
          %360 = sbr.rel (%p358) target = $region62
        $region61: #{_lambda_.16} parent=19 // pred_region
          %s361 = smul.u32 16, %s22
          %p362 = scmp.lt.s32.totalorder %s361, 31
          %s363 = scalar_select %p362, %s361, 31
          %s364 = smul.addr %s363, 8
          %s365 = scalar_lea.vmem %s1, %s364
          %s366 = smul.u32 16, %s22
        $region62: #{_lambda_.16} parent=19 // pred_fallthru
          _
        // Predicated region
        $region63: #{_lambda_.16} parent=19 // pred_check
          %p367 = pneg %p100
        $region64: #{_lambda_.16} parent=19 // pred_check_branch
          %369 = sbr.rel (%p367) target = $region66
        $region65: #{_lambda_.16} parent=19 // pred_region
          %s370 = smul.u32 16, %s21
          %p371 = scmp.lt.s32.totalorder %s370, 31
          %s372 = scalar_select %p371, %s370, 31
          %s373 = smul.addr %s372, 8
          %s374 = scalar_lea.vmem %s2, %s373
          %s375 = smul.u32 16, %s21
        $region66: #{_lambda_.16} parent=19 // pred_fallthru
          _
        // Predicated region
        $region67: #{_lambda_.16} parent=19 // pred_check
          %p376 = pneg %p126
        $region68: #{_lambda_.16} parent=19 // pred_check_branch
          %378 = sbr.rel (%p376) target = $region70
        $region69: #{_lambda_.16} parent=19 // pred_region
          %s379 = smul.u32 16, %s21
          %p380 = scmp.lt.s32.totalorder %s379, 31
          %s381 = scalar_select %p380, %s379, 31
          %s382 = smul.addr %s381, 8
          %s383 = scalar_lea.vmem %s3, %s382
          %s384 = smul.u32 16, %s21
        $region70: #{_lambda_.16} parent=19 // pred_fallthru
          _
      $region20: #{_lambda_.16} parent=5 // pred_fallthru
        _
      %p385 = scmp.le.s32.totalorder 1, %s14
      %p386 = scmp.lt.s32.totalorder %s14, 5
      %p387 = pnand %p385, %p386
      %p388 = pneg %p387
      // Predicated region
      $region71: #{_lambda_.16} parent=5 // pred_check
        _
      $region72: #{_lambda_.16} parent=5 // pred_check_branch
        %390 = sbr.rel (%p387) target = $region74
      $region73: #{_lambda_.16} parent=5 // pred_region
        %s391 = ssub.s32 %s14, 1
        %s392 = sand.u32 %s41, 1
        %s393 = sand.u32 %s41, 1
        %s394 = smul.addr %s393, 128
        %s395 = scalar_lea.vmem [#allocation3], %s394
        // Predicated region
        $region75: #{_lambda_.16} parent=73 // pred_check
          %p396 = pneg %p54
        $region76: #{_lambda_.16} parent=73 // pred_check_branch
          %398 = sbr.rel (%p396) target = $region78
        $region77: #{_lambda_.16} parent=73 // pred_region
          _
        $region78: #{_lambda_.16} parent=73 // pred_fallthru
          _
        %s399 = sand.u32 %s41, 1
        %s400 = sand.u32 %s41, 1
        %s401 = smul.addr %s400, 128
        %s402 = scalar_lea.vmem [#allocation3], %s401
        %p403 = pneg %p54
        %p404 = pneg %p51
        %s405 = smul.u32 16, %s24
        %p406 = scmp.lt.s32.totalorder %s405, 31
        %s407 = scalar_select %p406, %s405, 31
        %s408 = smul.addr %s407, 8
        %s409 = scalar_lea.vmem %s1, %s408
        %p410 = pneg %p80
        %p411 = pneg %p77
        %s412 = smul.u32 16, %s23
        %p413 = scmp.lt.s32.totalorder %s412, 31
        %s414 = scalar_select %p413, %s412, 31
        %s415 = smul.addr %s414, 8
        %s416 = scalar_lea.vmem %s2, %s415
        %p417 = pneg %p106
        %p418 = pneg %p103
        %s419 = smul.u32 16, %s23
        %p420 = scmp.lt.s32.totalorder %s419, 31
        %s421 = scalar_select %p420, %s419, 31
        %s422 = smul.addr %s421, 8
        %s423 = scalar_lea.vmem %s3, %s422
        %p424 = pneg %p132
        %p425 = pneg %p129
        %p426 = pneg %p153
        %p427 = pneg %p150
        %p428 = pneg %p179
        %p429 = pneg %p176
        %s430 = smul.u32 16, %s23
        %p431 = scmp.lt.s32.totalorder %s430, 31
        %s432 = scalar_select %p431, %s430, 31
        %s433 = smul.addr %s432, 8
        %s434 = scalar_lea.vmem %s5, %s433
        %p435 = pneg %p205
        %p436 = pneg %p202
        %p437 = scmp.lt.s32.totalorder %s23, 1
        %s438 = scalar_select %p437, %s23, 1
        %s439 = scalar_lea.vmem %s6, %s438
        %p440 = pneg %p231
        %p441 = pneg %p228
        %p442 = scmp.lt.s32.totalorder %s23, 1
        %s443 = scalar_select %p442, %s23, 1
        %s444 = scalar_lea.vmem %s7, %s443
        %s445 = smul.u32 16, %s23
        %s446 = smul.u32 16, %s24
        %p447 = scmp.lt.s32.totalorder %s446, 31
        %s448 = scalar_select %p447, %s446, 31
        %s449 = smul.addr %s448, 8
        %s450 = scalar_lea.vmem %s1, %s449
        %s451 = smul.u32 16, %s24
        %s452 = smul.u32 16, %s23
        %p453 = scmp.lt.s32.totalorder %s452, 31
        %s454 = scalar_select %p453, %s452, 31
        %s455 = smul.addr %s454, 8
        %s456 = scalar_lea.vmem %s2, %s455
        %s457 = smul.u32 16, %s23
        %s458 = smul.u32 16, %s23
        %p459 = scmp.lt.s32.totalorder %s458, 31
        %s460 = scalar_select %p459, %s458, 31
        %s461 = smul.addr %s460, 8
        %s462 = scalar_lea.vmem %s3, %s461
        %s463 = smul.u32 16, %s23
        %s464 = smul.u32 16, %s23
        %p465 = scmp.lt.s32.totalorder %s464, 31
        %s466 = scalar_select %p465, %s464, 31
        %s467 = smul.addr %s466, 8
        %s468 = scalar_lea.vmem %s5, %s467
        %s469 = smul.u32 16, %s23
        %p470 = scmp.lt.s32.totalorder %s23, 1
        %s471 = scalar_select %p470, %s23, 1
        %s472 = scalar_lea.vmem %s6, %s471
        %p473 = scmp.lt.s32.totalorder %s23, 1
        %s474 = scalar_select %p473, %s23, 1
        %s475 = scalar_lea.vmem %s7, %s474
        %p476 = scmp.eq.s32.totalorder %s24, 0
        // Predicated region
        $region79: #{_lambda_.16} parent=73 // pred_check
          %p477 = pneg %p476
        $region80: #{_lambda_.16} parent=73 // pred_check_branch
          %479 = sbr.rel (%p477) target = $region82
        $region81: #{_lambda_.16} parent=73 // pred_region
          %vm480 = vcmask 113664
          %481 = vst.msk [vmem:[#allocation2] sm:$0xff] %vm480, 0.0
          %482 = vst.msk [vmem:[#allocation2 + $0x8] sm:$0xff] %vm480, 0.0
          %483 = vst.msk [vmem:[#allocation2 + $0x10] sm:$0xff] %vm480, 0.0
          %484 = vst.msk [vmem:[#allocation2 + $0x18] sm:$0xff] %vm480, 0.0
          %485 = vst.msk [vmem:[#allocation2 + $0x20] sm:$0xff] %vm480, 0.0
          %486 = vst.msk [vmem:[#allocation2 + $0x28] sm:$0xff] %vm480, 0.0
          %487 = vst.msk [vmem:[#allocation2 + $0x30] sm:$0xff] %vm480, 0.0
          %488 = vst.msk [vmem:[#allocation2 + $0x38] sm:$0xff] %vm480, 0.0
          %489 = vst.msk [vmem:[#allocation2 + $0x40] sm:$0xff] %vm480, 0.0
          %490 = vst.msk [vmem:[#allocation2 + $0x48] sm:$0xff] %vm480, 0.0
          %491 = vst.msk [vmem:[#allocation2 + $0x50] sm:$0xff] %vm480, 0.0
          %492 = vst.msk [vmem:[#allocation2 + $0x58] sm:$0xff] %vm480, 0.0
          %493 = vst.msk [vmem:[#allocation2 + $0x60] sm:$0xff] %vm480, 0.0
          %494 = vst.msk [vmem:[#allocation2 + $0x68] sm:$0xff] %vm480, 0.0
          %495 = vst.msk [vmem:[#allocation2 + $0x70] sm:$0xff] %vm480, 0.0
          %496 = vst.msk [vmem:[#allocation2 + $0x78] sm:$0xff] %vm480, 0.0
        $region82: #{_lambda_.16} parent=73 // pred_fallthru
          _
        %v497 = vld [vmem:[#allocation2] sm:$0xff]
        %v498 = vld [vmem:[#allocation2 + $0x8] sm:$0xff]
        %v499 = vld [vmem:[#allocation2 + $0x10] sm:$0xff]
        %v500 = vld [vmem:[#allocation2 + $0x18] sm:$0xff]
        %v501 = vld [vmem:[#allocation2 + $0x20] sm:$0xff]
        %v502 = vld [vmem:[#allocation2 + $0x28] sm:$0xff]
        %v503 = vld [vmem:[#allocation2 + $0x30] sm:$0xff]
        %v504 = vld [vmem:[#allocation2 + $0x38] sm:$0xff]
        %v505 = vld [vmem:[#allocation2 + $0x40] sm:$0xff]
        %v506 = vld [vmem:[#allocation2 + $0x48] sm:$0xff]
        %v507 = vld [vmem:[#allocation2 + $0x50] sm:$0xff]
        %v508 = vld [vmem:[#allocation2 + $0x58] sm:$0xff]
        %v509 = vld [vmem:[#allocation2 + $0x60] sm:$0xff]
        %v510 = vld [vmem:[#allocation2 + $0x68] sm:$0xff]
        %v511 = vld [vmem:[#allocation2 + $0x70] sm:$0xff]
        %v512 = vld [vmem:[#allocation2 + $0x78] sm:$0xff]
        %v513 = vld [vmem:[%s395] sm:$0xff]
        %v514 = vld [vmem:[%s395 + $0x8] sm:$0xff]
        %v515 = vld [vmem:[%s395 + $0x10] sm:$0xff]
        %v516 = vld [vmem:[%s395 + $0x18] sm:$0xff]
        %v517 = vld [vmem:[%s395 + $0x20] sm:$0xff]
        %v518 = vld [vmem:[%s395 + $0x28] sm:$0xff]
        %v519 = vld [vmem:[%s395 + $0x30] sm:$0xff]
        %v520 = vld [vmem:[%s395 + $0x38] sm:$0xff]
        %v521 = vld [vmem:[%s395 + $0x40] sm:$0xff]
        %v522 = vld [vmem:[%s395 + $0x48] sm:$0xff]
        %v523 = vld [vmem:[%s395 + $0x50] sm:$0xff]
        %v524 = vld [vmem:[%s395 + $0x58] sm:$0xff]
        %v525 = vld [vmem:[%s395 + $0x60] sm:$0xff]
        %v526 = vld [vmem:[%s395 + $0x68] sm:$0xff]
        %v527 = vld [vmem:[%s395 + $0x70] sm:$0xff]
        %v528 = vld [vmem:[%s395 + $0x78] sm:$0xff]
        %v529 = vld [vmem:[%s450] sm:$0xff]
        %v530 = vld [vmem:[%s450 + $0x8] sm:$0xff]
        %v531 = vld [vmem:[%s450 + $0x10] sm:$0xff]
        %v532 = vld [vmem:[%s450 + $0x18] sm:$0xff]
        %v533 = vld [vmem:[%s450 + $0x20] sm:$0xff]
        %v534 = vld [vmem:[%s450 + $0x28] sm:$0xff]
        %v535 = vld [vmem:[%s450 + $0x30] sm:$0xff]
        %v536 = vld [vmem:[%s450 + $0x38] sm:$0xff]
        %v537 = vld [vmem:[%s450 + $0x40] sm:$0xff]
        %v538 = vld [vmem:[%s450 + $0x48] sm:$0xff]
        %v539 = vld [vmem:[%s450 + $0x50] sm:$0xff]
        %v540 = vld [vmem:[%s450 + $0x58] sm:$0xff]
        %v541 = vld [vmem:[%s450 + $0x60] sm:$0xff]
        %v542 = vld [vmem:[%s450 + $0x68] sm:$0xff]
        %v543 = vld [vmem:[%s450 + $0x70] sm:$0xff]
        %v544 = vld [vmem:[%s450 + $0x78] sm:$0xff]
        %545 = vmatpush.msra.mxu0 %v544
        %546 = vmatpush.msra.mxu0 %v543
        %547 = vmatpush.msra.mxu0 %v542
        %548 = vmatpush.msra.mxu0 %v541
        %549 = vmatpush.msra.mxu0 %v540
        %550 = vmatpush.msra.mxu0 %v539
        %551 = vmatpush.msra.mxu0 %v538
        %552 = vmatpush.msra.mxu0 %v537
        %553 = vmatpush.msra.mxu0 %v536
        %554 = vmatpush.msra.mxu0 %v535
        %555 = vmatpush.msra.mxu0 %v534
        %556 = vmatpush.msra.mxu0 %v533
        %557 = vmatpush.msra.mxu0 %v532
        %558 = vmatpush.msra.mxu0 %v531
        %559 = vmatpush.msra.mxu0 %v530
        %560 = vmatpush.msra.mxu0 %v529
        %561 = vmatmul.f32.gmra.mxu0 %v513
        %v562 = vpop.f32.mrf.mxu0
        %v563 = vadd.f32 0.0, %v562
        %564 = vmatmul.f32.gmra.mxu0 %v514
        %v565 = vpop.f32.mrf.mxu0
        %v566 = vadd.f32 0.0, %v565
        %567 = vmatmul.f32.gmra.mxu0 %v515
        %v568 = vpop.f32.mrf.mxu0
        %v569 = vadd.f32 0.0, %v568
        %570 = vmatmul.f32.gmra.mxu0 %v516
        %v571 = vpop.f32.mrf.mxu0
        %v572 = vadd.f32 0.0, %v571
        %573 = vmatmul.f32.gmra.mxu0 %v517
        %v574 = vpop.f32.mrf.mxu0
        %v575 = vadd.f32 0.0, %v574
        %576 = vmatmul.f32.gmra.mxu0 %v518
        %v577 = vpop.f32.mrf.mxu0
        %v578 = vadd.f32 0.0, %v577
        %579 = vmatmul.f32.gmra.mxu0 %v519
        %v580 = vpop.f32.mrf.mxu0
        %v581 = vadd.f32 0.0, %v580
        %582 = vmatmul.f32.gmra.mxu0 %v520
        %v583 = vpop.f32.mrf.mxu0
        %v584 = vadd.f32 0.0, %v583
        %585 = vmatmul.f32.gmra.mxu0 %v521
        %v586 = vpop.f32.mrf.mxu0
        %v587 = vadd.f32 0.0, %v586
        %588 = vmatmul.f32.gmra.mxu0 %v522
        %v589 = vpop.f32.mrf.mxu0
        %v590 = vadd.f32 0.0, %v589
        %591 = vmatmul.f32.gmra.mxu0 %v523
        %v592 = vpop.f32.mrf.mxu0
        %v593 = vadd.f32 0.0, %v592
        %594 = vmatmul.f32.gmra.mxu0 %v524
        %v595 = vpop.f32.mrf.mxu0
        %v596 = vadd.f32 0.0, %v595
        %597 = vmatmul.f32.gmra.mxu0 %v525
        %v598 = vpop.f32.mrf.mxu0
        %v599 = vadd.f32 0.0, %v598
        %600 = vmatmul.f32.gmra.mxu0 %v526
        %v601 = vpop.f32.mrf.mxu0
        %v602 = vadd.f32 0.0, %v601
        %603 = vmatmul.f32.gmra.mxu0 %v527
        %v604 = vpop.f32.mrf.mxu0
        %v605 = vadd.f32 0.0, %v604
        %606 = vmatmul.f32.gmra.mxu0 %v528
        %v607 = vpop.f32.mrf.mxu0
        %v608 = vadd.f32 0.0, %v607
        %609 = vdwg.mxu0
        %v610 = vadd.f32 %v497, %v563
        %v611 = vadd.f32 %v498, %v566
        %v612 = vadd.f32 %v499, %v569
        %v613 = vadd.f32 %v500, %v572
        %v614 = vadd.f32 %v501, %v575
        %v615 = vadd.f32 %v502, %v578
        %v616 = vadd.f32 %v503, %v581
        %v617 = vadd.f32 %v504, %v584
        %v618 = vadd.f32 %v505, %v587
        %v619 = vadd.f32 %v506, %v590
        %v620 = vadd.f32 %v507, %v593
        %v621 = vadd.f32 %v508, %v596
        %v622 = vadd.f32 %v509, %v599
        %v623 = vadd.f32 %v510, %v602
        %v624 = vadd.f32 %v511, %v605
        %v625 = vadd.f32 %v512, %v608
        %vm626 = vcmask 113664
        %627 = vst.msk [vmem:[#allocation2] sm:$0xff] %vm626, %v610
        %628 = vst.msk [vmem:[#allocation2 + $0x8] sm:$0xff] %vm626, %v611
        %629 = vst.msk [vmem:[#allocation2 + $0x10] sm:$0xff] %vm626, %v612
        %630 = vst.msk [vmem:[#allocation2 + $0x18] sm:$0xff] %vm626, %v613
        %631 = vst.msk [vmem:[#allocation2 + $0x20] sm:$0xff] %vm626, %v614
        %632 = vst.msk [vmem:[#allocation2 + $0x28] sm:$0xff] %vm626, %v615
        %633 = vst.msk [vmem:[#allocation2 + $0x30] sm:$0xff] %vm626, %v616
        %634 = vst.msk [vmem:[#allocation2 + $0x38] sm:$0xff] %vm626, %v617
        %635 = vst.msk [vmem:[#allocation2 + $0x40] sm:$0xff] %vm626, %v618
        %636 = vst.msk [vmem:[#allocation2 + $0x48] sm:$0xff] %vm626, %v619
        %637 = vst.msk [vmem:[#allocation2 + $0x50] sm:$0xff] %vm626, %v620
        %638 = vst.msk [vmem:[#allocation2 + $0x58] sm:$0xff] %vm626, %v621
        %639 = vst.msk [vmem:[#allocation2 + $0x60] sm:$0xff] %vm626, %v622
        %640 = vst.msk [vmem:[#allocation2 + $0x68] sm:$0xff] %vm626, %v623
        %641 = vst.msk [vmem:[#allocation2 + $0x70] sm:$0xff] %vm626, %v624
        %642 = vst.msk [vmem:[#allocation2 + $0x78] sm:$0xff] %vm626, %v625
        %p643 = scmp.eq.s32.totalorder %s24, 1
        // Predicated region
        $region83: #{_lambda_.16} parent=73 // pred_check
          %p644 = pneg %p643
        $region84: #{_lambda_.16} parent=73 // pred_check_branch
          %646 = sbr.rel (%p644) target = $region86
        $region85: #{_lambda_.16} parent=73 // pred_region
          %v647 = vld [vmem:[%s462] sm:$0xff]
          %v648 = vld [vmem:[%s462 + $0x8] sm:$0xff]
          %v649 = vld [vmem:[%s462 + $0x10] sm:$0xff]
          %v650 = vld [vmem:[%s462 + $0x18] sm:$0xff]
          %v651 = vld [vmem:[%s462 + $0x20] sm:$0xff]
          %v652 = vld [vmem:[%s462 + $0x28] sm:$0xff]
          %v653 = vld [vmem:[%s462 + $0x30] sm:$0xff]
          %v654 = vld [vmem:[%s462 + $0x38] sm:$0xff]
          %v655 = vld [vmem:[%s462 + $0x40] sm:$0xff]
          %v656 = vld [vmem:[%s462 + $0x48] sm:$0xff]
          %v657 = vld [vmem:[%s462 + $0x50] sm:$0xff]
          %v658 = vld [vmem:[%s462 + $0x58] sm:$0xff]
          %v659 = vld [vmem:[%s462 + $0x60] sm:$0xff]
          %v660 = vld [vmem:[%s462 + $0x68] sm:$0xff]
          %v661 = vld [vmem:[%s462 + $0x70] sm:$0xff]
          %v662 = vld [vmem:[%s462 + $0x78] sm:$0xff]
          %v663 = vld [vmem:[#allocation2] sm:$0xff]
          %v664 = vld [vmem:[#allocation2 + $0x8] sm:$0xff]
          %v665 = vld [vmem:[#allocation2 + $0x10] sm:$0xff]
          %v666 = vld [vmem:[#allocation2 + $0x18] sm:$0xff]
          %v667 = vld [vmem:[#allocation2 + $0x20] sm:$0xff]
          %v668 = vld [vmem:[#allocation2 + $0x28] sm:$0xff]
          %v669 = vld [vmem:[#allocation2 + $0x30] sm:$0xff]
          %v670 = vld [vmem:[#allocation2 + $0x38] sm:$0xff]
          %v671 = vld [vmem:[#allocation2 + $0x40] sm:$0xff]
          %v672 = vld [vmem:[#allocation2 + $0x48] sm:$0xff]
          %v673 = vld [vmem:[#allocation2 + $0x50] sm:$0xff]
          %v674 = vld [vmem:[#allocation2 + $0x58] sm:$0xff]
          %v675 = vld [vmem:[#allocation2 + $0x60] sm:$0xff]
          %v676 = vld [vmem:[#allocation2 + $0x68] sm:$0xff]
          %v677 = vld [vmem:[#allocation2 + $0x70] sm:$0xff]
          %v678 = vld [vmem:[#allocation2 + $0x78] sm:$0xff]
          %v679 = vld [vmem:[%s456] sm:$0xff]
          %v680 = vld [vmem:[%s456 + $0x8] sm:$0xff]
          %v681 = vld [vmem:[%s456 + $0x10] sm:$0xff]
          %v682 = vld [vmem:[%s456 + $0x18] sm:$0xff]
          %v683 = vld [vmem:[%s456 + $0x20] sm:$0xff]
          %v684 = vld [vmem:[%s456 + $0x28] sm:$0xff]
          %v685 = vld [vmem:[%s456 + $0x30] sm:$0xff]
          %v686 = vld [vmem:[%s456 + $0x38] sm:$0xff]
          %v687 = vld [vmem:[%s456 + $0x40] sm:$0xff]
          %v688 = vld [vmem:[%s456 + $0x48] sm:$0xff]
          %v689 = vld [vmem:[%s456 + $0x50] sm:$0xff]
          %v690 = vld [vmem:[%s456 + $0x58] sm:$0xff]
          %v691 = vld [vmem:[%s456 + $0x60] sm:$0xff]
          %v692 = vld [vmem:[%s456 + $0x68] sm:$0xff]
          %v693 = vld [vmem:[%s456 + $0x70] sm:$0xff]
          %v694 = vld [vmem:[%s456 + $0x78] sm:$0xff]
          %v695 = vadd.f32 %v663, %v679
          %v696 = vadd.f32 %v664, %v680
          %v697 = vadd.f32 %v665, %v681
          %v698 = vadd.f32 %v666, %v682
          %v699 = vadd.f32 %v667, %v683
          %v700 = vadd.f32 %v668, %v684
          %v701 = vadd.f32 %v669, %v685
          %v702 = vadd.f32 %v670, %v686
          %v703 = vadd.f32 %v671, %v687
          %v704 = vadd.f32 %v672, %v688
          %v705 = vadd.f32 %v673, %v689
          %v706 = vadd.f32 %v674, %v690
          %v707 = vadd.f32 %v675, %v691
          %v708 = vadd.f32 %v676, %v692
          %v709 = vadd.f32 %v677, %v693
          %v710 = vadd.f32 %v678, %v694
          %712 = vset.pattern.permute.xlu0 0
          %713 = vperm.xlu0 %712, %v647
          %v714 = vpop.permute.xlu0 %713
          %717 = vset.pattern.permute.xlu0 0
          %718 = vperm.xlu0 %717, %v648
          %v719 = vpop.permute.xlu0 %718
          %722 = vset.pattern.permute.xlu0 0
          %723 = vperm.xlu0 %722, %v649
          %v724 = vpop.permute.xlu0 %723
          %727 = vset.pattern.permute.xlu0 0
          %728 = vperm.xlu0 %727, %v650
          %v729 = vpop.permute.xlu0 %728
          %732 = vset.pattern.permute.xlu0 0
          %733 = vperm.xlu0 %732, %v651
          %v734 = vpop.permute.xlu0 %733
          %737 = vset.pattern.permute.xlu0 0
          %738 = vperm.xlu0 %737, %v652
          %v739 = vpop.permute.xlu0 %738
          %742 = vset.pattern.permute.xlu0 0
          %743 = vperm.xlu0 %742, %v653
          %v744 = vpop.permute.xlu0 %743
          %747 = vset.pattern.permute.xlu0 0
          %748 = vperm.xlu0 %747, %v654
          %v749 = vpop.permute.xlu0 %748
          %752 = vset.pattern.permute.xlu0 0
          %753 = vperm.xlu0 %752, %v655
          %v754 = vpop.permute.xlu0 %753
          %757 = vset.pattern.permute.xlu0 0
          %758 = vperm.xlu0 %757, %v656
          %v759 = vpop.permute.xlu0 %758
          %762 = vset.pattern.permute.xlu0 0
          %763 = vperm.xlu0 %762, %v657
          %v764 = vpop.permute.xlu0 %763
          %767 = vset.pattern.permute.xlu0 0
          %768 = vperm.xlu0 %767, %v658
          %v769 = vpop.permute.xlu0 %768
          %772 = vset.pattern.permute.xlu0 0
          %773 = vperm.xlu0 %772, %v659
          %v774 = vpop.permute.xlu0 %773
          %777 = vset.pattern.permute.xlu0 0
          %778 = vperm.xlu0 %777, %v660
          %v779 = vpop.permute.xlu0 %778
          %782 = vset.pattern.permute.xlu0 0
          %783 = vperm.xlu0 %782, %v661
          %v784 = vpop.permute.xlu0 %783
          %787 = vset.pattern.permute.xlu0 0
          %788 = vperm.xlu0 %787, %v662
          %v789 = vpop.permute.xlu0 %788
          %v791 = vmul.f32 %v714, %v695
          %v792 = vmul.f32 %v719, %v696
          %v793 = vmul.f32 %v724, %v697
          %v794 = vmul.f32 %v729, %v698
          %v795 = vmul.f32 %v734, %v699
          %v796 = vmul.f32 %v739, %v700
          %v797 = vmul.f32 %v744, %v701
          %v798 = vmul.f32 %v749, %v702
          %v799 = vmul.f32 %v754, %v703
          %v800 = vmul.f32 %v759, %v704
          %v801 = vmul.f32 %v764, %v705
          %v802 = vmul.f32 %v769, %v706
          %v803 = vmul.f32 %v774, %v707
          %v804 = vmul.f32 %v779, %v708
          %v805 = vmul.f32 %v784, %v709
          %v806 = vmul.f32 %v789, %v710
          %v807 = vld [vmem:[%s4] sm:$0x1]
          %v809 = vperm.slane %v807, 0
          %v811 = vadd.f32 %v791, %v809
          %v812 = vadd.f32 %v792, %v809
          %v813 = vadd.f32 %v793, %v809
          %v814 = vadd.f32 %v794, %v809
          %v815 = vadd.f32 %v795, %v809
          %v816 = vadd.f32 %v796, %v809
          %v817 = vadd.f32 %v797, %v809
          %v818 = vadd.f32 %v798, %v809
          %v819 = vadd.f32 %v799, %v809
          %v820 = vadd.f32 %v800, %v809
          %v821 = vadd.f32 %v801, %v809
          %v822 = vadd.f32 %v802, %v809
          %v823 = vadd.f32 %v803, %v809
          %v824 = vadd.f32 %v804, %v809
          %v825 = vadd.f32 %v805, %v809
          %v826 = vadd.f32 %v806, %v809
          %v827 = vmax.f32 %v811, 0.0
          %v828 = vmax.f32 %v812, 0.0
          %v829 = vmax.f32 %v813, 0.0
          %v830 = vmax.f32 %v814, 0.0
          %v831 = vmax.f32 %v815, 0.0
          %v832 = vmax.f32 %v816, 0.0
          %v833 = vmax.f32 %v817, 0.0
          %v834 = vmax.f32 %v818, 0.0
          %v835 = vmax.f32 %v819, 0.0
          %v836 = vmax.f32 %v820, 0.0
          %v837 = vmax.f32 %v821, 0.0
          %v838 = vmax.f32 %v822, 0.0
          %v839 = vmax.f32 %v823, 0.0
          %v840 = vmax.f32 %v824, 0.0
          %v841 = vmax.f32 %v825, 0.0
          %v842 = vmax.f32 %v826, 0.0
          %vm843 = vcmp.gt.f32.partialorder %v647, 0.0
          %vm844 = vcmp.gt.f32.partialorder %v648, 0.0
          %vm845 = vcmp.gt.f32.partialorder %v649, 0.0
          %vm846 = vcmp.gt.f32.partialorder %v650, 0.0
          %vm847 = vcmp.gt.f32.partialorder %v651, 0.0
          %vm848 = vcmp.gt.f32.partialorder %v652, 0.0
          %vm849 = vcmp.gt.f32.partialorder %v653, 0.0
          %vm850 = vcmp.gt.f32.partialorder %v654, 0.0
          %vm851 = vcmp.gt.f32.partialorder %v655, 0.0
          %vm852 = vcmp.gt.f32.partialorder %v656, 0.0
          %vm853 = vcmp.gt.f32.partialorder %v657, 0.0
          %vm854 = vcmp.gt.f32.partialorder %v658, 0.0
          %vm855 = vcmp.gt.f32.partialorder %v659, 0.0
          %vm856 = vcmp.gt.f32.partialorder %v660, 0.0
          %vm857 = vcmp.gt.f32.partialorder %v661, 0.0
          %vm858 = vcmp.gt.f32.partialorder %v662, 0.0
          %v859 = vsel %vm843, 1, 0
          %v860 = vsel %vm844, 1, 0
          %v861 = vsel %vm845, 1, 0
          %v862 = vsel %vm846, 1, 0
          %v863 = vsel %vm847, 1, 0
          %v864 = vsel %vm848, 1, 0
          %v865 = vsel %vm849, 1, 0
          %v866 = vsel %vm850, 1, 0
          %v867 = vsel %vm851, 1, 0
          %v868 = vsel %vm852, 1, 0
          %v869 = vsel %vm853, 1, 0
          %v870 = vsel %vm854, 1, 0
          %v871 = vsel %vm855, 1, 0
          %v872 = vsel %vm856, 1, 0
          %v873 = vsel %vm857, 1, 0
          %v874 = vsel %vm858, 1, 0
          %875 = vset.pattern.permute.xlu0 0
          %876 = vperm.xlu0 %875, %v859
          %v877 = vpop.permute.xlu0 %876
          %878 = vset.pattern.permute.xlu0 0
          %879 = vperm.xlu0 %878, %v860
          %v880 = vpop.permute.xlu0 %879
          %881 = vset.pattern.permute.xlu0 0
          %882 = vperm.xlu0 %881, %v861
          %v883 = vpop.permute.xlu0 %882
          %884 = vset.pattern.permute.xlu0 0
          %885 = vperm.xlu0 %884, %v862
          %v886 = vpop.permute.xlu0 %885
          %887 = vset.pattern.permute.xlu0 0
          %888 = vperm.xlu0 %887, %v863
          %v889 = vpop.permute.xlu0 %888
          %890 = vset.pattern.permute.xlu0 0
          %891 = vperm.xlu0 %890, %v864
          %v892 = vpop.permute.xlu0 %891
          %893 = vset.pattern.permute.xlu0 0
          %894 = vperm.xlu0 %893, %v865
          %v895 = vpop.permute.xlu0 %894
          %896 = vset.pattern.permute.xlu0 0
          %897 = vperm.xlu0 %896, %v866
          %v898 = vpop.permute.xlu0 %897
          %899 = vset.pattern.permute.xlu0 0
          %900 = vperm.xlu0 %899, %v867
          %v901 = vpop.permute.xlu0 %900
          %902 = vset.pattern.permute.xlu0 0
          %903 = vperm.xlu0 %902, %v868
          %v904 = vpop.permute.xlu0 %903
          %905 = vset.pattern.permute.xlu0 0
          %906 = vperm.xlu0 %905, %v869
          %v907 = vpop.permute.xlu0 %906
          %908 = vset.pattern.permute.xlu0 0
          %909 = vperm.xlu0 %908, %v870
          %v910 = vpop.permute.xlu0 %909
          %911 = vset.pattern.permute.xlu0 0
          %912 = vperm.xlu0 %911, %v871
          %v913 = vpop.permute.xlu0 %912
          %914 = vset.pattern.permute.xlu0 0
          %915 = vperm.xlu0 %914, %v872
          %v916 = vpop.permute.xlu0 %915
          %917 = vset.pattern.permute.xlu0 0
          %918 = vperm.xlu0 %917, %v873
          %v919 = vpop.permute.xlu0 %918
          %920 = vset.pattern.permute.xlu0 0
          %921 = vperm.xlu0 %920, %v874
          %v922 = vpop.permute.xlu0 %921
          %vm923 = vcmp.eq.s32.totalorder %v877, 1
          %vm924 = vcmp.eq.s32.totalorder %v880, 1
          %vm925 = vcmp.eq.s32.totalorder %v883, 1
          %vm926 = vcmp.eq.s32.totalorder %v886, 1
          %vm927 = vcmp.eq.s32.totalorder %v889, 1
          %vm928 = vcmp.eq.s32.totalorder %v892, 1
          %vm929 = vcmp.eq.s32.totalorder %v895, 1
          %vm930 = vcmp.eq.s32.totalorder %v898, 1
          %vm931 = vcmp.eq.s32.totalorder %v901, 1
          %vm932 = vcmp.eq.s32.totalorder %v904, 1
          %vm933 = vcmp.eq.s32.totalorder %v907, 1
          %vm934 = vcmp.eq.s32.totalorder %v910, 1
          %vm935 = vcmp.eq.s32.totalorder %v913, 1
          %vm936 = vcmp.eq.s32.totalorder %v916, 1
          %vm937 = vcmp.eq.s32.totalorder %v919, 1
          %vm938 = vcmp.eq.s32.totalorder %v922, 1
          %v939 = vsel %vm923, %v827, 0.0
          %v940 = vsel %vm924, %v828, 0.0
          %v941 = vsel %vm925, %v829, 0.0
          %v942 = vsel %vm926, %v830, 0.0
          %v943 = vsel %vm927, %v831, 0.0
          %v944 = vsel %vm928, %v832, 0.0
          %v945 = vsel %vm929, %v833, 0.0
          %v946 = vsel %vm930, %v834, 0.0
          %v947 = vsel %vm931, %v835, 0.0
          %v948 = vsel %vm932, %v836, 0.0
          %v949 = vsel %vm933, %v837, 0.0
          %v950 = vsel %vm934, %v838, 0.0
          %v951 = vsel %vm935, %v839, 0.0
          %v952 = vsel %vm936, %v840, 0.0
          %v953 = vsel %vm937, %v841, 0.0
          %v954 = vsel %vm938, %v842, 0.0
          %955 = vst.msk [vmem:[%s468] sm:$0xff] %vm626, %v939
          %956 = vst.msk [vmem:[%s468 + $0x8] sm:$0xff] %vm626, %v940
          %957 = vst.msk [vmem:[%s468 + $0x10] sm:$0xff] %vm626, %v941
          %958 = vst.msk [vmem:[%s468 + $0x18] sm:$0xff] %vm626, %v942
          %959 = vst.msk [vmem:[%s468 + $0x20] sm:$0xff] %vm626, %v943
          %960 = vst.msk [vmem:[%s468 + $0x28] sm:$0xff] %vm626, %v944
          %961 = vst.msk [vmem:[%s468 + $0x30] sm:$0xff] %vm626, %v945
          %962 = vst.msk [vmem:[%s468 + $0x38] sm:$0xff] %vm626, %v946
          %963 = vst.msk [vmem:[%s468 + $0x40] sm:$0xff] %vm626, %v947
          %964 = vst.msk [vmem:[%s468 + $0x48] sm:$0xff] %vm626, %v948
          %965 = vst.msk [vmem:[%s468 + $0x50] sm:$0xff] %vm626, %v949
          %966 = vst.msk [vmem:[%s468 + $0x58] sm:$0xff] %vm626, %v950
          %967 = vst.msk [vmem:[%s468 + $0x60] sm:$0xff] %vm626, %v951
          %968 = vst.msk [vmem:[%s468 + $0x68] sm:$0xff] %vm626, %v952
          %969 = vst.msk [vmem:[%s468 + $0x70] sm:$0xff] %vm626, %v953
          %970 = vst.msk [vmem:[%s468 + $0x78] sm:$0xff] %vm626, %v954
          %v971 = vsel %vm626, %v939, 0.0
          %v972 = vsel %vm626, %v940, 0.0
          %v973 = vadd.f32 %v971, %v972
          %v974 = vsel %vm626, %v941, 0.0
          %v975 = vadd.f32 %v973, %v974
          %v976 = vsel %vm626, %v942, 0.0
          %v977 = vadd.f32 %v975, %v976
          %v978 = vsel %vm626, %v943, 0.0
          %v979 = vadd.f32 %v977, %v978
          %v980 = vsel %vm626, %v944, 0.0
          %v981 = vadd.f32 %v979, %v980
          %v982 = vsel %vm626, %v945, 0.0
          %v983 = vadd.f32 %v981, %v982
          %v984 = vsel %vm626, %v946, 0.0
          %v985 = vadd.f32 %v983, %v984
          %v986 = vsel %vm626, %v947, 0.0
          %v987 = vadd.f32 %v985, %v986
          %v988 = vsel %vm626, %v948, 0.0
          %v989 = vadd.f32 %v987, %v988
          %v990 = vsel %vm626, %v949, 0.0
          %v991 = vadd.f32 %v989, %v990
          %v992 = vsel %vm626, %v950, 0.0
          %v993 = vadd.f32 %v991, %v992
          %v994 = vsel %vm626, %v951, 0.0
          %v995 = vadd.f32 %v993, %v994
          %v996 = vsel %vm626, %v952, 0.0
          %v997 = vadd.f32 %v995, %v996
          %v998 = vsel %vm626, %v953, 0.0
          %v999 = vadd.f32 %v997, %v998
          %v1000 = vsel %vm626, %v954, 0.0
          %v1001 = vadd.f32 %v999, %v1000
          %v1002 = vrot.slane %v1001, 4
          %v1003 = vadd.f32 %v1001, %v1002
          %v1004 = vrot.slane %v1003, 2
          %v1005 = vadd.f32 %v1003, %v1004
          %v1006 = vrot.slane %v1005, 1
          %v1007 = vadd.f32 %v1005, %v1006
          %vm1008 = vcmask 106496
          %1009 = vst.msk [vmem:[%s472] sm:$0x1] %vm1008, %v1007
          %v1010 = vmul.f32 %v939, %v939
          %v1011 = vmul.f32 %v940, %v940
          %v1012 = vmul.f32 %v941, %v941
          %v1013 = vmul.f32 %v942, %v942
          %v1014 = vmul.f32 %v943, %v943
          %v1015 = vmul.f32 %v944, %v944
          %v1016 = vmul.f32 %v945, %v945
          %v1017 = vmul.f32 %v946, %v946
          %v1018 = vmul.f32 %v947, %v947
          %v1019 = vmul.f32 %v948, %v948
          %v1020 = vmul.f32 %v949, %v949
          %v1021 = vmul.f32 %v950, %v950
          %v1022 = vmul.f32 %v951, %v951
          %v1023 = vmul.f32 %v952, %v952
          %v1024 = vmul.f32 %v953, %v953
          %v1025 = vmul.f32 %v954, %v954
          %v1026 = vsel %vm626, %v1010, 0.0
          %v1027 = vsel %vm626, %v1011, 0.0
          %v1028 = vadd.f32 %v1026, %v1027
          %v1029 = vsel %vm626, %v1012, 0.0
          %v1030 = vadd.f32 %v1028, %v1029
          %v1031 = vsel %vm626, %v1013, 0.0
          %v1032 = vadd.f32 %v1030, %v1031
          %v1033 = vsel %vm626, %v1014, 0.0
          %v1034 = vadd.f32 %v1032, %v1033
          %v1035 = vsel %vm626, %v1015, 0.0
          %v1036 = vadd.f32 %v1034, %v1035
          %v1037 = vsel %vm626, %v1016, 0.0
          %v1038 = vadd.f32 %v1036, %v1037
          %v1039 = vsel %vm626, %v1017, 0.0
          %v1040 = vadd.f32 %v1038, %v1039
          %v1041 = vsel %vm626, %v1018, 0.0
          %v1042 = vadd.f32 %v1040, %v1041
          %v1043 = vsel %vm626, %v1019, 0.0
          %v1044 = vadd.f32 %v1042, %v1043
          %v1045 = vsel %vm626, %v1020, 0.0
          %v1046 = vadd.f32 %v1044, %v1045
          %v1047 = vsel %vm626, %v1021, 0.0
          %v1048 = vadd.f32 %v1046, %v1047
          %v1049 = vsel %vm626, %v1022, 0.0
          %v1050 = vadd.f32 %v1048, %v1049
          %v1051 = vsel %vm626, %v1023, 0.0
          %v1052 = vadd.f32 %v1050, %v1051
          %v1053 = vsel %vm626, %v1024, 0.0
          %v1054 = vadd.f32 %v1052, %v1053
          %v1055 = vsel %vm626, %v1025, 0.0
          %v1056 = vadd.f32 %v1054, %v1055
          %v1057 = vrot.slane %v1056, 4
          %v1058 = vadd.f32 %v1056, %v1057
          %v1059 = vrot.slane %v1058, 2
          %v1060 = vadd.f32 %v1058, %v1059
          %v1061 = vrot.slane %v1060, 1
          %v1062 = vadd.f32 %v1060, %v1061
          %1063 = vst.msk [vmem:[%s475] sm:$0x1] %vm1008, %v1062
        $region86: #{_lambda_.16} parent=73 // pred_fallthru
          _
        %s1064 = smul.u32 16, %s23
        %p1065 = scmp.lt.s32.totalorder %s1064, 31
        %s1066 = scalar_select %p1065, %s1064, 31
        %s1067 = smul.addr %s1066, 8
        %s1068 = scalar_lea.vmem %s5, %s1067
        %p1069 = scmp.lt.s32.totalorder %s23, 1
        %s1070 = scalar_select %p1069, %s23, 1
        %s1071 = scalar_lea.vmem %s6, %s1070
        %p1072 = scmp.lt.s32.totalorder %s23, 1
        %s1073 = scalar_select %p1072, %s23, 1
        %s1074 = scalar_lea.vmem %s7, %s1073
        // Predicated region
        $region87: #{_lambda_.16} parent=73 // pred_check
          %p1075 = pneg %p176
        $region88: #{_lambda_.16} parent=73 // pred_check_branch
          %1077 = sbr.rel (%p1075) target = $region90
        $region89: #{_lambda_.16} parent=73 // pred_region
          %s1078 = smul.u32 16, %s23
        $region90: #{_lambda_.16} parent=73 // pred_fallthru
          _
        // Predicated region
        $region91: #{_lambda_.16} parent=73 // pred_check
          %p1079 = pneg %p202
        $region92: #{_lambda_.16} parent=73 // pred_check_branch
          %1081 = sbr.rel (%p1079) target = $region94
        $region93: #{_lambda_.16} parent=73 // pred_region
          _
        $region94: #{_lambda_.16} parent=73 // pred_fallthru
          _
        // Predicated region
        $region95: #{_lambda_.16} parent=73 // pred_check
          %p1082 = pneg %p228
        $region96: #{_lambda_.16} parent=73 // pred_check_branch
          %1084 = sbr.rel (%p1082) target = $region98
        $region97: #{_lambda_.16} parent=73 // pred_region
          _
        $region98: #{_lambda_.16} parent=73 // pred_fallthru
          _
      $region74: #{_lambda_.16} parent=5 // pred_fallthru
        _
      %p1085 = scmp.le.s32.totalorder 2, %s14
      // Predicated region
      $region99: #{_lambda_.16} parent=5 // pred_check
        %p1086 = pneg %p1085
      $region100: #{_lambda_.16} parent=5 // pred_check_branch
        %1088 = sbr.rel (%p1086) target = $region102
      $region101: #{_lambda_.16} parent=5 // pred_region
        %s1089 = ssub.s32 %s14, 2
        // Predicated region
        $region103: #{_lambda_.16} parent=101 // pred_check
          %p1090 = pneg %p182
        $region104: #{_lambda_.16} parent=101 // pred_check_branch
          %1092 = sbr.rel (%p1090) target = $region106
        $region105: #{_lambda_.16} parent=101 // pred_region
          %s1093 = smul.u32 16, %s25
          %p1094 = scmp.lt.s32.totalorder %s1093, 31
          %s1095 = scalar_select %p1094, %s1093, 31
          %s1096 = smul.addr %s1095, 8
          %s1097 = scalar_lea.vmem %s5, %s1096
        $region106: #{_lambda_.16} parent=101 // pred_fallthru
          _
        // Predicated region
        $region107: #{_lambda_.16} parent=101 // pred_check
          %p1098 = pneg %p208
        $region108: #{_lambda_.16} parent=101 // pred_check_branch
          %1100 = sbr.rel (%p1098) target = $region110
        $region109: #{_lambda_.16} parent=101 // pred_region
          %p1101 = scmp.lt.s32.totalorder %s25, 1
          %s1102 = scalar_select %p1101, %s25, 1
          %s1103 = scalar_lea.vmem %s6, %s1102
        $region110: #{_lambda_.16} parent=101 // pred_fallthru
          _
        // Predicated region
        $region111: #{_lambda_.16} parent=101 // pred_check
          %p1104 = pneg %p234
        $region112: #{_lambda_.16} parent=101 // pred_check_branch
          %1106 = sbr.rel (%p1104) target = $region114
        $region113: #{_lambda_.16} parent=101 // pred_region
          %p1107 = scmp.lt.s32.totalorder %s25, 1
          %s1108 = scalar_select %p1107, %s25, 1
          %s1109 = scalar_lea.vmem %s7, %s1108
        $region114: #{_lambda_.16} parent=101 // pred_fallthru
          _
      $region102: #{_lambda_.16} parent=5 // pred_fallthru
        _
    $region6: #{_lambda_.16} parent=1 // loop_footer
      %s18 = sadd.s32 1, %s14
    $region7: #{_lambda_.16} parent=1 // loop_footer_branch
      %13 = sbr.rel target = $region3
    $region8: #{_lambda_.16} parent=1 // loop_exit
      _

// kernel: _lambda_.17
$region0: #{_lambda_.17}
  #allocation0 [shape = 'u32[]', space=smem, size = 0x4, offset = 0x4, fixed_abs, tag = 'smem constant byte address 0x4 - core index']
  #allocation1 [shape = 'u32[72,128]{1,0:T(1,128)}', space=vmem, size = 0x9000, scoped, tag = 'internal scratch']
  %s0 = inlined_call_operand.vmem [shape: f32[256,14], index: 0, kind: input, shape index: {}]
  %s1 = inlined_call_operand.vmem [shape: f32[1,14], index: 1, kind: input, shape index: {}]
  %s2 = inlined_call_operand.vmem [shape: f32[1,14], index: 2, kind: input, shape index: {}]
  %s3 = inlined_call_operand.vmem [shape: f32[14,8], index: 3, kind: input, shape index: {}]
  %s4 = inlined_call_operand.vmem [shape: f32[256,1], index: 4, kind: input, shape index: {}]
  %s5 = inlined_call_operand.vmem [shape: f32[256,8], index: 5, kind: output, shape index: {}]
  %s6 = sld [smem:[#allocation0]]
  $region53: #{_lambda_.17} parent=0
    _
  %s8 = ssub.s32 1, %s6
  %s9 = scalar_select 0, %s8, %s6
  loop: start=0, step=1, limit=4
  $region2: #{_lambda_.17} parent=0 // loop_pre_header
    _
  $region3: #{_lambda_.17} parent=0 // loop_header
    %s11 = sphi 0, %s15
    %p12 = scmp.ge.s32.totalorder %s11, 4
    %s21 = sphi 0, %s23
    %s24 = sphi 0, %s21
    %s25 = sphi 0, %s24
    %s41 = sphi 0, %s25
    %s45 = sphi 0, %s45
    %s47 = sphi 0, %s45
    %s48 = sphi 0, %s47
    %s62 = sphi 0, %s48
    %s66 = sphi 0, %s66
    %s68 = sphi 0, %s66
    %s69 = sphi 0, %s68
    %s83 = sphi 0, %s69
    %s87 = sphi 0, %s87
    %s89 = sphi 0, %s87
    %s90 = sphi 0, %s89
    %s104 = sphi 0, %s90
    %s110 = sphi 0, %s112
    %s113 = sphi 0, %s110
    %s114 = sphi 0, %s113
    %s130 = sphi 0, %s114
    %s136 = sphi 0, %s138
    %s139 = sphi 0, %s136
    %s140 = sphi 0, %s139
    %s156 = sphi 0, %s140
  $region4: #{_lambda_.17} parent=0 // loop_header_branch
    %14 = sbr.rel (%p12) target = $region8
  $region5: #{_lambda_.17} parent=0 // loop_body
    %s16 = ssub.s32 %s11, 1
    %s17 = ssub.s32 %s11, 2
    %s18 = sadd.s32 %s11, 1
    %s19 = ssub.s32 %s11, %s18
    %p20 = scmp.eq.s32.totalorder %s19, 0
    %s22 = sadd.s32 %s21, 1
    %s23 = scalar_select %p20, %s21, %s22
    %p26 = pneg %p20
    %p27 = scmp.eq.s32.totalorder %s11, 1
    %p28 = por %p26, %p27
    %p29 = scmp.ne.s32.totalorder %s21, %s24
    %p30 = scmp.eq.s32.totalorder %s11, 0
    %p31 = por %p29, %p30
    %p32 = scmp.ne.s32.totalorder %s21, %s24
    %p33 = scmp.eq.s32.totalorder %s16, 1
    %p34 = por %p32, %p33
    %p35 = scmp.ne.s32.totalorder %s24, %s25
    %p36 = scmp.eq.s32.totalorder %s16, 0
    %p37 = por %p35, %p36
    %p38 = scmp.ne.s32.totalorder %s24, %s25
    %p39 = scmp.eq.s32.totalorder %s17, 1
    %p40 = por %p38, %p39
    %p42 = scmp.ne.s32.totalorder %s25, %s41
    %p43 = scmp.eq.s32.totalorder %s17, 0
    %p44 = por %p42, %p43
    %s46 = sadd.s32 %s45, 1
    %p49 = scmp.eq.s32.totalorder %s11, 1
    %p50 = scmp.ne.s32.totalorder %s45, %s47
    %p51 = scmp.eq.s32.totalorder %s11, 0
    %p52 = por %p50, %p51
    %p53 = scmp.ne.s32.totalorder %s45, %s47
    %p54 = scmp.eq.s32.totalorder %s16, 1
    %p55 = por %p53, %p54
    %p56 = scmp.ne.s32.totalorder %s47, %s48
    %p57 = scmp.eq.s32.totalorder %s16, 0
    %p58 = por %p56, %p57
    %p59 = scmp.ne.s32.totalorder %s47, %s48
    %p60 = scmp.eq.s32.totalorder %s17, 1
    %p61 = por %p59, %p60
    %p63 = scmp.ne.s32.totalorder %s48, %s62
    %p64 = scmp.eq.s32.totalorder %s17, 0
    %p65 = por %p63, %p64
    %s67 = sadd.s32 %s66, 1
    %p70 = scmp.eq.s32.totalorder %s11, 1
    %p71 = scmp.ne.s32.totalorder %s66, %s68
    %p72 = scmp.eq.s32.totalorder %s11, 0
    %p73 = por %p71, %p72
    %p74 = scmp.ne.s32.totalorder %s66, %s68
    %p75 = scmp.eq.s32.totalorder %s16, 1
    %p76 = por %p74, %p75
    %p77 = scmp.ne.s32.totalorder %s68, %s69
    %p78 = scmp.eq.s32.totalorder %s16, 0
    %p79 = por %p77, %p78
    %p80 = scmp.ne.s32.totalorder %s68, %s69
    %p81 = scmp.eq.s32.totalorder %s17, 1
    %p82 = por %p80, %p81
    %p84 = scmp.ne.s32.totalorder %s69, %s83
    %p85 = scmp.eq.s32.totalorder %s17, 0
    %p86 = por %p84, %p85
    %s88 = sadd.s32 %s87, 1
    %p91 = scmp.eq.s32.totalorder %s11, 1
    %p92 = scmp.ne.s32.totalorder %s87, %s89
    %p93 = scmp.eq.s32.totalorder %s11, 0
    %p94 = por %p92, %p93
    %p95 = scmp.ne.s32.totalorder %s87, %s89
    %p96 = scmp.eq.s32.totalorder %s16, 1
    %p97 = por %p95, %p96
    %p98 = scmp.ne.s32.totalorder %s89, %s90
    %p99 = scmp.eq.s32.totalorder %s16, 0
    %p100 = por %p98, %p99
    %p101 = scmp.ne.s32.totalorder %s89, %s90
    %p102 = scmp.eq.s32.totalorder %s17, 1
    %p103 = por %p101, %p102
    %p105 = scmp.ne.s32.totalorder %s90, %s104
    %p106 = scmp.eq.s32.totalorder %s17, 0
    %p107 = por %p105, %p106
    %s108 = ssub.s32 %s11, %s18
    %p109 = scmp.eq.s32.totalorder %s108, 0
    %s111 = sadd.s32 %s110, 1
    %s112 = scalar_select %p109, %s110, %s111
    %p115 = pneg %p109
    %p116 = scmp.eq.s32.totalorder %s11, 1
    %p117 = por %p115, %p116
    %p118 = scmp.ne.s32.totalorder %s110, %s113
    %p119 = scmp.eq.s32.totalorder %s11, 0
    %p120 = por %p118, %p119
    %p121 = scmp.ne.s32.totalorder %s110, %s113
    %p122 = scmp.eq.s32.totalorder %s16, 1
    %p123 = por %p121, %p122
    %p124 = scmp.ne.s32.totalorder %s113, %s114
    %p125 = scmp.eq.s32.totalorder %s16, 0
    %p126 = por %p124, %p125
    %p127 = scmp.ne.s32.totalorder %s113, %s114
    %p128 = scmp.eq.s32.totalorder %s17, 1
    %p129 = por %p127, %p128
    %p131 = scmp.ne.s32.totalorder %s114, %s130
    %p132 = scmp.eq.s32.totalorder %s17, 0
    %p133 = por %p131, %p132
    %s134 = ssub.s32 %s11, %s18
    %p135 = scmp.eq.s32.totalorder %s134, 0
    %s137 = sadd.s32 %s136, 1
    %s138 = scalar_select %p135, %s136, %s137
    %p141 = pneg %p135
    %p142 = scmp.eq.s32.totalorder %s11, 1
    %p143 = por %p141, %p142
    %p144 = scmp.ne.s32.totalorder %s136, %s139
    %p145 = scmp.eq.s32.totalorder %s11, 0
    %p146 = por %p144, %p145
    %p147 = scmp.ne.s32.totalorder %s136, %s139
    %p148 = scmp.eq.s32.totalorder %s16, 1
    %p149 = por %p147, %p148
    %p150 = scmp.ne.s32.totalorder %s139, %s140
    %p151 = scmp.eq.s32.totalorder %s16, 0
    %p152 = por %p150, %p151
    %p153 = scmp.ne.s32.totalorder %s139, %s140
    %p154 = scmp.eq.s32.totalorder %s17, 1
    %p155 = por %p153, %p154
    %p157 = scmp.ne.s32.totalorder %s140, %s156
    %p158 = scmp.eq.s32.totalorder %s17, 0
    %p159 = por %p157, %p158
    %p160 = scmp.le.s32.totalorder 1, %s11
    %p161 = scmp.lt.s32.totalorder %s11, 3
    %p162 = pnand %p160, %p161
    %p163 = pneg %p162
    // Predicated region
    $region9: #{_lambda_.17} parent=5 // pred_check
      _
    $region10: #{_lambda_.17} parent=5 // pred_check_branch
      %165 = sbr.rel (%p162) target = $region12
    $region11: #{_lambda_.17} parent=5 // pred_region
      %s166 = ssub.s32 %s11, 1
      // Predicated region
      $region13: #{_lambda_.17} parent=11 // pred_check
        %p167 = pneg %p58
      $region14: #{_lambda_.17} parent=11 // pred_check_branch
        %169 = sbr.rel (%p167) target = $region16
      $region15: #{_lambda_.17} parent=11 // pred_region
        _
      $region16: #{_lambda_.17} parent=11 // pred_fallthru
        _
      // Predicated region
      $region17: #{_lambda_.17} parent=11 // pred_check
        %p170 = pneg %p79
      $region18: #{_lambda_.17} parent=11 // pred_check_branch
        %172 = sbr.rel (%p170) target = $region20
      $region19: #{_lambda_.17} parent=11 // pred_region
        _
      $region20: #{_lambda_.17} parent=11 // pred_fallthru
        _
      // Predicated region
      $region21: #{_lambda_.17} parent=11 // pred_check
        %p173 = pneg %p100
      $region22: #{_lambda_.17} parent=11 // pred_check_branch
        %175 = sbr.rel (%p173) target = $region24
      $region23: #{_lambda_.17} parent=11 // pred_region
        _
      $region24: #{_lambda_.17} parent=11 // pred_fallthru
        _
    $region12: #{_lambda_.17} parent=5 // pred_fallthru
      _
    %p176 = scmp.lt.s32.totalorder %s11, 2
    // Predicated region
    $region25: #{_lambda_.17} parent=5 // pred_check
      %p177 = pneg %p176
    $region26: #{_lambda_.17} parent=5 // pred_check_branch
      %179 = sbr.rel (%p177) target = $region28
    $region27: #{_lambda_.17} parent=5 // pred_region
      // Predicated region
      $region29: #{_lambda_.17} parent=27 // pred_check
        %p180 = pneg %p31
      $region30: #{_lambda_.17} parent=27 // pred_check_branch
        %182 = sbr.rel (%p180) target = $region32
      $region31: #{_lambda_.17} parent=27 // pred_region
        %s183 = smul.u32 16, %s11
        %p184 = scmp.lt.s32.totalorder %s183, 31
        %s185 = scalar_select %p184, %s183, 31
        %s186 = smul.addr %s185, 8
        %s187 = scalar_lea.vmem %s0, %s186
        %s188 = smul.u32 16, %s11
      $region32: #{_lambda_.17} parent=27 // pred_fallthru
        _
      // Predicated region
      $region33: #{_lambda_.17} parent=27 // pred_check
        %p189 = pneg %p120
      $region34: #{_lambda_.17} parent=27 // pred_check_branch
        %191 = sbr.rel (%p189) target = $region36
      $region35: #{_lambda_.17} parent=27 // pred_region
        %s192 = smul.u32 16, %s11
        %p193 = scmp.lt.s32.totalorder %s192, 31
        %s194 = scalar_select %p193, %s192, 31
        %s195 = smul.addr %s194, 8
        %s196 = scalar_lea.vmem %s4, %s195
        %s197 = smul.u32 16, %s11
      $region36: #{_lambda_.17} parent=27 // pred_fallthru
        _
    $region28: #{_lambda_.17} parent=5 // pred_fallthru
      _
    %p198 = scmp.le.s32.totalorder 1, %s11
    %p199 = scmp.lt.s32.totalorder %s11, 3
    %p200 = pnand %p198, %p199
    %p201 = pneg %p200
    // Predicated region
    $region37: #{_lambda_.17} parent=5 // pred_check
      _
    $region38: #{_lambda_.17} parent=5 // pred_check_branch
      %203 = sbr.rel (%p200) target = $region40
    $region39: #{_lambda_.17} parent=5 // pred_region
      %s204 = ssub.s32 %s11, 1
      %s205 = smul.u32 16, %s16
      %p206 = scmp.lt.s32.totalorder %s205, 31
      %s207 = scalar_select %p206, %s205, 31
      %s208 = smul.addr %s207, 8
      %s209 = scalar_lea.vmem %s0, %s208
      %p210 = pneg %p37
      %p211 = pneg %p34
      %p212 = pneg %p58
      %p213 = pneg %p55
      %p214 = pneg %p79
      %p215 = pneg %p76
      %p216 = pneg %p100
      %p217 = pneg %p97
      %s218 = smul.u32 16, %s16
      %p219 = scmp.lt.s32.totalorder %s218, 31
      %s220 = scalar_select %p219, %s218, 31
      %s221 = smul.addr %s220, 8
      %s222 = scalar_lea.vmem %s4, %s221
      %p223 = pneg %p126
      %p224 = pneg %p123
      %p225 = pneg %p152
      %p226 = pneg %p149
      %s227 = smul.u32 16, %s16
      %p228 = scmp.lt.s32.totalorder %s227, 31
      %s229 = scalar_select %p228, %s227, 31
      %s230 = smul.addr %s229, 8
      %s231 = scalar_lea.vmem %s5, %s230
      %s232 = smul.u32 16, %s16
      %p233 = scmp.lt.s32.totalorder %s232, 31
      %s234 = scalar_select %p233, %s232, 31
      %s235 = smul.addr %s234, 8
      %s236 = scalar_lea.vmem %s0, %s235
      %s237 = smul.u32 16, %s16
      %s238 = smul.u32 16, %s16
      %p239 = scmp.lt.s32.totalorder %s238, 31
      %s240 = scalar_select %p239, %s238, 31
      %s241 = smul.addr %s240, 8
      %s242 = scalar_lea.vmem %s4, %s241
      %s243 = smul.u32 16, %s16
      %s244 = smul.u32 16, %s16
      %p245 = scmp.lt.s32.totalorder %s244, 31
      %s246 = scalar_select %p245, %s244, 31
      %s247 = smul.addr %s246, 8
      %s248 = scalar_lea.vmem %s5, %s247
      %s249 = smul.u32 16, %s16
      %v250 = vld [vmem:[%s236] sm:$0xff]
      %v251 = vld [vmem:[%s236 + $0x8] sm:$0xff]
      %v252 = vld [vmem:[%s236 + $0x10] sm:$0xff]
      %v253 = vld [vmem:[%s236 + $0x18] sm:$0xff]
      %v254 = vld [vmem:[%s236 + $0x20] sm:$0xff]
      %v255 = vld [vmem:[%s236 + $0x28] sm:$0xff]
      %v256 = vld [vmem:[%s236 + $0x30] sm:$0xff]
      %v257 = vld [vmem:[%s236 + $0x38] sm:$0xff]
      %v258 = vld [vmem:[%s236 + $0x40] sm:$0xff]
      %v259 = vld [vmem:[%s236 + $0x48] sm:$0xff]
      %v260 = vld [vmem:[%s236 + $0x50] sm:$0xff]
      %v261 = vld [vmem:[%s236 + $0x58] sm:$0xff]
      %v262 = vld [vmem:[%s236 + $0x60] sm:$0xff]
      %v263 = vld [vmem:[%s236 + $0x68] sm:$0xff]
      %v264 = vld [vmem:[%s236 + $0x70] sm:$0xff]
      %v265 = vld [vmem:[%s236 + $0x78] sm:$0xff]
      %v266 = vld [vmem:[%s1] sm:$0x1]
      %v268 = vperm.slane %v266, 0
      %v270 = vmul.f32 %v250, %v268
      %v271 = vmul.f32 %v251, %v268
      %v272 = vmul.f32 %v252, %v268
      %v273 = vmul.f32 %v253, %v268
      %v274 = vmul.f32 %v254, %v268
      %v275 = vmul.f32 %v255, %v268
      %v276 = vmul.f32 %v256, %v268
      %v277 = vmul.f32 %v257, %v268
      %v278 = vmul.f32 %v258, %v268
      %v279 = vmul.f32 %v259, %v268
      %v280 = vmul.f32 %v260, %v268
      %v281 = vmul.f32 %v261, %v268
      %v282 = vmul.f32 %v262, %v268
      %v283 = vmul.f32 %v263, %v268
      %v284 = vmul.f32 %v264, %v268
      %v285 = vmul.f32 %v265, %v268
      %v286 = vld [vmem:[%s2] sm:$0x1]
      %v288 = vperm.slane %v286, 0
      %v290 = vadd.f32 %v270, %v288
      %v291 = vadd.f32 %v271, %v288
      %v292 = vadd.f32 %v272, %v288
      %v293 = vadd.f32 %v273, %v288
      %v294 = vadd.f32 %v274, %v288
      %v295 = vadd.f32 %v275, %v288
      %v296 = vadd.f32 %v276, %v288
      %v297 = vadd.f32 %v277, %v288
      %v298 = vadd.f32 %v278, %v288
      %v299 = vadd.f32 %v279, %v288
      %v300 = vadd.f32 %v280, %v288
      %v301 = vadd.f32 %v281, %v288
      %v302 = vadd.f32 %v282, %v288
      %v303 = vadd.f32 %v283, %v288
      %v304 = vadd.f32 %v284, %v288
      %v305 = vadd.f32 %v285, %v288
      %v306 = vld [vmem:[%s3] sm:$0xff]
      %v307 = vld [vmem:[%s3 + $0x8] sm:$0x3f]
      %vm308 = vcmask 113664
      %v310 = vsel %vm308, %v290, 0
      %v313 = vsel %vm308, %v291, 0
      %v316 = vsel %vm308, %v292, 0
      %v319 = vsel %vm308, %v293, 0
      %v322 = vsel %vm308, %v294, 0
      %v325 = vsel %vm308, %v295, 0
      %v328 = vsel %vm308, %v296, 0
      %v331 = vsel %vm308, %v297, 0
      %v334 = vsel %vm308, %v298, 0
      %v337 = vsel %vm308, %v299, 0
      %v340 = vsel %vm308, %v300, 0
      %v343 = vsel %vm308, %v301, 0
      %v346 = vsel %vm308, %v302, 0
      %v349 = vsel %vm308, %v303, 0
      %v352 = vsel %vm308, %v304, 0
      %v355 = vsel %vm308, %v305, 0
      %vm357 = vcmask 1045504
      %v359 = vsel %vm357, %v307, 0
      %361 = vmatpush.msra.mxu0 0.0
      %362 = vmatpush.msra.mxu0 0.0
      %363 = vmatpush.msra.mxu0 0.0
      %364 = vmatpush.msra.mxu0 0.0
      %365 = vmatpush.msra.mxu0 0.0
      %366 = vmatpush.msra.mxu0 0.0
      %367 = vmatpush.msra.mxu0 0.0
      %368 = vmatpush.msra.mxu0 0.0
      %369 = vmatpush.msra.mxu0 0.0
      %370 = vmatpush.msra.mxu0 0.0
      %371 = vmatpush.msra.mxu0 0.0
      %372 = vmatpush.msra.mxu0 0.0
      %373 = vmatpush.msra.mxu0 0.0
      %374 = vmatpush.msra.mxu0 0.0
      %375 = vmatpush.msra.mxu0 %v359
      %376 = vmatpush.msra.mxu0 %v306
      %377 = vmatmul.f32.gmra.mxu0 %v310
      %v378 = vpop.f32.mrf.mxu0
      %v379 = vadd.f32 0.0, %v378
      %380 = vmatmul.f32.gmra.mxu0 %v313
      %v381 = vpop.f32.mrf.mxu0
      %v382 = vadd.f32 0.0, %v381
      %383 = vmatmul.f32.gmra.mxu0 %v316
      %v384 = vpop.f32.mrf.mxu0
      %v385 = vadd.f32 0.0, %v384
      %386 = vmatmul.f32.gmra.mxu0 %v319
      %v387 = vpop.f32.mrf.mxu0
      %v388 = vadd.f32 0.0, %v387
      %389 = vmatmul.f32.gmra.mxu0 %v322
      %v390 = vpop.f32.mrf.mxu0
      %v391 = vadd.f32 0.0, %v390
      %392 = vmatmul.f32.gmra.mxu0 %v325
      %v393 = vpop.f32.mrf.mxu0
      %v394 = vadd.f32 0.0, %v393
      %395 = vmatmul.f32.gmra.mxu0 %v328
      %v396 = vpop.f32.mrf.mxu0
      %v397 = vadd.f32 0.0, %v396
      %398 = vmatmul.f32.gmra.mxu0 %v331
      %v399 = vpop.f32.mrf.mxu0
      %v400 = vadd.f32 0.0, %v399
      %401 = vmatmul.f32.gmra.mxu0 %v334
      %v402 = vpop.f32.mrf.mxu0
      %v403 = vadd.f32 0.0, %v402
      %404 = vmatmul.f32.gmra.mxu0 %v337
      %v405 = vpop.f32.mrf.mxu0
      %v406 = vadd.f32 0.0, %v405
      %407 = vmatmul.f32.gmra.mxu0 %v340
      %v408 = vpop.f32.mrf.mxu0
      %v409 = vadd.f32 0.0, %v408
      %410 = vmatmul.f32.gmra.mxu0 %v343
      %v411 = vpop.f32.mrf.mxu0
      %v412 = vadd.f32 0.0, %v411
      %413 = vmatmul.f32.gmra.mxu0 %v346
      %v414 = vpop.f32.mrf.mxu0
      %v415 = vadd.f32 0.0, %v414
      %416 = vmatmul.f32.gmra.mxu0 %v349
      %v417 = vpop.f32.mrf.mxu0
      %v418 = vadd.f32 0.0, %v417
      %419 = vmatmul.f32.gmra.mxu0 %v352
      %v420 = vpop.f32.mrf.mxu0
      %v421 = vadd.f32 0.0, %v420
      %422 = vmatmul.f32.gmra.mxu0 %v355
      %v423 = vpop.f32.mrf.mxu0
      %v424 = vadd.f32 0.0, %v423
      %425 = vdwg.mxu0
      %v426 = vld [vmem:[%s242] sm:$0xff]
      %v427 = vld [vmem:[%s242 + $0x8] sm:$0xff]
      %v428 = vld [vmem:[%s242 + $0x10] sm:$0xff]
      %v429 = vld [vmem:[%s242 + $0x18] sm:$0xff]
      %v430 = vld [vmem:[%s242 + $0x20] sm:$0xff]
      %v431 = vld [vmem:[%s242 + $0x28] sm:$0xff]
      %v432 = vld [vmem:[%s242 + $0x30] sm:$0xff]
      %v433 = vld [vmem:[%s242 + $0x38] sm:$0xff]
      %v434 = vld [vmem:[%s242 + $0x40] sm:$0xff]
      %v435 = vld [vmem:[%s242 + $0x48] sm:$0xff]
      %v436 = vld [vmem:[%s242 + $0x50] sm:$0xff]
      %v437 = vld [vmem:[%s242 + $0x58] sm:$0xff]
      %v438 = vld [vmem:[%s242 + $0x60] sm:$0xff]
      %v439 = vld [vmem:[%s242 + $0x68] sm:$0xff]
      %v440 = vld [vmem:[%s242 + $0x70] sm:$0xff]
      %v441 = vld [vmem:[%s242 + $0x78] sm:$0xff]
      %443 = vset.pattern.permute.xlu0 0
      %444 = vperm.xlu0 %443, %v426
      %v445 = vpop.permute.xlu0 %444
      %448 = vset.pattern.permute.xlu0 0
      %449 = vperm.xlu0 %448, %v427
      %v450 = vpop.permute.xlu0 %449
      %453 = vset.pattern.permute.xlu0 0
      %454 = vperm.xlu0 %453, %v428
      %v455 = vpop.permute.xlu0 %454
      %458 = vset.pattern.permute.xlu0 0
      %459 = vperm.xlu0 %458, %v429
      %v460 = vpop.permute.xlu0 %459
      %463 = vset.pattern.permute.xlu0 0
      %464 = vperm.xlu0 %463, %v430
      %v465 = vpop.permute.xlu0 %464
      %468 = vset.pattern.permute.xlu0 0
      %469 = vperm.xlu0 %468, %v431
      %v470 = vpop.permute.xlu0 %469
      %473 = vset.pattern.permute.xlu0 0
      %474 = vperm.xlu0 %473, %v432
      %v475 = vpop.permute.xlu0 %474
      %478 = vset.pattern.permute.xlu0 0
      %479 = vperm.xlu0 %478, %v433
      %v480 = vpop.permute.xlu0 %479
      %483 = vset.pattern.permute.xlu0 0
      %484 = vperm.xlu0 %483, %v434
      %v485 = vpop.permute.xlu0 %484
      %488 = vset.pattern.permute.xlu0 0
      %489 = vperm.xlu0 %488, %v435
      %v490 = vpop.permute.xlu0 %489
      %493 = vset.pattern.permute.xlu0 0
      %494 = vperm.xlu0 %493, %v436
      %v495 = vpop.permute.xlu0 %494
      %498 = vset.pattern.permute.xlu0 0
      %499 = vperm.xlu0 %498, %v437
      %v500 = vpop.permute.xlu0 %499
      %503 = vset.pattern.permute.xlu0 0
      %504 = vperm.xlu0 %503, %v438
      %v505 = vpop.permute.xlu0 %504
      %508 = vset.pattern.permute.xlu0 0
      %509 = vperm.xlu0 %508, %v439
      %v510 = vpop.permute.xlu0 %509
      %513 = vset.pattern.permute.xlu0 0
      %514 = vperm.xlu0 %513, %v440
      %v515 = vpop.permute.xlu0 %514
      %518 = vset.pattern.permute.xlu0 0
      %519 = vperm.xlu0 %518, %v441
      %v520 = vpop.permute.xlu0 %519
      %v522 = vmul.f32 %v445, %v379
      %v523 = vmul.f32 %v450, %v382
      %v524 = vmul.f32 %v455, %v385
      %v525 = vmul.f32 %v460, %v388
      %v526 = vmul.f32 %v465, %v391
      %v527 = vmul.f32 %v470, %v394
      %v528 = vmul.f32 %v475, %v397
      %v529 = vmul.f32 %v480, %v400
      %v530 = vmul.f32 %v485, %v403
      %v531 = vmul.f32 %v490, %v406
      %v532 = vmul.f32 %v495, %v409
      %v533 = vmul.f32 %v500, %v412
      %v534 = vmul.f32 %v505, %v415
      %v535 = vmul.f32 %v510, %v418
      %v536 = vmul.f32 %v515, %v421
      %v537 = vmul.f32 %v520, %v424
      %vm538 = vcmask 64512
      %539 = vst.msk [vmem:[%s248] sm:$0xff] %vm538, %v522
      %540 = vst.msk [vmem:[%s248 + $0x8] sm:$0xff] %vm538, %v523
      %541 = vst.msk [vmem:[%s248 + $0x10] sm:$0xff] %vm538, %v524
      %542 = vst.msk [vmem:[%s248 + $0x18] sm:$0xff] %vm538, %v525
      %543 = vst.msk [vmem:[%s248 + $0x20] sm:$0xff] %vm538, %v526
      %544 = vst.msk [vmem:[%s248 + $0x28] sm:$0xff] %vm538, %v527
      %545 = vst.msk [vmem:[%s248 + $0x30] sm:$0xff] %vm538, %v528
      %546 = vst.msk [vmem:[%s248 + $0x38] sm:$0xff] %vm538, %v529
      %547 = vst.msk [vmem:[%s248 + $0x40] sm:$0xff] %vm538, %v530
      %548 = vst.msk [vmem:[%s248 + $0x48] sm:$0xff] %vm538, %v531
      %549 = vst.msk [vmem:[%s248 + $0x50] sm:$0xff] %vm538, %v532
      %550 = vst.msk [vmem:[%s248 + $0x58] sm:$0xff] %vm538, %v533
      %551 = vst.msk [vmem:[%s248 + $0x60] sm:$0xff] %vm538, %v534
      %552 = vst.msk [vmem:[%s248 + $0x68] sm:$0xff] %vm538, %v535
      %553 = vst.msk [vmem:[%s248 + $0x70] sm:$0xff] %vm538, %v536
      %554 = vst.msk [vmem:[%s248 + $0x78] sm:$0xff] %vm538, %v537
      %s555 = smul.u32 16, %s16
      %p556 = scmp.lt.s32.totalorder %s555, 31
      %s557 = scalar_select %p556, %s555, 31
      %s558 = smul.addr %s557, 8
      %s559 = scalar_lea.vmem %s5, %s558
      // Predicated region
      $region41: #{_lambda_.17} parent=39 // pred_check
        %p560 = pneg %p149
      $region42: #{_lambda_.17} parent=39 // pred_check_branch
        %562 = sbr.rel (%p560) target = $region44
      $region43: #{_lambda_.17} parent=39 // pred_region
        %s563 = smul.u32 16, %s16
      $region44: #{_lambda_.17} parent=39 // pred_fallthru
        _
    $region40: #{_lambda_.17} parent=5 // pred_fallthru
      _
    %p564 = scmp.le.s32.totalorder 2, %s11
    // Predicated region
    $region45: #{_lambda_.17} parent=5 // pred_check
      %p565 = pneg %p564
    $region46: #{_lambda_.17} parent=5 // pred_check_branch
      %567 = sbr.rel (%p565) target = $region48
    $region47: #{_lambda_.17} parent=5 // pred_region
      %s568 = ssub.s32 %s11, 2
      // Predicated region
      $region49: #{_lambda_.17} parent=47 // pred_check
        %p569 = pneg %p155
      $region50: #{_lambda_.17} parent=47 // pred_check_branch
        %571 = sbr.rel (%p569) target = $region52
      $region51: #{_lambda_.17} parent=47 // pred_region
        %s572 = smul.u32 16, %s17
        %p573 = scmp.lt.s32.totalorder %s572, 31
        %s574 = scalar_select %p573, %s572, 31
        %s575 = smul.addr %s574, 8
        %s576 = scalar_lea.vmem %s5, %s575
      $region52: #{_lambda_.17} parent=47 // pred_fallthru
        _
    $region48: #{_lambda_.17} parent=5 // pred_fallthru
      _
  $region6: #{_lambda_.17} parent=0 // loop_footer
    %s15 = sadd.s32 1, %s11
  $region7: #{_lambda_.17} parent=0 // loop_footer_branch
    %10 = sbr.rel target = $region3
  $region8: #{_lambda_.17} parent=0 // loop_exit
    _

// kernel: _lambda_.18
$region0: #{_lambda_.18}
  #allocation0 [shape = 'u32[]', space=smem, size = 0x4, offset = 0x4, fixed_abs, tag = 'smem constant byte address 0x4 - core index']
  #allocation1 [shape = 'u32[72,128]{1,0:T(1,128)}', space=vmem, size = 0x9000, scoped, tag = 'internal scratch']
  #allocation2 [shape = 'f32[128,8]{1,0:T(8,128)}', space=vmem, size = 0x10000, scoped, tag = 'scratch operand']
  %s0 = inlined_call_operand.vmem [shape: f32[256,256], index: 0, kind: input, shape index: {}]
  %s1 = inlined_call_operand.vmem [shape: f32[256,8], index: 1, kind: input, shape index: {}, may-alias: {1,2}]
  %s2 = inlined_call_operand.vmem [shape: f32[256,8], index: 2, kind: input, shape index: {}, may-alias: {1,2}]
  %s3 = inlined_call_operand.vmem [shape: f32[256,1], index: 3, kind: input, shape index: {}]
  %s4 = inlined_call_operand.vmem [shape: f32[1,8], index: 4, kind: input, shape index: {}]
  %s5 = inlined_call_operand.vmem [shape: f32[256,8], index: 5, kind: output, shape index: {0}]
  %s6 = inlined_call_operand.vmem [shape: f32[2,1,8], index: 6, kind: output, shape index: {1}]
  %s7 = inlined_call_operand.vmem [shape: f32[2,1,8], index: 7, kind: output, shape index: {2}]
  %8 = xla_tuple %s5, %s6, %s7
  %s9 = sld [smem:[#allocation0]]
  $region115: #{_lambda_.18} parent=0
    _
  %s11 = ssub.s32 1, %s9
  %s12 = scalar_select 0, %s11, %s9
  $region1: #{_lambda_.18} parent=0
    #allocation3 [shape = 'u8[131072]{0}', space=vmem, size = 0x20000, scoped, tag = 'input window, operand 0']
    loop: start=0, step=1, limit=6
    $region2: #{_lambda_.18} parent=1 // loop_pre_header
      _
    $region3: #{_lambda_.18} parent=1 // loop_header
      %s14 = sphi 0, %s18
      %p15 = scmp.ge.s32.totalorder %s14, 6
      %s21 = sphi 0, %s33
      %s22 = sphi 0, %s29
      %s23 = sphi 0, %s21
      %s24 = sphi 0, %s22
      %s25 = sphi 0, %s23
      %s26 = sphi 0, %s24
      %s38 = sphi 0, %s40
      %s41 = sphi 0, %s38
      %s42 = sphi 0, %s41
      %s58 = sphi 0, %s42
      %s64 = sphi 0, %s66
      %s67 = sphi 0, %s64
      %s68 = sphi 0, %s67
      %s84 = sphi 0, %s68
      %s90 = sphi 0, %s92
      %s93 = sphi 0, %s90
      %s94 = sphi 0, %s93
      %s110 = sphi 0, %s94
      %s116 = sphi 0, %s118
      %s119 = sphi 0, %s116
      %s120 = sphi 0, %s119
      %s136 = sphi 0, %s120
      %s140 = sphi 0, %s140
      %s142 = sphi 0, %s140
      %s143 = sphi 0, %s142
      %s157 = sphi 0, %s143
      %s163 = sphi 0, %s165
      %s166 = sphi 0, %s163
      %s167 = sphi 0, %s166
      %s183 = sphi 0, %s167
      %s189 = sphi 0, %s191
      %s192 = sphi 0, %s189
      %s193 = sphi 0, %s192
      %s209 = sphi 0, %s193
      %s215 = sphi 0, %s217
      %s218 = sphi 0, %s215
      %s219 = sphi 0, %s218
      %s235 = sphi 0, %s219
    $region4: #{_lambda_.18} parent=1 // loop_header_branch
      %17 = sbr.rel (%p15) target = $region8
    $region5: #{_lambda_.18} parent=1 // loop_body
      %s19 = ssub.s32 %s14, 1
      %s20 = ssub.s32 %s14, 2
      %s27 = sadd.s32 1, %s22
      %p28 = scmp.ge.s32.totalorder %s27, 2
      %s29 = scalar_select %p28, 0, %s27
      %s30 = sadd.s32 1, %s21
      %s31 = scalar_select %p28, %s30, %s21
      %p32 = scmp.ge.s32.totalorder %s31, 2
      %s33 = scalar_select %p32, 0, %s31
      %s34 = ssub.s32 %s21, %s33
      %s35 = ssub.s32 %s22, %s29
      %s36 = sor.u32 %s34, %s35
      %p37 = scmp.eq.s32.totalorder %s36, 0
      %s39 = sadd.s32 %s38, 1
      %s40 = scalar_select %p37, %s38, %s39
      %p43 = pneg %p37
      %p44 = scmp.eq.s32.totalorder %s14, 3
      %p45 = por %p43, %p44
      %p46 = scmp.ne.s32.totalorder %s38, %s41
      %p47 = scmp.eq.s32.totalorder %s14, 0
      %p48 = por %p46, %p47
      %p49 = scmp.ne.s32.totalorder %s38, %s41
      %p50 = scmp.eq.s32.totalorder %s19, 3
      %p51 = por %p49, %p50
      %p52 = scmp.ne.s32.totalorder %s41, %s42
      %p53 = scmp.eq.s32.totalorder %s19, 0
      %p54 = por %p52, %p53
      %p55 = scmp.ne.s32.totalorder %s41, %s42
      %p56 = scmp.eq.s32.totalorder %s20, 3
      %p57 = por %p55, %p56
      %p59 = scmp.ne.s32.totalorder %s42, %s58
      %p60 = scmp.eq.s32.totalorder %s20, 0
      %p61 = por %p59, %p60
      %s62 = ssub.s32 %s22, %s29
      %p63 = scmp.eq.s32.totalorder %s62, 0
      %s65 = sadd.s32 %s64, 1
      %s66 = scalar_select %p63, %s64, %s65
      %p69 = pneg %p63
      %p70 = scmp.eq.s32.totalorder %s14, 3
      %p71 = por %p69, %p70
      %p72 = scmp.ne.s32.totalorder %s64, %s67
      %p73 = scmp.eq.s32.totalorder %s14, 0
      %p74 = por %p72, %p73
      %p75 = scmp.ne.s32.totalorder %s64, %s67
      %p76 = scmp.eq.s32.totalorder %s19, 3
      %p77 = por %p75, %p76
      %p78 = scmp.ne.s32.totalorder %s67, %s68
      %p79 = scmp.eq.s32.totalorder %s19, 0
      %p80 = por %p78, %p79
      %p81 = scmp.ne.s32.totalorder %s67, %s68
      %p82 = scmp.eq.s32.totalorder %s20, 3
      %p83 = por %p81, %p82
      %p85 = scmp.ne.s32.totalorder %s68, %s84
      %p86 = scmp.eq.s32.totalorder %s20, 0
      %p87 = por %p85, %p86
      %s88 = ssub.s32 %s21, %s33
      %p89 = scmp.eq.s32.totalorder %s88, 0
      %s91 = sadd.s32 %s90, 1
      %s92 = scalar_select %p89, %s90, %s91
      %p95 = pneg %p89
      %p96 = scmp.eq.s32.totalorder %s14, 3
      %p97 = por %p95, %p96
      %p98 = scmp.ne.s32.totalorder %s90, %s93
      %p99 = scmp.eq.s32.totalorder %s14, 0
      %p100 = por %p98, %p99
      %p101 = scmp.ne.s32.totalorder %s90, %s93
      %p102 = scmp.eq.s32.totalorder %s19, 3
      %p103 = por %p101, %p102
      %p104 = scmp.ne.s32.totalorder %s93, %s94
      %p105 = scmp.eq.s32.totalorder %s19, 0
      %p106 = por %p104, %p105
      %p107 = scmp.ne.s32.totalorder %s93, %s94
      %p108 = scmp.eq.s32.totalorder %s20, 3
      %p109 = por %p107, %p108
      %p111 = scmp.ne.s32.totalorder %s94, %s110
      %p112 = scmp.eq.s32.totalorder %s20, 0
      %p113 = por %p111, %p112
      %s114 = ssub.s32 %s21, %s33
      %p115 = scmp.eq.s32.totalorder %s114, 0
      %s117 = sadd.s32 %s116, 1
      %s118 = scalar_select %p115, %s116, %s117
      %p121 = pneg %p115
      %p122 = scmp.eq.s32.totalorder %s14, 3
      %p123 = por %p121, %p122
      %p124 = scmp.ne.s32.totalorder %s116, %s119
      %p125 = scmp.eq.s32.totalorder %s14, 0
      %p126 = por %p124, %p125
      %p127 = scmp.ne.s32.totalorder %s116, %s119
      %p128 = scmp.eq.s32.totalorder %s19, 3
      %p129 = por %p127, %p128
      %p130 = scmp.ne.s32.totalorder %s119, %s120
      %p131 = scmp.eq.s32.totalorder %s19, 0
      %p132 = por %p130, %p131
      %p133 = scmp.ne.s32.totalorder %s119, %s120
      %p134 = scmp.eq.s32.totalorder %s20, 3
      %p135 = por %p133, %p134
      %p137 = scmp.ne.s32.totalorder %s120, %s136
      %p138 = scmp.eq.s32.totalorder %s20, 0
      %p139 = por %p137, %p138
      %s141 = sadd.s32 %s140, 1
      %p144 = scmp.eq.s32.totalorder %s14, 3
      %p145 = scmp.ne.s32.totalorder %s140, %s142
      %p146 = scmp.eq.s32.totalorder %s14, 0
      %p147 = por %p145, %p146
      %p148 = scmp.ne.s32.totalorder %s140, %s142
      %p149 = scmp.eq.s32.totalorder %s19, 3
      %p150 = por %p148, %p149
      %p151 = scmp.ne.s32.totalorder %s142, %s143
      %p152 = scmp.eq.s32.totalorder %s19, 0
      %p153 = por %p151, %p152
      %p154 = scmp.ne.s32.totalorder %s142, %s143
      %p155 = scmp.eq.s32.totalorder %s20, 3
      %p156 = por %p154, %p155
      %p158 = scmp.ne.s32.totalorder %s143, %s157
      %p159 = scmp.eq.s32.totalorder %s20, 0
      %p160 = por %p158, %p159
      %s161 = ssub.s32 %s21, %s33
      %p162 = scmp.eq.s32.totalorder %s161, 0
      %s164 = sadd.s32 %s163, 1
      %s165 = scalar_select %p162, %s163, %s164
      %p168 = pneg %p162
      %p169 = scmp.eq.s32.totalorder %s14, 3
      %p170 = por %p168, %p169
      %p171 = scmp.ne.s32.totalorder %s163, %s166
      %p172 = scmp.eq.s32.totalorder %s14, 0
      %p173 = por %p171, %p172
      %p174 = scmp.ne.s32.totalorder %s163, %s166
      %p175 = scmp.eq.s32.totalorder %s19, 3
      %p176 = por %p174, %p175
      %p177 = scmp.ne.s32.totalorder %s166, %s167
      %p178 = scmp.eq.s32.totalorder %s19, 0
      %p179 = por %p177, %p178
      %p180 = scmp.ne.s32.totalorder %s166, %s167
      %p181 = scmp.eq.s32.totalorder %s20, 3
      %p182 = por %p180, %p181
      %p184 = scmp.ne.s32.totalorder %s167, %s183
      %p185 = scmp.eq.s32.totalorder %s20, 0
      %p186 = por %p184, %p185
      %s187 = ssub.s32 %s21, %s33
      %p188 = scmp.eq.s32.totalorder %s187, 0
      %s190 = sadd.s32 %s189, 1
      %s191 = scalar_select %p188, %s189, %s190
      %p194 = pneg %p188
      %p195 = scmp.eq.s32.totalorder %s14, 3
      %p196 = por %p194, %p195
      %p197 = scmp.ne.s32.totalorder %s189, %s192
      %p198 = scmp.eq.s32.totalorder %s14, 0
      %p199 = por %p197, %p198
      %p200 = scmp.ne.s32.totalorder %s189, %s192
      %p201 = scmp.eq.s32.totalorder %s19, 3
      %p202 = por %p200, %p201
      %p203 = scmp.ne.s32.totalorder %s192, %s193
      %p204 = scmp.eq.s32.totalorder %s19, 0
      %p205 = por %p203, %p204
      %p206 = scmp.ne.s32.totalorder %s192, %s193
      %p207 = scmp.eq.s32.totalorder %s20, 3
      %p208 = por %p206, %p207
      %p210 = scmp.ne.s32.totalorder %s193, %s209
      %p211 = scmp.eq.s32.totalorder %s20, 0
      %p212 = por %p210, %p211
      %s213 = ssub.s32 %s21, %s33
      %p214 = scmp.eq.s32.totalorder %s213, 0
      %s216 = sadd.s32 %s215, 1
      %s217 = scalar_select %p214, %s215, %s216
      %p220 = pneg %p214
      %p221 = scmp.eq.s32.totalorder %s14, 3
      %p222 = por %p220, %p221
      %p223 = scmp.ne.s32.totalorder %s215, %s218
      %p224 = scmp.eq.s32.totalorder %s14, 0
      %p225 = por %p223, %p224
      %p226 = scmp.ne.s32.totalorder %s215, %s218
      %p227 = scmp.eq.s32.totalorder %s19, 3
      %p228 = por %p226, %p227
      %p229 = scmp.ne.s32.totalorder %s218, %s219
      %p230 = scmp.eq.s32.totalorder %s19, 0
      %p231 = por %p229, %p230
      %p232 = scmp.ne.s32.totalorder %s218, %s219
      %p233 = scmp.eq.s32.totalorder %s20, 3
      %p234 = por %p232, %p233
      %p236 = scmp.ne.s32.totalorder %s219, %s235
      %p237 = scmp.eq.s32.totalorder %s20, 0
      %p238 = por %p236, %p237
      %p239 = scmp.le.s32.totalorder 1, %s14
      %p240 = scmp.lt.s32.totalorder %s14, 5
      %p241 = pnand %p239, %p240
      %p242 = pneg %p241
      // Predicated region
      $region9: #{_lambda_.18} parent=5 // pred_check
        _
      $region10: #{_lambda_.18} parent=5 // pred_check_branch
        %244 = sbr.rel (%p241) target = $region12
      $region11: #{_lambda_.18} parent=5 // pred_region
        %s245 = ssub.s32 %s14, 1
        // Predicated region
        $region13: #{_lambda_.18} parent=11 // pred_check
          %p246 = pneg %p153
        $region14: #{_lambda_.18} parent=11 // pred_check_branch
          %248 = sbr.rel (%p246) target = $region16
        $region15: #{_lambda_.18} parent=11 // pred_region
          _
        $region16: #{_lambda_.18} parent=11 // pred_fallthru
          _
      $region12: #{_lambda_.18} parent=5 // pred_fallthru
        _
      %p249 = scmp.lt.s32.totalorder %s14, 4
      // Predicated region
      $region17: #{_lambda_.18} parent=5 // pred_check
        %p250 = pneg %p249
      $region18: #{_lambda_.18} parent=5 // pred_check_branch
        %252 = sbr.rel (%p250) target = $region20
      $region19: #{_lambda_.18} parent=5 // pred_region
        // Predicated region
        $region21: #{_lambda_.18} parent=19 // pred_check
          %p253 = pneg %p48
        $region22: #{_lambda_.18} parent=19 // pred_check_branch
          %255 = sbr.rel (%p253) target = $region24
        $region23: #{_lambda_.18} parent=19 // pred_region
          %s256 = sand.u32 %s38, 1
          %s257 = sand.u32 %s38, 1
          %s258 = smul.addr %s257, 128
          %s259 = scalar_lea.vmem [#allocation3], %s258
          %s260 = smul.u32 16, %s21
          %s261 = smul.addr %s260, 2
          %s262 = sadd.s32 %s22, %s261
          %s263 = smul.addr %s262, 8
          %s264 = scalar_lea.vmem %s0, %s263
          // Predicated region
          $region25: #{_lambda_.18} parent=23 // pred_check
            _
          $region26: #{_lambda_.18} parent=23 // pred_check_branch
            %266 = sbr.rel (0) target = $region28
          $region27: #{_lambda_.18} parent=23 // pred_region
            // Predicated region
            $region29: #{_lambda_.18} parent=27 // pred_check
              _
            $region30: #{_lambda_.18} parent=27 // pred_check_branch
              %268 = sbr.rel (0) target = $region32
            $region31: #{_lambda_.18} parent=27 // pred_region
              // Predicated region
              $region44: #{_lambda_.18} parent=31 // pred_check
                _
              $region45: #{_lambda_.18} parent=31 // pred_check_branch
                %314 = sbr.rel (0) target = $region47
              $region46: #{_lambda_.18} parent=31 // pred_region
                loop: start=0, step=1, limit=1
                $region48: #{_lambda_.18} parent=46 // loop_pre_header
                  _
                $region49: #{_lambda_.18} parent=46 // loop_header
                  %s316 = sphi 0, %s320
                  %p317 = scmp.ge.s32.totalorder %s316, 1
                  %s321 = sphi %s264, %s264
                  %s322 = sphi %s259, %s259
                $region50: #{_lambda_.18} parent=46 // loop_header_branch
                  %319 = sbr.rel (%p317) target = $region54
                $region51: #{_lambda_.18} parent=46 // loop_body
                  %v323 = vld [vmem:[%s321] sm:$0xff]
                  %324 = vst [vmem:[%s322] sm:$0xff] %v323
                  %v325 = vld [vmem:[%s321 + $0x10] sm:$0xff]
                  %326 = vst [vmem:[%s322 + $0x8] sm:$0xff] %v325
                  %v327 = vld [vmem:[%s321 + $0x20] sm:$0xff]
                  %328 = vst [vmem:[%s322 + $0x10] sm:$0xff] %v327
                  %v329 = vld [vmem:[%s321 + $0x30] sm:$0xff]
                  %330 = vst [vmem:[%s322 + $0x18] sm:$0xff] %v329
                  %v331 = vld [vmem:[%s321 + $0x40] sm:$0xff]
                  %332 = vst [vmem:[%s322 + $0x20] sm:$0xff] %v331
                  %v333 = vld [vmem:[%s321 + $0x50] sm:$0xff]
                  %334 = vst [vmem:[%s322 + $0x28] sm:$0xff] %v333
                  %v335 = vld [vmem:[%s321 + $0x60] sm:$0xff]
                  %336 = vst [vmem:[%s322 + $0x30] sm:$0xff] %v335
                  %v337 = vld [vmem:[%s321 + $0x70] sm:$0xff]
                  %338 = vst [vmem:[%s322 + $0x38] sm:$0xff] %v337
                  %v339 = vld [vmem:[%s321 + $0x80] sm:$0xff]
                  %340 = vst [vmem:[%s322 + $0x40] sm:$0xff] %v339
                  %v341 = vld [vmem:[%s321 + $0x90] sm:$0xff]
                  %342 = vst [vmem:[%s322 + $0x48] sm:$0xff] %v341
                  %v343 = vld [vmem:[%s321 + $0xa0] sm:$0xff]
                  %344 = vst [vmem:[%s322 + $0x50] sm:$0xff] %v343
                  %v345 = vld [vmem:[%s321 + $0xb0] sm:$0xff]
                  %346 = vst [vmem:[%s322 + $0x58] sm:$0xff] %v345
                  %v347 = vld [vmem:[%s321 + $0xc0] sm:$0xff]
                  %348 = vst [vmem:[%s322 + $0x60] sm:$0xff] %v347
                  %v349 = vld [vmem:[%s321 + $0xd0] sm:$0xff]
                  %350 = vst [vmem:[%s322 + $0x68] sm:$0xff] %v349
                  %v351 = vld [vmem:[%s321 + $0xe0] sm:$0xff]
                  %352 = vst [vmem:[%s322 + $0x70] sm:$0xff] %v351
                  %v353 = vld [vmem:[%s321 + $0xf0] sm:$0xff]
                  %354 = vst [vmem:[%s322 + $0x78] sm:$0xff] %v353
                $region52: #{_lambda_.18} parent=46 // loop_footer
                  %s320 = sadd.s32 1, %s316
                $region53: #{_lambda_.18} parent=46 // loop_footer_branch
                  %315 = sbr.rel target = $region49
                $region54: #{_lambda_.18} parent=46 // loop_exit
                  _
              $region47: #{_lambda_.18} parent=31 // pred_fallthru
                _
              // Predicated region
              $region55: #{_lambda_.18} parent=31 // pred_check
                _
              $region56: #{_lambda_.18} parent=31 // pred_check_branch
                %356 = sbr.rel target = $region58
              $region57: #{_lambda_.18} parent=31 // pred_region
                _
              $region58: #{_lambda_.18} parent=31 // pred_fallthru
                _
            $region32: #{_lambda_.18} parent=27 // pred_fallthru
              _
            // Predicated region
            $region33: #{_lambda_.18} parent=27 // pred_check
              _
            $region34: #{_lambda_.18} parent=27 // pred_check_branch
              %270 = sbr.rel target = $region36
            $region35: #{_lambda_.18} parent=27 // pred_region
              %s272 = ssub.s32 256, 1
              loop: start=0, step=1, limit=1
              $region37: #{_lambda_.18} parent=35 // loop_pre_header
                _
              $region38: #{_lambda_.18} parent=35 // loop_header
                %s274 = sphi 0, %s278
                %p275 = scmp.ge.s32.totalorder %s274, 1
                %s279 = sphi %s264, %s264
                %s280 = sphi %s259, %s259
              $region39: #{_lambda_.18} parent=35 // loop_header_branch
                %277 = sbr.rel (%p275) target = $region43
              $region40: #{_lambda_.18} parent=35 // loop_body
                %v281 = vld [vmem:[%s279] sm:%s272]
                %282 = vst [vmem:[%s280] sm:%s272] %v281
                %v283 = vld [vmem:[%s279 + $0x10] sm:%s272]
                %284 = vst [vmem:[%s280 + $0x8] sm:%s272] %v283
                %v285 = vld [vmem:[%s279 + $0x20] sm:%s272]
                %286 = vst [vmem:[%s280 + $0x10] sm:%s272] %v285
                %v287 = vld [vmem:[%s279 + $0x30] sm:%s272]
                %288 = vst [vmem:[%s280 + $0x18] sm:%s272] %v287
                %v289 = vld [vmem:[%s279 + $0x40] sm:%s272]
                %290 = vst [vmem:[%s280 + $0x20] sm:%s272] %v289
                %v291 = vld [vmem:[%s279 + $0x50] sm:%s272]
                %292 = vst [vmem:[%s280 + $0x28] sm:%s272] %v291
                %v293 = vld [vmem:[%s279 + $0x60] sm:%s272]
                %294 = vst [vmem:[%s280 + $0x30] sm:%s272] %v293
                %v295 = vld [vmem:[%s279 + $0x70] sm:%s272]
                %296 = vst [vmem:[%s280 + $0x38] sm:%s272] %v295
                %v297 = vld [vmem:[%s279 + $0x80] sm:%s272]
                %298 = vst [vmem:[%s280 + $0x40] sm:%s272] %v297
                %v299 = vld [vmem:[%s279 + $0x90] sm:%s272]
                %300 = vst [vmem:[%s280 + $0x48] sm:%s272] %v299
                %v301 = vld [vmem:[%s279 + $0xa0] sm:%s272]
                %302 = vst [vmem:[%s280 + $0x50] sm:%s272] %v301
                %v303 = vld [vmem:[%s279 + $0xb0] sm:%s272]
                %304 = vst [vmem:[%s280 + $0x58] sm:%s272] %v303
                %v305 = vld [vmem:[%s279 + $0xc0] sm:%s272]
                %306 = vst [vmem:[%s280 + $0x60] sm:%s272] %v305
                %v307 = vld [vmem:[%s279 + $0xd0] sm:%s272]
                %308 = vst [vmem:[%s280 + $0x68] sm:%s272] %v307
                %v309 = vld [vmem:[%s279 + $0xe0] sm:%s272]
                %310 = vst [vmem:[%s280 + $0x70] sm:%s272] %v309
                %v311 = vld [vmem:[%s279 + $0xf0] sm:%s272]
                %312 = vst [vmem:[%s280 + $0x78] sm:%s272] %v311
              $region41: #{_lambda_.18} parent=35 // loop_footer
                %s278 = sadd.s32 1, %s274
              $region42: #{_lambda_.18} parent=35 // loop_footer_branch
                %273 = sbr.rel target = $region38
              $region43: #{_lambda_.18} parent=35 // loop_exit
                _
            $region36: #{_lambda_.18} parent=27 // pred_fallthru
              _
          $region28: #{_lambda_.18} parent=23 // pred_fallthru
            _
          %357 = vnop
        $region24: #{_lambda_.18} parent=19 // pred_fallthru
          _
        // Predicated region
        $region59: #{_lambda_.18} parent=19 // pred_check
          %p358 = pneg %p74
        $region60: #{_lambda_.18} parent=19 // pred_check_branch
          %360 = sbr.rel (%p358) target = $region62
        $region61: #{_lambda_.18} parent=19 // pred_region
          %s361 = smul.u32 16, %s22
          %p362 = scmp.lt.s32.totalorder %s361, 31
          %s363 = scalar_select %p362, %s361, 31
          %s364 = smul.addr %s363, 8
          %s365 = scalar_lea.vmem %s1, %s364
          %s366 = smul.u32 16, %s22
        $region62: #{_lambda_.18} parent=19 // pred_fallthru
          _
        // Predicated region
        $region63: #{_lambda_.18} parent=19 // pred_check
          %p367 = pneg %p100
        $region64: #{_lambda_.18} parent=19 // pred_check_branch
          %369 = sbr.rel (%p367) target = $region66
        $region65: #{_lambda_.18} parent=19 // pred_region
          %s370 = smul.u32 16, %s21
          %p371 = scmp.lt.s32.totalorder %s370, 31
          %s372 = scalar_select %p371, %s370, 31
          %s373 = smul.addr %s372, 8
          %s374 = scalar_lea.vmem %s2, %s373
          %s375 = smul.u32 16, %s21
        $region66: #{_lambda_.18} parent=19 // pred_fallthru
          _
        // Predicated region
        $region67: #{_lambda_.18} parent=19 // pred_check
          %p376 = pneg %p126
        $region68: #{_lambda_.18} parent=19 // pred_check_branch
          %378 = sbr.rel (%p376) target = $region70
        $region69: #{_lambda_.18} parent=19 // pred_region
          %s379 = smul.u32 16, %s21
          %p380 = scmp.lt.s32.totalorder %s379, 31
          %s381 = scalar_select %p380, %s379, 31
          %s382 = smul.addr %s381, 8
          %s383 = scalar_lea.vmem %s3, %s382
          %s384 = smul.u32 16, %s21
        $region70: #{_lambda_.18} parent=19 // pred_fallthru
          _
      $region20: #{_lambda_.18} parent=5 // pred_fallthru
        _
      %p385 = scmp.le.s32.totalorder 1, %s14
      %p386 = scmp.lt.s32.totalorder %s14, 5
      %p387 = pnand %p385, %p386
      %p388 = pneg %p387
      // Predicated region
      $region71: #{_lambda_.18} parent=5 // pred_check
        _
      $region72: #{_lambda_.18} parent=5 // pred_check_branch
        %390 = sbr.rel (%p387) target = $region74
      $region73: #{_lambda_.18} parent=5 // pred_region
        %s391 = ssub.s32 %s14, 1
        %s392 = sand.u32 %s41, 1
        %s393 = sand.u32 %s41, 1
        %s394 = smul.addr %s393, 128
        %s395 = scalar_lea.vmem [#allocation3], %s394
        // Predicated region
        $region75: #{_lambda_.18} parent=73 // pred_check
          %p396 = pneg %p54
        $region76: #{_lambda_.18} parent=73 // pred_check_branch
          %398 = sbr.rel (%p396) target = $region78
        $region77: #{_lambda_.18} parent=73 // pred_region
          _
        $region78: #{_lambda_.18} parent=73 // pred_fallthru
          _
        %s399 = sand.u32 %s41, 1
        %s400 = sand.u32 %s41, 1
        %s401 = smul.addr %s400, 128
        %s402 = scalar_lea.vmem [#allocation3], %s401
        %p403 = pneg %p54
        %p404 = pneg %p51
        %s405 = smul.u32 16, %s24
        %p406 = scmp.lt.s32.totalorder %s405, 31
        %s407 = scalar_select %p406, %s405, 31
        %s408 = smul.addr %s407, 8
        %s409 = scalar_lea.vmem %s1, %s408
        %p410 = pneg %p80
        %p411 = pneg %p77
        %s412 = smul.u32 16, %s23
        %p413 = scmp.lt.s32.totalorder %s412, 31
        %s414 = scalar_select %p413, %s412, 31
        %s415 = smul.addr %s414, 8
        %s416 = scalar_lea.vmem %s2, %s415
        %p417 = pneg %p106
        %p418 = pneg %p103
        %s419 = smul.u32 16, %s23
        %p420 = scmp.lt.s32.totalorder %s419, 31
        %s421 = scalar_select %p420, %s419, 31
        %s422 = smul.addr %s421, 8
        %s423 = scalar_lea.vmem %s3, %s422
        %p424 = pneg %p132
        %p425 = pneg %p129
        %p426 = pneg %p153
        %p427 = pneg %p150
        %p428 = pneg %p179
        %p429 = pneg %p176
        %s430 = smul.u32 16, %s23
        %p431 = scmp.lt.s32.totalorder %s430, 31
        %s432 = scalar_select %p431, %s430, 31
        %s433 = smul.addr %s432, 8
        %s434 = scalar_lea.vmem %s5, %s433
        %p435 = pneg %p205
        %p436 = pneg %p202
        %p437 = scmp.lt.s32.totalorder %s23, 1
        %s438 = scalar_select %p437, %s23, 1
        %s439 = scalar_lea.vmem %s6, %s438
        %p440 = pneg %p231
        %p441 = pneg %p228
        %p442 = scmp.lt.s32.totalorder %s23, 1
        %s443 = scalar_select %p442, %s23, 1
        %s444 = scalar_lea.vmem %s7, %s443
        %s445 = smul.u32 16, %s23
        %s446 = smul.u32 16, %s24
        %p447 = scmp.lt.s32.totalorder %s446, 31
        %s448 = scalar_select %p447, %s446, 31
        %s449 = smul.addr %s448, 8
        %s450 = scalar_lea.vmem %s1, %s449
        %s451 = smul.u32 16, %s24
        %s452 = smul.u32 16, %s23
        %p453 = scmp.lt.s32.totalorder %s452, 31
        %s454 = scalar_select %p453, %s452, 31
        %s455 = smul.addr %s454, 8
        %s456 = scalar_lea.vmem %s2, %s455
        %s457 = smul.u32 16, %s23
        %s458 = smul.u32 16, %s23
        %p459 = scmp.lt.s32.totalorder %s458, 31
        %s460 = scalar_select %p459, %s458, 31
        %s461 = smul.addr %s460, 8
        %s462 = scalar_lea.vmem %s3, %s461
        %s463 = smul.u32 16, %s23
        %s464 = smul.u32 16, %s23
        %p465 = scmp.lt.s32.totalorder %s464, 31
        %s466 = scalar_select %p465, %s464, 31
        %s467 = smul.addr %s466, 8
        %s468 = scalar_lea.vmem %s5, %s467
        %s469 = smul.u32 16, %s23
        %p470 = scmp.lt.s32.totalorder %s23, 1
        %s471 = scalar_select %p470, %s23, 1
        %s472 = scalar_lea.vmem %s6, %s471
        %p473 = scmp.lt.s32.totalorder %s23, 1
        %s474 = scalar_select %p473, %s23, 1
        %s475 = scalar_lea.vmem %s7, %s474
        %p476 = scmp.eq.s32.totalorder %s24, 0
        // Predicated region
        $region79: #{_lambda_.18} parent=73 // pred_check
          %p477 = pneg %p476
        $region80: #{_lambda_.18} parent=73 // pred_check_branch
          %479 = sbr.rel (%p477) target = $region82
        $region81: #{_lambda_.18} parent=73 // pred_region
          %vm480 = vcmask 64512
          %481 = vst.msk [vmem:[#allocation2] sm:$0xff] %vm480, 0.0
          %482 = vst.msk [vmem:[#allocation2 + $0x8] sm:$0xff] %vm480, 0.0
          %483 = vst.msk [vmem:[#allocation2 + $0x10] sm:$0xff] %vm480, 0.0
          %484 = vst.msk [vmem:[#allocation2 + $0x18] sm:$0xff] %vm480, 0.0
          %485 = vst.msk [vmem:[#allocation2 + $0x20] sm:$0xff] %vm480, 0.0
          %486 = vst.msk [vmem:[#allocation2 + $0x28] sm:$0xff] %vm480, 0.0
          %487 = vst.msk [vmem:[#allocation2 + $0x30] sm:$0xff] %vm480, 0.0
          %488 = vst.msk [vmem:[#allocation2 + $0x38] sm:$0xff] %vm480, 0.0
          %489 = vst.msk [vmem:[#allocation2 + $0x40] sm:$0xff] %vm480, 0.0
          %490 = vst.msk [vmem:[#allocation2 + $0x48] sm:$0xff] %vm480, 0.0
          %491 = vst.msk [vmem:[#allocation2 + $0x50] sm:$0xff] %vm480, 0.0
          %492 = vst.msk [vmem:[#allocation2 + $0x58] sm:$0xff] %vm480, 0.0
          %493 = vst.msk [vmem:[#allocation2 + $0x60] sm:$0xff] %vm480, 0.0
          %494 = vst.msk [vmem:[#allocation2 + $0x68] sm:$0xff] %vm480, 0.0
          %495 = vst.msk [vmem:[#allocation2 + $0x70] sm:$0xff] %vm480, 0.0
          %496 = vst.msk [vmem:[#allocation2 + $0x78] sm:$0xff] %vm480, 0.0
        $region82: #{_lambda_.18} parent=73 // pred_fallthru
          _
        %v497 = vld [vmem:[#allocation2] sm:$0xff]
        %v498 = vld [vmem:[#allocation2 + $0x8] sm:$0xff]
        %v499 = vld [vmem:[#allocation2 + $0x10] sm:$0xff]
        %v500 = vld [vmem:[#allocation2 + $0x18] sm:$0xff]
        %v501 = vld [vmem:[#allocation2 + $0x20] sm:$0xff]
        %v502 = vld [vmem:[#allocation2 + $0x28] sm:$0xff]
        %v503 = vld [vmem:[#allocation2 + $0x30] sm:$0xff]
        %v504 = vld [vmem:[#allocation2 + $0x38] sm:$0xff]
        %v505 = vld [vmem:[#allocation2 + $0x40] sm:$0xff]
        %v506 = vld [vmem:[#allocation2 + $0x48] sm:$0xff]
        %v507 = vld [vmem:[#allocation2 + $0x50] sm:$0xff]
        %v508 = vld [vmem:[#allocation2 + $0x58] sm:$0xff]
        %v509 = vld [vmem:[#allocation2 + $0x60] sm:$0xff]
        %v510 = vld [vmem:[#allocation2 + $0x68] sm:$0xff]
        %v511 = vld [vmem:[#allocation2 + $0x70] sm:$0xff]
        %v512 = vld [vmem:[#allocation2 + $0x78] sm:$0xff]
        %v513 = vld [vmem:[%s395] sm:$0xff]
        %v514 = vld [vmem:[%s395 + $0x8] sm:$0xff]
        %v515 = vld [vmem:[%s395 + $0x10] sm:$0xff]
        %v516 = vld [vmem:[%s395 + $0x18] sm:$0xff]
        %v517 = vld [vmem:[%s395 + $0x20] sm:$0xff]
        %v518 = vld [vmem:[%s395 + $0x28] sm:$0xff]
        %v519 = vld [vmem:[%s395 + $0x30] sm:$0xff]
        %v520 = vld [vmem:[%s395 + $0x38] sm:$0xff]
        %v521 = vld [vmem:[%s395 + $0x40] sm:$0xff]
        %v522 = vld [vmem:[%s395 + $0x48] sm:$0xff]
        %v523 = vld [vmem:[%s395 + $0x50] sm:$0xff]
        %v524 = vld [vmem:[%s395 + $0x58] sm:$0xff]
        %v525 = vld [vmem:[%s395 + $0x60] sm:$0xff]
        %v526 = vld [vmem:[%s395 + $0x68] sm:$0xff]
        %v527 = vld [vmem:[%s395 + $0x70] sm:$0xff]
        %v528 = vld [vmem:[%s395 + $0x78] sm:$0xff]
        %v529 = vld [vmem:[%s450] sm:$0xff]
        %v530 = vld [vmem:[%s450 + $0x8] sm:$0xff]
        %v531 = vld [vmem:[%s450 + $0x10] sm:$0xff]
        %v532 = vld [vmem:[%s450 + $0x18] sm:$0xff]
        %v533 = vld [vmem:[%s450 + $0x20] sm:$0xff]
        %v534 = vld [vmem:[%s450 + $0x28] sm:$0xff]
        %v535 = vld [vmem:[%s450 + $0x30] sm:$0xff]
        %v536 = vld [vmem:[%s450 + $0x38] sm:$0xff]
        %v537 = vld [vmem:[%s450 + $0x40] sm:$0xff]
        %v538 = vld [vmem:[%s450 + $0x48] sm:$0xff]
        %v539 = vld [vmem:[%s450 + $0x50] sm:$0xff]
        %v540 = vld [vmem:[%s450 + $0x58] sm:$0xff]
        %v541 = vld [vmem:[%s450 + $0x60] sm:$0xff]
        %v542 = vld [vmem:[%s450 + $0x68] sm:$0xff]
        %v543 = vld [vmem:[%s450 + $0x70] sm:$0xff]
        %v544 = vld [vmem:[%s450 + $0x78] sm:$0xff]
        %545 = vmatpush.msra.mxu0 %v544
        %546 = vmatpush.msra.mxu0 %v543
        %547 = vmatpush.msra.mxu0 %v542
        %548 = vmatpush.msra.mxu0 %v541
        %549 = vmatpush.msra.mxu0 %v540
        %550 = vmatpush.msra.mxu0 %v539
        %551 = vmatpush.msra.mxu0 %v538
        %552 = vmatpush.msra.mxu0 %v537
        %553 = vmatpush.msra.mxu0 %v536
        %554 = vmatpush.msra.mxu0 %v535
        %555 = vmatpush.msra.mxu0 %v534
        %556 = vmatpush.msra.mxu0 %v533
        %557 = vmatpush.msra.mxu0 %v532
        %558 = vmatpush.msra.mxu0 %v531
        %559 = vmatpush.msra.mxu0 %v530
        %560 = vmatpush.msra.mxu0 %v529
        %561 = vmatmul.f32.gmra.mxu0 %v513
        %v562 = vpop.f32.mrf.mxu0
        %v563 = vadd.f32 0.0, %v562
        %564 = vmatmul.f32.gmra.mxu0 %v514
        %v565 = vpop.f32.mrf.mxu0
        %v566 = vadd.f32 0.0, %v565
        %567 = vmatmul.f32.gmra.mxu0 %v515
        %v568 = vpop.f32.mrf.mxu0
        %v569 = vadd.f32 0.0, %v568
        %570 = vmatmul.f32.gmra.mxu0 %v516
        %v571 = vpop.f32.mrf.mxu0
        %v572 = vadd.f32 0.0, %v571
        %573 = vmatmul.f32.gmra.mxu0 %v517
        %v574 = vpop.f32.mrf.mxu0
        %v575 = vadd.f32 0.0, %v574
        %576 = vmatmul.f32.gmra.mxu0 %v518
        %v577 = vpop.f32.mrf.mxu0
        %v578 = vadd.f32 0.0, %v577
        %579 = vmatmul.f32.gmra.mxu0 %v519
        %v580 = vpop.f32.mrf.mxu0
        %v581 = vadd.f32 0.0, %v580
        %582 = vmatmul.f32.gmra.mxu0 %v520
        %v583 = vpop.f32.mrf.mxu0
        %v584 = vadd.f32 0.0, %v583
        %585 = vmatmul.f32.gmra.mxu0 %v521
        %v586 = vpop.f32.mrf.mxu0
        %v587 = vadd.f32 0.0, %v586
        %588 = vmatmul.f32.gmra.mxu0 %v522
        %v589 = vpop.f32.mrf.mxu0
        %v590 = vadd.f32 0.0, %v589
        %591 = vmatmul.f32.gmra.mxu0 %v523
        %v592 = vpop.f32.mrf.mxu0
        %v593 = vadd.f32 0.0, %v592
        %594 = vmatmul.f32.gmra.mxu0 %v524
        %v595 = vpop.f32.mrf.mxu0
        %v596 = vadd.f32 0.0, %v595
        %597 = vmatmul.f32.gmra.mxu0 %v525
        %v598 = vpop.f32.mrf.mxu0
        %v599 = vadd.f32 0.0, %v598
        %600 = vmatmul.f32.gmra.mxu0 %v526
        %v601 = vpop.f32.mrf.mxu0
        %v602 = vadd.f32 0.0, %v601
        %603 = vmatmul.f32.gmra.mxu0 %v527
        %v604 = vpop.f32.mrf.mxu0
        %v605 = vadd.f32 0.0, %v604
        %606 = vmatmul.f32.gmra.mxu0 %v528
        %v607 = vpop.f32.mrf.mxu0
        %v608 = vadd.f32 0.0, %v607
        %609 = vdwg.mxu0
        %v610 = vadd.f32 %v497, %v563
        %v611 = vadd.f32 %v498, %v566
        %v612 = vadd.f32 %v499, %v569
        %v613 = vadd.f32 %v500, %v572
        %v614 = vadd.f32 %v501, %v575
        %v615 = vadd.f32 %v502, %v578
        %v616 = vadd.f32 %v503, %v581
        %v617 = vadd.f32 %v504, %v584
        %v618 = vadd.f32 %v505, %v587
        %v619 = vadd.f32 %v506, %v590
        %v620 = vadd.f32 %v507, %v593
        %v621 = vadd.f32 %v508, %v596
        %v622 = vadd.f32 %v509, %v599
        %v623 = vadd.f32 %v510, %v602
        %v624 = vadd.f32 %v511, %v605
        %v625 = vadd.f32 %v512, %v608
        %vm626 = vcmask 64512
        %627 = vst.msk [vmem:[#allocation2] sm:$0xff] %vm626, %v610
        %628 = vst.msk [vmem:[#allocation2 + $0x8] sm:$0xff] %vm626, %v611
        %629 = vst.msk [vmem:[#allocation2 + $0x10] sm:$0xff] %vm626, %v612
        %630 = vst.msk [vmem:[#allocation2 + $0x18] sm:$0xff] %vm626, %v613
        %631 = vst.msk [vmem:[#allocation2 + $0x20] sm:$0xff] %vm626, %v614
        %632 = vst.msk [vmem:[#allocation2 + $0x28] sm:$0xff] %vm626, %v615
        %633 = vst.msk [vmem:[#allocation2 + $0x30] sm:$0xff] %vm626, %v616
        %634 = vst.msk [vmem:[#allocation2 + $0x38] sm:$0xff] %vm626, %v617
        %635 = vst.msk [vmem:[#allocation2 + $0x40] sm:$0xff] %vm626, %v618
        %636 = vst.msk [vmem:[#allocation2 + $0x48] sm:$0xff] %vm626, %v619
        %637 = vst.msk [vmem:[#allocation2 + $0x50] sm:$0xff] %vm626, %v620
        %638 = vst.msk [vmem:[#allocation2 + $0x58] sm:$0xff] %vm626, %v621
        %639 = vst.msk [vmem:[#allocation2 + $0x60] sm:$0xff] %vm626, %v622
        %640 = vst.msk [vmem:[#allocation2 + $0x68] sm:$0xff] %vm626, %v623
        %641 = vst.msk [vmem:[#allocation2 + $0x70] sm:$0xff] %vm626, %v624
        %642 = vst.msk [vmem:[#allocation2 + $0x78] sm:$0xff] %vm626, %v625
        %p643 = scmp.eq.s32.totalorder %s24, 1
        // Predicated region
        $region83: #{_lambda_.18} parent=73 // pred_check
          %p644 = pneg %p643
        $region84: #{_lambda_.18} parent=73 // pred_check_branch
          %646 = sbr.rel (%p644) target = $region86
        $region85: #{_lambda_.18} parent=73 // pred_region
          %v647 = vld [vmem:[%s462] sm:$0xff]
          %v648 = vld [vmem:[%s462 + $0x8] sm:$0xff]
          %v649 = vld [vmem:[%s462 + $0x10] sm:$0xff]
          %v650 = vld [vmem:[%s462 + $0x18] sm:$0xff]
          %v651 = vld [vmem:[%s462 + $0x20] sm:$0xff]
          %v652 = vld [vmem:[%s462 + $0x28] sm:$0xff]
          %v653 = vld [vmem:[%s462 + $0x30] sm:$0xff]
          %v654 = vld [vmem:[%s462 + $0x38] sm:$0xff]
          %v655 = vld [vmem:[%s462 + $0x40] sm:$0xff]
          %v656 = vld [vmem:[%s462 + $0x48] sm:$0xff]
          %v657 = vld [vmem:[%s462 + $0x50] sm:$0xff]
          %v658 = vld [vmem:[%s462 + $0x58] sm:$0xff]
          %v659 = vld [vmem:[%s462 + $0x60] sm:$0xff]
          %v660 = vld [vmem:[%s462 + $0x68] sm:$0xff]
          %v661 = vld [vmem:[%s462 + $0x70] sm:$0xff]
          %v662 = vld [vmem:[%s462 + $0x78] sm:$0xff]
          %v663 = vld [vmem:[#allocation2] sm:$0xff]
          %v664 = vld [vmem:[#allocation2 + $0x8] sm:$0xff]
          %v665 = vld [vmem:[#allocation2 + $0x10] sm:$0xff]
          %v666 = vld [vmem:[#allocation2 + $0x18] sm:$0xff]
          %v667 = vld [vmem:[#allocation2 + $0x20] sm:$0xff]
          %v668 = vld [vmem:[#allocation2 + $0x28] sm:$0xff]
          %v669 = vld [vmem:[#allocation2 + $0x30] sm:$0xff]
          %v670 = vld [vmem:[#allocation2 + $0x38] sm:$0xff]
          %v671 = vld [vmem:[#allocation2 + $0x40] sm:$0xff]
          %v672 = vld [vmem:[#allocation2 + $0x48] sm:$0xff]
          %v673 = vld [vmem:[#allocation2 + $0x50] sm:$0xff]
          %v674 = vld [vmem:[#allocation2 + $0x58] sm:$0xff]
          %v675 = vld [vmem:[#allocation2 + $0x60] sm:$0xff]
          %v676 = vld [vmem:[#allocation2 + $0x68] sm:$0xff]
          %v677 = vld [vmem:[#allocation2 + $0x70] sm:$0xff]
          %v678 = vld [vmem:[#allocation2 + $0x78] sm:$0xff]
          %v679 = vld [vmem:[%s456] sm:$0xff]
          %v680 = vld [vmem:[%s456 + $0x8] sm:$0xff]
          %v681 = vld [vmem:[%s456 + $0x10] sm:$0xff]
          %v682 = vld [vmem:[%s456 + $0x18] sm:$0xff]
          %v683 = vld [vmem:[%s456 + $0x20] sm:$0xff]
          %v684 = vld [vmem:[%s456 + $0x28] sm:$0xff]
          %v685 = vld [vmem:[%s456 + $0x30] sm:$0xff]
          %v686 = vld [vmem:[%s456 + $0x38] sm:$0xff]
          %v687 = vld [vmem:[%s456 + $0x40] sm:$0xff]
          %v688 = vld [vmem:[%s456 + $0x48] sm:$0xff]
          %v689 = vld [vmem:[%s456 + $0x50] sm:$0xff]
          %v690 = vld [vmem:[%s456 + $0x58] sm:$0xff]
          %v691 = vld [vmem:[%s456 + $0x60] sm:$0xff]
          %v692 = vld [vmem:[%s456 + $0x68] sm:$0xff]
          %v693 = vld [vmem:[%s456 + $0x70] sm:$0xff]
          %v694 = vld [vmem:[%s456 + $0x78] sm:$0xff]
          %v695 = vadd.f32 %v663, %v679
          %v696 = vadd.f32 %v664, %v680
          %v697 = vadd.f32 %v665, %v681
          %v698 = vadd.f32 %v666, %v682
          %v699 = vadd.f32 %v667, %v683
          %v700 = vadd.f32 %v668, %v684
          %v701 = vadd.f32 %v669, %v685
          %v702 = vadd.f32 %v670, %v686
          %v703 = vadd.f32 %v671, %v687
          %v704 = vadd.f32 %v672, %v688
          %v705 = vadd.f32 %v673, %v689
          %v706 = vadd.f32 %v674, %v690
          %v707 = vadd.f32 %v675, %v691
          %v708 = vadd.f32 %v676, %v692
          %v709 = vadd.f32 %v677, %v693
          %v710 = vadd.f32 %v678, %v694
          %712 = vset.pattern.permute.xlu0 0
          %713 = vperm.xlu0 %712, %v647
          %v714 = vpop.permute.xlu0 %713
          %717 = vset.pattern.permute.xlu0 0
          %718 = vperm.xlu0 %717, %v648
          %v719 = vpop.permute.xlu0 %718
          %722 = vset.pattern.permute.xlu0 0
          %723 = vperm.xlu0 %722, %v649
          %v724 = vpop.permute.xlu0 %723
          %727 = vset.pattern.permute.xlu0 0
          %728 = vperm.xlu0 %727, %v650
          %v729 = vpop.permute.xlu0 %728
          %732 = vset.pattern.permute.xlu0 0
          %733 = vperm.xlu0 %732, %v651
          %v734 = vpop.permute.xlu0 %733
          %737 = vset.pattern.permute.xlu0 0
          %738 = vperm.xlu0 %737, %v652
          %v739 = vpop.permute.xlu0 %738
          %742 = vset.pattern.permute.xlu0 0
          %743 = vperm.xlu0 %742, %v653
          %v744 = vpop.permute.xlu0 %743
          %747 = vset.pattern.permute.xlu0 0
          %748 = vperm.xlu0 %747, %v654
          %v749 = vpop.permute.xlu0 %748
          %752 = vset.pattern.permute.xlu0 0
          %753 = vperm.xlu0 %752, %v655
          %v754 = vpop.permute.xlu0 %753
          %757 = vset.pattern.permute.xlu0 0
          %758 = vperm.xlu0 %757, %v656
          %v759 = vpop.permute.xlu0 %758
          %762 = vset.pattern.permute.xlu0 0
          %763 = vperm.xlu0 %762, %v657
          %v764 = vpop.permute.xlu0 %763
          %767 = vset.pattern.permute.xlu0 0
          %768 = vperm.xlu0 %767, %v658
          %v769 = vpop.permute.xlu0 %768
          %772 = vset.pattern.permute.xlu0 0
          %773 = vperm.xlu0 %772, %v659
          %v774 = vpop.permute.xlu0 %773
          %777 = vset.pattern.permute.xlu0 0
          %778 = vperm.xlu0 %777, %v660
          %v779 = vpop.permute.xlu0 %778
          %782 = vset.pattern.permute.xlu0 0
          %783 = vperm.xlu0 %782, %v661
          %v784 = vpop.permute.xlu0 %783
          %787 = vset.pattern.permute.xlu0 0
          %788 = vperm.xlu0 %787, %v662
          %v789 = vpop.permute.xlu0 %788
          %v791 = vmul.f32 %v714, %v695
          %v792 = vmul.f32 %v719, %v696
          %v793 = vmul.f32 %v724, %v697
          %v794 = vmul.f32 %v729, %v698
          %v795 = vmul.f32 %v734, %v699
          %v796 = vmul.f32 %v739, %v700
          %v797 = vmul.f32 %v744, %v701
          %v798 = vmul.f32 %v749, %v702
          %v799 = vmul.f32 %v754, %v703
          %v800 = vmul.f32 %v759, %v704
          %v801 = vmul.f32 %v764, %v705
          %v802 = vmul.f32 %v769, %v706
          %v803 = vmul.f32 %v774, %v707
          %v804 = vmul.f32 %v779, %v708
          %v805 = vmul.f32 %v784, %v709
          %v806 = vmul.f32 %v789, %v710
          %v807 = vld [vmem:[%s4] sm:$0x1]
          %v809 = vperm.slane %v807, 0
          %v811 = vadd.f32 %v791, %v809
          %v812 = vadd.f32 %v792, %v809
          %v813 = vadd.f32 %v793, %v809
          %v814 = vadd.f32 %v794, %v809
          %v815 = vadd.f32 %v795, %v809
          %v816 = vadd.f32 %v796, %v809
          %v817 = vadd.f32 %v797, %v809
          %v818 = vadd.f32 %v798, %v809
          %v819 = vadd.f32 %v799, %v809
          %v820 = vadd.f32 %v800, %v809
          %v821 = vadd.f32 %v801, %v809
          %v822 = vadd.f32 %v802, %v809
          %v823 = vadd.f32 %v803, %v809
          %v824 = vadd.f32 %v804, %v809
          %v825 = vadd.f32 %v805, %v809
          %v826 = vadd.f32 %v806, %v809
          %v827 = vmax.f32 %v811, 0.0
          %v828 = vmax.f32 %v812, 0.0
          %v829 = vmax.f32 %v813, 0.0
          %v830 = vmax.f32 %v814, 0.0
          %v831 = vmax.f32 %v815, 0.0
          %v832 = vmax.f32 %v816, 0.0
          %v833 = vmax.f32 %v817, 0.0
          %v834 = vmax.f32 %v818, 0.0
          %v835 = vmax.f32 %v819, 0.0
          %v836 = vmax.f32 %v820, 0.0
          %v837 = vmax.f32 %v821, 0.0
          %v838 = vmax.f32 %v822, 0.0
          %v839 = vmax.f32 %v823, 0.0
          %v840 = vmax.f32 %v824, 0.0
          %v841 = vmax.f32 %v825, 0.0
          %v842 = vmax.f32 %v826, 0.0
          %vm843 = vcmp.gt.f32.partialorder %v647, 0.0
          %vm844 = vcmp.gt.f32.partialorder %v648, 0.0
          %vm845 = vcmp.gt.f32.partialorder %v649, 0.0
          %vm846 = vcmp.gt.f32.partialorder %v650, 0.0
          %vm847 = vcmp.gt.f32.partialorder %v651, 0.0
          %vm848 = vcmp.gt.f32.partialorder %v652, 0.0
          %vm849 = vcmp.gt.f32.partialorder %v653, 0.0
          %vm850 = vcmp.gt.f32.partialorder %v654, 0.0
          %vm851 = vcmp.gt.f32.partialorder %v655, 0.0
          %vm852 = vcmp.gt.f32.partialorder %v656, 0.0
          %vm853 = vcmp.gt.f32.partialorder %v657, 0.0
          %vm854 = vcmp.gt.f32.partialorder %v658, 0.0
          %vm855 = vcmp.gt.f32.partialorder %v659, 0.0
          %vm856 = vcmp.gt.f32.partialorder %v660, 0.0
          %vm857 = vcmp.gt.f32.partialorder %v661, 0.0
          %vm858 = vcmp.gt.f32.partialorder %v662, 0.0
          %v859 = vsel %vm843, 1, 0
          %v860 = vsel %vm844, 1, 0
          %v861 = vsel %vm845, 1, 0
          %v862 = vsel %vm846, 1, 0
          %v863 = vsel %vm847, 1, 0
          %v864 = vsel %vm848, 1, 0
          %v865 = vsel %vm849, 1, 0
          %v866 = vsel %vm850, 1, 0
          %v867 = vsel %vm851, 1, 0
          %v868 = vsel %vm852, 1, 0
          %v869 = vsel %vm853, 1, 0
          %v870 = vsel %vm854, 1, 0
          %v871 = vsel %vm855, 1, 0
          %v872 = vsel %vm856, 1, 0
          %v873 = vsel %vm857, 1, 0
          %v874 = vsel %vm858, 1, 0
          %875 = vset.pattern.permute.xlu0 0
          %876 = vperm.xlu0 %875, %v859
          %v877 = vpop.permute.xlu0 %876
          %878 = vset.pattern.permute.xlu0 0
          %879 = vperm.xlu0 %878, %v860
          %v880 = vpop.permute.xlu0 %879
          %881 = vset.pattern.permute.xlu0 0
          %882 = vperm.xlu0 %881, %v861
          %v883 = vpop.permute.xlu0 %882
          %884 = vset.pattern.permute.xlu0 0
          %885 = vperm.xlu0 %884, %v862
          %v886 = vpop.permute.xlu0 %885
          %887 = vset.pattern.permute.xlu0 0
          %888 = vperm.xlu0 %887, %v863
          %v889 = vpop.permute.xlu0 %888
          %890 = vset.pattern.permute.xlu0 0
          %891 = vperm.xlu0 %890, %v864
          %v892 = vpop.permute.xlu0 %891
          %893 = vset.pattern.permute.xlu0 0
          %894 = vperm.xlu0 %893, %v865
          %v895 = vpop.permute.xlu0 %894
          %896 = vset.pattern.permute.xlu0 0
          %897 = vperm.xlu0 %896, %v866
          %v898 = vpop.permute.xlu0 %897
          %899 = vset.pattern.permute.xlu0 0
          %900 = vperm.xlu0 %899, %v867
          %v901 = vpop.permute.xlu0 %900
          %902 = vset.pattern.permute.xlu0 0
          %903 = vperm.xlu0 %902, %v868
          %v904 = vpop.permute.xlu0 %903
          %905 = vset.pattern.permute.xlu0 0
          %906 = vperm.xlu0 %905, %v869
          %v907 = vpop.permute.xlu0 %906
          %908 = vset.pattern.permute.xlu0 0
          %909 = vperm.xlu0 %908, %v870
          %v910 = vpop.permute.xlu0 %909
          %911 = vset.pattern.permute.xlu0 0
          %912 = vperm.xlu0 %911, %v871
          %v913 = vpop.permute.xlu0 %912
          %914 = vset.pattern.permute.xlu0 0
          %915 = vperm.xlu0 %914, %v872
          %v916 = vpop.permute.xlu0 %915
          %917 = vset.pattern.permute.xlu0 0
          %918 = vperm.xlu0 %917, %v873
          %v919 = vpop.permute.xlu0 %918
          %920 = vset.pattern.permute.xlu0 0
          %921 = vperm.xlu0 %920, %v874
          %v922 = vpop.permute.xlu0 %921
          %vm923 = vcmp.eq.s32.totalorder %v877, 1
          %vm924 = vcmp.eq.s32.totalorder %v880, 1
          %vm925 = vcmp.eq.s32.totalorder %v883, 1
          %vm926 = vcmp.eq.s32.totalorder %v886, 1
          %vm927 = vcmp.eq.s32.totalorder %v889, 1
          %vm928 = vcmp.eq.s32.totalorder %v892, 1
          %vm929 = vcmp.eq.s32.totalorder %v895, 1
          %vm930 = vcmp.eq.s32.totalorder %v898, 1
          %vm931 = vcmp.eq.s32.totalorder %v901, 1
          %vm932 = vcmp.eq.s32.totalorder %v904, 1
          %vm933 = vcmp.eq.s32.totalorder %v907, 1
          %vm934 = vcmp.eq.s32.totalorder %v910, 1
          %vm935 = vcmp.eq.s32.totalorder %v913, 1
          %vm936 = vcmp.eq.s32.totalorder %v916, 1
          %vm937 = vcmp.eq.s32.totalorder %v919, 1
          %vm938 = vcmp.eq.s32.totalorder %v922, 1
          %v939 = vsel %vm923, %v827, 0.0
          %v940 = vsel %vm924, %v828, 0.0
          %v941 = vsel %vm925, %v829, 0.0
          %v942 = vsel %vm926, %v830, 0.0
          %v943 = vsel %vm927, %v831, 0.0
          %v944 = vsel %vm928, %v832, 0.0
          %v945 = vsel %vm929, %v833, 0.0
          %v946 = vsel %vm930, %v834, 0.0
          %v947 = vsel %vm931, %v835, 0.0
          %v948 = vsel %vm932, %v836, 0.0
          %v949 = vsel %vm933, %v837, 0.0
          %v950 = vsel %vm934, %v838, 0.0
          %v951 = vsel %vm935, %v839, 0.0
          %v952 = vsel %vm936, %v840, 0.0
          %v953 = vsel %vm937, %v841, 0.0
          %v954 = vsel %vm938, %v842, 0.0
          %955 = vst.msk [vmem:[%s468] sm:$0xff] %vm626, %v939
          %956 = vst.msk [vmem:[%s468 + $0x8] sm:$0xff] %vm626, %v940
          %957 = vst.msk [vmem:[%s468 + $0x10] sm:$0xff] %vm626, %v941
          %958 = vst.msk [vmem:[%s468 + $0x18] sm:$0xff] %vm626, %v942
          %959 = vst.msk [vmem:[%s468 + $0x20] sm:$0xff] %vm626, %v943
          %960 = vst.msk [vmem:[%s468 + $0x28] sm:$0xff] %vm626, %v944
          %961 = vst.msk [vmem:[%s468 + $0x30] sm:$0xff] %vm626, %v945
          %962 = vst.msk [vmem:[%s468 + $0x38] sm:$0xff] %vm626, %v946
          %963 = vst.msk [vmem:[%s468 + $0x40] sm:$0xff] %vm626, %v947
          %964 = vst.msk [vmem:[%s468 + $0x48] sm:$0xff] %vm626, %v948
          %965 = vst.msk [vmem:[%s468 + $0x50] sm:$0xff] %vm626, %v949
          %966 = vst.msk [vmem:[%s468 + $0x58] sm:$0xff] %vm626, %v950
          %967 = vst.msk [vmem:[%s468 + $0x60] sm:$0xff] %vm626, %v951
          %968 = vst.msk [vmem:[%s468 + $0x68] sm:$0xff] %vm626, %v952
          %969 = vst.msk [vmem:[%s468 + $0x70] sm:$0xff] %vm626, %v953
          %970 = vst.msk [vmem:[%s468 + $0x78] sm:$0xff] %vm626, %v954
          %v971 = vsel %vm626, %v939, 0.0
          %v972 = vsel %vm626, %v940, 0.0
          %v973 = vadd.f32 %v971, %v972
          %v974 = vsel %vm626, %v941, 0.0
          %v975 = vadd.f32 %v973, %v974
          %v976 = vsel %vm626, %v942, 0.0
          %v977 = vadd.f32 %v975, %v976
          %v978 = vsel %vm626, %v943, 0.0
          %v979 = vadd.f32 %v977, %v978
          %v980 = vsel %vm626, %v944, 0.0
          %v981 = vadd.f32 %v979, %v980
          %v982 = vsel %vm626, %v945, 0.0
          %v983 = vadd.f32 %v981, %v982
          %v984 = vsel %vm626, %v946, 0.0
          %v985 = vadd.f32 %v983, %v984
          %v986 = vsel %vm626, %v947, 0.0
          %v987 = vadd.f32 %v985, %v986
          %v988 = vsel %vm626, %v948, 0.0
          %v989 = vadd.f32 %v987, %v988
          %v990 = vsel %vm626, %v949, 0.0
          %v991 = vadd.f32 %v989, %v990
          %v992 = vsel %vm626, %v950, 0.0
          %v993 = vadd.f32 %v991, %v992
          %v994 = vsel %vm626, %v951, 0.0
          %v995 = vadd.f32 %v993, %v994
          %v996 = vsel %vm626, %v952, 0.0
          %v997 = vadd.f32 %v995, %v996
          %v998 = vsel %vm626, %v953, 0.0
          %v999 = vadd.f32 %v997, %v998
          %v1000 = vsel %vm626, %v954, 0.0
          %v1001 = vadd.f32 %v999, %v1000
          %v1002 = vrot.slane %v1001, 4
          %v1003 = vadd.f32 %v1001, %v1002
          %v1004 = vrot.slane %v1003, 2
          %v1005 = vadd.f32 %v1003, %v1004
          %v1006 = vrot.slane %v1005, 1
          %v1007 = vadd.f32 %v1005, %v1006
          %vm1008 = vcmask 57344
          %1009 = vst.msk [vmem:[%s472] sm:$0x1] %vm1008, %v1007
          %v1010 = vmul.f32 %v939, %v939
          %v1011 = vmul.f32 %v940, %v940
          %v1012 = vmul.f32 %v941, %v941
          %v1013 = vmul.f32 %v942, %v942
          %v1014 = vmul.f32 %v943, %v943
          %v1015 = vmul.f32 %v944, %v944
          %v1016 = vmul.f32 %v945, %v945
          %v1017 = vmul.f32 %v946, %v946
          %v1018 = vmul.f32 %v947, %v947
          %v1019 = vmul.f32 %v948, %v948
          %v1020 = vmul.f32 %v949, %v949
          %v1021 = vmul.f32 %v950, %v950
          %v1022 = vmul.f32 %v951, %v951
          %v1023 = vmul.f32 %v952, %v952
          %v1024 = vmul.f32 %v953, %v953
          %v1025 = vmul.f32 %v954, %v954
          %v1026 = vsel %vm626, %v1010, 0.0
          %v1027 = vsel %vm626, %v1011, 0.0
          %v1028 = vadd.f32 %v1026, %v1027
          %v1029 = vsel %vm626, %v1012, 0.0
          %v1030 = vadd.f32 %v1028, %v1029
          %v1031 = vsel %vm626, %v1013, 0.0
          %v1032 = vadd.f32 %v1030, %v1031
          %v1033 = vsel %vm626, %v1014, 0.0
          %v1034 = vadd.f32 %v1032, %v1033
          %v1035 = vsel %vm626, %v1015, 0.0
          %v1036 = vadd.f32 %v1034, %v1035
          %v1037 = vsel %vm626, %v1016, 0.0
          %v1038 = vadd.f32 %v1036, %v1037
          %v1039 = vsel %vm626, %v1017, 0.0
          %v1040 = vadd.f32 %v1038, %v1039
          %v1041 = vsel %vm626, %v1018, 0.0
          %v1042 = vadd.f32 %v1040, %v1041
          %v1043 = vsel %vm626, %v1019, 0.0
          %v1044 = vadd.f32 %v1042, %v1043
          %v1045 = vsel %vm626, %v1020, 0.0
          %v1046 = vadd.f32 %v1044, %v1045
          %v1047 = vsel %vm626, %v1021, 0.0
          %v1048 = vadd.f32 %v1046, %v1047
          %v1049 = vsel %vm626, %v1022, 0.0
          %v1050 = vadd.f32 %v1048, %v1049
          %v1051 = vsel %vm626, %v1023, 0.0
          %v1052 = vadd.f32 %v1050, %v1051
          %v1053 = vsel %vm626, %v1024, 0.0
          %v1054 = vadd.f32 %v1052, %v1053
          %v1055 = vsel %vm626, %v1025, 0.0
          %v1056 = vadd.f32 %v1054, %v1055
          %v1057 = vrot.slane %v1056, 4
          %v1058 = vadd.f32 %v1056, %v1057
          %v1059 = vrot.slane %v1058, 2
          %v1060 = vadd.f32 %v1058, %v1059
          %v1061 = vrot.slane %v1060, 1
          %v1062 = vadd.f32 %v1060, %v1061
          %1063 = vst.msk [vmem:[%s475] sm:$0x1] %vm1008, %v1062
        $region86: #{_lambda_.18} parent=73 // pred_fallthru
          _
        %s1064 = smul.u32 16, %s23
        %p1065 = scmp.lt.s32.totalorder %s1064, 31
        %s1066 = scalar_select %p1065, %s1064, 31
        %s1067 = smul.addr %s1066, 8
        %s1068 = scalar_lea.vmem %s5, %s1067
        %p1069 = scmp.lt.s32.totalorder %s23, 1
        %s1070 = scalar_select %p1069, %s23, 1
        %s1071 = scalar_lea.vmem %s6, %s1070
        %p1072 = scmp.lt.s32.totalorder %s23, 1
        %s1073 = scalar_select %p1072, %s23, 1
        %s1074 = scalar_lea.vmem %s7, %s1073
        // Predicated region
        $region87: #{_lambda_.18} parent=73 // pred_check
          %p1075 = pneg %p176
        $region88: #{_lambda_.18} parent=73 // pred_check_branch
          %1077 = sbr.rel (%p1075) target = $region90
        $region89: #{_lambda_.18} parent=73 // pred_region
          %s1078 = smul.u32 16, %s23
        $region90: #{_lambda_.18} parent=73 // pred_fallthru
          _
        // Predicated region
        $region91: #{_lambda_.18} parent=73 // pred_check
          %p1079 = pneg %p202
        $region92: #{_lambda_.18} parent=73 // pred_check_branch
          %1081 = sbr.rel (%p1079) target = $region94
        $region93: #{_lambda_.18} parent=73 // pred_region
          _
        $region94: #{_lambda_.18} parent=73 // pred_fallthru
          _
        // Predicated region
        $region95: #{_lambda_.18} parent=73 // pred_check
          %p1082 = pneg %p228
        $region96: #{_lambda_.18} parent=73 // pred_check_branch
          %1084 = sbr.rel (%p1082) target = $region98
        $region97: #{_lambda_.18} parent=73 // pred_region
          _
        $region98: #{_lambda_.18} parent=73 // pred_fallthru
          _
      $region74: #{_lambda_.18} parent=5 // pred_fallthru
        _
      %p1085 = scmp.le.s32.totalorder 2, %s14
      // Predicated region
      $region99: #{_lambda_.18} parent=5 // pred_check
        %p1086 = pneg %p1085
      $region100: #{_lambda_.18} parent=5 // pred_check_branch
        %1088 = sbr.rel (%p1086) target = $region102
      $region101: #{_lambda_.18} parent=5 // pred_region
        %s1089 = ssub.s32 %s14, 2
        // Predicated region
        $region103: #{_lambda_.18} parent=101 // pred_check
          %p1090 = pneg %p182
        $region104: #{_lambda_.18} parent=101 // pred_check_branch
          %1092 = sbr.rel (%p1090) target = $region106
        $region105: #{_lambda_.18} parent=101 // pred_region
          %s1093 = smul.u32 16, %s25
          %p1094 = scmp.lt.s32.totalorder %s1093, 31
          %s1095 = scalar_select %p1094, %s1093, 31
          %s1096 = smul.addr %s1095, 8
          %s1097 = scalar_lea.vmem %s5, %s1096
        $region106: #{_lambda_.18} parent=101 // pred_fallthru
          _
        // Predicated region
        $region107: #{_lambda_.18} parent=101 // pred_check
          %p1098 = pneg %p208
        $region108: #{_lambda_.18} parent=101 // pred_check_branch
          %1100 = sbr.rel (%p1098) target = $region110
        $region109: #{_lambda_.18} parent=101 // pred_region
          %p1101 = scmp.lt.s32.totalorder %s25, 1
          %s1102 = scalar_select %p1101, %s25, 1
          %s1103 = scalar_lea.vmem %s6, %s1102
        $region110: #{_lambda_.18} parent=101 // pred_fallthru
          _
        // Predicated region
        $region111: #{_lambda_.18} parent=101 // pred_check
          %p1104 = pneg %p234
        $region112: #{_lambda_.18} parent=101 // pred_check_branch
          %1106 = sbr.rel (%p1104) target = $region114
        $region113: #{_lambda_.18} parent=101 // pred_region
          %p1107 = scmp.lt.s32.totalorder %s25, 1
          %s1108 = scalar_select %p1107, %s25, 1
          %s1109 = scalar_lea.vmem %s7, %s1108
        $region114: #{_lambda_.18} parent=101 // pred_fallthru
          _
      $region102: #{_lambda_.18} parent=5 // pred_fallthru
        _
    $region6: #{_lambda_.18} parent=1 // loop_footer
      %s18 = sadd.s32 1, %s14
    $region7: #{_lambda_.18} parent=1 // loop_footer_branch
      %13 = sbr.rel target = $region3
    $region8: #{_lambda_.18} parent=1 // loop_exit
      _

// kernel: _lambda_.19
$region0: #{_lambda_.19}
  #allocation0 [shape = 'u32[]', space=smem, size = 0x4, offset = 0x4, fixed_abs, tag = 'smem constant byte address 0x4 - core index']
  #allocation1 [shape = 'u32[72,128]{1,0:T(1,128)}', space=vmem, size = 0x9000, scoped, tag = 'internal scratch']
  %s0 = inlined_call_operand.vmem [shape: f32[256,8], index: 0, kind: input, shape index: {}]
  %s1 = inlined_call_operand.vmem [shape: f32[1,8], index: 1, kind: input, shape index: {}]
  %s2 = inlined_call_operand.vmem [shape: f32[1,8], index: 2, kind: input, shape index: {}]
  %s3 = inlined_call_operand.vmem [shape: f32[256,8], index: 3, kind: output, shape index: {}]
  %s4 = sld [smem:[#allocation0]]
  $region45: #{_lambda_.19} parent=0
    _
  %s6 = ssub.s32 1, %s4
  %s7 = scalar_select 0, %s6, %s4
  loop: start=0, step=1, limit=4
  $region2: #{_lambda_.19} parent=0 // loop_pre_header
    _
  $region3: #{_lambda_.19} parent=0 // loop_header
    %s9 = sphi 0, %s13
    %p10 = scmp.ge.s32.totalorder %s9, 4
    %s19 = sphi 0, %s21
    %s22 = sphi 0, %s19
    %s23 = sphi 0, %s22
    %s39 = sphi 0, %s23
    %s43 = sphi 0, %s43
    %s45 = sphi 0, %s43
    %s46 = sphi 0, %s45
    %s60 = sphi 0, %s46
    %s64 = sphi 0, %s64
    %s66 = sphi 0, %s64
    %s67 = sphi 0, %s66
    %s81 = sphi 0, %s67
    %s87 = sphi 0, %s89
    %s90 = sphi 0, %s87
    %s91 = sphi 0, %s90
    %s107 = sphi 0, %s91
  $region4: #{_lambda_.19} parent=0 // loop_header_branch
    %12 = sbr.rel (%p10) target = $region8
  $region5: #{_lambda_.19} parent=0 // loop_body
    %s14 = ssub.s32 %s9, 1
    %s15 = ssub.s32 %s9, 2
    %s16 = sadd.s32 %s9, 1
    %s17 = ssub.s32 %s9, %s16
    %p18 = scmp.eq.s32.totalorder %s17, 0
    %s20 = sadd.s32 %s19, 1
    %s21 = scalar_select %p18, %s19, %s20
    %p24 = pneg %p18
    %p25 = scmp.eq.s32.totalorder %s9, 1
    %p26 = por %p24, %p25
    %p27 = scmp.ne.s32.totalorder %s19, %s22
    %p28 = scmp.eq.s32.totalorder %s9, 0
    %p29 = por %p27, %p28
    %p30 = scmp.ne.s32.totalorder %s19, %s22
    %p31 = scmp.eq.s32.totalorder %s14, 1
    %p32 = por %p30, %p31
    %p33 = scmp.ne.s32.totalorder %s22, %s23
    %p34 = scmp.eq.s32.totalorder %s14, 0
    %p35 = por %p33, %p34
    %p36 = scmp.ne.s32.totalorder %s22, %s23
    %p37 = scmp.eq.s32.totalorder %s15, 1
    %p38 = por %p36, %p37
    %p40 = scmp.ne.s32.totalorder %s23, %s39
    %p41 = scmp.eq.s32.totalorder %s15, 0
    %p42 = por %p40, %p41
    %s44 = sadd.s32 %s43, 1
    %p47 = scmp.eq.s32.totalorder %s9, 1
    %p48 = scmp.ne.s32.totalorder %s43, %s45
    %p49 = scmp.eq.s32.totalorder %s9, 0
    %p50 = por %p48, %p49
    %p51 = scmp.ne.s32.totalorder %s43, %s45
    %p52 = scmp.eq.s32.totalorder %s14, 1
    %p53 = por %p51, %p52
    %p54 = scmp.ne.s32.totalorder %s45, %s46
    %p55 = scmp.eq.s32.totalorder %s14, 0
    %p56 = por %p54, %p55
    %p57 = scmp.ne.s32.totalorder %s45, %s46
    %p58 = scmp.eq.s32.totalorder %s15, 1
    %p59 = por %p57, %p58
    %p61 = scmp.ne.s32.totalorder %s46, %s60
    %p62 = scmp.eq.s32.totalorder %s15, 0
    %p63 = por %p61, %p62
    %s65 = sadd.s32 %s64, 1
    %p68 = scmp.eq.s32.totalorder %s9, 1
    %p69 = scmp.ne.s32.totalorder %s64, %s66
    %p70 = scmp.eq.s32.totalorder %s9, 0
    %p71 = por %p69, %p70
    %p72 = scmp.ne.s32.totalorder %s64, %s66
    %p73 = scmp.eq.s32.totalorder %s14, 1
    %p74 = por %p72, %p73
    %p75 = scmp.ne.s32.totalorder %s66, %s67
    %p76 = scmp.eq.s32.totalorder %s14, 0
    %p77 = por %p75, %p76
    %p78 = scmp.ne.s32.totalorder %s66, %s67
    %p79 = scmp.eq.s32.totalorder %s15, 1
    %p80 = por %p78, %p79
    %p82 = scmp.ne.s32.totalorder %s67, %s81
    %p83 = scmp.eq.s32.totalorder %s15, 0
    %p84 = por %p82, %p83
    %s85 = ssub.s32 %s9, %s16
    %p86 = scmp.eq.s32.totalorder %s85, 0
    %s88 = sadd.s32 %s87, 1
    %s89 = scalar_select %p86, %s87, %s88
    %p92 = pneg %p86
    %p93 = scmp.eq.s32.totalorder %s9, 1
    %p94 = por %p92, %p93
    %p95 = scmp.ne.s32.totalorder %s87, %s90
    %p96 = scmp.eq.s32.totalorder %s9, 0
    %p97 = por %p95, %p96
    %p98 = scmp.ne.s32.totalorder %s87, %s90
    %p99 = scmp.eq.s32.totalorder %s14, 1
    %p100 = por %p98, %p99
    %p101 = scmp.ne.s32.totalorder %s90, %s91
    %p102 = scmp.eq.s32.totalorder %s14, 0
    %p103 = por %p101, %p102
    %p104 = scmp.ne.s32.totalorder %s90, %s91
    %p105 = scmp.eq.s32.totalorder %s15, 1
    %p106 = por %p104, %p105
    %p108 = scmp.ne.s32.totalorder %s91, %s107
    %p109 = scmp.eq.s32.totalorder %s15, 0
    %p110 = por %p108, %p109
    %p111 = scmp.le.s32.totalorder 1, %s9
    %p112 = scmp.lt.s32.totalorder %s9, 3
    %p113 = pnand %p111, %p112
    %p114 = pneg %p113
    // Predicated region
    $region9: #{_lambda_.19} parent=5 // pred_check
      _
    $region10: #{_lambda_.19} parent=5 // pred_check_branch
      %116 = sbr.rel (%p113) target = $region12
    $region11: #{_lambda_.19} parent=5 // pred_region
      %s117 = ssub.s32 %s9, 1
      // Predicated region
      $region13: #{_lambda_.19} parent=11 // pred_check
        %p118 = pneg %p56
      $region14: #{_lambda_.19} parent=11 // pred_check_branch
        %120 = sbr.rel (%p118) target = $region16
      $region15: #{_lambda_.19} parent=11 // pred_region
        _
      $region16: #{_lambda_.19} parent=11 // pred_fallthru
        _
      // Predicated region
      $region17: #{_lambda_.19} parent=11 // pred_check
        %p121 = pneg %p77
      $region18: #{_lambda_.19} parent=11 // pred_check_branch
        %123 = sbr.rel (%p121) target = $region20
      $region19: #{_lambda_.19} parent=11 // pred_region
        _
      $region20: #{_lambda_.19} parent=11 // pred_fallthru
        _
    $region12: #{_lambda_.19} parent=5 // pred_fallthru
      _
    %p124 = scmp.lt.s32.totalorder %s9, 2
    // Predicated region
    $region21: #{_lambda_.19} parent=5 // pred_check
      %p125 = pneg %p124
    $region22: #{_lambda_.19} parent=5 // pred_check_branch
      %127 = sbr.rel (%p125) target = $region24
    $region23: #{_lambda_.19} parent=5 // pred_region
      // Predicated region
      $region25: #{_lambda_.19} parent=23 // pred_check
        %p128 = pneg %p29
      $region26: #{_lambda_.19} parent=23 // pred_check_branch
        %130 = sbr.rel (%p128) target = $region28
      $region27: #{_lambda_.19} parent=23 // pred_region
        %s131 = smul.u32 16, %s9
        %p132 = scmp.lt.s32.totalorder %s131, 31
        %s133 = scalar_select %p132, %s131, 31
        %s134 = smul.addr %s133, 8
        %s135 = scalar_lea.vmem %s0, %s134
        %s136 = smul.u32 16, %s9
      $region28: #{_lambda_.19} parent=23 // pred_fallthru
        _
    $region24: #{_lambda_.19} parent=5 // pred_fallthru
      _
    %p137 = scmp.le.s32.totalorder 1, %s9
    %p138 = scmp.lt.s32.totalorder %s9, 3
    %p139 = pnand %p137, %p138
    %p140 = pneg %p139
    // Predicated region
    $region29: #{_lambda_.19} parent=5 // pred_check
      _
    $region30: #{_lambda_.19} parent=5 // pred_check_branch
      %142 = sbr.rel (%p139) target = $region32
    $region31: #{_lambda_.19} parent=5 // pred_region
      %s143 = ssub.s32 %s9, 1
      %s144 = smul.u32 16, %s14
      %p145 = scmp.lt.s32.totalorder %s144, 31
      %s146 = scalar_select %p145, %s144, 31
      %s147 = smul.addr %s146, 8
      %s148 = scalar_lea.vmem %s0, %s147
      %p149 = pneg %p35
      %p150 = pneg %p32
      %p151 = pneg %p56
      %p152 = pneg %p53
      %p153 = pneg %p77
      %p154 = pneg %p74
      %p155 = pneg %p103
      %p156 = pneg %p100
      %s157 = smul.u32 16, %s14
      %p158 = scmp.lt.s32.totalorder %s157, 31
      %s159 = scalar_select %p158, %s157, 31
      %s160 = smul.addr %s159, 8
      %s161 = scalar_lea.vmem %s3, %s160
      %s162 = smul.u32 16, %s14
      %p163 = scmp.lt.s32.totalorder %s162, 31
      %s164 = scalar_select %p163, %s162, 31
      %s165 = smul.addr %s164, 8
      %s166 = scalar_lea.vmem %s0, %s165
      %s167 = smul.u32 16, %s14
      %s168 = smul.u32 16, %s14
      %p169 = scmp.lt.s32.totalorder %s168, 31
      %s170 = scalar_select %p169, %s168, 31
      %s171 = smul.addr %s170, 8
      %s172 = scalar_lea.vmem %s3, %s171
      %s173 = smul.u32 16, %s14
      %v174 = vld [vmem:[%s166] sm:$0xff]
      %v175 = vld [vmem:[%s166 + $0x8] sm:$0xff]
      %v176 = vld [vmem:[%s166 + $0x10] sm:$0xff]
      %v177 = vld [vmem:[%s166 + $0x18] sm:$0xff]
      %v178 = vld [vmem:[%s166 + $0x20] sm:$0xff]
      %v179 = vld [vmem:[%s166 + $0x28] sm:$0xff]
      %v180 = vld [vmem:[%s166 + $0x30] sm:$0xff]
      %v181 = vld [vmem:[%s166 + $0x38] sm:$0xff]
      %v182 = vld [vmem:[%s166 + $0x40] sm:$0xff]
      %v183 = vld [vmem:[%s166 + $0x48] sm:$0xff]
      %v184 = vld [vmem:[%s166 + $0x50] sm:$0xff]
      %v185 = vld [vmem:[%s166 + $0x58] sm:$0xff]
      %v186 = vld [vmem:[%s166 + $0x60] sm:$0xff]
      %v187 = vld [vmem:[%s166 + $0x68] sm:$0xff]
      %v188 = vld [vmem:[%s166 + $0x70] sm:$0xff]
      %v189 = vld [vmem:[%s166 + $0x78] sm:$0xff]
      %v190 = vld [vmem:[%s1] sm:$0x1]
      %v192 = vperm.slane %v190, 0
      %v194 = vmul.f32 %v174, %v192
      %v195 = vmul.f32 %v175, %v192
      %v196 = vmul.f32 %v176, %v192
      %v197 = vmul.f32 %v177, %v192
      %v198 = vmul.f32 %v178, %v192
      %v199 = vmul.f32 %v179, %v192
      %v200 = vmul.f32 %v180, %v192
      %v201 = vmul.f32 %v181, %v192
      %v202 = vmul.f32 %v182, %v192
      %v203 = vmul.f32 %v183, %v192
      %v204 = vmul.f32 %v184, %v192
      %v205 = vmul.f32 %v185, %v192
      %v206 = vmul.f32 %v186, %v192
      %v207 = vmul.f32 %v187, %v192
      %v208 = vmul.f32 %v188, %v192
      %v209 = vmul.f32 %v189, %v192
      %v210 = vld [vmem:[%s2] sm:$0x1]
      %v212 = vperm.slane %v210, 0
      %v214 = vadd.f32 %v194, %v212
      %v215 = vadd.f32 %v195, %v212
      %v216 = vadd.f32 %v196, %v212
      %v217 = vadd.f32 %v197, %v212
      %v218 = vadd.f32 %v198, %v212
      %v219 = vadd.f32 %v199, %v212
      %v220 = vadd.f32 %v200, %v212
      %v221 = vadd.f32 %v201, %v212
      %v222 = vadd.f32 %v202, %v212
      %v223 = vadd.f32 %v203, %v212
      %v224 = vadd.f32 %v204, %v212
      %v225 = vadd.f32 %v205, %v212
      %v226 = vadd.f32 %v206, %v212
      %v227 = vadd.f32 %v207, %v212
      %v228 = vadd.f32 %v208, %v212
      %v229 = vadd.f32 %v209, %v212
      %vm230 = vcmask 64512
      %231 = vst.msk [vmem:[%s172] sm:$0xff] %vm230, %v214
      %232 = vst.msk [vmem:[%s172 + $0x8] sm:$0xff] %vm230, %v215
      %233 = vst.msk [vmem:[%s172 + $0x10] sm:$0xff] %vm230, %v216
      %234 = vst.msk [vmem:[%s172 + $0x18] sm:$0xff] %vm230, %v217
      %235 = vst.msk [vmem:[%s172 + $0x20] sm:$0xff] %vm230, %v218
      %236 = vst.msk [vmem:[%s172 + $0x28] sm:$0xff] %vm230, %v219
      %237 = vst.msk [vmem:[%s172 + $0x30] sm:$0xff] %vm230, %v220
      %238 = vst.msk [vmem:[%s172 + $0x38] sm:$0xff] %vm230, %v221
      %239 = vst.msk [vmem:[%s172 + $0x40] sm:$0xff] %vm230, %v222
      %240 = vst.msk [vmem:[%s172 + $0x48] sm:$0xff] %vm230, %v223
      %241 = vst.msk [vmem:[%s172 + $0x50] sm:$0xff] %vm230, %v224
      %242 = vst.msk [vmem:[%s172 + $0x58] sm:$0xff] %vm230, %v225
      %243 = vst.msk [vmem:[%s172 + $0x60] sm:$0xff] %vm230, %v226
      %244 = vst.msk [vmem:[%s172 + $0x68] sm:$0xff] %vm230, %v227
      %245 = vst.msk [vmem:[%s172 + $0x70] sm:$0xff] %vm230, %v228
      %246 = vst.msk [vmem:[%s172 + $0x78] sm:$0xff] %vm230, %v229
      %s247 = smul.u32 16, %s14
      %p248 = scmp.lt.s32.totalorder %s247, 31
      %s249 = scalar_select %p248, %s247, 31
      %s250 = smul.addr %s249, 8
      %s251 = scalar_lea.vmem %s3, %s250
      // Predicated region
      $region33: #{_lambda_.19} parent=31 // pred_check
        %p252 = pneg %p100
      $region34: #{_lambda_.19} parent=31 // pred_check_branch
        %254 = sbr.rel (%p252) target = $region36
      $region35: #{_lambda_.19} parent=31 // pred_region
        %s255 = smul.u32 16, %s14
      $region36: #{_lambda_.19} parent=31 // pred_fallthru
        _
    $region32: #{_lambda_.19} parent=5 // pred_fallthru
      _
    %p256 = scmp.le.s32.totalorder 2, %s9
    // Predicated region
    $region37: #{_lambda_.19} parent=5 // pred_check
      %p257 = pneg %p256
    $region38: #{_lambda_.19} parent=5 // pred_check_branch
      %259 = sbr.rel (%p257) target = $region40
    $region39: #{_lambda_.19} parent=5 // pred_region
      %s260 = ssub.s32 %s9, 2
      // Predicated region
      $region41: #{_lambda_.19} parent=39 // pred_check
        %p261 = pneg %p106
      $region42: #{_lambda_.19} parent=39 // pred_check_branch
        %263 = sbr.rel (%p261) target = $region44
      $region43: #{_lambda_.19} parent=39 // pred_region
        %s264 = smul.u32 16, %s15
        %p265 = scmp.lt.s32.totalorder %s264, 31
        %s266 = scalar_select %p265, %s264, 31
        %s267 = smul.addr %s266, 8
        %s268 = scalar_lea.vmem %s3, %s267
      $region44: #{_lambda_.19} parent=39 // pred_fallthru
        _
    $region40: #{_lambda_.19} parent=5 // pred_fallthru
      _
  $region6: #{_lambda_.19} parent=0 // loop_footer
    %s13 = sadd.s32 1, %s9
  $region7: #{_lambda_.19} parent=0 // loop_footer_branch
    %8 = sbr.rel target = $region3
  $region8: #{_lambda_.19} parent=0 // loop_exit
    _

</llo_original>
